<compile_context>
chip_gen: v7x
topology: tpu7x:2x2x1
jax: 0.10.0
libtpu: 0.0.40
codegen_flags: <defaults>
</compile_context>

<pallas_src>
import functools

import jax
import jax.numpy as jnp
from jax import lax
from jax.experimental import pallas as pl
from jax.experimental.pallas import tpu as pltpu

BN_EPS = 1e-5

# InceptionBlock channel configuration fixed by MODEL.
B1_OUT, B2_MID, B2_OUT, B3_MID, B3_OUT, B4_OUT = 10, 5, 10, 5, 10, 10
PAD = 2  # spatial border of the internal layout (enough for the 5x5 branch)


# ---------------------------------------------------------------------------
# Fused Pallas kernel: one grid step == `B` images.
# ---------------------------------------------------------------------------
def _model_kernel(x_ref, w0_ref, b0_ref,
                  w2_ref, b2_ref, w3_ref, b3_ref,
                  wfx_ref, wf2_ref, wf3_ref, bf_ref,
                  out_ref,
                  pad2_ref, pad3_ref,
                  *, H, W, Wp, off):
    HWp = H * Wp                       # flattened output-grid length (lane dim)
    base = PAD * Wp + PAD              # flat offset of spatial (0, 0) in x
    cdt = w0_ref.dtype                 # matmul operand dtype (bf16 or f32)
    B = out_ref.shape[0]               # images per grid step
    Lpad = pad2_ref.shape[-1]

    # validity mask of the internal H x Wp grid, built in-kernel (no mask DMA)
    lane = lax.broadcasted_iota(jnp.int32, (1, HWp), 1)
    valid = (lane % Wp) < W            # junk columns (>= W) are masked

    # small resident weights, loaded once per grid step
    w0 = w0_ref[...]
    b0 = b0_ref[...]
    b2 = b2_ref[...]
    b3 = b3_ref[...]
    wfx = wfx_ref[...]
    wf2 = wf2_ref[...]
    wf3 = wf3_ref[...]
    bf = bf_ref[...]

    # zero only the (aligned) scratch borders, once per grid step; the interior
    # is fully overwritten per image and junk columns carry zeros already.
    tail = Lpad - off - HWp
    pad2_ref[:, :off] = jnp.zeros((B2_MID, off), cdt)
    pad2_ref[:, off + HWp:] = jnp.zeros((B2_MID, tail), cdt)
    pad3_ref[:, :off] = jnp.zeros((B3_MID, off), cdt)
    pad3_ref[:, off + HWp:] = jnp.zeros((B3_MID, tail), cdt)

    for b in range(B):
        # ---- branch4 maxpool: 3x3/s1/p1 shifted-slice max on -inf padded x --
        m = None
        for dy in (-1, 0, 1):
            for dx in (-1, 0, 1):
                s = base + dy * Wp + dx
                sl = x_ref[b, :, s:s + HWp]          # (Cin, HWp) f32 load
                m = sl if m is None else jnp.maximum(m, sl)

        # ---- fused 1x1 stage: branch1 + branch2-mid + branch3-mid (on x) and
        #      branch4 (on maxpool) as ONE block-diagonal matmul -------------
        x_int = x_ref[b, :, base:base + HWp]         # (Cin, HWp) f32
        rhs = jnp.concatenate([x_int, m], axis=0)    # (2*Cin, HWp)
        rhs = jnp.where(valid, rhs, 0.0).astype(cdt)  # kill -inf pad columns
        y0 = jnp.tanh(
            jnp.dot(w0, rhs, preferred_element_type=jnp.float32) + b0)
        y0 = jnp.where(valid, y0, 0.0)               # junk cols -> conv 0-pad
        y0c = y0.astype(cdt)                         # (30, HWp)

        # ---- final 1x1 ConvBlock accumulator: branch1 + branch4 parts ------
        acc = jnp.dot(wfx, y0c, preferred_element_type=jnp.float32) + bf

        # ---- branch2: 3x3 conv (pad 1), shift-and-accumulate (no im2col) ---
        pad2_ref[:, off:off + HWp] = y0c[B1_OUT:B1_OUT + B2_MID]
        acc2 = jnp.zeros((B2_OUT, HWp), jnp.float32)
        for di in range(3):
            for dj in range(3):
                s = off + (di - 1) * Wp + (dj - 1)
                acc2 += jnp.dot(w2_ref[di * 3 + dj], pad2_ref[:, s:s + HWp],
                                preferred_element_type=jnp.float32)
        b2o = jnp.tanh(acc2 + b2)
        acc += jnp.dot(wf2, b2o.astype(cdt), preferred_element_type=jnp.float32)

        # ---- branch3: 5x5 conv (pad 2), shift-and-accumulate ---------------
        lo = B1_OUT + B2_MID
        pad3_ref[:, off:off + HWp] = y0c[lo:lo + B3_MID]
        acc3 = jnp.zeros((B3_OUT, HWp), jnp.float32)
        for di in range(5):
            for dj in range(5):
                s = off + (di - 2) * Wp + (dj - 2)
                acc3 += jnp.dot(w3_ref[di * 5 + dj], pad3_ref[:, s:s + HWp],
                                preferred_element_type=jnp.float32)
        b3o = jnp.tanh(acc3 + b3)
        acc += jnp.dot(wf3, b3o.astype(cdt), preferred_element_type=jnp.float32)

        # ---- final ConvBlock tanh + tail nn.Tanh, lane-dense (8,384) store --
        out_ref[b] = jnp.tanh(jnp.tanh(acc))


# ---------------------------------------------------------------------------
# Wrapper: BN folding + padded/flattened layout + pallas_call.
# ---------------------------------------------------------------------------
def _fold_convblock(w, gamma, beta, mean, var):
    """Fold eval-mode BatchNorm into conv weights -> ((O,kh,kw,I), (O,1))."""
    s = gamma / jnp.sqrt(var + BN_EPS)
    w_f = (w * s[:, None, None, None]).transpose(0, 2, 3, 1)   # (O, kh, kw, I)
    bias = (beta - mean * s)[:, None].astype(jnp.float32)      # (O, 1)
    return w_f.astype(jnp.float32), bias


def _round_up(x, m):
    return ((x + m - 1) // m) * m


def model_forward(x, params, *, compute_dtype=jnp.bfloat16, images_per_step=4):
    """MODEL.forward: tanh(ConvBlock_1x1(InceptionBlock(x))), x: (N,Cin,H,W)."""
    N, Cin, H, W = x.shape

    # lane-dense internal width: smallest Wp >= W + 2*PAD with H*Wp % 128 == 0
    Wp = W + 2 * PAD
    for cand in range(W + 2 * PAD, W + 2 * PAD + 129):
        if (H * cand) % 128 == 0:
            Wp = cand
            break
    HWp = H * Wp
    Lx = (H + 2 * PAD) * Wp
    off = _round_up(2 * Wp + 2, 128)     # aligned scratch lead (>= 5x5 reach)
    Lpad = off + HWp + off               # conv scratch length

    # batch several images per grid step (amortize per-step overhead).
    # NOTE(v7x): for large N keep (Np // B) divisible by 2 so both TCs get work.
    B = max(1, min(images_per_step, N))
    Np = pl.cdiv(N, B) * B

    xb = x.astype(jnp.float32)
    if Np != N:
        xb = jnp.concatenate(
            [xb, jnp.zeros((Np - N, Cin, H, W), jnp.float32)], axis=0)
    # -inf padded (maxpool identity), row-major flattened input
    xp = jnp.pad(xb, ((0, 0), (0, 0), (PAD, PAD), (PAD, Wp - W - PAD)),
                 constant_values=-jnp.inf).reshape(Np, Cin, Lx)

    # ---- fold BN into weights; build the fused operator matrices ----------
    w1m, b1b = _fold_convblock(*params["conv1"])
    w21m, b21b = _fold_convblock(*params["conv2_1"])
    w31m, b31b = _fold_convblock(*params["conv3_1"])
    w4m, b4b = _fold_convblock(*params["conv4"])
    w1m = w1m.reshape(B1_OUT, Cin)
    w21m = w21m.reshape(B2_MID, Cin)
    w31m = w31m.reshape(B3_MID, Cin)
    w4m = w4m.reshape(B4_OUT, Cin)

    n0 = B1_OUT + B2_MID + B3_MID + B4_OUT        # 30 rows of y0
    w0 = jnp.zeros((n0, 2 * Cin), jnp.float32)
    w0 = w0.at[:B1_OUT + B2_MID + B3_MID, :Cin].set(
        jnp.concatenate([w1m, w21m, w31m], axis=0))
    w0 = w0.at[B1_OUT + B2_MID + B3_MID:, Cin:].set(w4m)      # block-diagonal
    b0 = jnp.concatenate([b1b, b21b, b31b, b4b], axis=0)      # (30, 1)

    w2m, b2b = _fold_convblock(*params["conv2_2"])            # (10,3,3,5)
    w2t = w2m.reshape(B2_OUT, 9, B2_MID).transpose(1, 0, 2)   # (9, O, I)
    w3m, b3b = _fold_convblock(*params["conv3_2"])            # (10,5,5,5)
    w3t = w3m.reshape(B3_OUT, 25, B3_MID).transpose(1, 0, 2)  # (25, O, I)

    wfm, bfb = _fold_convblock(*params["conv_final"])
    cout = wfm.shape[0]
    wfm = wfm.reshape(cout, B1_OUT + B2_OUT + B3_OUT + B4_OUT)  # (cout, 40)
    # column blocks aligned to y0 rows [b1(10) | y2m(5) | y3m(5) | b4(10)]
    wf_ext = jnp.concatenate(
        [wfm[:, :B1_OUT],
         jnp.zeros((cout, B2_MID + B3_MID), jnp.float32),
         wfm[:, B1_OUT + B2_OUT + B3_OUT:]], axis=1)            # (cout, 30)
    wf2 = wfm[:, B1_OUT:B1_OUT + B2_OUT]
    wf3 = wfm[:, B1_OUT + B2_OUT:B1_OUT + B2_OUT + B3_OUT]

    cdt = compute_dtype
    w0c = w0.astype(cdt)
    w2c = w2t.astype(cdt)
    w3c = w3t.astype(cdt)
    wfxc = wf_ext.astype(cdt)
    wf2c = wf2.astype(cdt)
    wf3c = wf3.astype(cdt)

    kernel = functools.partial(_model_kernel, H=H, W=W, Wp=Wp, off=off)

    def _res(a):  # resident (constant across the grid) operand
        nd = a.ndim
        return pl.BlockSpec(a.shape, lambda n, _nd=nd: (0,) * _nd)

    out = pl.pallas_call(
        kernel,
        out_shape=jax.ShapeDtypeStruct((Np, cout, HWp), jnp.float32),
        grid=(Np // B,),
        in_specs=[
            pl.BlockSpec((B, Cin, Lx), lambda n: (n, 0, 0)),
            _res(w0c), _res(b0),
            _res(w2c), _res(b2b),
            _res(w3c), _res(b3b),
            _res(wfxc), _res(wf2c), _res(wf3c), _res(bfb),
        ],
        out_specs=pl.BlockSpec((B, cout, HWp), lambda n: (n, 0, 0)),
        scratch_shapes=[
            pltpu.VMEM((B2_MID, Lpad), cdt),
            pltpu.VMEM((B3_MID, Lpad), cdt),
        ],
        compiler_params=pltpu.CompilerParams(
            dimension_semantics=("parallel",),
            vmem_limit_bytes=64 * 1024 * 1024),
    )(xp, w0c, b0, w2c, b2b, w3c, b3b, wfxc, wf2c, wf3c, bfb)

    # drop padded images and the junk columns of the internal grid (XLA slice).
    return out.reshape(Np, cout, H, Wp)[:N, :, :, :W]


# ---------------------------------------------------------------------------
# Deterministic parameter init (Conv2d + eval-mode BatchNorm2d shapes).
# ---------------------------------------------------------------------------
def init_convblock_params(key, in_channels, out_channels, kernel_size):
    kw, kg, kb, km, kv = jax.random.split(key, 5)
    w = 0.1 * jax.random.normal(
        kw, (out_channels, in_channels, kernel_size, kernel_size), jnp.float32)
    gamma = 1.0 + 0.1 * jax.random.normal(kg, (out_channels,), jnp.float32)
    beta = 0.1 * jax.random.normal(kb, (out_channels,), jnp.float32)
    mean = 0.1 * jax.random.normal(km, (out_channels,), jnp.float32)
    var = 1.0 + 0.1 * jnp.abs(jax.random.normal(kv, (out_channels,), jnp.float32))
    return (w, gamma, beta, mean, var)


def init_model_params(key, in_channels, out_channels):
    keys = jax.random.split(key, 7)
    n_cat = B1_OUT + B2_OUT + B3_OUT + B4_OUT
    return {
        "conv1":      init_convblock_params(keys[0], in_channels, B1_OUT, 1),
        "conv2_1":    init_convblock_params(keys[1], in_channels, B2_MID, 1),
        "conv2_2":    init_convblock_params(keys[2], B2_MID, B2_OUT, 3),
        "conv3_1":    init_convblock_params(keys[3], in_channels, B3_MID, 1),
        "conv3_2":    init_convblock_params(keys[4], B3_MID, B3_OUT, 5),
        "conv4":      init_convblock_params(keys[5], in_channels, B4_OUT, 1),
        "conv_final": init_convblock_params(keys[6], n_cat, out_channels, 1),
    }


# ---------------------------------------------------------------------------
# Pure-JAX reference (f32) for correctness checks.
# ---------------------------------------------------------------------------
def _ref_convblock(x, params, padding):
    w, gamma, beta, mean, var = params
    y = lax.conv_general_dilated(
        x, w, window_strides=(1, 1),
        padding=[(padding, padding), (padding, padding)],
        dimension_numbers=("NCHW", "OIHW", "NCHW"))
    s = gamma / jnp.sqrt(var + BN_EPS)
    y = y * s[None, :, None, None] + (beta - mean * s)[None, :, None, None]
    return jnp.tanh(y)


def _ref_model(x, params):
    b1 = _ref_convblock(x, params["conv1"], 0)
    b2 = _ref_convblock(_ref_convblock(x, params["conv2_1"], 0),
                        params["conv2_2"], 1)
    b3 = _ref_convblock(_ref_convblock(x, params["conv3_1"], 0),
                        params["conv3_2"], 2)
    mp = lax.reduce_window(x, -jnp.inf, lax.max, (1, 1, 3, 3), (1, 1, 1, 1),
                           [(0, 0), (0, 0), (1, 1), (1, 1)])
    b4 = _ref_convblock(mp, params["conv4"], 0)
    y = jnp.concatenate([b1, b2, b3, b4], axis=1)
    y = _ref_convblock(y, params["conv_final"], 0)
    return jnp.tanh(y)


# ---------------------------------------------------------------------------
if __name__ == "__main__":
    key = jax.random.PRNGKey(0)
    kx, kp = jax.random.split(key)

    N, Cin, S = 2, 4, 16          # in_shape = (4, 16, 16)
    OUT_CH = 8                    # out_shape[0]

    x = jax.random.normal(kx, (N, Cin, S, S), jnp.float32)
    params = init_model_params(kp, Cin, OUT_CH)

    fwd_bf16 = jax.jit(functools.partial(model_forward,
                                         compute_dtype=jnp.bfloat16))
    fwd_f32 = jax.jit(functools.partial(model_forward,
                                        compute_dtype=jnp.float32))

    # optimized path: bf16 MXU operands, f32 accumulation + epilogue
    out = jax.block_until_ready(fwd_bf16(x, params))
    assert out.shape == (N, OUT_CH, S, S), out.shape
    assert bool(jnp.all(jnp.isfinite(out)))

    ref = _ref_model(x, params)

    # exact-math self check (f32 operands)
    out_f32 = jax.block_until_ready(fwd_f32(x, params))
    assert jnp.allclose(out_f32, ref, atol=2e-4, rtol=2e-4), \
        float(jnp.max(jnp.abs(out_f32 - ref)))

    # bf16-operand path vs f32 reference (loose tolerance is intentional:
    # six cascaded tanh layers with bf16 MXU operands)
    assert jnp.allclose(out, ref, atol=3e-2, rtol=3e-2), \
        float(jnp.max(jnp.abs(out - ref)))

    print("KERNEL_OK")
</pallas_src>

<mosaic_0001>
module attributes {stable_mosaic.version = 11 : i64} {
  func.func @_model_kernel(%arg0: i32, %arg1: memref<2x4x480xf32, #tpu.memory_space<vmem>>, %arg2: memref<30x8xbf16, #tpu.memory_space<vmem>>, %arg3: memref<30x1xf32, #tpu.memory_space<vmem>>, %arg4: memref<9x10x5xbf16, #tpu.memory_space<vmem>>, %arg5: memref<10x1xf32, #tpu.memory_space<vmem>>, %arg6: memref<25x10x5xbf16, #tpu.memory_space<vmem>>, %arg7: memref<10x1xf32, #tpu.memory_space<vmem>>, %arg8: memref<8x30xbf16, #tpu.memory_space<vmem>>, %arg9: memref<8x10xbf16, #tpu.memory_space<vmem>>, %arg10: memref<8x10xbf16, #tpu.memory_space<vmem>>, %arg11: memref<8x1xf32, #tpu.memory_space<vmem>>, %arg12: memref<2x8x384xf32, #tpu.memory_space<vmem>>, %arg13: memref<5x640xbf16, #tpu.memory_space<vmem>>, %arg14: memref<5x640xbf16, #tpu.memory_space<vmem>>) attributes {dimension_semantics = [#tpu.dimension_semantics<parallel>], iteration_bounds = array<i64: 1>, scalar_prefetch = 0 : i64, scratch_operands = 2 : i64, tpu.core_type = #tpu.core_type<tc>, window_params = [{transform_indices = @transform_0, window_bounds = array<i64: 2, 4, 480>}, {pipeline_mode = #tpu.pipeline_mode<synchronous>, transform_indices = @transform_1, window_bounds = array<i64: 30, 8>}, {pipeline_mode = #tpu.pipeline_mode<synchronous>, transform_indices = @transform_2, window_bounds = array<i64: 30, 1>}, {pipeline_mode = #tpu.pipeline_mode<synchronous>, transform_indices = @transform_3, window_bounds = array<i64: 9, 10, 5>}, {pipeline_mode = #tpu.pipeline_mode<synchronous>, transform_indices = @transform_4, window_bounds = array<i64: 10, 1>}, {pipeline_mode = #tpu.pipeline_mode<synchronous>, transform_indices = @transform_5, window_bounds = array<i64: 25, 10, 5>}, {pipeline_mode = #tpu.pipeline_mode<synchronous>, transform_indices = @transform_6, window_bounds = array<i64: 10, 1>}, {pipeline_mode = #tpu.pipeline_mode<synchronous>, transform_indices = @transform_7, window_bounds = array<i64: 8, 30>}, {pipeline_mode = #tpu.pipeline_mode<synchronous>, transform_indices = @transform_8, window_bounds = array<i64: 8, 10>}, {pipeline_mode = #tpu.pipeline_mode<synchronous>, transform_indices = @transform_9, window_bounds = array<i64: 8, 10>}, {pipeline_mode = #tpu.pipeline_mode<synchronous>, transform_indices = @transform_10, window_bounds = array<i64: 8, 1>}, {transform_indices = @transform_11, window_bounds = array<i64: 2, 8, 384>}]} {
    %0 = tpu.iota {dimensions = array<i32: 1>} : vector<1x384xi32>
    %c24_i32 = arith.constant 24 : i32
    %c0_i32 = arith.constant 0 : i32
    %1 = arith.cmpi eq, %c24_i32, %c0_i32 : i32
    %c1_i32 = arith.constant 1 : i32
    %2 = arith.select %1, %c1_i32, %c24_i32 : i32
    %3 = vector.broadcast %2 : i32 to vector<1x384xi32>
    %4 = arith.remsi %0, %3 : vector<1x384xi32>
    %c0_i32_0 = arith.constant 0 : i32
    %5 = vector.broadcast %c0_i32_0 : i32 to vector<1x384xi32>
    %6 = arith.cmpi ne, %4, %5 : vector<1x384xi32>
    %c0_i32_1 = arith.constant 0 : i32
    %7 = vector.broadcast %c0_i32_1 : i32 to vector<1x384xi32>
    %8 = arith.cmpi slt, %4, %7 : vector<1x384xi32>
    %c0_i32_2 = arith.constant 0 : i32
    %9 = arith.cmpi slt, %2, %c0_i32_2 : i32
    %10 = vector.broadcast %9 : i1 to vector<1x384xi1>
    %11 = vector.broadcast %10 : vector<1x384xi1> to vector<1x384xi1>
    %12 = arith.xori %8, %11 : vector<1x384xi1>
    %13 = arith.andi %12, %6 : vector<1x384xi1>
    %14 = vector.broadcast %2 : i32 to vector<1x384xi32>
    %15 = arith.addi %4, %14 : vector<1x384xi32>
    %16 = arith.select %13, %15, %4 : vector<1x384xi1>, vector<1x384xi32>
    %c16_i32 = arith.constant 16 : i32
    %17 = vector.broadcast %c16_i32 : i32 to vector<1x384xi32>
    %18 = arith.cmpi slt, %16, %17 : vector<1x384xi32>
    %c0 = arith.constant 0 : index
    %c0_3 = arith.constant 0 : index
    %19 = vector.load %arg2[%c0, %c0_3] : memref<30x8xbf16, #tpu.memory_space<vmem>>, vector<30x8xbf16>
    %c0_4 = arith.constant 0 : index
    %c0_5 = arith.constant 0 : index
    %20 = vector.load %arg3[%c0_4, %c0_5] : memref<30x1xf32, #tpu.memory_space<vmem>>, vector<30x1xf32>
    %c0_6 = arith.constant 0 : index
    %c0_7 = arith.constant 0 : index
    %21 = vector.load %arg5[%c0_6, %c0_7] : memref<10x1xf32, #tpu.memory_space<vmem>>, vector<10x1xf32>
    %c0_8 = arith.constant 0 : index
    %c0_9 = arith.constant 0 : index
    %22 = vector.load %arg7[%c0_8, %c0_9] : memref<10x1xf32, #tpu.memory_space<vmem>>, vector<10x1xf32>
    %c0_10 = arith.constant 0 : index
    %c0_11 = arith.constant 0 : index
    %23 = vector.load %arg8[%c0_10, %c0_11] : memref<8x30xbf16, #tpu.memory_space<vmem>>, vector<8x30xbf16>
    %c0_12 = arith.constant 0 : index
    %c0_13 = arith.constant 0 : index
    %24 = vector.load %arg9[%c0_12, %c0_13] : memref<8x10xbf16, #tpu.memory_space<vmem>>, vector<8x10xbf16>
    %c0_14 = arith.constant 0 : index
    %c0_15 = arith.constant 0 : index
    %25 = vector.load %arg10[%c0_14, %c0_15] : memref<8x10xbf16, #tpu.memory_space<vmem>>, vector<8x10xbf16>
    %c0_16 = arith.constant 0 : index
    %c0_17 = arith.constant 0 : index
    %26 = vector.load %arg11[%c0_16, %c0_17] : memref<8x1xf32, #tpu.memory_space<vmem>>, vector<8x1xf32>
    %cst = arith.constant 0.000000e+00 : bf16
    %27 = vector.broadcast %cst : bf16 to vector<5x128xbf16>
    %c0_18 = arith.constant 0 : index
    %c0_19 = arith.constant 0 : index
    %28 = vector.load %arg13[%c0_18, %c0_19] : memref<5x640xbf16, #tpu.memory_space<vmem>>, vector<5x128xbf16>
    tpu.vector_store %arg13[%c0_18, %c0_19], %27 {strides = array<i32>} : memref<5x640xbf16, #tpu.memory_space<vmem>>, vector<5x128xbf16>,
    %cst_20 = arith.constant 0.000000e+00 : bf16
    %29 = vector.broadcast %cst_20 : bf16 to vector<5x128xbf16>
    %c0_21 = arith.constant 0 : index
    %c512 = arith.constant 512 : index
    %30 = vector.load %arg13[%c0_21, %c512] : memref<5x640xbf16, #tpu.memory_space<vmem>>, vector<5x128xbf16>
    tpu.vector_store %arg13[%c0_21, %c512], %29 {strides = array<i32>} : memref<5x640xbf16, #tpu.memory_space<vmem>>, vector<5x128xbf16>,
    %cst_22 = arith.constant 0.000000e+00 : bf16
    %31 = vector.broadcast %cst_22 : bf16 to vector<5x128xbf16>
    %c0_23 = arith.constant 0 : index
    %c0_24 = arith.constant 0 : index
    %32 = vector.load %arg14[%c0_23, %c0_24] : memref<5x640xbf16, #tpu.memory_space<vmem>>, vector<5x128xbf16>
    tpu.vector_store %arg14[%c0_23, %c0_24], %31 {strides = array<i32>} : memref<5x640xbf16, #tpu.memory_space<vmem>>, vector<5x128xbf16>,
    %cst_25 = arith.constant 0.000000e+00 : bf16
    %33 = vector.broadcast %cst_25 : bf16 to vector<5x128xbf16>
    %c0_26 = arith.constant 0 : index
    %c512_27 = arith.constant 512 : index
    %34 = vector.load %arg14[%c0_26, %c512_27] : memref<5x640xbf16, #tpu.memory_space<vmem>>, vector<5x128xbf16>
    tpu.vector_store %arg14[%c0_26, %c512_27], %33 {strides = array<i32>} : memref<5x640xbf16, #tpu.memory_space<vmem>>, vector<5x128xbf16>,
    %c0_28 = arith.constant 0 : index
    %c0_29 = arith.constant 0 : index
    %c25 = arith.constant 25 : index
    %35 = vector.load %arg1[%c0_28, %c0_29, %c25] : memref<2x4x480xf32, #tpu.memory_space<vmem>>, vector<1x4x384xf32>
    %36 = vector.shape_cast %35 : vector<1x4x384xf32> to vector<4x384xf32>
    %c0_30 = arith.constant 0 : index
    %c0_31 = arith.constant 0 : index
    %c26 = arith.constant 26 : index
    %37 = vector.load %arg1[%c0_30, %c0_31, %c26] : memref<2x4x480xf32, #tpu.memory_space<vmem>>, vector<1x4x384xf32>
    %38 = vector.shape_cast %37 : vector<1x4x384xf32> to vector<4x384xf32>
    %39 = arith.maximumf %36, %38 : vector<4x384xf32>
    %c0_32 = arith.constant 0 : index
    %c0_33 = arith.constant 0 : index
    %c27 = arith.constant 27 : index
    %40 = vector.load %arg1[%c0_32, %c0_33, %c27] : memref<2x4x480xf32, #tpu.memory_space<vmem>>, vector<1x4x384xf32>
    %41 = vector.shape_cast %40 : vector<1x4x384xf32> to vector<4x384xf32>
    %42 = arith.maximumf %39, %41 : vector<4x384xf32>
    %c0_34 = arith.constant 0 : index
    %c0_35 = arith.constant 0 : index
    %c49 = arith.constant 49 : index
    %43 = vector.load %arg1[%c0_34, %c0_35, %c49] : memref<2x4x480xf32, #tpu.memory_space<vmem>>, vector<1x4x384xf32>
    %44 = vector.shape_cast %43 : vector<1x4x384xf32> to vector<4x384xf32>
    %45 = arith.maximumf %42, %44 : vector<4x384xf32>
    %c0_36 = arith.constant 0 : index
    %c0_37 = arith.constant 0 : index
    %c50 = arith.constant 50 : index
    %46 = vector.load %arg1[%c0_36, %c0_37, %c50] : memref<2x4x480xf32, #tpu.memory_space<vmem>>, vector<1x4x384xf32>
    %47 = vector.shape_cast %46 : vector<1x4x384xf32> to vector<4x384xf32>
    %48 = arith.maximumf %45, %47 : vector<4x384xf32>
    %c0_38 = arith.constant 0 : index
    %c0_39 = arith.constant 0 : index
    %c51 = arith.constant 51 : index
    %49 = vector.load %arg1[%c0_38, %c0_39, %c51] : memref<2x4x480xf32, #tpu.memory_space<vmem>>, vector<1x4x384xf32>
    %50 = vector.shape_cast %49 : vector<1x4x384xf32> to vector<4x384xf32>
    %51 = arith.maximumf %48, %50 : vector<4x384xf32>
    %c0_40 = arith.constant 0 : index
    %c0_41 = arith.constant 0 : index
    %c73 = arith.constant 73 : index
    %52 = vector.load %arg1[%c0_40, %c0_41, %c73] : memref<2x4x480xf32, #tpu.memory_space<vmem>>, vector<1x4x384xf32>
    %53 = vector.shape_cast %52 : vector<1x4x384xf32> to vector<4x384xf32>
    %54 = arith.maximumf %51, %53 : vector<4x384xf32>
    %c0_42 = arith.constant 0 : index
    %c0_43 = arith.constant 0 : index
    %c74 = arith.constant 74 : index
    %55 = vector.load %arg1[%c0_42, %c0_43, %c74] : memref<2x4x480xf32, #tpu.memory_space<vmem>>, vector<1x4x384xf32>
    %56 = vector.shape_cast %55 : vector<1x4x384xf32> to vector<4x384xf32>
    %57 = arith.maximumf %54, %56 : vector<4x384xf32>
    %c0_44 = arith.constant 0 : index
    %c0_45 = arith.constant 0 : index
    %c75 = arith.constant 75 : index
    %58 = vector.load %arg1[%c0_44, %c0_45, %c75] : memref<2x4x480xf32, #tpu.memory_space<vmem>>, vector<1x4x384xf32>
    %59 = vector.shape_cast %58 : vector<1x4x384xf32> to vector<4x384xf32>
    %60 = arith.maximumf %57, %59 : vector<4x384xf32>
    %c0_46 = arith.constant 0 : index
    %c0_47 = arith.constant 0 : index
    %c50_48 = arith.constant 50 : index
    %61 = vector.load %arg1[%c0_46, %c0_47, %c50_48] : memref<2x4x480xf32, #tpu.memory_space<vmem>>, vector<1x4x384xf32>
    %62 = vector.shape_cast %61 : vector<1x4x384xf32> to vector<4x384xf32>
    %63 = tpu.concatenate %62, %60 in 0 : vector<4x384xf32>, vector<4x384xf32> -> vector<8x384xf32>
    %cst_49 = arith.constant 0.000000e+00 : f32
    %64 = vector.shape_cast %18 : vector<1x384xi1> to vector<1x384xi1>
    %65 = vector.broadcast %64 : vector<1x384xi1> to vector<8x384xi1>
    %66 = vector.broadcast %cst_49 : f32 to vector<8x384xf32>
    %67 = arith.select %65, %63, %66 : vector<8x384xi1>, vector<8x384xf32>
    %68 = arith.truncf %67 : vector<8x384xf32> to vector<8x384xbf16>
    %cst_50 = arith.constant dense<0.000000e+00> : vector<30x384xf32>
    %69 = tpu.matmul %19, %68, %cst_50 {dimension_numbers = #tpu.dot_dimension_numbers<[1], [0], [0], [1], [0, 0, 1, 1], [], []>} : vector<30x8xbf16>, vector<8x384xbf16>, vector<30x384xf32> -> vector<30x384xf32>
    %70 = vector.broadcast %20 : vector<30x1xf32> to vector<30x384xf32>
    %71 = arith.addf %69, %70 : vector<30x384xf32>
    %72 = math.tanh %71 : vector<30x384xf32>
    %cst_51 = arith.constant 0.000000e+00 : f32
    %73 = vector.shape_cast %18 : vector<1x384xi1> to vector<1x384xi1>
    %74 = vector.broadcast %73 : vector<1x384xi1> to vector<30x384xi1>
    %75 = vector.broadcast %cst_51 : f32 to vector<30x384xf32>
    %76 = arith.select %74, %72, %75 : vector<30x384xi1>, vector<30x384xf32>
    %77 = arith.truncf %76 : vector<30x384xf32> to vector<30x384xbf16>
    %cst_52 = arith.constant dense<0.000000e+00> : vector<8x384xf32>
    %78 = tpu.matmul %23, %77, %cst_52 {dimension_numbers = #tpu.dot_dimension_numbers<[1], [0], [0], [1], [0, 0, 1, 1], [], []>} : vector<8x30xbf16>, vector<30x384xbf16>, vector<8x384xf32> -> vector<8x384xf32>
    %79 = vector.broadcast %26 : vector<8x1xf32> to vector<8x384xf32>
    %80 = arith.addf %78, %79 : vector<8x384xf32>
    %81 = vector.extract_strided_slice %77 {offsets = [10, 0], sizes = [5, 384], strides = [1, 1]} : vector<30x384xbf16> to vector<5x384xbf16>
    %c0_53 = arith.constant 0 : index
    %c128 = arith.constant 128 : index
    %82 = vector.load %arg13[%c0_53, %c128] : memref<5x640xbf16, #tpu.memory_space<vmem>>, vector<5x384xbf16>
    tpu.vector_store %arg13[%c0_53, %c128], %81 {strides = array<i32>} : memref<5x640xbf16, #tpu.memory_space<vmem>>, vector<5x384xbf16>,
    %cst_54 = arith.constant 0.000000e+00 : f32
    %83 = vector.broadcast %cst_54 : f32 to vector<10x384xf32>
    %c0_55 = arith.constant 0 : index
    %c0_56 = arith.constant 0 : index
    %c0_57 = arith.constant 0 : index
    %84 = vector.load %arg4[%c0_55, %c0_56, %c0_57] : memref<9x10x5xbf16, #tpu.memory_space<vmem>>, vector<1x10x5xbf16>
    %85 = vector.shape_cast %84 : vector<1x10x5xbf16> to vector<10x5xbf16>
    %c0_58 = arith.constant 0 : index
    %c103 = arith.constant 103 : index
    %86 = vector.load %arg13[%c0_58, %c103] : memref<5x640xbf16, #tpu.memory_space<vmem>>, vector<5x384xbf16>
    %cst_59 = arith.constant dense<0.000000e+00> : vector<10x384xf32>
    %87 = tpu.matmul %85, %86, %cst_59 {dimension_numbers = #tpu.dot_dimension_numbers<[1], [0], [0], [1], [0, 0, 1, 1], [], []>} : vector<10x5xbf16>, vector<5x384xbf16>, vector<10x384xf32> -> vector<10x384xf32>
    %88 = arith.addf %83, %87 : vector<10x384xf32>
    %c1 = arith.constant 1 : index
    %c0_60 = arith.constant 0 : index
    %c0_61 = arith.constant 0 : index
    %89 = vector.load %arg4[%c1, %c0_60, %c0_61] : memref<9x10x5xbf16, #tpu.memory_space<vmem>>, vector<1x10x5xbf16>
    %90 = vector.shape_cast %89 : vector<1x10x5xbf16> to vector<10x5xbf16>
    %c0_62 = arith.constant 0 : index
    %c104 = arith.constant 104 : index
    %91 = vector.load %arg13[%c0_62, %c104] : memref<5x640xbf16, #tpu.memory_space<vmem>>, vector<5x384xbf16>
    %cst_63 = arith.constant dense<0.000000e+00> : vector<10x384xf32>
    %92 = tpu.matmul %90, %91, %cst_63 {dimension_numbers = #tpu.dot_dimension_numbers<[1], [0], [0], [1], [0, 0, 1, 1], [], []>} : vector<10x5xbf16>, vector<5x384xbf16>, vector<10x384xf32> -> vector<10x384xf32>
    %93 = arith.addf %88, %92 : vector<10x384xf32>
    %c2 = arith.constant 2 : index
    %c0_64 = arith.constant 0 : index
    %c0_65 = arith.constant 0 : index
    %94 = vector.load %arg4[%c2, %c0_64, %c0_65] : memref<9x10x5xbf16, #tpu.memory_space<vmem>>, vector<1x10x5xbf16>
    %95 = vector.shape_cast %94 : vector<1x10x5xbf16> to vector<10x5xbf16>
    %c0_66 = arith.constant 0 : index
    %c105 = arith.constant 105 : index
    %96 = vector.load %arg13[%c0_66, %c105] : memref<5x640xbf16, #tpu.memory_space<vmem>>, vector<5x384xbf16>
    %cst_67 = arith.constant dense<0.000000e+00> : vector<10x384xf32>
    %97 = tpu.matmul %95, %96, %cst_67 {dimension_numbers = #tpu.dot_dimension_numbers<[1], [0], [0], [1], [0, 0, 1, 1], [], []>} : vector<10x5xbf16>, vector<5x384xbf16>, vector<10x384xf32> -> vector<10x384xf32>
    %98 = arith.addf %93, %97 : vector<10x384xf32>
    %c3 = arith.constant 3 : index
    %c0_68 = arith.constant 0 : index
    %c0_69 = arith.constant 0 : index
    %99 = vector.load %arg4[%c3, %c0_68, %c0_69] : memref<9x10x5xbf16, #tpu.memory_space<vmem>>, vector<1x10x5xbf16>
    %100 = vector.shape_cast %99 : vector<1x10x5xbf16> to vector<10x5xbf16>
    %c0_70 = arith.constant 0 : index
    %c127 = arith.constant 127 : index
    %101 = vector.load %arg13[%c0_70, %c127] : memref<5x640xbf16, #tpu.memory_space<vmem>>, vector<5x384xbf16>
    %cst_71 = arith.constant dense<0.000000e+00> : vector<10x384xf32>
    %102 = tpu.matmul %100, %101, %cst_71 {dimension_numbers = #tpu.dot_dimension_numbers<[1], [0], [0], [1], [0, 0, 1, 1], [], []>} : vector<10x5xbf16>, vector<5x384xbf16>, vector<10x384xf32> -> vector<10x384xf32>
    %103 = arith.addf %98, %102 : vector<10x384xf32>
    %c4 = arith.constant 4 : index
    %c0_72 = arith.constant 0 : index
    %c0_73 = arith.constant 0 : index
    %104 = vector.load %arg4[%c4, %c0_72, %c0_73] : memref<9x10x5xbf16, #tpu.memory_space<vmem>>, vector<1x10x5xbf16>
    %105 = vector.shape_cast %104 : vector<1x10x5xbf16> to vector<10x5xbf16>
    %c0_74 = arith.constant 0 : index
    %c128_75 = arith.constant 128 : index
    %106 = vector.load %arg13[%c0_74, %c128_75] : memref<5x640xbf16, #tpu.memory_space<vmem>>, vector<5x384xbf16>
    %cst_76 = arith.constant dense<0.000000e+00> : vector<10x384xf32>
    %107 = tpu.matmul %105, %106, %cst_76 {dimension_numbers = #tpu.dot_dimension_numbers<[1], [0], [0], [1], [0, 0, 1, 1], [], []>} : vector<10x5xbf16>, vector<5x384xbf16>, vector<10x384xf32> -> vector<10x384xf32>
    %108 = arith.addf %103, %107 : vector<10x384xf32>
    %c5 = arith.constant 5 : index
    %c0_77 = arith.constant 0 : index
    %c0_78 = arith.constant 0 : index
    %109 = vector.load %arg4[%c5, %c0_77, %c0_78] : memref<9x10x5xbf16, #tpu.memory_space<vmem>>, vector<1x10x5xbf16>
    %110 = vector.shape_cast %109 : vector<1x10x5xbf16> to vector<10x5xbf16>
    %c0_79 = arith.constant 0 : index
    %c129 = arith.constant 129 : index
    %111 = vector.load %arg13[%c0_79, %c129] : memref<5x640xbf16, #tpu.memory_space<vmem>>, vector<5x384xbf16>
    %cst_80 = arith.constant dense<0.000000e+00> : vector<10x384xf32>
    %112 = tpu.matmul %110, %111, %cst_80 {dimension_numbers = #tpu.dot_dimension_numbers<[1], [0], [0], [1], [0, 0, 1, 1], [], []>} : vector<10x5xbf16>, vector<5x384xbf16>, vector<10x384xf32> -> vector<10x384xf32>
    %113 = arith.addf %108, %112 : vector<10x384xf32>
    %c6 = arith.constant 6 : index
    %c0_81 = arith.constant 0 : index
    %c0_82 = arith.constant 0 : index
    %114 = vector.load %arg4[%c6, %c0_81, %c0_82] : memref<9x10x5xbf16, #tpu.memory_space<vmem>>, vector<1x10x5xbf16>
    %115 = vector.shape_cast %114 : vector<1x10x5xbf16> to vector<10x5xbf16>
    %c0_83 = arith.constant 0 : index
    %c151 = arith.constant 151 : index
    %116 = vector.load %arg13[%c0_83, %c151] : memref<5x640xbf16, #tpu.memory_space<vmem>>, vector<5x384xbf16>
    %cst_84 = arith.constant dense<0.000000e+00> : vector<10x384xf32>
    %117 = tpu.matmul %115, %116, %cst_84 {dimension_numbers = #tpu.dot_dimension_numbers<[1], [0], [0], [1], [0, 0, 1, 1], [], []>} : vector<10x5xbf16>, vector<5x384xbf16>, vector<10x384xf32> -> vector<10x384xf32>
    %118 = arith.addf %113, %117 : vector<10x384xf32>
    %c7 = arith.constant 7 : index
    %c0_85 = arith.constant 0 : index
    %c0_86 = arith.constant 0 : index
    %119 = vector.load %arg4[%c7, %c0_85, %c0_86] : memref<9x10x5xbf16, #tpu.memory_space<vmem>>, vector<1x10x5xbf16>
    %120 = vector.shape_cast %119 : vector<1x10x5xbf16> to vector<10x5xbf16>
    %c0_87 = arith.constant 0 : index
    %c152 = arith.constant 152 : index
    %121 = vector.load %arg13[%c0_87, %c152] : memref<5x640xbf16, #tpu.memory_space<vmem>>, vector<5x384xbf16>
    %cst_88 = arith.constant dense<0.000000e+00> : vector<10x384xf32>
    %122 = tpu.matmul %120, %121, %cst_88 {dimension_numbers = #tpu.dot_dimension_numbers<[1], [0], [0], [1], [0, 0, 1, 1], [], []>} : vector<10x5xbf16>, vector<5x384xbf16>, vector<10x384xf32> -> vector<10x384xf32>
    %123 = arith.addf %118, %122 : vector<10x384xf32>
    %c8 = arith.constant 8 : index
    %c0_89 = arith.constant 0 : index
    %c0_90 = arith.constant 0 : index
    %124 = vector.load %arg4[%c8, %c0_89, %c0_90] : memref<9x10x5xbf16, #tpu.memory_space<vmem>>, vector<1x10x5xbf16>
    %125 = vector.shape_cast %124 : vector<1x10x5xbf16> to vector<10x5xbf16>
    %c0_91 = arith.constant 0 : index
    %c153 = arith.constant 153 : index
    %126 = vector.load %arg13[%c0_91, %c153] : memref<5x640xbf16, #tpu.memory_space<vmem>>, vector<5x384xbf16>
    %cst_92 = arith.constant dense<0.000000e+00> : vector<10x384xf32>
    %127 = tpu.matmul %125, %126, %cst_92 {dimension_numbers = #tpu.dot_dimension_numbers<[1], [0], [0], [1], [0, 0, 1, 1], [], []>} : vector<10x5xbf16>, vector<5x384xbf16>, vector<10x384xf32> -> vector<10x384xf32>
    %128 = arith.addf %123, %127 : vector<10x384xf32>
    %129 = vector.broadcast %21 : vector<10x1xf32> to vector<10x384xf32>
    %130 = arith.addf %128, %129 : vector<10x384xf32>
    %131 = math.tanh %130 : vector<10x384xf32>
    %132 = arith.truncf %131 : vector<10x384xf32> to vector<10x384xbf16>
    %cst_93 = arith.constant dense<0.000000e+00> : vector<8x384xf32>
    %133 = tpu.matmul %24, %132, %cst_93 {dimension_numbers = #tpu.dot_dimension_numbers<[1], [0], [0], [1], [0, 0, 1, 1], [], []>} : vector<8x10xbf16>, vector<10x384xbf16>, vector<8x384xf32> -> vector<8x384xf32>
    %134 = arith.addf %80, %133 : vector<8x384xf32>
    %135 = vector.extract_strided_slice %77 {offsets = [15, 0], sizes = [5, 384], strides = [1, 1]} : vector<30x384xbf16> to vector<5x384xbf16>
    %c0_94 = arith.constant 0 : index
    %c128_95 = arith.constant 128 : index
    %136 = vector.load %arg14[%c0_94, %c128_95] : memref<5x640xbf16, #tpu.memory_space<vmem>>, vector<5x384xbf16>
    tpu.vector_store %arg14[%c0_94, %c128_95], %135 {strides = array<i32>} : memref<5x640xbf16, #tpu.memory_space<vmem>>, vector<5x384xbf16>,
    %cst_96 = arith.constant 0.000000e+00 : f32
    %137 = vector.broadcast %cst_96 : f32 to vector<10x384xf32>
    %c0_97 = arith.constant 0 : index
    %c0_98 = arith.constant 0 : index
    %c0_99 = arith.constant 0 : index
    %138 = vector.load %arg6[%c0_97, %c0_98, %c0_99] : memref<25x10x5xbf16, #tpu.memory_space<vmem>>, vector<1x10x5xbf16>
    %139 = vector.shape_cast %138 : vector<1x10x5xbf16> to vector<10x5xbf16>
    %c0_100 = arith.constant 0 : index
    %c78 = arith.constant 78 : index
    %140 = vector.load %arg14[%c0_100, %c78] : memref<5x640xbf16, #tpu.memory_space<vmem>>, vector<5x384xbf16>
    %cst_101 = arith.constant dense<0.000000e+00> : vector<10x384xf32>
    %141 = tpu.matmul %139, %140, %cst_101 {dimension_numbers = #tpu.dot_dimension_numbers<[1], [0], [0], [1], [0, 0, 1, 1], [], []>} : vector<10x5xbf16>, vector<5x384xbf16>, vector<10x384xf32> -> vector<10x384xf32>
    %142 = arith.addf %137, %141 : vector<10x384xf32>
    %c1_102 = arith.constant 1 : index
    %c0_103 = arith.constant 0 : index
    %c0_104 = arith.constant 0 : index
    %143 = vector.load %arg6[%c1_102, %c0_103, %c0_104] : memref<25x10x5xbf16, #tpu.memory_space<vmem>>, vector<1x10x5xbf16>
    %144 = vector.shape_cast %143 : vector<1x10x5xbf16> to vector<10x5xbf16>
    %c0_105 = arith.constant 0 : index
    %c79 = arith.constant 79 : index
    %145 = vector.load %arg14[%c0_105, %c79] : memref<5x640xbf16, #tpu.memory_space<vmem>>, vector<5x384xbf16>
    %cst_106 = arith.constant dense<0.000000e+00> : vector<10x384xf32>
    %146 = tpu.matmul %144, %145, %cst_106 {dimension_numbers = #tpu.dot_dimension_numbers<[1], [0], [0], [1], [0, 0, 1, 1], [], []>} : vector<10x5xbf16>, vector<5x384xbf16>, vector<10x384xf32> -> vector<10x384xf32>
    %147 = arith.addf %142, %146 : vector<10x384xf32>
    %c2_107 = arith.constant 2 : index
    %c0_108 = arith.constant 0 : index
    %c0_109 = arith.constant 0 : index
    %148 = vector.load %arg6[%c2_107, %c0_108, %c0_109] : memref<25x10x5xbf16, #tpu.memory_space<vmem>>, vector<1x10x5xbf16>
    %149 = vector.shape_cast %148 : vector<1x10x5xbf16> to vector<10x5xbf16>
    %c0_110 = arith.constant 0 : index
    %c80 = arith.constant 80 : index
    %150 = vector.load %arg14[%c0_110, %c80] : memref<5x640xbf16, #tpu.memory_space<vmem>>, vector<5x384xbf16>
    %cst_111 = arith.constant dense<0.000000e+00> : vector<10x384xf32>
    %151 = tpu.matmul %149, %150, %cst_111 {dimension_numbers = #tpu.dot_dimension_numbers<[1], [0], [0], [1], [0, 0, 1, 1], [], []>} : vector<10x5xbf16>, vector<5x384xbf16>, vector<10x384xf32> -> vector<10x384xf32>
    %152 = arith.addf %147, %151 : vector<10x384xf32>
    %c3_112 = arith.constant 3 : index
    %c0_113 = arith.constant 0 : index
    %c0_114 = arith.constant 0 : index
    %153 = vector.load %arg6[%c3_112, %c0_113, %c0_114] : memref<25x10x5xbf16, #tpu.memory_space<vmem>>, vector<1x10x5xbf16>
    %154 = vector.shape_cast %153 : vector<1x10x5xbf16> to vector<10x5xbf16>
    %c0_115 = arith.constant 0 : index
    %c81 = arith.constant 81 : index
    %155 = vector.load %arg14[%c0_115, %c81] : memref<5x640xbf16, #tpu.memory_space<vmem>>, vector<5x384xbf16>
    %cst_116 = arith.constant dense<0.000000e+00> : vector<10x384xf32>
    %156 = tpu.matmul %154, %155, %cst_116 {dimension_numbers = #tpu.dot_dimension_numbers<[1], [0], [0], [1], [0, 0, 1, 1], [], []>} : vector<10x5xbf16>, vector<5x384xbf16>, vector<10x384xf32> -> vector<10x384xf32>
    %157 = arith.addf %152, %156 : vector<10x384xf32>
    %c4_117 = arith.constant 4 : index
    %c0_118 = arith.constant 0 : index
    %c0_119 = arith.constant 0 : index
    %158 = vector.load %arg6[%c4_117, %c0_118, %c0_119] : memref<25x10x5xbf16, #tpu.memory_space<vmem>>, vector<1x10x5xbf16>
    %159 = vector.shape_cast %158 : vector<1x10x5xbf16> to vector<10x5xbf16>
    %c0_120 = arith.constant 0 : index
    %c82 = arith.constant 82 : index
    %160 = vector.load %arg14[%c0_120, %c82] : memref<5x640xbf16, #tpu.memory_space<vmem>>, vector<5x384xbf16>
    %cst_121 = arith.constant dense<0.000000e+00> : vector<10x384xf32>
    %161 = tpu.matmul %159, %160, %cst_121 {dimension_numbers = #tpu.dot_dimension_numbers<[1], [0], [0], [1], [0, 0, 1, 1], [], []>} : vector<10x5xbf16>, vector<5x384xbf16>, vector<10x384xf32> -> vector<10x384xf32>
    %162 = arith.addf %157, %161 : vector<10x384xf32>
    %c5_122 = arith.constant 5 : index
    %c0_123 = arith.constant 0 : index
    %c0_124 = arith.constant 0 : index
    %163 = vector.load %arg6[%c5_122, %c0_123, %c0_124] : memref<25x10x5xbf16, #tpu.memory_space<vmem>>, vector<1x10x5xbf16>
    %164 = vector.shape_cast %163 : vector<1x10x5xbf16> to vector<10x5xbf16>
    %c0_125 = arith.constant 0 : index
    %c102 = arith.constant 102 : index
    %165 = vector.load %arg14[%c0_125, %c102] : memref<5x640xbf16, #tpu.memory_space<vmem>>, vector<5x384xbf16>
    %cst_126 = arith.constant dense<0.000000e+00> : vector<10x384xf32>
    %166 = tpu.matmul %164, %165, %cst_126 {dimension_numbers = #tpu.dot_dimension_numbers<[1], [0], [0], [1], [0, 0, 1, 1], [], []>} : vector<10x5xbf16>, vector<5x384xbf16>, vector<10x384xf32> -> vector<10x384xf32>
    %167 = arith.addf %162, %166 : vector<10x384xf32>
    %c6_127 = arith.constant 6 : index
    %c0_128 = arith.constant 0 : index
    %c0_129 = arith.constant 0 : index
    %168 = vector.load %arg6[%c6_127, %c0_128, %c0_129] : memref<25x10x5xbf16, #tpu.memory_space<vmem>>, vector<1x10x5xbf16>
    %169 = vector.shape_cast %168 : vector<1x10x5xbf16> to vector<10x5xbf16>
    %c0_130 = arith.constant 0 : index
    %c103_131 = arith.constant 103 : index
    %170 = vector.load %arg14[%c0_130, %c103_131] : memref<5x640xbf16, #tpu.memory_space<vmem>>, vector<5x384xbf16>
    %cst_132 = arith.constant dense<0.000000e+00> : vector<10x384xf32>
    %171 = tpu.matmul %169, %170, %cst_132 {dimension_numbers = #tpu.dot_dimension_numbers<[1], [0], [0], [1], [0, 0, 1, 1], [], []>} : vector<10x5xbf16>, vector<5x384xbf16>, vector<10x384xf32> -> vector<10x384xf32>
    %172 = arith.addf %167, %171 : vector<10x384xf32>
    %c7_133 = arith.constant 7 : index
    %c0_134 = arith.constant 0 : index
    %c0_135 = arith.constant 0 : index
    %173 = vector.load %arg6[%c7_133, %c0_134, %c0_135] : memref<25x10x5xbf16, #tpu.memory_space<vmem>>, vector<1x10x5xbf16>
    %174 = vector.shape_cast %173 : vector<1x10x5xbf16> to vector<10x5xbf16>
    %c0_136 = arith.constant 0 : index
    %c104_137 = arith.constant 104 : index
    %175 = vector.load %arg14[%c0_136, %c104_137] : memref<5x640xbf16, #tpu.memory_space<vmem>>, vector<5x384xbf16>
    %cst_138 = arith.constant dense<0.000000e+00> : vector<10x384xf32>
    %176 = tpu.matmul %174, %175, %cst_138 {dimension_numbers = #tpu.dot_dimension_numbers<[1], [0], [0], [1], [0, 0, 1, 1], [], []>} : vector<10x5xbf16>, vector<5x384xbf16>, vector<10x384xf32> -> vector<10x384xf32>
    %177 = arith.addf %172, %176 : vector<10x384xf32>
    %c8_139 = arith.constant 8 : index
    %c0_140 = arith.constant 0 : index
    %c0_141 = arith.constant 0 : index
    %178 = vector.load %arg6[%c8_139, %c0_140, %c0_141] : memref<25x10x5xbf16, #tpu.memory_space<vmem>>, vector<1x10x5xbf16>
    %179 = vector.shape_cast %178 : vector<1x10x5xbf16> to vector<10x5xbf16>
    %c0_142 = arith.constant 0 : index
    %c105_143 = arith.constant 105 : index
    %180 = vector.load %arg14[%c0_142, %c105_143] : memref<5x640xbf16, #tpu.memory_space<vmem>>, vector<5x384xbf16>
    %cst_144 = arith.constant dense<0.000000e+00> : vector<10x384xf32>
    %181 = tpu.matmul %179, %180, %cst_144 {dimension_numbers = #tpu.dot_dimension_numbers<[1], [0], [0], [1], [0, 0, 1, 1], [], []>} : vector<10x5xbf16>, vector<5x384xbf16>, vector<10x384xf32> -> vector<10x384xf32>
    %182 = arith.addf %177, %181 : vector<10x384xf32>
    %c9 = arith.constant 9 : index
    %c0_145 = arith.constant 0 : index
    %c0_146 = arith.constant 0 : index
    %183 = vector.load %arg6[%c9, %c0_145, %c0_146] : memref<25x10x5xbf16, #tpu.memory_space<vmem>>, vector<1x10x5xbf16>
    %184 = vector.shape_cast %183 : vector<1x10x5xbf16> to vector<10x5xbf16>
    %c0_147 = arith.constant 0 : index
    %c106 = arith.constant 106 : index
    %185 = vector.load %arg14[%c0_147, %c106] : memref<5x640xbf16, #tpu.memory_space<vmem>>, vector<5x384xbf16>
    %cst_148 = arith.constant dense<0.000000e+00> : vector<10x384xf32>
    %186 = tpu.matmul %184, %185, %cst_148 {dimension_numbers = #tpu.dot_dimension_numbers<[1], [0], [0], [1], [0, 0, 1, 1], [], []>} : vector<10x5xbf16>, vector<5x384xbf16>, vector<10x384xf32> -> vector<10x384xf32>
    %187 = arith.addf %182, %186 : vector<10x384xf32>
    %c10 = arith.constant 10 : index
    %c0_149 = arith.constant 0 : index
    %c0_150 = arith.constant 0 : index
    %188 = vector.load %arg6[%c10, %c0_149, %c0_150] : memref<25x10x5xbf16, #tpu.memory_space<vmem>>, vector<1x10x5xbf16>
    %189 = vector.shape_cast %188 : vector<1x10x5xbf16> to vector<10x5xbf16>
    %c0_151 = arith.constant 0 : index
    %c126 = arith.constant 126 : index
    %190 = vector.load %arg14[%c0_151, %c126] : memref<5x640xbf16, #tpu.memory_space<vmem>>, vector<5x384xbf16>
    %cst_152 = arith.constant dense<0.000000e+00> : vector<10x384xf32>
    %191 = tpu.matmul %189, %190, %cst_152 {dimension_numbers = #tpu.dot_dimension_numbers<[1], [0], [0], [1], [0, 0, 1, 1], [], []>} : vector<10x5xbf16>, vector<5x384xbf16>, vector<10x384xf32> -> vector<10x384xf32>
    %192 = arith.addf %187, %191 : vector<10x384xf32>
    %c11 = arith.constant 11 : index
    %c0_153 = arith.constant 0 : index
    %c0_154 = arith.constant 0 : index
    %193 = vector.load %arg6[%c11, %c0_153, %c0_154] : memref<25x10x5xbf16, #tpu.memory_space<vmem>>, vector<1x10x5xbf16>
    %194 = vector.shape_cast %193 : vector<1x10x5xbf16> to vector<10x5xbf16>
    %c0_155 = arith.constant 0 : index
    %c127_156 = arith.constant 127 : index
    %195 = vector.load %arg14[%c0_155, %c127_156] : memref<5x640xbf16, #tpu.memory_space<vmem>>, vector<5x384xbf16>
    %cst_157 = arith.constant dense<0.000000e+00> : vector<10x384xf32>
    %196 = tpu.matmul %194, %195, %cst_157 {dimension_numbers = #tpu.dot_dimension_numbers<[1], [0], [0], [1], [0, 0, 1, 1], [], []>} : vector<10x5xbf16>, vector<5x384xbf16>, vector<10x384xf32> -> vector<10x384xf32>
    %197 = arith.addf %192, %196 : vector<10x384xf32>
    %c12 = arith.constant 12 : index
    %c0_158 = arith.constant 0 : index
    %c0_159 = arith.constant 0 : index
    %198 = vector.load %arg6[%c12, %c0_158, %c0_159] : memref<25x10x5xbf16, #tpu.memory_space<vmem>>, vector<1x10x5xbf16>
    %199 = vector.shape_cast %198 : vector<1x10x5xbf16> to vector<10x5xbf16>
    %c0_160 = arith.constant 0 : index
    %c128_161 = arith.constant 128 : index
    %200 = vector.load %arg14[%c0_160, %c128_161] : memref<5x640xbf16, #tpu.memory_space<vmem>>, vector<5x384xbf16>
    %cst_162 = arith.constant dense<0.000000e+00> : vector<10x384xf32>
    %201 = tpu.matmul %199, %200, %cst_162 {dimension_numbers = #tpu.dot_dimension_numbers<[1], [0], [0], [1], [0, 0, 1, 1], [], []>} : vector<10x5xbf16>, vector<5x384xbf16>, vector<10x384xf32> -> vector<10x384xf32>
    %202 = arith.addf %197, %201 : vector<10x384xf32>
    %c13 = arith.constant 13 : index
    %c0_163 = arith.constant 0 : index
    %c0_164 = arith.constant 0 : index
    %203 = vector.load %arg6[%c13, %c0_163, %c0_164] : memref<25x10x5xbf16, #tpu.memory_space<vmem>>, vector<1x10x5xbf16>
    %204 = vector.shape_cast %203 : vector<1x10x5xbf16> to vector<10x5xbf16>
    %c0_165 = arith.constant 0 : index
    %c129_166 = arith.constant 129 : index
    %205 = vector.load %arg14[%c0_165, %c129_166] : memref<5x640xbf16, #tpu.memory_space<vmem>>, vector<5x384xbf16>
    %cst_167 = arith.constant dense<0.000000e+00> : vector<10x384xf32>
    %206 = tpu.matmul %204, %205, %cst_167 {dimension_numbers = #tpu.dot_dimension_numbers<[1], [0], [0], [1], [0, 0, 1, 1], [], []>} : vector<10x5xbf16>, vector<5x384xbf16>, vector<10x384xf32> -> vector<10x384xf32>
    %207 = arith.addf %202, %206 : vector<10x384xf32>
    %c14 = arith.constant 14 : index
    %c0_168 = arith.constant 0 : index
    %c0_169 = arith.constant 0 : index
    %208 = vector.load %arg6[%c14, %c0_168, %c0_169] : memref<25x10x5xbf16, #tpu.memory_space<vmem>>, vector<1x10x5xbf16>
    %209 = vector.shape_cast %208 : vector<1x10x5xbf16> to vector<10x5xbf16>
    %c0_170 = arith.constant 0 : index
    %c130 = arith.constant 130 : index
    %210 = vector.load %arg14[%c0_170, %c130] : memref<5x640xbf16, #tpu.memory_space<vmem>>, vector<5x384xbf16>
    %cst_171 = arith.constant dense<0.000000e+00> : vector<10x384xf32>
    %211 = tpu.matmul %209, %210, %cst_171 {dimension_numbers = #tpu.dot_dimension_numbers<[1], [0], [0], [1], [0, 0, 1, 1], [], []>} : vector<10x5xbf16>, vector<5x384xbf16>, vector<10x384xf32> -> vector<10x384xf32>
    %212 = arith.addf %207, %211 : vector<10x384xf32>
    %c15 = arith.constant 15 : index
    %c0_172 = arith.constant 0 : index
    %c0_173 = arith.constant 0 : index
    %213 = vector.load %arg6[%c15, %c0_172, %c0_173] : memref<25x10x5xbf16, #tpu.memory_space<vmem>>, vector<1x10x5xbf16>
    %214 = vector.shape_cast %213 : vector<1x10x5xbf16> to vector<10x5xbf16>
    %c0_174 = arith.constant 0 : index
    %c150 = arith.constant 150 : index
    %215 = vector.load %arg14[%c0_174, %c150] : memref<5x640xbf16, #tpu.memory_space<vmem>>, vector<5x384xbf16>
    %cst_175 = arith.constant dense<0.000000e+00> : vector<10x384xf32>
    %216 = tpu.matmul %214, %215, %cst_175 {dimension_numbers = #tpu.dot_dimension_numbers<[1], [0], [0], [1], [0, 0, 1, 1], [], []>} : vector<10x5xbf16>, vector<5x384xbf16>, vector<10x384xf32> -> vector<10x384xf32>
    %217 = arith.addf %212, %216 : vector<10x384xf32>
    %c16 = arith.constant 16 : index
    %c0_176 = arith.constant 0 : index
    %c0_177 = arith.constant 0 : index
    %218 = vector.load %arg6[%c16, %c0_176, %c0_177] : memref<25x10x5xbf16, #tpu.memory_space<vmem>>, vector<1x10x5xbf16>
    %219 = vector.shape_cast %218 : vector<1x10x5xbf16> to vector<10x5xbf16>
    %c0_178 = arith.constant 0 : index
    %c151_179 = arith.constant 151 : index
    %220 = vector.load %arg14[%c0_178, %c151_179] : memref<5x640xbf16, #tpu.memory_space<vmem>>, vector<5x384xbf16>
    %cst_180 = arith.constant dense<0.000000e+00> : vector<10x384xf32>
    %221 = tpu.matmul %219, %220, %cst_180 {dimension_numbers = #tpu.dot_dimension_numbers<[1], [0], [0], [1], [0, 0, 1, 1], [], []>} : vector<10x5xbf16>, vector<5x384xbf16>, vector<10x384xf32> -> vector<10x384xf32>
    %222 = arith.addf %217, %221 : vector<10x384xf32>
    %c17 = arith.constant 17 : index
    %c0_181 = arith.constant 0 : index
    %c0_182 = arith.constant 0 : index
    %223 = vector.load %arg6[%c17, %c0_181, %c0_182] : memref<25x10x5xbf16, #tpu.memory_space<vmem>>, vector<1x10x5xbf16>
    %224 = vector.shape_cast %223 : vector<1x10x5xbf16> to vector<10x5xbf16>
    %c0_183 = arith.constant 0 : index
    %c152_184 = arith.constant 152 : index
    %225 = vector.load %arg14[%c0_183, %c152_184] : memref<5x640xbf16, #tpu.memory_space<vmem>>, vector<5x384xbf16>
    %cst_185 = arith.constant dense<0.000000e+00> : vector<10x384xf32>
    %226 = tpu.matmul %224, %225, %cst_185 {dimension_numbers = #tpu.dot_dimension_numbers<[1], [0], [0], [1], [0, 0, 1, 1], [], []>} : vector<10x5xbf16>, vector<5x384xbf16>, vector<10x384xf32> -> vector<10x384xf32>
    %227 = arith.addf %222, %226 : vector<10x384xf32>
    %c18 = arith.constant 18 : index
    %c0_186 = arith.constant 0 : index
    %c0_187 = arith.constant 0 : index
    %228 = vector.load %arg6[%c18, %c0_186, %c0_187] : memref<25x10x5xbf16, #tpu.memory_space<vmem>>, vector<1x10x5xbf16>
    %229 = vector.shape_cast %228 : vector<1x10x5xbf16> to vector<10x5xbf16>
    %c0_188 = arith.constant 0 : index
    %c153_189 = arith.constant 153 : index
    %230 = vector.load %arg14[%c0_188, %c153_189] : memref<5x640xbf16, #tpu.memory_space<vmem>>, vector<5x384xbf16>
    %cst_190 = arith.constant dense<0.000000e+00> : vector<10x384xf32>
    %231 = tpu.matmul %229, %230, %cst_190 {dimension_numbers = #tpu.dot_dimension_numbers<[1], [0], [0], [1], [0, 0, 1, 1], [], []>} : vector<10x5xbf16>, vector<5x384xbf16>, vector<10x384xf32> -> vector<10x384xf32>
    %232 = arith.addf %227, %231 : vector<10x384xf32>
    %c19 = arith.constant 19 : index
    %c0_191 = arith.constant 0 : index
    %c0_192 = arith.constant 0 : index
    %233 = vector.load %arg6[%c19, %c0_191, %c0_192] : memref<25x10x5xbf16, #tpu.memory_space<vmem>>, vector<1x10x5xbf16>
    %234 = vector.shape_cast %233 : vector<1x10x5xbf16> to vector<10x5xbf16>
    %c0_193 = arith.constant 0 : index
    %c154 = arith.constant 154 : index
    %235 = vector.load %arg14[%c0_193, %c154] : memref<5x640xbf16, #tpu.memory_space<vmem>>, vector<5x384xbf16>
    %cst_194 = arith.constant dense<0.000000e+00> : vector<10x384xf32>
    %236 = tpu.matmul %234, %235, %cst_194 {dimension_numbers = #tpu.dot_dimension_numbers<[1], [0], [0], [1], [0, 0, 1, 1], [], []>} : vector<10x5xbf16>, vector<5x384xbf16>, vector<10x384xf32> -> vector<10x384xf32>
    %237 = arith.addf %232, %236 : vector<10x384xf32>
    %c20 = arith.constant 20 : index
    %c0_195 = arith.constant 0 : index
    %c0_196 = arith.constant 0 : index
    %238 = vector.load %arg6[%c20, %c0_195, %c0_196] : memref<25x10x5xbf16, #tpu.memory_space<vmem>>, vector<1x10x5xbf16>
    %239 = vector.shape_cast %238 : vector<1x10x5xbf16> to vector<10x5xbf16>
    %c0_197 = arith.constant 0 : index
    %c174 = arith.constant 174 : index
    %240 = vector.load %arg14[%c0_197, %c174] : memref<5x640xbf16, #tpu.memory_space<vmem>>, vector<5x384xbf16>
    %cst_198 = arith.constant dense<0.000000e+00> : vector<10x384xf32>
    %241 = tpu.matmul %239, %240, %cst_198 {dimension_numbers = #tpu.dot_dimension_numbers<[1], [0], [0], [1], [0, 0, 1, 1], [], []>} : vector<10x5xbf16>, vector<5x384xbf16>, vector<10x384xf32> -> vector<10x384xf32>
    %242 = arith.addf %237, %241 : vector<10x384xf32>
    %c21 = arith.constant 21 : index
    %c0_199 = arith.constant 0 : index
    %c0_200 = arith.constant 0 : index
    %243 = vector.load %arg6[%c21, %c0_199, %c0_200] : memref<25x10x5xbf16, #tpu.memory_space<vmem>>, vector<1x10x5xbf16>
    %244 = vector.shape_cast %243 : vector<1x10x5xbf16> to vector<10x5xbf16>
    %c0_201 = arith.constant 0 : index
    %c175 = arith.constant 175 : index
    %245 = vector.load %arg14[%c0_201, %c175] : memref<5x640xbf16, #tpu.memory_space<vmem>>, vector<5x384xbf16>
    %cst_202 = arith.constant dense<0.000000e+00> : vector<10x384xf32>
    %246 = tpu.matmul %244, %245, %cst_202 {dimension_numbers = #tpu.dot_dimension_numbers<[1], [0], [0], [1], [0, 0, 1, 1], [], []>} : vector<10x5xbf16>, vector<5x384xbf16>, vector<10x384xf32> -> vector<10x384xf32>
    %247 = arith.addf %242, %246 : vector<10x384xf32>
    %c22 = arith.constant 22 : index
    %c0_203 = arith.constant 0 : index
    %c0_204 = arith.constant 0 : index
    %248 = vector.load %arg6[%c22, %c0_203, %c0_204] : memref<25x10x5xbf16, #tpu.memory_space<vmem>>, vector<1x10x5xbf16>
    %249 = vector.shape_cast %248 : vector<1x10x5xbf16> to vector<10x5xbf16>
    %c0_205 = arith.constant 0 : index
    %c176 = arith.constant 176 : index
    %250 = vector.load %arg14[%c0_205, %c176] : memref<5x640xbf16, #tpu.memory_space<vmem>>, vector<5x384xbf16>
    %cst_206 = arith.constant dense<0.000000e+00> : vector<10x384xf32>
    %251 = tpu.matmul %249, %250, %cst_206 {dimension_numbers = #tpu.dot_dimension_numbers<[1], [0], [0], [1], [0, 0, 1, 1], [], []>} : vector<10x5xbf16>, vector<5x384xbf16>, vector<10x384xf32> -> vector<10x384xf32>
    %252 = arith.addf %247, %251 : vector<10x384xf32>
    %c23 = arith.constant 23 : index
    %c0_207 = arith.constant 0 : index
    %c0_208 = arith.constant 0 : index
    %253 = vector.load %arg6[%c23, %c0_207, %c0_208] : memref<25x10x5xbf16, #tpu.memory_space<vmem>>, vector<1x10x5xbf16>
    %254 = vector.shape_cast %253 : vector<1x10x5xbf16> to vector<10x5xbf16>
    %c0_209 = arith.constant 0 : index
    %c177 = arith.constant 177 : index
    %255 = vector.load %arg14[%c0_209, %c177] : memref<5x640xbf16, #tpu.memory_space<vmem>>, vector<5x384xbf16>
    %cst_210 = arith.constant dense<0.000000e+00> : vector<10x384xf32>
    %256 = tpu.matmul %254, %255, %cst_210 {dimension_numbers = #tpu.dot_dimension_numbers<[1], [0], [0], [1], [0, 0, 1, 1], [], []>} : vector<10x5xbf16>, vector<5x384xbf16>, vector<10x384xf32> -> vector<10x384xf32>
    %257 = arith.addf %252, %256 : vector<10x384xf32>
    %c24 = arith.constant 24 : index
    %c0_211 = arith.constant 0 : index
    %c0_212 = arith.constant 0 : index
    %258 = vector.load %arg6[%c24, %c0_211, %c0_212] : memref<25x10x5xbf16, #tpu.memory_space<vmem>>, vector<1x10x5xbf16>
    %259 = vector.shape_cast %258 : vector<1x10x5xbf16> to vector<10x5xbf16>
    %c0_213 = arith.constant 0 : index
    %c178 = arith.constant 178 : index
    %260 = vector.load %arg14[%c0_213, %c178] : memref<5x640xbf16, #tpu.memory_space<vmem>>, vector<5x384xbf16>
    %cst_214 = arith.constant dense<0.000000e+00> : vector<10x384xf32>
    %261 = tpu.matmul %259, %260, %cst_214 {dimension_numbers = #tpu.dot_dimension_numbers<[1], [0], [0], [1], [0, 0, 1, 1], [], []>} : vector<10x5xbf16>, vector<5x384xbf16>, vector<10x384xf32> -> vector<10x384xf32>
    %262 = arith.addf %257, %261 : vector<10x384xf32>
    %263 = vector.broadcast %22 : vector<10x1xf32> to vector<10x384xf32>
    %264 = arith.addf %262, %263 : vector<10x384xf32>
    %265 = math.tanh %264 : vector<10x384xf32>
    %266 = arith.truncf %265 : vector<10x384xf32> to vector<10x384xbf16>
    %cst_215 = arith.constant dense<0.000000e+00> : vector<8x384xf32>
    %267 = tpu.matmul %25, %266, %cst_215 {dimension_numbers = #tpu.dot_dimension_numbers<[1], [0], [0], [1], [0, 0, 1, 1], [], []>} : vector<8x10xbf16>, vector<10x384xbf16>, vector<8x384xf32> -> vector<8x384xf32>
    %268 = arith.addf %134, %267 : vector<8x384xf32>
    %269 = math.tanh %268 : vector<8x384xf32>
    %270 = math.tanh %269 : vector<8x384xf32>
    %c0_216 = arith.constant 0 : index
    %c0_217 = arith.constant 0 : index
    %c0_218 = arith.constant 0 : index
    %271 = vector.load %arg12[%c0_216, %c0_217, %c0_218] : memref<2x8x384xf32, #tpu.memory_space<vmem>>, vector<1x8x384xf32>
    %272 = vector.shape_cast %271 : vector<1x8x384xf32> to vector<8x384xf32>
    %273 = vector.shape_cast %270 : vector<8x384xf32> to vector<1x8x384xf32>
    tpu.vector_store %arg12[%c0_216, %c0_217, %c0_218], %273 {strides = array<i32>} : memref<2x8x384xf32, #tpu.memory_space<vmem>>, vector<1x8x384xf32>,
    %c1_219 = arith.constant 1 : index
    %c0_220 = arith.constant 0 : index
    %c25_221 = arith.constant 25 : index
    %274 = vector.load %arg1[%c1_219, %c0_220, %c25_221] : memref<2x4x480xf32, #tpu.memory_space<vmem>>, vector<1x4x384xf32>
    %275 = vector.shape_cast %274 : vector<1x4x384xf32> to vector<4x384xf32>
    %c1_222 = arith.constant 1 : index
    %c0_223 = arith.constant 0 : index
    %c26_224 = arith.constant 26 : index
    %276 = vector.load %arg1[%c1_222, %c0_223, %c26_224] : memref<2x4x480xf32, #tpu.memory_space<vmem>>, vector<1x4x384xf32>
    %277 = vector.shape_cast %276 : vector<1x4x384xf32> to vector<4x384xf32>
    %278 = arith.maximumf %275, %277 : vector<4x384xf32>
    %c1_225 = arith.constant 1 : index
    %c0_226 = arith.constant 0 : index
    %c27_227 = arith.constant 27 : index
    %279 = vector.load %arg1[%c1_225, %c0_226, %c27_227] : memref<2x4x480xf32, #tpu.memory_space<vmem>>, vector<1x4x384xf32>
    %280 = vector.shape_cast %279 : vector<1x4x384xf32> to vector<4x384xf32>
    %281 = arith.maximumf %278, %280 : vector<4x384xf32>
    %c1_228 = arith.constant 1 : index
    %c0_229 = arith.constant 0 : index
    %c49_230 = arith.constant 49 : index
    %282 = vector.load %arg1[%c1_228, %c0_229, %c49_230] : memref<2x4x480xf32, #tpu.memory_space<vmem>>, vector<1x4x384xf32>
    %283 = vector.shape_cast %282 : vector<1x4x384xf32> to vector<4x384xf32>
    %284 = arith.maximumf %281, %283 : vector<4x384xf32>
    %c1_231 = arith.constant 1 : index
    %c0_232 = arith.constant 0 : index
    %c50_233 = arith.constant 50 : index
    %285 = vector.load %arg1[%c1_231, %c0_232, %c50_233] : memref<2x4x480xf32, #tpu.memory_space<vmem>>, vector<1x4x384xf32>
    %286 = vector.shape_cast %285 : vector<1x4x384xf32> to vector<4x384xf32>
    %287 = arith.maximumf %284, %286 : vector<4x384xf32>
    %c1_234 = arith.constant 1 : index
    %c0_235 = arith.constant 0 : index
    %c51_236 = arith.constant 51 : index
    %288 = vector.load %arg1[%c1_234, %c0_235, %c51_236] : memref<2x4x480xf32, #tpu.memory_space<vmem>>, vector<1x4x384xf32>
    %289 = vector.shape_cast %288 : vector<1x4x384xf32> to vector<4x384xf32>
    %290 = arith.maximumf %287, %289 : vector<4x384xf32>
    %c1_237 = arith.constant 1 : index
    %c0_238 = arith.constant 0 : index
    %c73_239 = arith.constant 73 : index
    %291 = vector.load %arg1[%c1_237, %c0_238, %c73_239] : memref<2x4x480xf32, #tpu.memory_space<vmem>>, vector<1x4x384xf32>
    %292 = vector.shape_cast %291 : vector<1x4x384xf32> to vector<4x384xf32>
    %293 = arith.maximumf %290, %292 : vector<4x384xf32>
    %c1_240 = arith.constant 1 : index
    %c0_241 = arith.constant 0 : index
    %c74_242 = arith.constant 74 : index
    %294 = vector.load %arg1[%c1_240, %c0_241, %c74_242] : memref<2x4x480xf32, #tpu.memory_space<vmem>>, vector<1x4x384xf32>
    %295 = vector.shape_cast %294 : vector<1x4x384xf32> to vector<4x384xf32>
    %296 = arith.maximumf %293, %295 : vector<4x384xf32>
    %c1_243 = arith.constant 1 : index
    %c0_244 = arith.constant 0 : index
    %c75_245 = arith.constant 75 : index
    %297 = vector.load %arg1[%c1_243, %c0_244, %c75_245] : memref<2x4x480xf32, #tpu.memory_space<vmem>>, vector<1x4x384xf32>
    %298 = vector.shape_cast %297 : vector<1x4x384xf32> to vector<4x384xf32>
    %299 = arith.maximumf %296, %298 : vector<4x384xf32>
    %c1_246 = arith.constant 1 : index
    %c0_247 = arith.constant 0 : index
    %c50_248 = arith.constant 50 : index
    %300 = vector.load %arg1[%c1_246, %c0_247, %c50_248] : memref<2x4x480xf32, #tpu.memory_space<vmem>>, vector<1x4x384xf32>
    %301 = vector.shape_cast %300 : vector<1x4x384xf32> to vector<4x384xf32>
    %302 = tpu.concatenate %301, %299 in 0 : vector<4x384xf32>, vector<4x384xf32> -> vector<8x384xf32>
    %cst_249 = arith.constant 0.000000e+00 : f32
    %303 = vector.shape_cast %18 : vector<1x384xi1> to vector<1x384xi1>
    %304 = vector.broadcast %303 : vector<1x384xi1> to vector<8x384xi1>
    %305 = vector.broadcast %cst_249 : f32 to vector<8x384xf32>
    %306 = arith.select %304, %302, %305 : vector<8x384xi1>, vector<8x384xf32>
    %307 = arith.truncf %306 : vector<8x384xf32> to vector<8x384xbf16>
    %cst_250 = arith.constant dense<0.000000e+00> : vector<30x384xf32>
    %308 = tpu.matmul %19, %307, %cst_250 {dimension_numbers = #tpu.dot_dimension_numbers<[1], [0], [0], [1], [0, 0, 1, 1], [], []>} : vector<30x8xbf16>, vector<8x384xbf16>, vector<30x384xf32> -> vector<30x384xf32>
    %309 = vector.broadcast %20 : vector<30x1xf32> to vector<30x384xf32>
    %310 = arith.addf %308, %309 : vector<30x384xf32>
    %311 = math.tanh %310 : vector<30x384xf32>
    %cst_251 = arith.constant 0.000000e+00 : f32
    %312 = vector.shape_cast %18 : vector<1x384xi1> to vector<1x384xi1>
    %313 = vector.broadcast %312 : vector<1x384xi1> to vector<30x384xi1>
    %314 = vector.broadcast %cst_251 : f32 to vector<30x384xf32>
    %315 = arith.select %313, %311, %314 : vector<30x384xi1>, vector<30x384xf32>
    %316 = arith.truncf %315 : vector<30x384xf32> to vector<30x384xbf16>
    %cst_252 = arith.constant dense<0.000000e+00> : vector<8x384xf32>
    %317 = tpu.matmul %23, %316, %cst_252 {dimension_numbers = #tpu.dot_dimension_numbers<[1], [0], [0], [1], [0, 0, 1, 1], [], []>} : vector<8x30xbf16>, vector<30x384xbf16>, vector<8x384xf32> -> vector<8x384xf32>
    %318 = vector.broadcast %26 : vector<8x1xf32> to vector<8x384xf32>
    %319 = arith.addf %317, %318 : vector<8x384xf32>
    %320 = vector.extract_strided_slice %316 {offsets = [10, 0], sizes = [5, 384], strides = [1, 1]} : vector<30x384xbf16> to vector<5x384xbf16>
    %c0_253 = arith.constant 0 : index
    %c128_254 = arith.constant 128 : index
    %321 = vector.load %arg13[%c0_253, %c128_254] : memref<5x640xbf16, #tpu.memory_space<vmem>>, vector<5x384xbf16>
    tpu.vector_store %arg13[%c0_253, %c128_254], %320 {strides = array<i32>} : memref<5x640xbf16, #tpu.memory_space<vmem>>, vector<5x384xbf16>,
    %cst_255 = arith.constant 0.000000e+00 : f32
    %322 = vector.broadcast %cst_255 : f32 to vector<10x384xf32>
    %c0_256 = arith.constant 0 : index
    %c0_257 = arith.constant 0 : index
    %c0_258 = arith.constant 0 : index
    %323 = vector.load %arg4[%c0_256, %c0_257, %c0_258] : memref<9x10x5xbf16, #tpu.memory_space<vmem>>, vector<1x10x5xbf16>
    %324 = vector.shape_cast %323 : vector<1x10x5xbf16> to vector<10x5xbf16>
    %c0_259 = arith.constant 0 : index
    %c103_260 = arith.constant 103 : index
    %325 = vector.load %arg13[%c0_259, %c103_260] : memref<5x640xbf16, #tpu.memory_space<vmem>>, vector<5x384xbf16>
    %cst_261 = arith.constant dense<0.000000e+00> : vector<10x384xf32>
    %326 = tpu.matmul %324, %325, %cst_261 {dimension_numbers = #tpu.dot_dimension_numbers<[1], [0], [0], [1], [0, 0, 1, 1], [], []>} : vector<10x5xbf16>, vector<5x384xbf16>, vector<10x384xf32> -> vector<10x384xf32>
    %327 = arith.addf %322, %326 : vector<10x384xf32>
    %c1_262 = arith.constant 1 : index
    %c0_263 = arith.constant 0 : index
    %c0_264 = arith.constant 0 : index
    %328 = vector.load %arg4[%c1_262, %c0_263, %c0_264] : memref<9x10x5xbf16, #tpu.memory_space<vmem>>, vector<1x10x5xbf16>
    %329 = vector.shape_cast %328 : vector<1x10x5xbf16> to vector<10x5xbf16>
    %c0_265 = arith.constant 0 : index
    %c104_266 = arith.constant 104 : index
    %330 = vector.load %arg13[%c0_265, %c104_266] : memref<5x640xbf16, #tpu.memory_space<vmem>>, vector<5x384xbf16>
    %cst_267 = arith.constant dense<0.000000e+00> : vector<10x384xf32>
    %331 = tpu.matmul %329, %330, %cst_267 {dimension_numbers = #tpu.dot_dimension_numbers<[1], [0], [0], [1], [0, 0, 1, 1], [], []>} : vector<10x5xbf16>, vector<5x384xbf16>, vector<10x384xf32> -> vector<10x384xf32>
    %332 = arith.addf %327, %331 : vector<10x384xf32>
    %c2_268 = arith.constant 2 : index
    %c0_269 = arith.constant 0 : index
    %c0_270 = arith.constant 0 : index
    %333 = vector.load %arg4[%c2_268, %c0_269, %c0_270] : memref<9x10x5xbf16, #tpu.memory_space<vmem>>, vector<1x10x5xbf16>
    %334 = vector.shape_cast %333 : vector<1x10x5xbf16> to vector<10x5xbf16>
    %c0_271 = arith.constant 0 : index
    %c105_272 = arith.constant 105 : index
    %335 = vector.load %arg13[%c0_271, %c105_272] : memref<5x640xbf16, #tpu.memory_space<vmem>>, vector<5x384xbf16>
    %cst_273 = arith.constant dense<0.000000e+00> : vector<10x384xf32>
    %336 = tpu.matmul %334, %335, %cst_273 {dimension_numbers = #tpu.dot_dimension_numbers<[1], [0], [0], [1], [0, 0, 1, 1], [], []>} : vector<10x5xbf16>, vector<5x384xbf16>, vector<10x384xf32> -> vector<10x384xf32>
    %337 = arith.addf %332, %336 : vector<10x384xf32>
    %c3_274 = arith.constant 3 : index
    %c0_275 = arith.constant 0 : index
    %c0_276 = arith.constant 0 : index
    %338 = vector.load %arg4[%c3_274, %c0_275, %c0_276] : memref<9x10x5xbf16, #tpu.memory_space<vmem>>, vector<1x10x5xbf16>
    %339 = vector.shape_cast %338 : vector<1x10x5xbf16> to vector<10x5xbf16>
    %c0_277 = arith.constant 0 : index
    %c127_278 = arith.constant 127 : index
    %340 = vector.load %arg13[%c0_277, %c127_278] : memref<5x640xbf16, #tpu.memory_space<vmem>>, vector<5x384xbf16>
    %cst_279 = arith.constant dense<0.000000e+00> : vector<10x384xf32>
    %341 = tpu.matmul %339, %340, %cst_279 {dimension_numbers = #tpu.dot_dimension_numbers<[1], [0], [0], [1], [0, 0, 1, 1], [], []>} : vector<10x5xbf16>, vector<5x384xbf16>, vector<10x384xf32> -> vector<10x384xf32>
    %342 = arith.addf %337, %341 : vector<10x384xf32>
    %c4_280 = arith.constant 4 : index
    %c0_281 = arith.constant 0 : index
    %c0_282 = arith.constant 0 : index
    %343 = vector.load %arg4[%c4_280, %c0_281, %c0_282] : memref<9x10x5xbf16, #tpu.memory_space<vmem>>, vector<1x10x5xbf16>
    %344 = vector.shape_cast %343 : vector<1x10x5xbf16> to vector<10x5xbf16>
    %c0_283 = arith.constant 0 : index
    %c128_284 = arith.constant 128 : index
    %345 = vector.load %arg13[%c0_283, %c128_284] : memref<5x640xbf16, #tpu.memory_space<vmem>>, vector<5x384xbf16>
    %cst_285 = arith.constant dense<0.000000e+00> : vector<10x384xf32>
    %346 = tpu.matmul %344, %345, %cst_285 {dimension_numbers = #tpu.dot_dimension_numbers<[1], [0], [0], [1], [0, 0, 1, 1], [], []>} : vector<10x5xbf16>, vector<5x384xbf16>, vector<10x384xf32> -> vector<10x384xf32>
    %347 = arith.addf %342, %346 : vector<10x384xf32>
    %c5_286 = arith.constant 5 : index
    %c0_287 = arith.constant 0 : index
    %c0_288 = arith.constant 0 : index
    %348 = vector.load %arg4[%c5_286, %c0_287, %c0_288] : memref<9x10x5xbf16, #tpu.memory_space<vmem>>, vector<1x10x5xbf16>
    %349 = vector.shape_cast %348 : vector<1x10x5xbf16> to vector<10x5xbf16>
    %c0_289 = arith.constant 0 : index
    %c129_290 = arith.constant 129 : index
    %350 = vector.load %arg13[%c0_289, %c129_290] : memref<5x640xbf16, #tpu.memory_space<vmem>>, vector<5x384xbf16>
    %cst_291 = arith.constant dense<0.000000e+00> : vector<10x384xf32>
    %351 = tpu.matmul %349, %350, %cst_291 {dimension_numbers = #tpu.dot_dimension_numbers<[1], [0], [0], [1], [0, 0, 1, 1], [], []>} : vector<10x5xbf16>, vector<5x384xbf16>, vector<10x384xf32> -> vector<10x384xf32>
    %352 = arith.addf %347, %351 : vector<10x384xf32>
    %c6_292 = arith.constant 6 : index
    %c0_293 = arith.constant 0 : index
    %c0_294 = arith.constant 0 : index
    %353 = vector.load %arg4[%c6_292, %c0_293, %c0_294] : memref<9x10x5xbf16, #tpu.memory_space<vmem>>, vector<1x10x5xbf16>
    %354 = vector.shape_cast %353 : vector<1x10x5xbf16> to vector<10x5xbf16>
    %c0_295 = arith.constant 0 : index
    %c151_296 = arith.constant 151 : index
    %355 = vector.load %arg13[%c0_295, %c151_296] : memref<5x640xbf16, #tpu.memory_space<vmem>>, vector<5x384xbf16>
    %cst_297 = arith.constant dense<0.000000e+00> : vector<10x384xf32>
    %356 = tpu.matmul %354, %355, %cst_297 {dimension_numbers = #tpu.dot_dimension_numbers<[1], [0], [0], [1], [0, 0, 1, 1], [], []>} : vector<10x5xbf16>, vector<5x384xbf16>, vector<10x384xf32> -> vector<10x384xf32>
    %357 = arith.addf %352, %356 : vector<10x384xf32>
    %c7_298 = arith.constant 7 : index
    %c0_299 = arith.constant 0 : index
    %c0_300 = arith.constant 0 : index
    %358 = vector.load %arg4[%c7_298, %c0_299, %c0_300] : memref<9x10x5xbf16, #tpu.memory_space<vmem>>, vector<1x10x5xbf16>
    %359 = vector.shape_cast %358 : vector<1x10x5xbf16> to vector<10x5xbf16>
    %c0_301 = arith.constant 0 : index
    %c152_302 = arith.constant 152 : index
    %360 = vector.load %arg13[%c0_301, %c152_302] : memref<5x640xbf16, #tpu.memory_space<vmem>>, vector<5x384xbf16>
    %cst_303 = arith.constant dense<0.000000e+00> : vector<10x384xf32>
    %361 = tpu.matmul %359, %360, %cst_303 {dimension_numbers = #tpu.dot_dimension_numbers<[1], [0], [0], [1], [0, 0, 1, 1], [], []>} : vector<10x5xbf16>, vector<5x384xbf16>, vector<10x384xf32> -> vector<10x384xf32>
    %362 = arith.addf %357, %361 : vector<10x384xf32>
    %c8_304 = arith.constant 8 : index
    %c0_305 = arith.constant 0 : index
    %c0_306 = arith.constant 0 : index
    %363 = vector.load %arg4[%c8_304, %c0_305, %c0_306] : memref<9x10x5xbf16, #tpu.memory_space<vmem>>, vector<1x10x5xbf16>
    %364 = vector.shape_cast %363 : vector<1x10x5xbf16> to vector<10x5xbf16>
    %c0_307 = arith.constant 0 : index
    %c153_308 = arith.constant 153 : index
    %365 = vector.load %arg13[%c0_307, %c153_308] : memref<5x640xbf16, #tpu.memory_space<vmem>>, vector<5x384xbf16>
    %cst_309 = arith.constant dense<0.000000e+00> : vector<10x384xf32>
    %366 = tpu.matmul %364, %365, %cst_309 {dimension_numbers = #tpu.dot_dimension_numbers<[1], [0], [0], [1], [0, 0, 1, 1], [], []>} : vector<10x5xbf16>, vector<5x384xbf16>, vector<10x384xf32> -> vector<10x384xf32>
    %367 = arith.addf %362, %366 : vector<10x384xf32>
    %368 = vector.broadcast %21 : vector<10x1xf32> to vector<10x384xf32>
    %369 = arith.addf %367, %368 : vector<10x384xf32>
    %370 = math.tanh %369 : vector<10x384xf32>
    %371 = arith.truncf %370 : vector<10x384xf32> to vector<10x384xbf16>
    %cst_310 = arith.constant dense<0.000000e+00> : vector<8x384xf32>
    %372 = tpu.matmul %24, %371, %cst_310 {dimension_numbers = #tpu.dot_dimension_numbers<[1], [0], [0], [1], [0, 0, 1, 1], [], []>} : vector<8x10xbf16>, vector<10x384xbf16>, vector<8x384xf32> -> vector<8x384xf32>
    %373 = arith.addf %319, %372 : vector<8x384xf32>
    %374 = vector.extract_strided_slice %316 {offsets = [15, 0], sizes = [5, 384], strides = [1, 1]} : vector<30x384xbf16> to vector<5x384xbf16>
    %c0_311 = arith.constant 0 : index
    %c128_312 = arith.constant 128 : index
    %375 = vector.load %arg14[%c0_311, %c128_312] : memref<5x640xbf16, #tpu.memory_space<vmem>>, vector<5x384xbf16>
    tpu.vector_store %arg14[%c0_311, %c128_312], %374 {strides = array<i32>} : memref<5x640xbf16, #tpu.memory_space<vmem>>, vector<5x384xbf16>,
    %cst_313 = arith.constant 0.000000e+00 : f32
    %376 = vector.broadcast %cst_313 : f32 to vector<10x384xf32>
    %c0_314 = arith.constant 0 : index
    %c0_315 = arith.constant 0 : index
    %c0_316 = arith.constant 0 : index
    %377 = vector.load %arg6[%c0_314, %c0_315, %c0_316] : memref<25x10x5xbf16, #tpu.memory_space<vmem>>, vector<1x10x5xbf16>
    %378 = vector.shape_cast %377 : vector<1x10x5xbf16> to vector<10x5xbf16>
    %c0_317 = arith.constant 0 : index
    %c78_318 = arith.constant 78 : index
    %379 = vector.load %arg14[%c0_317, %c78_318] : memref<5x640xbf16, #tpu.memory_space<vmem>>, vector<5x384xbf16>
    %cst_319 = arith.constant dense<0.000000e+00> : vector<10x384xf32>
    %380 = tpu.matmul %378, %379, %cst_319 {dimension_numbers = #tpu.dot_dimension_numbers<[1], [0], [0], [1], [0, 0, 1, 1], [], []>} : vector<10x5xbf16>, vector<5x384xbf16>, vector<10x384xf32> -> vector<10x384xf32>
    %381 = arith.addf %376, %380 : vector<10x384xf32>
    %c1_320 = arith.constant 1 : index
    %c0_321 = arith.constant 0 : index
    %c0_322 = arith.constant 0 : index
    %382 = vector.load %arg6[%c1_320, %c0_321, %c0_322] : memref<25x10x5xbf16, #tpu.memory_space<vmem>>, vector<1x10x5xbf16>
    %383 = vector.shape_cast %382 : vector<1x10x5xbf16> to vector<10x5xbf16>
    %c0_323 = arith.constant 0 : index
    %c79_324 = arith.constant 79 : index
    %384 = vector.load %arg14[%c0_323, %c79_324] : memref<5x640xbf16, #tpu.memory_space<vmem>>, vector<5x384xbf16>
    %cst_325 = arith.constant dense<0.000000e+00> : vector<10x384xf32>
    %385 = tpu.matmul %383, %384, %cst_325 {dimension_numbers = #tpu.dot_dimension_numbers<[1], [0], [0], [1], [0, 0, 1, 1], [], []>} : vector<10x5xbf16>, vector<5x384xbf16>, vector<10x384xf32> -> vector<10x384xf32>
    %386 = arith.addf %381, %385 : vector<10x384xf32>
    %c2_326 = arith.constant 2 : index
    %c0_327 = arith.constant 0 : index
    %c0_328 = arith.constant 0 : index
    %387 = vector.load %arg6[%c2_326, %c0_327, %c0_328] : memref<25x10x5xbf16, #tpu.memory_space<vmem>>, vector<1x10x5xbf16>
    %388 = vector.shape_cast %387 : vector<1x10x5xbf16> to vector<10x5xbf16>
    %c0_329 = arith.constant 0 : index
    %c80_330 = arith.constant 80 : index
    %389 = vector.load %arg14[%c0_329, %c80_330] : memref<5x640xbf16, #tpu.memory_space<vmem>>, vector<5x384xbf16>
    %cst_331 = arith.constant dense<0.000000e+00> : vector<10x384xf32>
    %390 = tpu.matmul %388, %389, %cst_331 {dimension_numbers = #tpu.dot_dimension_numbers<[1], [0], [0], [1], [0, 0, 1, 1], [], []>} : vector<10x5xbf16>, vector<5x384xbf16>, vector<10x384xf32> -> vector<10x384xf32>
    %391 = arith.addf %386, %390 : vector<10x384xf32>
    %c3_332 = arith.constant 3 : index
    %c0_333 = arith.constant 0 : index
    %c0_334 = arith.constant 0 : index
    %392 = vector.load %arg6[%c3_332, %c0_333, %c0_334] : memref<25x10x5xbf16, #tpu.memory_space<vmem>>, vector<1x10x5xbf16>
    %393 = vector.shape_cast %392 : vector<1x10x5xbf16> to vector<10x5xbf16>
    %c0_335 = arith.constant 0 : index
    %c81_336 = arith.constant 81 : index
    %394 = vector.load %arg14[%c0_335, %c81_336] : memref<5x640xbf16, #tpu.memory_space<vmem>>, vector<5x384xbf16>
    %cst_337 = arith.constant dense<0.000000e+00> : vector<10x384xf32>
    %395 = tpu.matmul %393, %394, %cst_337 {dimension_numbers = #tpu.dot_dimension_numbers<[1], [0], [0], [1], [0, 0, 1, 1], [], []>} : vector<10x5xbf16>, vector<5x384xbf16>, vector<10x384xf32> -> vector<10x384xf32>
    %396 = arith.addf %391, %395 : vector<10x384xf32>
    %c4_338 = arith.constant 4 : index
    %c0_339 = arith.constant 0 : index
    %c0_340 = arith.constant 0 : index
    %397 = vector.load %arg6[%c4_338, %c0_339, %c0_340] : memref<25x10x5xbf16, #tpu.memory_space<vmem>>, vector<1x10x5xbf16>
    %398 = vector.shape_cast %397 : vector<1x10x5xbf16> to vector<10x5xbf16>
    %c0_341 = arith.constant 0 : index
    %c82_342 = arith.constant 82 : index
    %399 = vector.load %arg14[%c0_341, %c82_342] : memref<5x640xbf16, #tpu.memory_space<vmem>>, vector<5x384xbf16>
    %cst_343 = arith.constant dense<0.000000e+00> : vector<10x384xf32>
    %400 = tpu.matmul %398, %399, %cst_343 {dimension_numbers = #tpu.dot_dimension_numbers<[1], [0], [0], [1], [0, 0, 1, 1], [], []>} : vector<10x5xbf16>, vector<5x384xbf16>, vector<10x384xf32> -> vector<10x384xf32>
    %401 = arith.addf %396, %400 : vector<10x384xf32>
    %c5_344 = arith.constant 5 : index
    %c0_345 = arith.constant 0 : index
    %c0_346 = arith.constant 0 : index
    %402 = vector.load %arg6[%c5_344, %c0_345, %c0_346] : memref<25x10x5xbf16, #tpu.memory_space<vmem>>, vector<1x10x5xbf16>
    %403 = vector.shape_cast %402 : vector<1x10x5xbf16> to vector<10x5xbf16>
    %c0_347 = arith.constant 0 : index
    %c102_348 = arith.constant 102 : index
    %404 = vector.load %arg14[%c0_347, %c102_348] : memref<5x640xbf16, #tpu.memory_space<vmem>>, vector<5x384xbf16>
    %cst_349 = arith.constant dense<0.000000e+00> : vector<10x384xf32>
    %405 = tpu.matmul %403, %404, %cst_349 {dimension_numbers = #tpu.dot_dimension_numbers<[1], [0], [0], [1], [0, 0, 1, 1], [], []>} : vector<10x5xbf16>, vector<5x384xbf16>, vector<10x384xf32> -> vector<10x384xf32>
    %406 = arith.addf %401, %405 : vector<10x384xf32>
    %c6_350 = arith.constant 6 : index
    %c0_351 = arith.constant 0 : index
    %c0_352 = arith.constant 0 : index
    %407 = vector.load %arg6[%c6_350, %c0_351, %c0_352] : memref<25x10x5xbf16, #tpu.memory_space<vmem>>, vector<1x10x5xbf16>
    %408 = vector.shape_cast %407 : vector<1x10x5xbf16> to vector<10x5xbf16>
    %c0_353 = arith.constant 0 : index
    %c103_354 = arith.constant 103 : index
    %409 = vector.load %arg14[%c0_353, %c103_354] : memref<5x640xbf16, #tpu.memory_space<vmem>>, vector<5x384xbf16>
    %cst_355 = arith.constant dense<0.000000e+00> : vector<10x384xf32>
    %410 = tpu.matmul %408, %409, %cst_355 {dimension_numbers = #tpu.dot_dimension_numbers<[1], [0], [0], [1], [0, 0, 1, 1], [], []>} : vector<10x5xbf16>, vector<5x384xbf16>, vector<10x384xf32> -> vector<10x384xf32>
    %411 = arith.addf %406, %410 : vector<10x384xf32>
    %c7_356 = arith.constant 7 : index
    %c0_357 = arith.constant 0 : index
    %c0_358 = arith.constant 0 : index
    %412 = vector.load %arg6[%c7_356, %c0_357, %c0_358] : memref<25x10x5xbf16, #tpu.memory_space<vmem>>, vector<1x10x5xbf16>
    %413 = vector.shape_cast %412 : vector<1x10x5xbf16> to vector<10x5xbf16>
    %c0_359 = arith.constant 0 : index
    %c104_360 = arith.constant 104 : index
    %414 = vector.load %arg14[%c0_359, %c104_360] : memref<5x640xbf16, #tpu.memory_space<vmem>>, vector<5x384xbf16>
    %cst_361 = arith.constant dense<0.000000e+00> : vector<10x384xf32>
    %415 = tpu.matmul %413, %414, %cst_361 {dimension_numbers = #tpu.dot_dimension_numbers<[1], [0], [0], [1], [0, 0, 1, 1], [], []>} : vector<10x5xbf16>, vector<5x384xbf16>, vector<10x384xf32> -> vector<10x384xf32>
    %416 = arith.addf %411, %415 : vector<10x384xf32>
    %c8_362 = arith.constant 8 : index
    %c0_363 = arith.constant 0 : index
    %c0_364 = arith.constant 0 : index
    %417 = vector.load %arg6[%c8_362, %c0_363, %c0_364] : memref<25x10x5xbf16, #tpu.memory_space<vmem>>, vector<1x10x5xbf16>
    %418 = vector.shape_cast %417 : vector<1x10x5xbf16> to vector<10x5xbf16>
    %c0_365 = arith.constant 0 : index
    %c105_366 = arith.constant 105 : index
    %419 = vector.load %arg14[%c0_365, %c105_366] : memref<5x640xbf16, #tpu.memory_space<vmem>>, vector<5x384xbf16>
    %cst_367 = arith.constant dense<0.000000e+00> : vector<10x384xf32>
    %420 = tpu.matmul %418, %419, %cst_367 {dimension_numbers = #tpu.dot_dimension_numbers<[1], [0], [0], [1], [0, 0, 1, 1], [], []>} : vector<10x5xbf16>, vector<5x384xbf16>, vector<10x384xf32> -> vector<10x384xf32>
    %421 = arith.addf %416, %420 : vector<10x384xf32>
    %c9_368 = arith.constant 9 : index
    %c0_369 = arith.constant 0 : index
    %c0_370 = arith.constant 0 : index
    %422 = vector.load %arg6[%c9_368, %c0_369, %c0_370] : memref<25x10x5xbf16, #tpu.memory_space<vmem>>, vector<1x10x5xbf16>
    %423 = vector.shape_cast %422 : vector<1x10x5xbf16> to vector<10x5xbf16>
    %c0_371 = arith.constant 0 : index
    %c106_372 = arith.constant 106 : index
    %424 = vector.load %arg14[%c0_371, %c106_372] : memref<5x640xbf16, #tpu.memory_space<vmem>>, vector<5x384xbf16>
    %cst_373 = arith.constant dense<0.000000e+00> : vector<10x384xf32>
    %425 = tpu.matmul %423, %424, %cst_373 {dimension_numbers = #tpu.dot_dimension_numbers<[1], [0], [0], [1], [0, 0, 1, 1], [], []>} : vector<10x5xbf16>, vector<5x384xbf16>, vector<10x384xf32> -> vector<10x384xf32>
    %426 = arith.addf %421, %425 : vector<10x384xf32>
    %c10_374 = arith.constant 10 : index
    %c0_375 = arith.constant 0 : index
    %c0_376 = arith.constant 0 : index
    %427 = vector.load %arg6[%c10_374, %c0_375, %c0_376] : memref<25x10x5xbf16, #tpu.memory_space<vmem>>, vector<1x10x5xbf16>
    %428 = vector.shape_cast %427 : vector<1x10x5xbf16> to vector<10x5xbf16>
    %c0_377 = arith.constant 0 : index
    %c126_378 = arith.constant 126 : index
    %429 = vector.load %arg14[%c0_377, %c126_378] : memref<5x640xbf16, #tpu.memory_space<vmem>>, vector<5x384xbf16>
    %cst_379 = arith.constant dense<0.000000e+00> : vector<10x384xf32>
    %430 = tpu.matmul %428, %429, %cst_379 {dimension_numbers = #tpu.dot_dimension_numbers<[1], [0], [0], [1], [0, 0, 1, 1], [], []>} : vector<10x5xbf16>, vector<5x384xbf16>, vector<10x384xf32> -> vector<10x384xf32>
    %431 = arith.addf %426, %430 : vector<10x384xf32>
    %c11_380 = arith.constant 11 : index
    %c0_381 = arith.constant 0 : index
    %c0_382 = arith.constant 0 : index
    %432 = vector.load %arg6[%c11_380, %c0_381, %c0_382] : memref<25x10x5xbf16, #tpu.memory_space<vmem>>, vector<1x10x5xbf16>
    %433 = vector.shape_cast %432 : vector<1x10x5xbf16> to vector<10x5xbf16>
    %c0_383 = arith.constant 0 : index
    %c127_384 = arith.constant 127 : index
    %434 = vector.load %arg14[%c0_383, %c127_384] : memref<5x640xbf16, #tpu.memory_space<vmem>>, vector<5x384xbf16>
    %cst_385 = arith.constant dense<0.000000e+00> : vector<10x384xf32>
    %435 = tpu.matmul %433, %434, %cst_385 {dimension_numbers = #tpu.dot_dimension_numbers<[1], [0], [0], [1], [0, 0, 1, 1], [], []>} : vector<10x5xbf16>, vector<5x384xbf16>, vector<10x384xf32> -> vector<10x384xf32>
    %436 = arith.addf %431, %435 : vector<10x384xf32>
    %c12_386 = arith.constant 12 : index
    %c0_387 = arith.constant 0 : index
    %c0_388 = arith.constant 0 : index
    %437 = vector.load %arg6[%c12_386, %c0_387, %c0_388] : memref<25x10x5xbf16, #tpu.memory_space<vmem>>, vector<1x10x5xbf16>
    %438 = vector.shape_cast %437 : vector<1x10x5xbf16> to vector<10x5xbf16>
    %c0_389 = arith.constant 0 : index
    %c128_390 = arith.constant 128 : index
    %439 = vector.load %arg14[%c0_389, %c128_390] : memref<5x640xbf16, #tpu.memory_space<vmem>>, vector<5x384xbf16>
    %cst_391 = arith.constant dense<0.000000e+00> : vector<10x384xf32>
    %440 = tpu.matmul %438, %439, %cst_391 {dimension_numbers = #tpu.dot_dimension_numbers<[1], [0], [0], [1], [0, 0, 1, 1], [], []>} : vector<10x5xbf16>, vector<5x384xbf16>, vector<10x384xf32> -> vector<10x384xf32>
    %441 = arith.addf %436, %440 : vector<10x384xf32>
    %c13_392 = arith.constant 13 : index
    %c0_393 = arith.constant 0 : index
    %c0_394 = arith.constant 0 : index
    %442 = vector.load %arg6[%c13_392, %c0_393, %c0_394] : memref<25x10x5xbf16, #tpu.memory_space<vmem>>, vector<1x10x5xbf16>
    %443 = vector.shape_cast %442 : vector<1x10x5xbf16> to vector<10x5xbf16>
    %c0_395 = arith.constant 0 : index
    %c129_396 = arith.constant 129 : index
    %444 = vector.load %arg14[%c0_395, %c129_396] : memref<5x640xbf16, #tpu.memory_space<vmem>>, vector<5x384xbf16>
    %cst_397 = arith.constant dense<0.000000e+00> : vector<10x384xf32>
    %445 = tpu.matmul %443, %444, %cst_397 {dimension_numbers = #tpu.dot_dimension_numbers<[1], [0], [0], [1], [0, 0, 1, 1], [], []>} : vector<10x5xbf16>, vector<5x384xbf16>, vector<10x384xf32> -> vector<10x384xf32>
    %446 = arith.addf %441, %445 : vector<10x384xf32>
    %c14_398 = arith.constant 14 : index
    %c0_399 = arith.constant 0 : index
    %c0_400 = arith.constant 0 : index
    %447 = vector.load %arg6[%c14_398, %c0_399, %c0_400] : memref<25x10x5xbf16, #tpu.memory_space<vmem>>, vector<1x10x5xbf16>
    %448 = vector.shape_cast %447 : vector<1x10x5xbf16> to vector<10x5xbf16>
    %c0_401 = arith.constant 0 : index
    %c130_402 = arith.constant 130 : index
    %449 = vector.load %arg14[%c0_401, %c130_402] : memref<5x640xbf16, #tpu.memory_space<vmem>>, vector<5x384xbf16>
    %cst_403 = arith.constant dense<0.000000e+00> : vector<10x384xf32>
    %450 = tpu.matmul %448, %449, %cst_403 {dimension_numbers = #tpu.dot_dimension_numbers<[1], [0], [0], [1], [0, 0, 1, 1], [], []>} : vector<10x5xbf16>, vector<5x384xbf16>, vector<10x384xf32> -> vector<10x384xf32>
    %451 = arith.addf %446, %450 : vector<10x384xf32>
    %c15_404 = arith.constant 15 : index
    %c0_405 = arith.constant 0 : index
    %c0_406 = arith.constant 0 : index
    %452 = vector.load %arg6[%c15_404, %c0_405, %c0_406] : memref<25x10x5xbf16, #tpu.memory_space<vmem>>, vector<1x10x5xbf16>
    %453 = vector.shape_cast %452 : vector<1x10x5xbf16> to vector<10x5xbf16>
    %c0_407 = arith.constant 0 : index
    %c150_408 = arith.constant 150 : index
    %454 = vector.load %arg14[%c0_407, %c150_408] : memref<5x640xbf16, #tpu.memory_space<vmem>>, vector<5x384xbf16>
    %cst_409 = arith.constant dense<0.000000e+00> : vector<10x384xf32>
    %455 = tpu.matmul %453, %454, %cst_409 {dimension_numbers = #tpu.dot_dimension_numbers<[1], [0], [0], [1], [0, 0, 1, 1], [], []>} : vector<10x5xbf16>, vector<5x384xbf16>, vector<10x384xf32> -> vector<10x384xf32>
    %456 = arith.addf %451, %455 : vector<10x384xf32>
    %c16_410 = arith.constant 16 : index
    %c0_411 = arith.constant 0 : index
    %c0_412 = arith.constant 0 : index
    %457 = vector.load %arg6[%c16_410, %c0_411, %c0_412] : memref<25x10x5xbf16, #tpu.memory_space<vmem>>, vector<1x10x5xbf16>
    %458 = vector.shape_cast %457 : vector<1x10x5xbf16> to vector<10x5xbf16>
    %c0_413 = arith.constant 0 : index
    %c151_414 = arith.constant 151 : index
    %459 = vector.load %arg14[%c0_413, %c151_414] : memref<5x640xbf16, #tpu.memory_space<vmem>>, vector<5x384xbf16>
    %cst_415 = arith.constant dense<0.000000e+00> : vector<10x384xf32>
    %460 = tpu.matmul %458, %459, %cst_415 {dimension_numbers = #tpu.dot_dimension_numbers<[1], [0], [0], [1], [0, 0, 1, 1], [], []>} : vector<10x5xbf16>, vector<5x384xbf16>, vector<10x384xf32> -> vector<10x384xf32>
    %461 = arith.addf %456, %460 : vector<10x384xf32>
    %c17_416 = arith.constant 17 : index
    %c0_417 = arith.constant 0 : index
    %c0_418 = arith.constant 0 : index
    %462 = vector.load %arg6[%c17_416, %c0_417, %c0_418] : memref<25x10x5xbf16, #tpu.memory_space<vmem>>, vector<1x10x5xbf16>
    %463 = vector.shape_cast %462 : vector<1x10x5xbf16> to vector<10x5xbf16>
    %c0_419 = arith.constant 0 : index
    %c152_420 = arith.constant 152 : index
    %464 = vector.load %arg14[%c0_419, %c152_420] : memref<5x640xbf16, #tpu.memory_space<vmem>>, vector<5x384xbf16>
    %cst_421 = arith.constant dense<0.000000e+00> : vector<10x384xf32>
    %465 = tpu.matmul %463, %464, %cst_421 {dimension_numbers = #tpu.dot_dimension_numbers<[1], [0], [0], [1], [0, 0, 1, 1], [], []>} : vector<10x5xbf16>, vector<5x384xbf16>, vector<10x384xf32> -> vector<10x384xf32>
    %466 = arith.addf %461, %465 : vector<10x384xf32>
    %c18_422 = arith.constant 18 : index
    %c0_423 = arith.constant 0 : index
    %c0_424 = arith.constant 0 : index
    %467 = vector.load %arg6[%c18_422, %c0_423, %c0_424] : memref<25x10x5xbf16, #tpu.memory_space<vmem>>, vector<1x10x5xbf16>
    %468 = vector.shape_cast %467 : vector<1x10x5xbf16> to vector<10x5xbf16>
    %c0_425 = arith.constant 0 : index
    %c153_426 = arith.constant 153 : index
    %469 = vector.load %arg14[%c0_425, %c153_426] : memref<5x640xbf16, #tpu.memory_space<vmem>>, vector<5x384xbf16>
    %cst_427 = arith.constant dense<0.000000e+00> : vector<10x384xf32>
    %470 = tpu.matmul %468, %469, %cst_427 {dimension_numbers = #tpu.dot_dimension_numbers<[1], [0], [0], [1], [0, 0, 1, 1], [], []>} : vector<10x5xbf16>, vector<5x384xbf16>, vector<10x384xf32> -> vector<10x384xf32>
    %471 = arith.addf %466, %470 : vector<10x384xf32>
    %c19_428 = arith.constant 19 : index
    %c0_429 = arith.constant 0 : index
    %c0_430 = arith.constant 0 : index
    %472 = vector.load %arg6[%c19_428, %c0_429, %c0_430] : memref<25x10x5xbf16, #tpu.memory_space<vmem>>, vector<1x10x5xbf16>
    %473 = vector.shape_cast %472 : vector<1x10x5xbf16> to vector<10x5xbf16>
    %c0_431 = arith.constant 0 : index
    %c154_432 = arith.constant 154 : index
    %474 = vector.load %arg14[%c0_431, %c154_432] : memref<5x640xbf16, #tpu.memory_space<vmem>>, vector<5x384xbf16>
    %cst_433 = arith.constant dense<0.000000e+00> : vector<10x384xf32>
    %475 = tpu.matmul %473, %474, %cst_433 {dimension_numbers = #tpu.dot_dimension_numbers<[1], [0], [0], [1], [0, 0, 1, 1], [], []>} : vector<10x5xbf16>, vector<5x384xbf16>, vector<10x384xf32> -> vector<10x384xf32>
    %476 = arith.addf %471, %475 : vector<10x384xf32>
    %c20_434 = arith.constant 20 : index
    %c0_435 = arith.constant 0 : index
    %c0_436 = arith.constant 0 : index
    %477 = vector.load %arg6[%c20_434, %c0_435, %c0_436] : memref<25x10x5xbf16, #tpu.memory_space<vmem>>, vector<1x10x5xbf16>
    %478 = vector.shape_cast %477 : vector<1x10x5xbf16> to vector<10x5xbf16>
    %c0_437 = arith.constant 0 : index
    %c174_438 = arith.constant 174 : index
    %479 = vector.load %arg14[%c0_437, %c174_438] : memref<5x640xbf16, #tpu.memory_space<vmem>>, vector<5x384xbf16>
    %cst_439 = arith.constant dense<0.000000e+00> : vector<10x384xf32>
    %480 = tpu.matmul %478, %479, %cst_439 {dimension_numbers = #tpu.dot_dimension_numbers<[1], [0], [0], [1], [0, 0, 1, 1], [], []>} : vector<10x5xbf16>, vector<5x384xbf16>, vector<10x384xf32> -> vector<10x384xf32>
    %481 = arith.addf %476, %480 : vector<10x384xf32>
    %c21_440 = arith.constant 21 : index
    %c0_441 = arith.constant 0 : index
    %c0_442 = arith.constant 0 : index
    %482 = vector.load %arg6[%c21_440, %c0_441, %c0_442] : memref<25x10x5xbf16, #tpu.memory_space<vmem>>, vector<1x10x5xbf16>
    %483 = vector.shape_cast %482 : vector<1x10x5xbf16> to vector<10x5xbf16>
    %c0_443 = arith.constant 0 : index
    %c175_444 = arith.constant 175 : index
    %484 = vector.load %arg14[%c0_443, %c175_444] : memref<5x640xbf16, #tpu.memory_space<vmem>>, vector<5x384xbf16>
    %cst_445 = arith.constant dense<0.000000e+00> : vector<10x384xf32>
    %485 = tpu.matmul %483, %484, %cst_445 {dimension_numbers = #tpu.dot_dimension_numbers<[1], [0], [0], [1], [0, 0, 1, 1], [], []>} : vector<10x5xbf16>, vector<5x384xbf16>, vector<10x384xf32> -> vector<10x384xf32>
    %486 = arith.addf %481, %485 : vector<10x384xf32>
    %c22_446 = arith.constant 22 : index
    %c0_447 = arith.constant 0 : index
    %c0_448 = arith.constant 0 : index
    %487 = vector.load %arg6[%c22_446, %c0_447, %c0_448] : memref<25x10x5xbf16, #tpu.memory_space<vmem>>, vector<1x10x5xbf16>
    %488 = vector.shape_cast %487 : vector<1x10x5xbf16> to vector<10x5xbf16>
    %c0_449 = arith.constant 0 : index
    %c176_450 = arith.constant 176 : index
    %489 = vector.load %arg14[%c0_449, %c176_450] : memref<5x640xbf16, #tpu.memory_space<vmem>>, vector<5x384xbf16>
    %cst_451 = arith.constant dense<0.000000e+00> : vector<10x384xf32>
    %490 = tpu.matmul %488, %489, %cst_451 {dimension_numbers = #tpu.dot_dimension_numbers<[1], [0], [0], [1], [0, 0, 1, 1], [], []>} : vector<10x5xbf16>, vector<5x384xbf16>, vector<10x384xf32> -> vector<10x384xf32>
    %491 = arith.addf %486, %490 : vector<10x384xf32>
    %c23_452 = arith.constant 23 : index
    %c0_453 = arith.constant 0 : index
    %c0_454 = arith.constant 0 : index
    %492 = vector.load %arg6[%c23_452, %c0_453, %c0_454] : memref<25x10x5xbf16, #tpu.memory_space<vmem>>, vector<1x10x5xbf16>
    %493 = vector.shape_cast %492 : vector<1x10x5xbf16> to vector<10x5xbf16>
    %c0_455 = arith.constant 0 : index
    %c177_456 = arith.constant 177 : index
    %494 = vector.load %arg14[%c0_455, %c177_456] : memref<5x640xbf16, #tpu.memory_space<vmem>>, vector<5x384xbf16>
    %cst_457 = arith.constant dense<0.000000e+00> : vector<10x384xf32>
    %495 = tpu.matmul %493, %494, %cst_457 {dimension_numbers = #tpu.dot_dimension_numbers<[1], [0], [0], [1], [0, 0, 1, 1], [], []>} : vector<10x5xbf16>, vector<5x384xbf16>, vector<10x384xf32> -> vector<10x384xf32>
    %496 = arith.addf %491, %495 : vector<10x384xf32>
    %c24_458 = arith.constant 24 : index
    %c0_459 = arith.constant 0 : index
    %c0_460 = arith.constant 0 : index
    %497 = vector.load %arg6[%c24_458, %c0_459, %c0_460] : memref<25x10x5xbf16, #tpu.memory_space<vmem>>, vector<1x10x5xbf16>
    %498 = vector.shape_cast %497 : vector<1x10x5xbf16> to vector<10x5xbf16>
    %c0_461 = arith.constant 0 : index
    %c178_462 = arith.constant 178 : index
    %499 = vector.load %arg14[%c0_461, %c178_462] : memref<5x640xbf16, #tpu.memory_space<vmem>>, vector<5x384xbf16>
    %cst_463 = arith.constant dense<0.000000e+00> : vector<10x384xf32>
    %500 = tpu.matmul %498, %499, %cst_463 {dimension_numbers = #tpu.dot_dimension_numbers<[1], [0], [0], [1], [0, 0, 1, 1], [], []>} : vector<10x5xbf16>, vector<5x384xbf16>, vector<10x384xf32> -> vector<10x384xf32>
    %501 = arith.addf %496, %500 : vector<10x384xf32>
    %502 = vector.broadcast %22 : vector<10x1xf32> to vector<10x384xf32>
    %503 = arith.addf %501, %502 : vector<10x384xf32>
    %504 = math.tanh %503 : vector<10x384xf32>
    %505 = arith.truncf %504 : vector<10x384xf32> to vector<10x384xbf16>
    %cst_464 = arith.constant dense<0.000000e+00> : vector<8x384xf32>
    %506 = tpu.matmul %25, %505, %cst_464 {dimension_numbers = #tpu.dot_dimension_numbers<[1], [0], [0], [1], [0, 0, 1, 1], [], []>} : vector<8x10xbf16>, vector<10x384xbf16>, vector<8x384xf32> -> vector<8x384xf32>
    %507 = arith.addf %373, %506 : vector<8x384xf32>
    %508 = math.tanh %507 : vector<8x384xf32>
    %509 = math.tanh %508 : vector<8x384xf32>
    %c1_465 = arith.constant 1 : index
    %c0_466 = arith.constant 0 : index
    %c0_467 = arith.constant 0 : index
    %510 = vector.load %arg12[%c1_465, %c0_466, %c0_467] : memref<2x8x384xf32, #tpu.memory_space<vmem>>, vector<1x8x384xf32>
    %511 = vector.shape_cast %510 : vector<1x8x384xf32> to vector<8x384xf32>
    %512 = vector.shape_cast %509 : vector<8x384xf32> to vector<1x8x384xf32>
    tpu.vector_store %arg12[%c1_465, %c0_466, %c0_467], %512 {strides = array<i32>} : memref<2x8x384xf32, #tpu.memory_space<vmem>>, vector<1x8x384xf32>,
    return
  }
  func.func @transform_0(%arg0: i32) -> (i32, i32, i32) {
    %c0_i32 = arith.constant 0 : i32
    %c0_i32_0 = arith.constant 0 : i32
    %c0_i32_1 = arith.constant 0 : i32
    return %arg0, %c0_i32, %c0_i32_0 : i32, i32, i32
  }
  func.func @transform_1(%arg0: i32) -> (i32, i32) {
    %c0_i32 = arith.constant 0 : i32
    %c0_i32_0 = arith.constant 0 : i32
    %c0_i32_1 = arith.constant 0 : i32
    return %c0_i32, %c0_i32_0 : i32, i32
  }
  func.func @transform_2(%arg0: i32) -> (i32, i32) {
    %c0_i32 = arith.constant 0 : i32
    %c0_i32_0 = arith.constant 0 : i32
    %c0_i32_1 = arith.constant 0 : i32
    return %c0_i32, %c0_i32_0 : i32, i32
  }
  func.func @transform_3(%arg0: i32) -> (i32, i32, i32) {
    %c0_i32 = arith.constant 0 : i32
    %c0_i32_0 = arith.constant 0 : i32
    %c0_i32_1 = arith.constant 0 : i32
    %c0_i32_2 = arith.constant 0 : i32
    return %c0_i32, %c0_i32_0, %c0_i32_1 : i32, i32, i32
  }
  func.func @transform_4(%arg0: i32) -> (i32, i32) {
    %c0_i32 = arith.constant 0 : i32
    %c0_i32_0 = arith.constant 0 : i32
    %c0_i32_1 = arith.constant 0 : i32
    return %c0_i32, %c0_i32_0 : i32, i32
  }
  func.func @transform_5(%arg0: i32) -> (i32, i32, i32) {
    %c0_i32 = arith.constant 0 : i32
    %c0_i32_0 = arith.constant 0 : i32
    %c0_i32_1 = arith.constant 0 : i32
    %c0_i32_2 = arith.constant 0 : i32
    return %c0_i32, %c0_i32_0, %c0_i32_1 : i32, i32, i32
  }
  func.func @transform_6(%arg0: i32) -> (i32, i32) {
    %c0_i32 = arith.constant 0 : i32
    %c0_i32_0 = arith.constant 0 : i32
    %c0_i32_1 = arith.constant 0 : i32
    return %c0_i32, %c0_i32_0 : i32, i32
  }
  func.func @transform_7(%arg0: i32) -> (i32, i32) {
    %c0_i32 = arith.constant 0 : i32
    %c0_i32_0 = arith.constant 0 : i32
    %c0_i32_1 = arith.constant 0 : i32
    return %c0_i32, %c0_i32_0 : i32, i32
  }
  func.func @transform_8(%arg0: i32) -> (i32, i32) {
    %c0_i32 = arith.constant 0 : i32
    %c0_i32_0 = arith.constant 0 : i32
    %c0_i32_1 = arith.constant 0 : i32
    return %c0_i32, %c0_i32_0 : i32, i32
  }
  func.func @transform_9(%arg0: i32) -> (i32, i32) {
    %c0_i32 = arith.constant 0 : i32
    %c0_i32_0 = arith.constant 0 : i32
    %c0_i32_1 = arith.constant 0 : i32
    return %c0_i32, %c0_i32_0 : i32, i32
  }
  func.func @transform_10(%arg0: i32) -> (i32, i32) {
    %c0_i32 = arith.constant 0 : i32
    %c0_i32_0 = arith.constant 0 : i32
    %c0_i32_1 = arith.constant 0 : i32
    return %c0_i32, %c0_i32_0 : i32, i32
  }
  func.func @transform_11(%arg0: i32) -> (i32, i32, i32) {
    %c0_i32 = arith.constant 0 : i32
    %c0_i32_0 = arith.constant 0 : i32
    %c0_i32_1 = arith.constant 0 : i32
    return %arg0, %c0_i32, %c0_i32_0 : i32, i32, i32
  }
}

</mosaic_0001>

<llo_original>
// kernel: model_forward.1
$region0: #{model_forward.1}
  #allocation0 [shape = 'u32[]', space=smem, size = 0x4, offset = 0x4, fixed_abs, tag = 'smem constant byte address 0x4 - core index']
  #allocation1 [shape = 'u32[144,128]{1,0:T(1,128)}', space=vmem, size = 0x12000, scoped, tag = 'internal scratch']
  #allocation2 [shape = 'bf16[5,640]{1,0:T(8,128)(2,1)}', space=vmem, size = 0x2800, scoped, tag = 'scratch operand']
  #allocation3 [shape = 'bf16[5,640]{1,0:T(8,128)(2,1)}', space=vmem, size = 0x2800, scoped, tag = 'scratch operand']
  %s0 = inlined_call_operand.hbm [shape: f32[2,4,480], index: 0, kind: input, shape index: {}]
  %s1 = inlined_call_operand.hbm [shape: bf16[30,8], index: 1, kind: input, shape index: {}]
  %s2 = inlined_call_operand.hbm [shape: f32[30,1], index: 2, kind: input, shape index: {}]
  %s3 = inlined_call_operand.hbm [shape: bf16[9,10,5], index: 3, kind: input, shape index: {}]
  %s4 = inlined_call_operand.hbm [shape: f32[10,1], index: 4, kind: input, shape index: {}]
  %s5 = inlined_call_operand.hbm [shape: bf16[25,10,5], index: 5, kind: input, shape index: {}]
  %s6 = inlined_call_operand.hbm [shape: f32[10,1], index: 6, kind: input, shape index: {}]
  %s7 = inlined_call_operand.hbm [shape: bf16[8,30], index: 7, kind: input, shape index: {}]
  %s8 = inlined_call_operand.hbm [shape: bf16[8,10], index: 8, kind: input, shape index: {}]
  %s9 = inlined_call_operand.hbm [shape: bf16[8,10], index: 9, kind: input, shape index: {}]
  %s10 = inlined_call_operand.hbm [shape: f32[8,1], index: 10, kind: input, shape index: {}]
  %s11 = inlined_call_operand.hbm [shape: f32[2,8,384], index: 11, kind: output, shape index: {}]
  %s12 = sld [smem:[#allocation0]]
  $region98: #{model_forward.1} parent=0
    _
  %s14 = ssub.s32 1, %s12
  %s15 = scalar_select 0, %s14, %s12
  $region1: #{model_forward.1} parent=0
    #allocation4 [shape = 'u8[16384]{0}', space=vmem, size = 0x4000, scoped, tag = 'input window, operand 0, single buffered']
    #allocation5 [shape = 's32[1]{0}', space=sflag, size = 0x4, scoped, tag = 'scoped memory for model_forward.1']
    #allocation6 [shape = 's32[1]{0}', space=sflag, size = 0x4, scoped, tag = 'scoped memory for model_forward.1']
    #allocation7 [shape = 'u8[8192]{0}', space=vmem, size = 0x2000, scoped, tag = 'input window, operand 1, single buffered']
    #allocation8 [shape = 's32[1]{0}', space=sflag, size = 0x4, scoped, tag = 'scoped memory for model_forward.1']
    #allocation9 [shape = 'u8[16384]{0}', space=vmem, size = 0x4000, scoped, tag = 'input window, operand 2, single buffered']
    #allocation10 [shape = 'u8[36864]{0}', space=vmem, size = 0x9000, scoped, tag = 'input window, operand 3, single buffered']
    #allocation11 [shape = 's32[1]{0}', space=sflag, size = 0x4, scoped, tag = 'scoped memory for model_forward.1']
    #allocation12 [shape = 'u8[8192]{0}', space=vmem, size = 0x2000, scoped, tag = 'input window, operand 4, single buffered']
    #allocation13 [shape = 'u8[102400]{0}', space=vmem, size = 0x19000, scoped, tag = 'input window, operand 5, single buffered']
    #allocation14 [shape = 's32[1]{0}', space=sflag, size = 0x4, scoped, tag = 'scoped memory for model_forward.1']
    #allocation15 [shape = 'u8[8192]{0}', space=vmem, size = 0x2000, scoped, tag = 'input window, operand 6, single buffered']
    #allocation16 [shape = 'u8[2048]{0}', space=vmem, size = 0x800, scoped, tag = 'input window, operand 7, single buffered']
    #allocation17 [shape = 's32[1]{0}', space=sflag, size = 0x4, scoped, tag = 'scoped memory for model_forward.1']
    #allocation18 [shape = 'u8[2048]{0}', space=vmem, size = 0x800, scoped, tag = 'input window, operand 8, single buffered']
    #allocation19 [shape = 'u8[2048]{0}', space=vmem, size = 0x800, scoped, tag = 'input window, operand 9, single buffered']
    #allocation20 [shape = 's32[1]{0}', space=sflag, size = 0x4, scoped, tag = 'scoped memory for model_forward.1']
    #allocation21 [shape = 'u8[4096]{0}', space=vmem, size = 0x1000, scoped, tag = 'input window, operand 10, single buffered']
    #allocation22 [shape = 'u8[24576]{0}', space=vmem, size = 0x6000, scoped, tag = 'output window, operand 0, single buffered']
    %16 = vsyncpa [#allocation5], 0
    %17 = vsyncpa [#allocation8], 0
    %18 = vsyncpa [#allocation11], 0
    %19 = vsyncpa [#allocation14], 0
    %20 = vsyncpa [#allocation17], 0
    %21 = vsyncpa [#allocation20], 0
    %22 = vsyncpa [#allocation6], 0
    // Predicated region
    $region2: #{model_forward.1} parent=1 // pred_check
      _
    $region3: #{model_forward.1} parent=1 // pred_check_branch
      %24 = sbr.rel (0) target = $region5
    $region4: #{model_forward.1} parent=1 // pred_region
      %s26 = ssub.s32 512, 512
      %27 = vsyncadd [#allocation5], %s26
      %s28 = sshll.u32 [#allocation4], 4
      %s29 = int_to_ptr.vmem [resolvable:$true] %s28
      %34 = dma.hbm_to_vmem [thread:$0]  %s0, 512, %s29, [#allocation5], 256, 256, 16
    $region5: #{model_forward.1} parent=1 // pred_fallthru
      _
    // Predicated region
    $region6: #{model_forward.1} parent=1 // pred_check
      _
    $region7: #{model_forward.1} parent=1 // pred_check_branch
      %36 = sbr.rel (0) target = $region9
    $region8: #{model_forward.1} parent=1 // pred_region
      %s38 = ssub.s32 256, 256
      %39 = vsyncadd [#allocation8], %s38
      %s40 = sshll.u32 [#allocation7], 4
      %s41 = int_to_ptr.vmem [resolvable:$true] %s40
      %46 = dma.hbm_to_vmem [thread:$0]  %s1, 256, %s41, [#allocation8], 64, 64, 4
    $region9: #{model_forward.1} parent=1 // pred_fallthru
      _
    // Predicated region
    $region10: #{model_forward.1} parent=1 // pred_check
      _
    $region11: #{model_forward.1} parent=1 // pred_check_branch
      %48 = sbr.rel (0) target = $region13
    $region12: #{model_forward.1} parent=1 // pred_region
      %s50 = ssub.s32 512, 512
      %51 = vsyncadd [#allocation8], %s50
      %s52 = sshll.u32 [#allocation9], 4
      %s53 = int_to_ptr.vmem [resolvable:$true] %s52
      %58 = dma.hbm_to_vmem [thread:$0]  %s2, 512, %s53, [#allocation8], 128, 128, 8
    $region13: #{model_forward.1} parent=1 // pred_fallthru
      _
    // Predicated region
    $region14: #{model_forward.1} parent=1 // pred_check
      _
    $region15: #{model_forward.1} parent=1 // pred_check_branch
      %60 = sbr.rel (0) target = $region17
    $region16: #{model_forward.1} parent=1 // pred_region
      %s62 = ssub.s32 1152, 1152
      %63 = vsyncadd [#allocation11], %s62
      %s64 = sshll.u32 [#allocation10], 4
      %s65 = int_to_ptr.vmem [resolvable:$true] %s64
      %70 = dma.hbm_to_vmem [thread:$0]  %s3, 1152, %s65, [#allocation11], 64, 64, 4
    $region17: #{model_forward.1} parent=1 // pred_fallthru
      _
    // Predicated region
    $region18: #{model_forward.1} parent=1 // pred_check
      _
    $region19: #{model_forward.1} parent=1 // pred_check_branch
      %72 = sbr.rel (0) target = $region21
    $region20: #{model_forward.1} parent=1 // pred_region
      %s74 = ssub.s32 256, 256
      %75 = vsyncadd [#allocation11], %s74
      %s76 = sshll.u32 [#allocation12], 4
      %s77 = int_to_ptr.vmem [resolvable:$true] %s76
      %82 = dma.hbm_to_vmem [thread:$0]  %s4, 256, %s77, [#allocation11], 128, 128, 8
    $region21: #{model_forward.1} parent=1 // pred_fallthru
      _
    // Predicated region
    $region22: #{model_forward.1} parent=1 // pred_check
      _
    $region23: #{model_forward.1} parent=1 // pred_check_branch
      %84 = sbr.rel (0) target = $region25
    $region24: #{model_forward.1} parent=1 // pred_region
      %s86 = ssub.s32 3200, 3200
      %87 = vsyncadd [#allocation14], %s86
      %s88 = sshll.u32 [#allocation13], 4
      %s89 = int_to_ptr.vmem [resolvable:$true] %s88
      %94 = dma.hbm_to_vmem [thread:$0]  %s5, 3200, %s89, [#allocation14], 64, 64, 4
    $region25: #{model_forward.1} parent=1 // pred_fallthru
      _
    // Predicated region
    $region26: #{model_forward.1} parent=1 // pred_check
      _
    $region27: #{model_forward.1} parent=1 // pred_check_branch
      %96 = sbr.rel (0) target = $region29
    $region28: #{model_forward.1} parent=1 // pred_region
      %s98 = ssub.s32 256, 256
      %99 = vsyncadd [#allocation14], %s98
      %s100 = sshll.u32 [#allocation15], 4
      %s101 = int_to_ptr.vmem [resolvable:$true] %s100
      %106 = dma.hbm_to_vmem [thread:$0]  %s6, 256, %s101, [#allocation14], 128, 128, 8
    $region29: #{model_forward.1} parent=1 // pred_fallthru
      _
    // Predicated region
    $region30: #{model_forward.1} parent=1 // pred_check
      _
    $region31: #{model_forward.1} parent=1 // pred_check_branch
      %108 = sbr.rel (0) target = $region33
    $region32: #{model_forward.1} parent=1 // pred_region
      %s110 = ssub.s32 64, 64
      %111 = vsyncadd [#allocation17], %s110
      %s113 = sshll.u32 [#allocation16], 4
      %s114 = int_to_ptr.vmem [resolvable:$true] %s113
      %116 = dma.hbm_to_vmem [thread:$0]  %s7, 64, %s114, [#allocation17]
    $region33: #{model_forward.1} parent=1 // pred_fallthru
      _
    // Predicated region
    $region34: #{model_forward.1} parent=1 // pred_check
      _
    $region35: #{model_forward.1} parent=1 // pred_check_branch
      %118 = sbr.rel (0) target = $region37
    $region36: #{model_forward.1} parent=1 // pred_region
      %s120 = ssub.s32 64, 64
      %121 = vsyncadd [#allocation17], %s120
      %s123 = sshll.u32 [#allocation18], 4
      %s124 = int_to_ptr.vmem [resolvable:$true] %s123
      %126 = dma.hbm_to_vmem [thread:$0]  %s8, 64, %s124, [#allocation17]
    $region37: #{model_forward.1} parent=1 // pred_fallthru
      _
    // Predicated region
    $region38: #{model_forward.1} parent=1 // pred_check
      _
    $region39: #{model_forward.1} parent=1 // pred_check_branch
      %128 = sbr.rel (0) target = $region41
    $region40: #{model_forward.1} parent=1 // pred_region
      %s130 = ssub.s32 64, 64
      %131 = vsyncadd [#allocation20], %s130
      %s133 = sshll.u32 [#allocation19], 4
      %s134 = int_to_ptr.vmem [resolvable:$true] %s133
      %136 = dma.hbm_to_vmem [thread:$0]  %s9, 64, %s134, [#allocation20]
    $region41: #{model_forward.1} parent=1 // pred_fallthru
      _
    // Predicated region
    $region42: #{model_forward.1} parent=1 // pred_check
      _
    $region43: #{model_forward.1} parent=1 // pred_check_branch
      %138 = sbr.rel (0) target = $region45
    $region44: #{model_forward.1} parent=1 // pred_region
      %s140 = ssub.s32 128, 128
      %141 = vsyncadd [#allocation20], %s140
      %s143 = sshll.u32 [#allocation21], 4
      %s144 = int_to_ptr.vmem [resolvable:$true] %s143
      %146 = dma.hbm_to_vmem [thread:$0]  %s10, 128, %s144, [#allocation20]
    $region45: #{model_forward.1} parent=1 // pred_fallthru
      _
    // Predicated region
    $region46: #{model_forward.1} parent=1 // pred_check
      _
    $region47: #{model_forward.1} parent=1 // pred_check_branch
      %148 = sbr.rel (0) target = $region49
    $region48: #{model_forward.1} parent=1 // pred_region
      %149 = dma.done [#allocation5], 512
    $region49: #{model_forward.1} parent=1 // pred_fallthru
      _
    // Predicated region
    $region50: #{model_forward.1} parent=1 // pred_check
      _
    $region51: #{model_forward.1} parent=1 // pred_check_branch
      %151 = sbr.rel (0) target = $region53
    $region52: #{model_forward.1} parent=1 // pred_region
      %152 = dma.done [#allocation8], 256
    $region53: #{model_forward.1} parent=1 // pred_fallthru
      _
    // Predicated region
    $region54: #{model_forward.1} parent=1 // pred_check
      _
    $region55: #{model_forward.1} parent=1 // pred_check_branch
      %154 = sbr.rel (0) target = $region57
    $region56: #{model_forward.1} parent=1 // pred_region
      %155 = dma.done [#allocation8], 512
    $region57: #{model_forward.1} parent=1 // pred_fallthru
      _
    // Predicated region
    $region58: #{model_forward.1} parent=1 // pred_check
      _
    $region59: #{model_forward.1} parent=1 // pred_check_branch
      %157 = sbr.rel (0) target = $region61
    $region60: #{model_forward.1} parent=1 // pred_region
      %158 = dma.done [#allocation11], 1152
    $region61: #{model_forward.1} parent=1 // pred_fallthru
      _
    // Predicated region
    $region62: #{model_forward.1} parent=1 // pred_check
      _
    $region63: #{model_forward.1} parent=1 // pred_check_branch
      %160 = sbr.rel (0) target = $region65
    $region64: #{model_forward.1} parent=1 // pred_region
      %161 = dma.done [#allocation11], 256
    $region65: #{model_forward.1} parent=1 // pred_fallthru
      _
    // Predicated region
    $region66: #{model_forward.1} parent=1 // pred_check
      _
    $region67: #{model_forward.1} parent=1 // pred_check_branch
      %163 = sbr.rel (0) target = $region69
    $region68: #{model_forward.1} parent=1 // pred_region
      %164 = dma.done [#allocation14], 3200
    $region69: #{model_forward.1} parent=1 // pred_fallthru
      _
    // Predicated region
    $region70: #{model_forward.1} parent=1 // pred_check
      _
    $region71: #{model_forward.1} parent=1 // pred_check_branch
      %166 = sbr.rel (0) target = $region73
    $region72: #{model_forward.1} parent=1 // pred_region
      %167 = dma.done [#allocation14], 256
    $region73: #{model_forward.1} parent=1 // pred_fallthru
      _
    // Predicated region
    $region74: #{model_forward.1} parent=1 // pred_check
      _
    $region75: #{model_forward.1} parent=1 // pred_check_branch
      %169 = sbr.rel (0) target = $region77
    $region76: #{model_forward.1} parent=1 // pred_region
      %170 = dma.done [#allocation17], 64
    $region77: #{model_forward.1} parent=1 // pred_fallthru
      _
    // Predicated region
    $region78: #{model_forward.1} parent=1 // pred_check
      _
    $region79: #{model_forward.1} parent=1 // pred_check_branch
      %172 = sbr.rel (0) target = $region81
    $region80: #{model_forward.1} parent=1 // pred_region
      %173 = dma.done [#allocation17], 64
    $region81: #{model_forward.1} parent=1 // pred_fallthru
      _
    // Predicated region
    $region82: #{model_forward.1} parent=1 // pred_check
      _
    $region83: #{model_forward.1} parent=1 // pred_check_branch
      %175 = sbr.rel (0) target = $region85
    $region84: #{model_forward.1} parent=1 // pred_region
      %176 = dma.done [#allocation20], 64
    $region85: #{model_forward.1} parent=1 // pred_fallthru
      _
    // Predicated region
    $region86: #{model_forward.1} parent=1 // pred_check
      _
    $region87: #{model_forward.1} parent=1 // pred_check_branch
      %178 = sbr.rel (0) target = $region89
    $region88: #{model_forward.1} parent=1 // pred_region
      %179 = dma.done [#allocation20], 128
    $region89: #{model_forward.1} parent=1 // pred_fallthru
      _
    %v181 = vlaneseq
    %v182 = vand.u32 %v181, 127
    %v183 = vadd.s32 %v182, 128
    %v184 = vadd.s32 %v182, 256
    %vm185 = vcmp.lt.s32.totalorder %v182, 0
    %v186 = vsub.s32 0, %v182
    %v187 = vsel %vm185, %v186, %v182
    %v188 = vmul.u32.u64.compose %v187, 2863311531
    %v189 = vextract.low.u32 %v188
    %v190 = vextract.high.u32 %v188
    %v191 = vshrl.u32 %v190, 4
    %v192 = vmul.u32 %v191, 24
    %v193 = vsub.s32 %v187, %v192
    %v194 = vsub.s32 0, %v193
    %v195 = vsel %vm185, %v194, %v193
    %vm196 = vcmp.lt.s32.totalorder %v183, 0
    %v197 = vsub.s32 0, %v183
    %v198 = vsel %vm196, %v197, %v183
    %v199 = vmul.u32.u64.compose %v198, 2863311531
    %v200 = vextract.low.u32 %v199
    %v201 = vextract.high.u32 %v199
    %v202 = vshrl.u32 %v201, 4
    %v203 = vmul.u32 %v202, 24
    %v204 = vsub.s32 %v198, %v203
    %v205 = vsub.s32 0, %v204
    %v206 = vsel %vm196, %v205, %v204
    %vm207 = vcmp.lt.s32.totalorder %v184, 0
    %v208 = vsub.s32 0, %v184
    %v209 = vsel %vm207, %v208, %v184
    %v210 = vmul.u32.u64.compose %v209, 2863311531
    %v211 = vextract.low.u32 %v210
    %v212 = vextract.high.u32 %v210
    %v213 = vshrl.u32 %v212, 4
    %v214 = vmul.u32 %v213, 24
    %v215 = vsub.s32 %v209, %v214
    %v216 = vsub.s32 0, %v215
    %v217 = vsel %vm207, %v216, %v215
    %vm218 = vcmp.ne.s32.totalorder %v195, 0
    %vm219 = vcmp.ne.s32.totalorder %v206, 0
    %vm220 = vcmp.ne.s32.totalorder %v217, 0
    %vm221 = vcmp.lt.s32.totalorder %v195, 0
    %vm222 = vcmp.lt.s32.totalorder %v206, 0
    %vm223 = vcmp.lt.s32.totalorder %v217, 0
    %vm224 = vmand %vm221, %vm218
    %vm225 = vmand %vm222, %vm219
    %vm226 = vmand %vm223, %vm220
    %v227 = vadd.s32 %v195, 24
    %v228 = vadd.s32 %v206, 24
    %v229 = vadd.s32 %v217, 24
    %v230 = vsel %vm224, %v227, %v195
    %v231 = vsel %vm225, %v228, %v206
    %v232 = vsel %vm226, %v229, %v217
    %vm233 = vcmp.lt.s32.totalorder %v230, 16
    %vm234 = vcmp.lt.s32.totalorder %v231, 16
    %vm235 = vcmp.lt.s32.totalorder %v232, 16
    %v236 = vld [vmem:[#allocation7] sm:$0xf]
    %v237 = vld [vmem:[#allocation7 + $0x4] sm:$0xf]
    %v238 = vld [vmem:[#allocation7 + $0x8] sm:$0xf]
    %v239 = vld [vmem:[#allocation7 + $0xc] sm:$0x7]
    %v240 = vld [vmem:[#allocation9] sm:$0xff]
    %v241 = vld [vmem:[#allocation9 + $0x8] sm:$0xff]
    %v242 = vld [vmem:[#allocation9 + $0x10] sm:$0xff]
    %v243 = vld [vmem:[#allocation9 + $0x18] sm:$0x3f]
    %v244 = vld [vmem:[#allocation12] sm:$0xff]
    %v245 = vld [vmem:[#allocation12 + $0x8] sm:$0x3]
    %v246 = vld [vmem:[#allocation15] sm:$0xff]
    %v247 = vld [vmem:[#allocation15 + $0x8] sm:$0x3]
    %v248 = vld [vmem:[#allocation16] sm:$0xf]
    %v249 = vld [vmem:[#allocation18] sm:$0xf]
    %v250 = vld [vmem:[#allocation19] sm:$0xf]
    %v251 = vld [vmem:[#allocation21] sm:$0xff]
    %vm252 = vcmask 1042432
    %vm253 = vsmask.f32 2304
    %vm254 = vmand %vm252, %vm253
    %v255 = vld [vmem:[#allocation2] sm:$0x7]
    %v256 = vsel %vm254, 0, %v255
    %257 = vst [vmem:[#allocation2] sm:$0x7] %v256
    %v258 = vld [vmem:[#allocation2 + $0x10] sm:$0x7]
    %v259 = vsel %vm254, 0, %v258
    %260 = vst [vmem:[#allocation2 + $0x10] sm:$0x7] %v259
    %v261 = vld [vmem:[#allocation3] sm:$0x7]
    %v262 = vsel %vm254, 0, %v261
    %263 = vst [vmem:[#allocation3] sm:$0x7] %v262
    %v264 = vld [vmem:[#allocation3 + $0x10] sm:$0x7]
    %v265 = vsel %vm254, 0, %v264
    %266 = vst [vmem:[#allocation3 + $0x10] sm:$0x7] %v265
    %v267 = vld [vmem:[#allocation4] sm:$0xff]
    %v268 = vld [vmem:[#allocation4 + $0x8] sm:$0xff]
    %271 = vrot.lane.b32.xlu0 %v267, 127
    %v272 = vpop.permute.xlu0 %271
    %273 = vrot.lane.b32.xlu0 %v268, 127
    %v274 = vpop.permute.xlu0 %273
    %v275 = vrot.slane %v272, 4
    %v276 = vrot.slane %v274, 4
    %vm277 = vcmask 1043456
    %v278 = vsel %vm277, %v275, %v276
    %vm279 = vcmask 1039360
    %v280 = vsel %vm279, %v272, %v278
    %v281 = vsel %vm279, %v274, %v276
    %v284 = vmax.f32 %v267, %v280
    %v285 = vmax.f32 %v268, %v281
    %286 = vrot.lane.b32.xlu0 %v267, 126
    %v287 = vpop.permute.xlu0 %286
    %288 = vrot.lane.b32.xlu0 %v268, 126
    %v289 = vpop.permute.xlu0 %288
    %v290 = vrot.slane %v287, 4
    %v291 = vrot.slane %v289, 4
    %v292 = vsel %vm277, %v290, %v291
    %vm293 = vcmask 1031168
    %v294 = vsel %vm293, %v287, %v292
    %v295 = vsel %vm293, %v289, %v291
    %v298 = vmax.f32 %v284, %v294
    %v299 = vmax.f32 %v285, %v295
    %300 = vrot.lane.b32.xlu0 %v267, 104
    %v301 = vpop.permute.xlu0 %300
    %302 = vrot.lane.b32.xlu0 %v268, 104
    %v303 = vpop.permute.xlu0 %302
    %v304 = vrot.slane %v301, 4
    %v305 = vrot.slane %v303, 4
    %v306 = vsel %vm277, %v304, %v305
    %vm307 = vcmask 850944
    %v308 = vsel %vm307, %v301, %v306
    %v309 = vsel %vm307, %v303, %v305
    %v312 = vmax.f32 %v298, %v308
    %v313 = vmax.f32 %v299, %v309
    %314 = vrot.lane.b32.xlu0 %v267, 103
    %v315 = vpop.permute.xlu0 %314
    %316 = vrot.lane.b32.xlu0 %v268, 103
    %v317 = vpop.permute.xlu0 %316
    %v318 = vrot.slane %v315, 4
    %v319 = vrot.slane %v317, 4
    %v320 = vsel %vm277, %v318, %v319
    %vm321 = vcmask 842752
    %v322 = vsel %vm321, %v315, %v320
    %v323 = vsel %vm321, %v317, %v319
    %v326 = vmax.f32 %v312, %v322
    %v327 = vmax.f32 %v313, %v323
    %328 = vrot.lane.b32.xlu0 %v267, 102
    %v329 = vpop.permute.xlu0 %328
    %330 = vrot.lane.b32.xlu0 %v268, 102
    %v331 = vpop.permute.xlu0 %330
    %v332 = vrot.slane %v329, 4
    %v333 = vrot.slane %v331, 4
    %v334 = vsel %vm277, %v332, %v333
    %vm335 = vcmask 834560
    %v336 = vsel %vm335, %v329, %v334
    %v337 = vsel %vm335, %v331, %v333
    %v340 = vmax.f32 %v326, %v336
    %v341 = vmax.f32 %v327, %v337
    %342 = vrot.lane.b32.xlu0 %v267, 80
    %v343 = vpop.permute.xlu0 %342
    %344 = vrot.lane.b32.xlu0 %v268, 80
    %v345 = vpop.permute.xlu0 %344
    %v346 = vrot.slane %v343, 4
    %v347 = vrot.slane %v345, 4
    %v348 = vsel %vm277, %v346, %v347
    %vm349 = vcmask 654336
    %v350 = vsel %vm349, %v343, %v348
    %v351 = vsel %vm349, %v345, %v347
    %v354 = vmax.f32 %v340, %v350
    %v355 = vmax.f32 %v341, %v351
    %356 = vrot.lane.b32.xlu0 %v267, 79
    %v357 = vpop.permute.xlu0 %356
    %358 = vrot.lane.b32.xlu0 %v268, 79
    %v359 = vpop.permute.xlu0 %358
    %v360 = vrot.slane %v357, 4
    %v361 = vrot.slane %v359, 4
    %v362 = vsel %vm277, %v360, %v361
    %vm363 = vcmask 646144
    %v364 = vsel %vm363, %v357, %v362
    %v365 = vsel %vm363, %v359, %v361
    %v368 = vmax.f32 %v354, %v364
    %v369 = vmax.f32 %v355, %v365
    %370 = vrot.lane.b32.xlu0 %v267, 78
    %v371 = vpop.permute.xlu0 %370
    %372 = vrot.lane.b32.xlu0 %v268, 78
    %v373 = vpop.permute.xlu0 %372
    %v374 = vrot.slane %v371, 4
    %v375 = vrot.slane %v373, 4
    %v376 = vsel %vm277, %v374, %v375
    %vm377 = vcmask 637952
    %v378 = vsel %vm377, %v371, %v376
    %v379 = vsel %vm377, %v373, %v375
    %v382 = vmax.f32 %v368, %v378
    %v383 = vmax.f32 %v369, %v379
    %v384 = vcombine.high %v267, %v267
    %v385 = vcombine.high %v268, %v268
    %v390 = vcombine.low %v382, %v382
    %v391 = vcombine.low %v383, %v383
    %392 = vrot.lane.b32.xlu0 %v390, 25
    %v393 = vpop.permute.xlu0 %392
    %394 = vrot.lane.b32.xlu0 %v382, 25
    %v395 = vpop.permute.xlu0 %394
    %396 = vrot.lane.b32.xlu0 %v391, 25
    %v397 = vpop.permute.xlu0 %396
    %398 = vrot.lane.b32.xlu0 %v383, 25
    %v399 = vpop.permute.xlu0 %398
    %vm400 = vcmask 203776
    %v401 = vsel %vm400, %v393, %v395
    %v402 = vsel %vm400, %v395, %v397
    %v403 = vsel %vm400, %v397, %v399
    %v408 = vsel %vm277, %v267, %v393
    %v409 = vsel %vm277, %v384, %v401
    %v410 = vsel %vm277, %v268, %v402
    %v411 = vsel %vm277, %v385, %v403
    %v412 = vsel %vm233, 1, 0
    %v413 = vsel %vm234, 1, 0
    %v414 = vsel %vm235, 1, 0
    %vm415 = vcmp.eq.s32.totalorder %v412, 1
    %vm416 = vcmp.eq.s32.totalorder %v413, 1
    %vm417 = vcmp.eq.s32.totalorder %v414, 1
    %422 = vrot.lane.b32.xlu0 %v408, 78
    %v423 = vpop.permute.xlu0 %422
    %424 = vrot.lane.b32.xlu0 %v409, 78
    %v425 = vpop.permute.xlu0 %424
    %426 = vrot.lane.b32.xlu0 %v410, 78
    %v427 = vpop.permute.xlu0 %426
    %428 = vrot.lane.b32.xlu0 %v411, 78
    %v429 = vpop.permute.xlu0 %428
    %v430 = vsel %vm377, %v423, %v425
    %v431 = vsel %vm377, %v425, %v427
    %v432 = vsel %vm377, %v427, %v429
    %v436 = vsel %vm415, %v430, 0.0
    %v437 = vsel %vm416, %v431, 0.0
    %v438 = vsel %vm417, %v432, 0.0
    %v439 = vpack.c.bf16 %v436, %v436
    %v440 = vpack.c.bf16 %v437, %v437
    %v441 = vpack.c.bf16 %v438, %v438
    %443 = vset.pattern.permute.xlu0 0
    %444 = vperm.xlu0 %443, %v240
    %v445 = vpop.permute.xlu0 %444
    %448 = vset.pattern.permute.xlu0 0
    %449 = vperm.xlu0 %448, %v241
    %v450 = vpop.permute.xlu0 %449
    %453 = vset.pattern.permute.xlu0 0
    %454 = vperm.xlu0 %453, %v242
    %v455 = vpop.permute.xlu0 %454
    %458 = vset.pattern.permute.xlu0 0
    %459 = vperm.xlu0 %458, %v243
    %v460 = vpop.permute.xlu0 %459
    %v466 = vunpack.c.l.b16 %v236
    %v467 = vunpack.c.l.b16 %v237
    %v468 = vunpack.c.l.b16 %v238
    %v469 = vunpack.c.l.b16 %v239
    %v470 = vpack.c.b16 %v467, %v466
    %v471 = vpack.c.b16 %v469, %v468
    %vm472 = vcmask 64512
    %v474 = vsel %vm472, %v470, 0
    %v477 = vsel %vm472, %v471, 0
    %v480 = vsel %vm277, %v439, 0
    %v483 = vsel %vm277, %v440, 0
    %v486 = vsel %vm277, %v441, 0
    %488 = vmatprep.subr.bf16.mxu0 %v483
    %489 = vmatpush1.bf16.msra.mxu0 %v480
    %490 = vmatprep.subr.bf16.mxu0 0
    %491 = vmatpush1.bf16.msra.mxu0 0
    %492 = vmatprep.subr.bf16.mxu0 0
    %493 = vmatpush1.bf16.msra.mxu0 0
    %494 = vmatprep.subr.bf16.mxu0 0
    %495 = vmatpush1.bf16.msra.mxu0 0
    %496 = vmatprep.subr.bf16.mxu0 0
    %497 = vmatpush1.bf16.msra.mxu0 0
    %498 = vmatprep.subr.bf16.mxu0 0
    %499 = vmatpush1.bf16.msra.mxu0 0
    %500 = vmatprep.subr.bf16.mxu0 0
    %501 = vmatpush1.bf16.msra.mxu0 0
    %502 = vmatprep.subr.bf16.mxu0 0
    %503 = vmatpush1.bf16.msra.mxu0 0
    %504 = vmatprep.subr.bf16.mxu0 0
    %505 = vmatpush1.bf16.msra.mxu0 0
    %506 = vmatprep.subr.bf16.mxu0 0
    %507 = vmatpush1.bf16.msra.mxu0 0
    %508 = vmatprep.subr.bf16.mxu0 0
    %509 = vmatpush1.bf16.msra.mxu0 0
    %510 = vmatprep.subr.bf16.mxu0 0
    %511 = vmatpush1.bf16.msra.mxu0 0
    %512 = vmatprep.subr.bf16.mxu0 0
    %513 = vmatpush1.bf16.msra.mxu0 0
    %514 = vmatprep.subr.bf16.mxu0 0
    %515 = vmatpush1.bf16.msra.mxu0 0
    %516 = vmatprep.subr.bf16.mxu0 0
    %517 = vmatpush1.bf16.msra.mxu0 0
    %518 = vmatprep.subr.bf16.mxu0 0
    %519 = vmatpush1.bf16.msra.mxu0 0
    %520 = vmatprep.mubr.bf16.mxu0 0
    %521 = vmatmul.mubr.bf16.gmra.mrb[0].mxu0 %v474
    %v522 = vpop.f32.mrb[0].mxu0
    %v523 = vadd.f32 %v445, %v522
    %v524 = vpop.f32.mrb[0].mxu0
    %v525 = vadd.f32 %v445, %v524
    %v526 = vpop.f32.mrb[0].mxu0
    %v527 = vadd.f32 %v450, %v526
    %v528 = vpop.f32.mrb[0].mxu0
    %v529 = vadd.f32 %v450, %v528
    %530 = vmatprep.mubr.bf16.mxu0 0
    %531 = vmatmul.mubr.bf16.gmra.mrb[0].mxu0 %v477
    %v532 = vpop.f32.mrb[0].mxu0
    %v533 = vadd.f32 %v455, %v532
    %v534 = vpop.f32.mrb[0].mxu0
    %v535 = vadd.f32 %v455, %v534
    %v536 = vpop.f32.mrb[0].mxu0
    %v537 = vadd.f32 %v460, %v536
    %v538 = vpop.f32.mrb[0].mxu0
    %v539 = vadd.f32 %v460, %v538
    %540 = vdwg.mxu0
    %541 = vmatprep.subr.bf16.mxu0 0
    %542 = vmatpush1.bf16.msra.mxu0 %v486
    %543 = vmatprep.subr.bf16.mxu0 0
    %544 = vmatpush1.bf16.msra.mxu0 0
    %545 = vmatprep.subr.bf16.mxu0 0
    %546 = vmatpush1.bf16.msra.mxu0 0
    %547 = vmatprep.subr.bf16.mxu0 0
    %548 = vmatpush1.bf16.msra.mxu0 0
    %549 = vmatprep.subr.bf16.mxu0 0
    %550 = vmatpush1.bf16.msra.mxu0 0
    %551 = vmatprep.subr.bf16.mxu0 0
    %552 = vmatpush1.bf16.msra.mxu0 0
    %553 = vmatprep.subr.bf16.mxu0 0
    %554 = vmatpush1.bf16.msra.mxu0 0
    %555 = vmatprep.subr.bf16.mxu0 0
    %556 = vmatpush1.bf16.msra.mxu0 0
    %557 = vmatprep.subr.bf16.mxu0 0
    %558 = vmatpush1.bf16.msra.mxu0 0
    %559 = vmatprep.subr.bf16.mxu0 0
    %560 = vmatpush1.bf16.msra.mxu0 0
    %561 = vmatprep.subr.bf16.mxu0 0
    %562 = vmatpush1.bf16.msra.mxu0 0
    %563 = vmatprep.subr.bf16.mxu0 0
    %564 = vmatpush1.bf16.msra.mxu0 0
    %565 = vmatprep.subr.bf16.mxu0 0
    %566 = vmatpush1.bf16.msra.mxu0 0
    %567 = vmatprep.subr.bf16.mxu0 0
    %568 = vmatpush1.bf16.msra.mxu0 0
    %569 = vmatprep.subr.bf16.mxu0 0
    %570 = vmatpush1.bf16.msra.mxu0 0
    %571 = vmatprep.subr.bf16.mxu0 0
    %572 = vmatpush1.bf16.msra.mxu0 0
    %573 = vmatprep.mubr.bf16.mxu0 0
    %574 = vmatmul.mubr.bf16.gmra.mrb[0].mxu0 %v474
    %v575 = vpop.f32.mrb[0].mxu0
    %v576 = vadd.f32 %v445, %v575
    %v577 = vpop.f32.mrb[0].mxu0
    %v578 = vpop.f32.mrb[0].mxu0
    %v579 = vadd.f32 %v450, %v578
    %v580 = vpop.f32.mrb[0].mxu0
    %581 = vmatprep.mubr.bf16.mxu0 0
    %582 = vmatmul.mubr.bf16.gmra.mrb[0].mxu0 %v477
    %v583 = vpop.f32.mrb[0].mxu0
    %v584 = vadd.f32 %v455, %v583
    %v585 = vpop.f32.mrb[0].mxu0
    %v586 = vpop.f32.mrb[0].mxu0
    %v587 = vadd.f32 %v460, %v586
    %v588 = vpop.f32.mrb[0].mxu0
    %589 = vdwg.mxu0
    %v590 = vtanh.pop %v523
    %v591 = vtanh.pop %v525
    %v592 = vtanh.pop %v576
    %v593 = vtanh.pop %v527
    %v594 = vtanh.pop %v529
    %v595 = vtanh.pop %v579
    %v596 = vtanh.pop %v533
    %v597 = vtanh.pop %v535
    %v598 = vtanh.pop %v584
    %v599 = vtanh.pop %v537
    %v600 = vtanh.pop %v539
    %v601 = vtanh.pop %v587
    %v602 = vsel %vm415, %v590, 0.0
    %v603 = vsel %vm416, %v591, 0.0
    %v604 = vsel %vm417, %v592, 0.0
    %v605 = vsel %vm415, %v593, 0.0
    %v606 = vsel %vm416, %v594, 0.0
    %v607 = vsel %vm417, %v595, 0.0
    %v608 = vsel %vm415, %v596, 0.0
    %v609 = vsel %vm416, %v597, 0.0
    %v610 = vsel %vm417, %v598, 0.0
    %v611 = vsel %vm415, %v599, 0.0
    %v612 = vsel %vm416, %v600, 0.0
    %v613 = vsel %vm417, %v601, 0.0
    %v614 = vpack.c.bf16 %v605, %v602
    %v615 = vpack.c.bf16 %v606, %v603
    %v616 = vpack.c.bf16 %v607, %v604
    %v617 = vpack.c.bf16 %v611, %v608
    %v618 = vpack.c.bf16 %v612, %v609
    %v619 = vpack.c.bf16 %v613, %v610
    %621 = vset.pattern.permute.xlu0 0
    %622 = vperm.xlu0 %621, %v251
    %v623 = vpop.permute.xlu0 %622
    %vm625 = vcmask 244736
    %v627 = vsel %vm625, %v248, 0
    %vm629 = vcmask 1046528
    %v631 = vsel %vm629, %v617, 0
    %v634 = vsel %vm629, %v618, 0
    %v637 = vsel %vm629, %v619, 0
    %639 = vmatprep.subr.bf16.mxu0 %v615
    %640 = vmatpush1.bf16.msra.mxu0 %v614
    %641 = vmatprep.subr.bf16.mxu0 %v634
    %642 = vmatpush1.bf16.msra.mxu0 %v631
    %643 = vmatprep.subr.bf16.mxu0 0
    %644 = vmatpush1.bf16.msra.mxu0 0
    %645 = vmatprep.subr.bf16.mxu0 0
    %646 = vmatpush1.bf16.msra.mxu0 0
    %647 = vmatprep.subr.bf16.mxu0 0
    %648 = vmatpush1.bf16.msra.mxu0 0
    %649 = vmatprep.subr.bf16.mxu0 0
    %650 = vmatpush1.bf16.msra.mxu0 0
    %651 = vmatprep.subr.bf16.mxu0 0
    %652 = vmatpush1.bf16.msra.mxu0 0
    %653 = vmatprep.subr.bf16.mxu0 0
    %654 = vmatpush1.bf16.msra.mxu0 0
    %655 = vmatprep.subr.bf16.mxu0 0
    %656 = vmatpush1.bf16.msra.mxu0 0
    %657 = vmatprep.subr.bf16.mxu0 0
    %658 = vmatpush1.bf16.msra.mxu0 0
    %659 = vmatprep.subr.bf16.mxu0 0
    %660 = vmatpush1.bf16.msra.mxu0 0
    %661 = vmatprep.subr.bf16.mxu0 0
    %662 = vmatpush1.bf16.msra.mxu0 0
    %663 = vmatprep.subr.bf16.mxu0 0
    %664 = vmatpush1.bf16.msra.mxu0 0
    %665 = vmatprep.subr.bf16.mxu0 0
    %666 = vmatpush1.bf16.msra.mxu0 0
    %667 = vmatprep.subr.bf16.mxu0 0
    %668 = vmatpush1.bf16.msra.mxu0 0
    %669 = vmatprep.subr.bf16.mxu0 0
    %670 = vmatpush1.bf16.msra.mxu0 0
    %671 = vmatprep.mubr.bf16.mxu0 0
    %672 = vmatmul.mubr.bf16.gmra.mrb[0].mxu0 %v627
    %v673 = vpop.f32.mrb[0].mxu0
    %v674 = vadd.f32 %v623, %v673
    %v675 = vpop.f32.mrb[0].mxu0
    %v676 = vadd.f32 %v623, %v675
    %v677 = vpop.f32.mrb[0].mxu0
    %v678 = vpop.f32.mrb[0].mxu0
    %679 = vdwg.mxu0
    %680 = vmatprep.subr.bf16.mxu0 0
    %681 = vmatpush1.bf16.msra.mxu0 %v616
    %682 = vmatprep.subr.bf16.mxu0 0
    %683 = vmatpush1.bf16.msra.mxu0 %v637
    %684 = vmatprep.subr.bf16.mxu0 0
    %685 = vmatpush1.bf16.msra.mxu0 0
    %686 = vmatprep.subr.bf16.mxu0 0
    %687 = vmatpush1.bf16.msra.mxu0 0
    %688 = vmatprep.subr.bf16.mxu0 0
    %689 = vmatpush1.bf16.msra.mxu0 0
    %690 = vmatprep.subr.bf16.mxu0 0
    %691 = vmatpush1.bf16.msra.mxu0 0
    %692 = vmatprep.subr.bf16.mxu0 0
    %693 = vmatpush1.bf16.msra.mxu0 0
    %694 = vmatprep.subr.bf16.mxu0 0
    %695 = vmatpush1.bf16.msra.mxu0 0
    %696 = vmatprep.subr.bf16.mxu0 0
    %697 = vmatpush1.bf16.msra.mxu0 0
    %698 = vmatprep.subr.bf16.mxu0 0
    %699 = vmatpush1.bf16.msra.mxu0 0
    %700 = vmatprep.subr.bf16.mxu0 0
    %701 = vmatpush1.bf16.msra.mxu0 0
    %702 = vmatprep.subr.bf16.mxu0 0
    %703 = vmatpush1.bf16.msra.mxu0 0
    %704 = vmatprep.subr.bf16.mxu0 0
    %705 = vmatpush1.bf16.msra.mxu0 0
    %706 = vmatprep.subr.bf16.mxu0 0
    %707 = vmatpush1.bf16.msra.mxu0 0
    %708 = vmatprep.subr.bf16.mxu0 0
    %709 = vmatpush1.bf16.msra.mxu0 0
    %710 = vmatprep.subr.bf16.mxu0 0
    %711 = vmatpush1.bf16.msra.mxu0 0
    %712 = vmatprep.mubr.bf16.mxu0 0
    %713 = vmatmul.mubr.bf16.gmra.mrb[0].mxu0 %v627
    %v714 = vpop.f32.mrb[0].mxu0
    %v715 = vadd.f32 %v623, %v714
    %v716 = vpop.f32.mrb[0].mxu0
    %v717 = vpop.f32.mrb[0].mxu0
    %v718 = vpop.f32.mrb[0].mxu0
    %719 = vdwg.mxu0
    %v723 = vunpack.c.h.b16 %v614
    %v724 = vunpack.c.h.b16 %v615
    %v725 = vunpack.c.h.b16 %v616
    %v726 = vpack.c.b16 %v724, %v723
    %v727 = vpack.c.b16 %v725, %v725
    %v728 = vrot.slane %v726, 5
    %v729 = vrot.slane %v728, 4
    %v730 = vrot.slane %v727, 5
    %v731 = vrot.slane %v730, 4
    %vm734 = vcmask 1046532
    %vm735 = vsmask.f32 6400
    %vm736 = vmand %vm734, %vm735
    %vm737 = vmor %vm736, %vm254
    %v738 = vld [vmem:[#allocation2 + $0x4] sm:$0x77]
    %v739 = vsel %vm737, %v729, %v738
    %740 = vst [vmem:[#allocation2 + $0x4] sm:$0x77] %v739
    %v741 = vld [vmem:[#allocation2 + $0xc] sm:$0x7]
    %v742 = vsel %vm254, %v731, %v741
    %743 = vst [vmem:[#allocation2 + $0xc] sm:$0x7] %v742
    %v744 = vld [vmem:[#allocation10] sm:$0xf]
    %v745 = vld [vmem:[#allocation10 + $0x4] sm:$0x1]
    %v746 = vld [vmem:[#allocation2] sm:$0x77]
    %v747 = vld [vmem:[#allocation2 + $0x8] sm:$0x77]
    %s748 = scalar_lea.vmem [#allocation10], 8
    %v749 = vld [vmem:[%s748] sm:$0xf]
    %v750 = vld [vmem:[%s748 + $0x4] sm:$0x1]
    %v753 = vunpack.c.l.b16 %v749
    %v754 = vunpack.c.l.b16 %v750
    %v755 = vpack.c.b16 %v754, %v753
    %v758 = vunpack.c.l.b16 %v746
    %v759 = vunpack.c.h.b16 %v746
    %v760 = vunpack.c.l.b16 %v747
    %v761 = vunpack.c.h.b16 %v747
    %v762 = vpack.c.b16 %v758, %v758
    %v763 = vpack.c.b16 %v759, %v759
    %v764 = vpack.c.b16 %v760, %v760
    %v765 = vpack.c.b16 %v761, %v761
    %766 = vrot.lane.b32.xlu0 %v762, 24
    %v767 = vpop.permute.xlu0 %766
    %768 = vrot.lane.b32.xlu0 %v763, 24
    %v769 = vpop.permute.xlu0 %768
    %770 = vrot.lane.b32.xlu0 %v764, 24
    %v771 = vpop.permute.xlu0 %770
    %772 = vrot.lane.b32.xlu0 %v765, 24
    %v773 = vpop.permute.xlu0 %772
    %vm774 = vcmask 195584
    %v775 = vsel %vm774, %v767, %v769
    %v776 = vsel %vm774, %v769, %v771
    %v777 = vsel %vm774, %v771, %v773
    %vm778 = vcmask 39936
    %v780 = vsel %vm778, %v755, 0
    %vm782 = vcmask 1041408
    %vm783 = vcmask 1042432
    %v784 = vsel %vm782, 4294967295, 65535
    %v785 = vsel %vm783, %v784, 0
    %v787 = vand.u32 %v775, %v785
    %v790 = vand.u32 %v776, %v785
    %v793 = vand.u32 %v777, %v785
    %795 = vmatprep.subr.bf16.mxu0 %v790
    %796 = vmatpush1.bf16.msra.mxu0 %v787
    %797 = vmatprep.subr.bf16.mxu0 0
    %798 = vmatpush1.bf16.msra.mxu0 0
    %799 = vmatprep.subr.bf16.mxu0 0
    %800 = vmatpush1.bf16.msra.mxu0 0
    %801 = vmatprep.subr.bf16.mxu0 0
    %802 = vmatpush1.bf16.msra.mxu0 0
    %803 = vmatprep.subr.bf16.mxu0 0
    %804 = vmatpush1.bf16.msra.mxu0 0
    %805 = vmatprep.subr.bf16.mxu0 0
    %806 = vmatpush1.bf16.msra.mxu0 0
    %807 = vmatprep.subr.bf16.mxu0 0
    %808 = vmatpush1.bf16.msra.mxu0 0
    %809 = vmatprep.subr.bf16.mxu0 0
    %810 = vmatpush1.bf16.msra.mxu0 0
    %811 = vmatprep.subr.bf16.mxu0 0
    %812 = vmatpush1.bf16.msra.mxu0 0
    %813 = vmatprep.subr.bf16.mxu0 0
    %814 = vmatpush1.bf16.msra.mxu0 0
    %815 = vmatprep.subr.bf16.mxu0 0
    %816 = vmatpush1.bf16.msra.mxu0 0
    %817 = vmatprep.subr.bf16.mxu0 0
    %818 = vmatpush1.bf16.msra.mxu0 0
    %819 = vmatprep.subr.bf16.mxu0 0
    %820 = vmatpush1.bf16.msra.mxu0 0
    %821 = vmatprep.subr.bf16.mxu0 0
    %822 = vmatpush1.bf16.msra.mxu0 0
    %823 = vmatprep.subr.bf16.mxu0 0
    %824 = vmatpush1.bf16.msra.mxu0 0
    %825 = vmatprep.subr.bf16.mxu0 0
    %826 = vmatpush1.bf16.msra.mxu0 0
    %827 = vmatprep.mubr.bf16.mxu0 0
    %828 = vmatmul.mubr.bf16.gmra.mrb[0].mxu0 %v780
    %v829 = vpop.f32.mrb[0].mxu0
    %v830 = vadd.f32 0.0, %v829
    %v831 = vpop.f32.mrb[0].mxu0
    %v832 = vadd.f32 0.0, %v831
    %v833 = vpop.f32.mrb[0].mxu0
    %v834 = vadd.f32 0.0, %v833
    %v835 = vpop.f32.mrb[0].mxu0
    %v836 = vadd.f32 0.0, %v835
    %837 = vdwg.mxu0
    %838 = vmatprep.subr.bf16.mxu0 0
    %839 = vmatpush1.bf16.msra.mxu0 %v793
    %840 = vmatprep.subr.bf16.mxu0 0
    %841 = vmatpush1.bf16.msra.mxu0 0
    %842 = vmatprep.subr.bf16.mxu0 0
    %843 = vmatpush1.bf16.msra.mxu0 0
    %844 = vmatprep.subr.bf16.mxu0 0
    %845 = vmatpush1.bf16.msra.mxu0 0
    %846 = vmatprep.subr.bf16.mxu0 0
    %847 = vmatpush1.bf16.msra.mxu0 0
    %848 = vmatprep.subr.bf16.mxu0 0
    %849 = vmatpush1.bf16.msra.mxu0 0
    %850 = vmatprep.subr.bf16.mxu0 0
    %851 = vmatpush1.bf16.msra.mxu0 0
    %852 = vmatprep.subr.bf16.mxu0 0
    %853 = vmatpush1.bf16.msra.mxu0 0
    %854 = vmatprep.subr.bf16.mxu0 0
    %855 = vmatpush1.bf16.msra.mxu0 0
    %856 = vmatprep.subr.bf16.mxu0 0
    %857 = vmatpush1.bf16.msra.mxu0 0
    %858 = vmatprep.subr.bf16.mxu0 0
    %859 = vmatpush1.bf16.msra.mxu0 0
    %860 = vmatprep.subr.bf16.mxu0 0
    %861 = vmatpush1.bf16.msra.mxu0 0
    %862 = vmatprep.subr.bf16.mxu0 0
    %863 = vmatpush1.bf16.msra.mxu0 0
    %864 = vmatprep.subr.bf16.mxu0 0
    %865 = vmatpush1.bf16.msra.mxu0 0
    %866 = vmatprep.subr.bf16.mxu0 0
    %867 = vmatpush1.bf16.msra.mxu0 0
    %868 = vmatprep.subr.bf16.mxu0 0
    %869 = vmatpush1.bf16.msra.mxu0 0
    %870 = vmatprep.mubr.bf16.mxu0 0
    %871 = vmatmul.mubr.bf16.gmra.mrb[0].mxu0 %v780
    %v872 = vpop.f32.mrb[0].mxu0
    %v873 = vadd.f32 0.0, %v872
    %v874 = vpop.f32.mrb[0].mxu0
    %v875 = vpop.f32.mrb[0].mxu0
    %v876 = vadd.f32 0.0, %v875
    %v877 = vpop.f32.mrb[0].mxu0
    %878 = vdwg.mxu0
    %v881 = vunpack.c.l.b16 %v744
    %v882 = vunpack.c.l.b16 %v745
    %v883 = vpack.c.b16 %v882, %v881
    %884 = vrot.lane.b32.xlu0 %v762, 25
    %v885 = vpop.permute.xlu0 %884
    %886 = vrot.lane.b32.xlu0 %v763, 25
    %v887 = vpop.permute.xlu0 %886
    %888 = vrot.lane.b32.xlu0 %v764, 25
    %v889 = vpop.permute.xlu0 %888
    %890 = vrot.lane.b32.xlu0 %v765, 25
    %v891 = vpop.permute.xlu0 %890
    %vm892 = vcmask 203776
    %v893 = vsel %vm892, %v885, %v887
    %v894 = vsel %vm892, %v887, %v889
    %v895 = vsel %vm892, %v889, %v891
    %v897 = vsel %vm778, %v883, 0
    %v900 = vand.u32 %v893, %v785
    %v903 = vand.u32 %v894, %v785
    %v906 = vand.u32 %v895, %v785
    %908 = vmatprep.subr.bf16.mxu0 %v903
    %909 = vmatpush1.bf16.msra.mxu0 %v900
    %910 = vmatprep.subr.bf16.mxu0 0
    %911 = vmatpush1.bf16.msra.mxu0 0
    %912 = vmatprep.subr.bf16.mxu0 0
    %913 = vmatpush1.bf16.msra.mxu0 0
    %914 = vmatprep.subr.bf16.mxu0 0
    %915 = vmatpush1.bf16.msra.mxu0 0
    %916 = vmatprep.subr.bf16.mxu0 0
    %917 = vmatpush1.bf16.msra.mxu0 0
    %918 = vmatprep.subr.bf16.mxu0 0
    %919 = vmatpush1.bf16.msra.mxu0 0
    %920 = vmatprep.subr.bf16.mxu0 0
    %921 = vmatpush1.bf16.msra.mxu0 0
    %922 = vmatprep.subr.bf16.mxu0 0
    %923 = vmatpush1.bf16.msra.mxu0 0
    %924 = vmatprep.subr.bf16.mxu0 0
    %925 = vmatpush1.bf16.msra.mxu0 0
    %926 = vmatprep.subr.bf16.mxu0 0
    %927 = vmatpush1.bf16.msra.mxu0 0
    %928 = vmatprep.subr.bf16.mxu0 0
    %929 = vmatpush1.bf16.msra.mxu0 0
    %930 = vmatprep.subr.bf16.mxu0 0
    %931 = vmatpush1.bf16.msra.mxu0 0
    %932 = vmatprep.subr.bf16.mxu0 0
    %933 = vmatpush1.bf16.msra.mxu0 0
    %934 = vmatprep.subr.bf16.mxu0 0
    %935 = vmatpush1.bf16.msra.mxu0 0
    %936 = vmatprep.subr.bf16.mxu0 0
    %937 = vmatpush1.bf16.msra.mxu0 0
    %938 = vmatprep.subr.bf16.mxu0 0
    %939 = vmatpush1.bf16.msra.mxu0 0
    %940 = vmatprep.mubr.bf16.mxu0 0
    %941 = vmatmul.mubr.bf16.gmra.mrb[0].mxu0 %v897
    %v942 = vpop.f32.mrb[0].mxu0
    %v943 = vadd.f32 %v830, %v942
    %v944 = vpop.f32.mrb[0].mxu0
    %v945 = vadd.f32 %v832, %v944
    %v946 = vpop.f32.mrb[0].mxu0
    %v947 = vadd.f32 %v834, %v946
    %v948 = vpop.f32.mrb[0].mxu0
    %v949 = vadd.f32 %v836, %v948
    %950 = vdwg.mxu0
    %951 = vmatprep.subr.bf16.mxu0 0
    %952 = vmatpush1.bf16.msra.mxu0 %v906
    %953 = vmatprep.subr.bf16.mxu0 0
    %954 = vmatpush1.bf16.msra.mxu0 0
    %955 = vmatprep.subr.bf16.mxu0 0
    %956 = vmatpush1.bf16.msra.mxu0 0
    %957 = vmatprep.subr.bf16.mxu0 0
    %958 = vmatpush1.bf16.msra.mxu0 0
    %959 = vmatprep.subr.bf16.mxu0 0
    %960 = vmatpush1.bf16.msra.mxu0 0
    %961 = vmatprep.subr.bf16.mxu0 0
    %962 = vmatpush1.bf16.msra.mxu0 0
    %963 = vmatprep.subr.bf16.mxu0 0
    %964 = vmatpush1.bf16.msra.mxu0 0
    %965 = vmatprep.subr.bf16.mxu0 0
    %966 = vmatpush1.bf16.msra.mxu0 0
    %967 = vmatprep.subr.bf16.mxu0 0
    %968 = vmatpush1.bf16.msra.mxu0 0
    %969 = vmatprep.subr.bf16.mxu0 0
    %970 = vmatpush1.bf16.msra.mxu0 0
    %971 = vmatprep.subr.bf16.mxu0 0
    %972 = vmatpush1.bf16.msra.mxu0 0
    %973 = vmatprep.subr.bf16.mxu0 0
    %974 = vmatpush1.bf16.msra.mxu0 0
    %975 = vmatprep.subr.bf16.mxu0 0
    %976 = vmatpush1.bf16.msra.mxu0 0
    %977 = vmatprep.subr.bf16.mxu0 0
    %978 = vmatpush1.bf16.msra.mxu0 0
    %979 = vmatprep.subr.bf16.mxu0 0
    %980 = vmatpush1.bf16.msra.mxu0 0
    %981 = vmatprep.subr.bf16.mxu0 0
    %982 = vmatpush1.bf16.msra.mxu0 0
    %983 = vmatprep.mubr.bf16.mxu0 0
    %984 = vmatmul.mubr.bf16.gmra.mrb[0].mxu0 %v897
    %v985 = vpop.f32.mrb[0].mxu0
    %v986 = vadd.f32 %v873, %v985
    %v987 = vpop.f32.mrb[0].mxu0
    %v988 = vpop.f32.mrb[0].mxu0
    %v989 = vadd.f32 %v876, %v988
    %v990 = vpop.f32.mrb[0].mxu0
    %991 = vdwg.mxu0
    %s992 = scalar_lea.vmem [#allocation10], 16
    %v993 = vld [vmem:[%s992] sm:$0xf]
    %v994 = vld [vmem:[%s992 + $0x4] sm:$0x1]
    %v997 = vunpack.c.l.b16 %v993
    %v998 = vunpack.c.l.b16 %v994
    %v999 = vpack.c.b16 %v998, %v997
    %1000 = vrot.lane.b32.xlu0 %v762, 23
    %v1001 = vpop.permute.xlu0 %1000
    %1002 = vrot.lane.b32.xlu0 %v763, 23
    %v1003 = vpop.permute.xlu0 %1002
    %1004 = vrot.lane.b32.xlu0 %v764, 23
    %v1005 = vpop.permute.xlu0 %1004
    %1006 = vrot.lane.b32.xlu0 %v765, 23
    %v1007 = vpop.permute.xlu0 %1006
    %vm1008 = vcmask 187392
    %v1009 = vsel %vm1008, %v1001, %v1003
    %v1010 = vsel %vm1008, %v1003, %v1005
    %v1011 = vsel %vm1008, %v1005, %v1007
    %v1013 = vsel %vm778, %v999, 0
    %v1016 = vand.u32 %v1009, %v785
    %v1019 = vand.u32 %v1010, %v785
    %v1022 = vand.u32 %v1011, %v785
    %1024 = vmatprep.subr.bf16.mxu0 %v1019
    %1025 = vmatpush1.bf16.msra.mxu0 %v1016
    %1026 = vmatprep.subr.bf16.mxu0 0
    %1027 = vmatpush1.bf16.msra.mxu0 0
    %1028 = vmatprep.subr.bf16.mxu0 0
    %1029 = vmatpush1.bf16.msra.mxu0 0
    %1030 = vmatprep.subr.bf16.mxu0 0
    %1031 = vmatpush1.bf16.msra.mxu0 0
    %1032 = vmatprep.subr.bf16.mxu0 0
    %1033 = vmatpush1.bf16.msra.mxu0 0
    %1034 = vmatprep.subr.bf16.mxu0 0
    %1035 = vmatpush1.bf16.msra.mxu0 0
    %1036 = vmatprep.subr.bf16.mxu0 0
    %1037 = vmatpush1.bf16.msra.mxu0 0
    %1038 = vmatprep.subr.bf16.mxu0 0
    %1039 = vmatpush1.bf16.msra.mxu0 0
    %1040 = vmatprep.subr.bf16.mxu0 0
    %1041 = vmatpush1.bf16.msra.mxu0 0
    %1042 = vmatprep.subr.bf16.mxu0 0
    %1043 = vmatpush1.bf16.msra.mxu0 0
    %1044 = vmatprep.subr.bf16.mxu0 0
    %1045 = vmatpush1.bf16.msra.mxu0 0
    %1046 = vmatprep.subr.bf16.mxu0 0
    %1047 = vmatpush1.bf16.msra.mxu0 0
    %1048 = vmatprep.subr.bf16.mxu0 0
    %1049 = vmatpush1.bf16.msra.mxu0 0
    %1050 = vmatprep.subr.bf16.mxu0 0
    %1051 = vmatpush1.bf16.msra.mxu0 0
    %1052 = vmatprep.subr.bf16.mxu0 0
    %1053 = vmatpush1.bf16.msra.mxu0 0
    %1054 = vmatprep.subr.bf16.mxu0 0
    %1055 = vmatpush1.bf16.msra.mxu0 0
    %1056 = vmatprep.mubr.bf16.mxu0 0
    %1057 = vmatmul.mubr.bf16.gmra.mrb[0].mxu0 %v1013
    %v1058 = vpop.f32.mrb[0].mxu0
    %v1059 = vadd.f32 0.0, %v1058
    %v1060 = vpop.f32.mrb[0].mxu0
    %v1061 = vadd.f32 0.0, %v1060
    %v1062 = vpop.f32.mrb[0].mxu0
    %v1063 = vadd.f32 0.0, %v1062
    %v1064 = vpop.f32.mrb[0].mxu0
    %v1065 = vadd.f32 0.0, %v1064
    %1066 = vdwg.mxu0
    %1067 = vmatprep.subr.bf16.mxu0 0
    %1068 = vmatpush1.bf16.msra.mxu0 %v1022
    %1069 = vmatprep.subr.bf16.mxu0 0
    %1070 = vmatpush1.bf16.msra.mxu0 0
    %1071 = vmatprep.subr.bf16.mxu0 0
    %1072 = vmatpush1.bf16.msra.mxu0 0
    %1073 = vmatprep.subr.bf16.mxu0 0
    %1074 = vmatpush1.bf16.msra.mxu0 0
    %1075 = vmatprep.subr.bf16.mxu0 0
    %1076 = vmatpush1.bf16.msra.mxu0 0
    %1077 = vmatprep.subr.bf16.mxu0 0
    %1078 = vmatpush1.bf16.msra.mxu0 0
    %1079 = vmatprep.subr.bf16.mxu0 0
    %1080 = vmatpush1.bf16.msra.mxu0 0
    %1081 = vmatprep.subr.bf16.mxu0 0
    %1082 = vmatpush1.bf16.msra.mxu0 0
    %1083 = vmatprep.subr.bf16.mxu0 0
    %1084 = vmatpush1.bf16.msra.mxu0 0
    %1085 = vmatprep.subr.bf16.mxu0 0
    %1086 = vmatpush1.bf16.msra.mxu0 0
    %1087 = vmatprep.subr.bf16.mxu0 0
    %1088 = vmatpush1.bf16.msra.mxu0 0
    %1089 = vmatprep.subr.bf16.mxu0 0
    %1090 = vmatpush1.bf16.msra.mxu0 0
    %1091 = vmatprep.subr.bf16.mxu0 0
    %1092 = vmatpush1.bf16.msra.mxu0 0
    %1093 = vmatprep.subr.bf16.mxu0 0
    %1094 = vmatpush1.bf16.msra.mxu0 0
    %1095 = vmatprep.subr.bf16.mxu0 0
    %1096 = vmatpush1.bf16.msra.mxu0 0
    %1097 = vmatprep.subr.bf16.mxu0 0
    %1098 = vmatpush1.bf16.msra.mxu0 0
    %1099 = vmatprep.mubr.bf16.mxu0 0
    %1100 = vmatmul.mubr.bf16.gmra.mrb[0].mxu0 %v1013
    %v1101 = vpop.f32.mrb[0].mxu0
    %v1102 = vadd.f32 0.0, %v1101
    %v1103 = vpop.f32.mrb[0].mxu0
    %v1104 = vpop.f32.mrb[0].mxu0
    %v1105 = vadd.f32 0.0, %v1104
    %v1106 = vpop.f32.mrb[0].mxu0
    %1107 = vdwg.mxu0
    %v1108 = vadd.f32 %v943, %v1059
    %v1109 = vadd.f32 %v945, %v1061
    %v1110 = vadd.f32 %v986, %v1102
    %v1111 = vadd.f32 %v947, %v1063
    %v1112 = vadd.f32 %v949, %v1065
    %v1113 = vadd.f32 %v989, %v1105
    %s1114 = scalar_lea.vmem [#allocation10], 24
    %v1115 = vld [vmem:[%s1114] sm:$0xf]
    %v1116 = vld [vmem:[%s1114 + $0x4] sm:$0x1]
    %v1119 = vunpack.c.l.b16 %v1115
    %v1120 = vunpack.c.l.b16 %v1116
    %v1121 = vpack.c.b16 %v1120, %v1119
    %1122 = vrot.lane.b32.xlu0 %v762, 1
    %v1123 = vpop.permute.xlu0 %1122
    %1124 = vrot.lane.b32.xlu0 %v763, 1
    %v1125 = vpop.permute.xlu0 %1124
    %1126 = vrot.lane.b32.xlu0 %v764, 1
    %v1127 = vpop.permute.xlu0 %1126
    %1128 = vrot.lane.b32.xlu0 %v765, 1
    %v1129 = vpop.permute.xlu0 %1128
    %vm1130 = vcmask 7168
    %v1131 = vsel %vm1130, %v1123, %v1125
    %v1132 = vsel %vm1130, %v1125, %v1127
    %v1133 = vsel %vm1130, %v1127, %v1129
    %v1135 = vsel %vm778, %v1121, 0
    %v1138 = vand.u32 %v1131, %v785
    %v1141 = vand.u32 %v1132, %v785
    %v1144 = vand.u32 %v1133, %v785
    %1146 = vmatprep.subr.bf16.mxu0 %v1141
    %1147 = vmatpush1.bf16.msra.mxu0 %v1138
    %1148 = vmatprep.subr.bf16.mxu0 0
    %1149 = vmatpush1.bf16.msra.mxu0 0
    %1150 = vmatprep.subr.bf16.mxu0 0
    %1151 = vmatpush1.bf16.msra.mxu0 0
    %1152 = vmatprep.subr.bf16.mxu0 0
    %1153 = vmatpush1.bf16.msra.mxu0 0
    %1154 = vmatprep.subr.bf16.mxu0 0
    %1155 = vmatpush1.bf16.msra.mxu0 0
    %1156 = vmatprep.subr.bf16.mxu0 0
    %1157 = vmatpush1.bf16.msra.mxu0 0
    %1158 = vmatprep.subr.bf16.mxu0 0
    %1159 = vmatpush1.bf16.msra.mxu0 0
    %1160 = vmatprep.subr.bf16.mxu0 0
    %1161 = vmatpush1.bf16.msra.mxu0 0
    %1162 = vmatprep.subr.bf16.mxu0 0
    %1163 = vmatpush1.bf16.msra.mxu0 0
    %1164 = vmatprep.subr.bf16.mxu0 0
    %1165 = vmatpush1.bf16.msra.mxu0 0
    %1166 = vmatprep.subr.bf16.mxu0 0
    %1167 = vmatpush1.bf16.msra.mxu0 0
    %1168 = vmatprep.subr.bf16.mxu0 0
    %1169 = vmatpush1.bf16.msra.mxu0 0
    %1170 = vmatprep.subr.bf16.mxu0 0
    %1171 = vmatpush1.bf16.msra.mxu0 0
    %1172 = vmatprep.subr.bf16.mxu0 0
    %1173 = vmatpush1.bf16.msra.mxu0 0
    %1174 = vmatprep.subr.bf16.mxu0 0
    %1175 = vmatpush1.bf16.msra.mxu0 0
    %1176 = vmatprep.subr.bf16.mxu0 0
    %1177 = vmatpush1.bf16.msra.mxu0 0
    %1178 = vmatprep.mubr.bf16.mxu0 0
    %1179 = vmatmul.mubr.bf16.gmra.mrb[0].mxu0 %v1135
    %v1180 = vpop.f32.mrb[0].mxu0
    %v1181 = vadd.f32 0.0, %v1180
    %v1182 = vpop.f32.mrb[0].mxu0
    %v1183 = vadd.f32 0.0, %v1182
    %v1184 = vpop.f32.mrb[0].mxu0
    %v1185 = vadd.f32 0.0, %v1184
    %v1186 = vpop.f32.mrb[0].mxu0
    %v1187 = vadd.f32 0.0, %v1186
    %1188 = vdwg.mxu0
    %1189 = vmatprep.subr.bf16.mxu0 0
    %1190 = vmatpush1.bf16.msra.mxu0 %v1144
    %1191 = vmatprep.subr.bf16.mxu0 0
    %1192 = vmatpush1.bf16.msra.mxu0 0
    %1193 = vmatprep.subr.bf16.mxu0 0
    %1194 = vmatpush1.bf16.msra.mxu0 0
    %1195 = vmatprep.subr.bf16.mxu0 0
    %1196 = vmatpush1.bf16.msra.mxu0 0
    %1197 = vmatprep.subr.bf16.mxu0 0
    %1198 = vmatpush1.bf16.msra.mxu0 0
    %1199 = vmatprep.subr.bf16.mxu0 0
    %1200 = vmatpush1.bf16.msra.mxu0 0
    %1201 = vmatprep.subr.bf16.mxu0 0
    %1202 = vmatpush1.bf16.msra.mxu0 0
    %1203 = vmatprep.subr.bf16.mxu0 0
    %1204 = vmatpush1.bf16.msra.mxu0 0
    %1205 = vmatprep.subr.bf16.mxu0 0
    %1206 = vmatpush1.bf16.msra.mxu0 0
    %1207 = vmatprep.subr.bf16.mxu0 0
    %1208 = vmatpush1.bf16.msra.mxu0 0
    %1209 = vmatprep.subr.bf16.mxu0 0
    %1210 = vmatpush1.bf16.msra.mxu0 0
    %1211 = vmatprep.subr.bf16.mxu0 0
    %1212 = vmatpush1.bf16.msra.mxu0 0
    %1213 = vmatprep.subr.bf16.mxu0 0
    %1214 = vmatpush1.bf16.msra.mxu0 0
    %1215 = vmatprep.subr.bf16.mxu0 0
    %1216 = vmatpush1.bf16.msra.mxu0 0
    %1217 = vmatprep.subr.bf16.mxu0 0
    %1218 = vmatpush1.bf16.msra.mxu0 0
    %1219 = vmatprep.subr.bf16.mxu0 0
    %1220 = vmatpush1.bf16.msra.mxu0 0
    %1221 = vmatprep.mubr.bf16.mxu0 0
    %1222 = vmatmul.mubr.bf16.gmra.mrb[0].mxu0 %v1135
    %v1223 = vpop.f32.mrb[0].mxu0
    %v1224 = vadd.f32 0.0, %v1223
    %v1225 = vpop.f32.mrb[0].mxu0
    %v1226 = vpop.f32.mrb[0].mxu0
    %v1227 = vadd.f32 0.0, %v1226
    %v1228 = vpop.f32.mrb[0].mxu0
    %1229 = vdwg.mxu0
    %v1230 = vadd.f32 %v1108, %v1181
    %v1231 = vadd.f32 %v1109, %v1183
    %v1232 = vadd.f32 %v1110, %v1224
    %v1233 = vadd.f32 %v1111, %v1185
    %v1234 = vadd.f32 %v1112, %v1187
    %v1235 = vadd.f32 %v1113, %v1227
    %s1236 = scalar_lea.vmem [#allocation10], 32
    %v1237 = vld [vmem:[%s1236] sm:$0xf]
    %v1238 = vld [vmem:[%s1236 + $0x4] sm:$0x1]
    %v1239 = vld [vmem:[#allocation2 + $0x4] sm:$0x77]
    %v1240 = vld [vmem:[#allocation2 + $0xc] sm:$0x7]
    %v1243 = vunpack.c.l.b16 %v1237
    %v1244 = vunpack.c.l.b16 %v1238
    %v1245 = vpack.c.b16 %v1244, %v1243
    %v1248 = vunpack.c.l.b16 %v1239
    %v1249 = vunpack.c.h.b16 %v1239
    %v1250 = vunpack.c.l.b16 %v1240
    %v1251 = vpack.c.b16 %v1248, %v1248
    %v1252 = vpack.c.b16 %v1249, %v1249
    %v1253 = vpack.c.b16 %v1250, %v1250
    %v1255 = vsel %vm778, %v1245, 0
    %v1258 = vand.u32 %v1251, %v785
    %v1261 = vand.u32 %v1252, %v785
    %v1264 = vand.u32 %v1253, %v785
    %1266 = vmatprep.subr.bf16.mxu0 %v1261
    %1267 = vmatpush1.bf16.msra.mxu0 %v1258
    %1268 = vmatprep.subr.bf16.mxu0 0
    %1269 = vmatpush1.bf16.msra.mxu0 0
    %1270 = vmatprep.subr.bf16.mxu0 0
    %1271 = vmatpush1.bf16.msra.mxu0 0
    %1272 = vmatprep.subr.bf16.mxu0 0
    %1273 = vmatpush1.bf16.msra.mxu0 0
    %1274 = vmatprep.subr.bf16.mxu0 0
    %1275 = vmatpush1.bf16.msra.mxu0 0
    %1276 = vmatprep.subr.bf16.mxu0 0
    %1277 = vmatpush1.bf16.msra.mxu0 0
    %1278 = vmatprep.subr.bf16.mxu0 0
    %1279 = vmatpush1.bf16.msra.mxu0 0
    %1280 = vmatprep.subr.bf16.mxu0 0
    %1281 = vmatpush1.bf16.msra.mxu0 0
    %1282 = vmatprep.subr.bf16.mxu0 0
    %1283 = vmatpush1.bf16.msra.mxu0 0
    %1284 = vmatprep.subr.bf16.mxu0 0
    %1285 = vmatpush1.bf16.msra.mxu0 0
    %1286 = vmatprep.subr.bf16.mxu0 0
    %1287 = vmatpush1.bf16.msra.mxu0 0
    %1288 = vmatprep.subr.bf16.mxu0 0
    %1289 = vmatpush1.bf16.msra.mxu0 0
    %1290 = vmatprep.subr.bf16.mxu0 0
    %1291 = vmatpush1.bf16.msra.mxu0 0
    %1292 = vmatprep.subr.bf16.mxu0 0
    %1293 = vmatpush1.bf16.msra.mxu0 0
    %1294 = vmatprep.subr.bf16.mxu0 0
    %1295 = vmatpush1.bf16.msra.mxu0 0
    %1296 = vmatprep.subr.bf16.mxu0 0
    %1297 = vmatpush1.bf16.msra.mxu0 0
    %1298 = vmatprep.mubr.bf16.mxu0 0
    %1299 = vmatmul.mubr.bf16.gmra.mrb[0].mxu0 %v1255
    %v1300 = vpop.f32.mrb[0].mxu0
    %v1301 = vadd.f32 0.0, %v1300
    %v1302 = vpop.f32.mrb[0].mxu0
    %v1303 = vadd.f32 0.0, %v1302
    %v1304 = vpop.f32.mrb[0].mxu0
    %v1305 = vadd.f32 0.0, %v1304
    %v1306 = vpop.f32.mrb[0].mxu0
    %v1307 = vadd.f32 0.0, %v1306
    %1308 = vdwg.mxu0
    %1309 = vmatprep.subr.bf16.mxu0 0
    %1310 = vmatpush1.bf16.msra.mxu0 %v1264
    %1311 = vmatprep.subr.bf16.mxu0 0
    %1312 = vmatpush1.bf16.msra.mxu0 0
    %1313 = vmatprep.subr.bf16.mxu0 0
    %1314 = vmatpush1.bf16.msra.mxu0 0
    %1315 = vmatprep.subr.bf16.mxu0 0
    %1316 = vmatpush1.bf16.msra.mxu0 0
    %1317 = vmatprep.subr.bf16.mxu0 0
    %1318 = vmatpush1.bf16.msra.mxu0 0
    %1319 = vmatprep.subr.bf16.mxu0 0
    %1320 = vmatpush1.bf16.msra.mxu0 0
    %1321 = vmatprep.subr.bf16.mxu0 0
    %1322 = vmatpush1.bf16.msra.mxu0 0
    %1323 = vmatprep.subr.bf16.mxu0 0
    %1324 = vmatpush1.bf16.msra.mxu0 0
    %1325 = vmatprep.subr.bf16.mxu0 0
    %1326 = vmatpush1.bf16.msra.mxu0 0
    %1327 = vmatprep.subr.bf16.mxu0 0
    %1328 = vmatpush1.bf16.msra.mxu0 0
    %1329 = vmatprep.subr.bf16.mxu0 0
    %1330 = vmatpush1.bf16.msra.mxu0 0
    %1331 = vmatprep.subr.bf16.mxu0 0
    %1332 = vmatpush1.bf16.msra.mxu0 0
    %1333 = vmatprep.subr.bf16.mxu0 0
    %1334 = vmatpush1.bf16.msra.mxu0 0
    %1335 = vmatprep.subr.bf16.mxu0 0
    %1336 = vmatpush1.bf16.msra.mxu0 0
    %1337 = vmatprep.subr.bf16.mxu0 0
    %1338 = vmatpush1.bf16.msra.mxu0 0
    %1339 = vmatprep.subr.bf16.mxu0 0
    %1340 = vmatpush1.bf16.msra.mxu0 0
    %1341 = vmatprep.mubr.bf16.mxu0 0
    %1342 = vmatmul.mubr.bf16.gmra.mrb[0].mxu0 %v1255
    %v1343 = vpop.f32.mrb[0].mxu0
    %v1344 = vadd.f32 0.0, %v1343
    %v1345 = vpop.f32.mrb[0].mxu0
    %v1346 = vpop.f32.mrb[0].mxu0
    %v1347 = vadd.f32 0.0, %v1346
    %v1348 = vpop.f32.mrb[0].mxu0
    %1349 = vdwg.mxu0
    %v1350 = vadd.f32 %v1230, %v1301
    %v1351 = vadd.f32 %v1231, %v1303
    %v1352 = vadd.f32 %v1232, %v1344
    %v1353 = vadd.f32 %v1233, %v1305
    %v1354 = vadd.f32 %v1234, %v1307
    %v1355 = vadd.f32 %v1235, %v1347
    %s1356 = scalar_lea.vmem [#allocation10], 40
    %v1357 = vld [vmem:[%s1356] sm:$0xf]
    %v1358 = vld [vmem:[%s1356 + $0x4] sm:$0x1]
    %v1359 = vld [vmem:[#allocation2 + $0x4] sm:$0x77]
    %v1360 = vld [vmem:[#allocation2 + $0xc] sm:$0x77]
    %v1363 = vunpack.c.l.b16 %v1357
    %v1364 = vunpack.c.l.b16 %v1358
    %v1365 = vpack.c.b16 %v1364, %v1363
    %v1368 = vunpack.c.l.b16 %v1359
    %v1369 = vunpack.c.h.b16 %v1359
    %v1370 = vunpack.c.l.b16 %v1360
    %v1371 = vunpack.c.h.b16 %v1360
    %v1372 = vpack.c.b16 %v1368, %v1368
    %v1373 = vpack.c.b16 %v1369, %v1369
    %v1374 = vpack.c.b16 %v1370, %v1370
    %v1375 = vpack.c.b16 %v1371, %v1371
    %1376 = vrot.lane.b32.xlu0 %v1372, 127
    %v1377 = vpop.permute.xlu0 %1376
    %1378 = vrot.lane.b32.xlu0 %v1373, 127
    %v1379 = vpop.permute.xlu0 %1378
    %1380 = vrot.lane.b32.xlu0 %v1374, 127
    %v1381 = vpop.permute.xlu0 %1380
    %1382 = vrot.lane.b32.xlu0 %v1375, 127
    %v1383 = vpop.permute.xlu0 %1382
    %vm1384 = vcmask 1039360
    %v1385 = vsel %vm1384, %v1377, %v1379
    %v1386 = vsel %vm1384, %v1379, %v1381
    %v1387 = vsel %vm1384, %v1381, %v1383
    %v1389 = vsel %vm778, %v1365, 0
    %v1392 = vand.u32 %v1385, %v785
    %v1395 = vand.u32 %v1386, %v785
    %v1398 = vand.u32 %v1387, %v785
    %1400 = vmatprep.subr.bf16.mxu0 %v1395
    %1401 = vmatpush1.bf16.msra.mxu0 %v1392
    %1402 = vmatprep.subr.bf16.mxu0 0
    %1403 = vmatpush1.bf16.msra.mxu0 0
    %1404 = vmatprep.subr.bf16.mxu0 0
    %1405 = vmatpush1.bf16.msra.mxu0 0
    %1406 = vmatprep.subr.bf16.mxu0 0
    %1407 = vmatpush1.bf16.msra.mxu0 0
    %1408 = vmatprep.subr.bf16.mxu0 0
    %1409 = vmatpush1.bf16.msra.mxu0 0
    %1410 = vmatprep.subr.bf16.mxu0 0
    %1411 = vmatpush1.bf16.msra.mxu0 0
    %1412 = vmatprep.subr.bf16.mxu0 0
    %1413 = vmatpush1.bf16.msra.mxu0 0
    %1414 = vmatprep.subr.bf16.mxu0 0
    %1415 = vmatpush1.bf16.msra.mxu0 0
    %1416 = vmatprep.subr.bf16.mxu0 0
    %1417 = vmatpush1.bf16.msra.mxu0 0
    %1418 = vmatprep.subr.bf16.mxu0 0
    %1419 = vmatpush1.bf16.msra.mxu0 0
    %1420 = vmatprep.subr.bf16.mxu0 0
    %1421 = vmatpush1.bf16.msra.mxu0 0
    %1422 = vmatprep.subr.bf16.mxu0 0
    %1423 = vmatpush1.bf16.msra.mxu0 0
    %1424 = vmatprep.subr.bf16.mxu0 0
    %1425 = vmatpush1.bf16.msra.mxu0 0
    %1426 = vmatprep.subr.bf16.mxu0 0
    %1427 = vmatpush1.bf16.msra.mxu0 0
    %1428 = vmatprep.subr.bf16.mxu0 0
    %1429 = vmatpush1.bf16.msra.mxu0 0
    %1430 = vmatprep.subr.bf16.mxu0 0
    %1431 = vmatpush1.bf16.msra.mxu0 0
    %1432 = vmatprep.mubr.bf16.mxu0 0
    %1433 = vmatmul.mubr.bf16.gmra.mrb[0].mxu0 %v1389
    %v1434 = vpop.f32.mrb[0].mxu0
    %v1435 = vadd.f32 0.0, %v1434
    %v1436 = vpop.f32.mrb[0].mxu0
    %v1437 = vadd.f32 0.0, %v1436
    %v1438 = vpop.f32.mrb[0].mxu0
    %v1439 = vadd.f32 0.0, %v1438
    %v1440 = vpop.f32.mrb[0].mxu0
    %v1441 = vadd.f32 0.0, %v1440
    %1442 = vdwg.mxu0
    %1443 = vmatprep.subr.bf16.mxu0 0
    %1444 = vmatpush1.bf16.msra.mxu0 %v1398
    %1445 = vmatprep.subr.bf16.mxu0 0
    %1446 = vmatpush1.bf16.msra.mxu0 0
    %1447 = vmatprep.subr.bf16.mxu0 0
    %1448 = vmatpush1.bf16.msra.mxu0 0
    %1449 = vmatprep.subr.bf16.mxu0 0
    %1450 = vmatpush1.bf16.msra.mxu0 0
    %1451 = vmatprep.subr.bf16.mxu0 0
    %1452 = vmatpush1.bf16.msra.mxu0 0
    %1453 = vmatprep.subr.bf16.mxu0 0
    %1454 = vmatpush1.bf16.msra.mxu0 0
    %1455 = vmatprep.subr.bf16.mxu0 0
    %1456 = vmatpush1.bf16.msra.mxu0 0
    %1457 = vmatprep.subr.bf16.mxu0 0
    %1458 = vmatpush1.bf16.msra.mxu0 0
    %1459 = vmatprep.subr.bf16.mxu0 0
    %1460 = vmatpush1.bf16.msra.mxu0 0
    %1461 = vmatprep.subr.bf16.mxu0 0
    %1462 = vmatpush1.bf16.msra.mxu0 0
    %1463 = vmatprep.subr.bf16.mxu0 0
    %1464 = vmatpush1.bf16.msra.mxu0 0
    %1465 = vmatprep.subr.bf16.mxu0 0
    %1466 = vmatpush1.bf16.msra.mxu0 0
    %1467 = vmatprep.subr.bf16.mxu0 0
    %1468 = vmatpush1.bf16.msra.mxu0 0
    %1469 = vmatprep.subr.bf16.mxu0 0
    %1470 = vmatpush1.bf16.msra.mxu0 0
    %1471 = vmatprep.subr.bf16.mxu0 0
    %1472 = vmatpush1.bf16.msra.mxu0 0
    %1473 = vmatprep.subr.bf16.mxu0 0
    %1474 = vmatpush1.bf16.msra.mxu0 0
    %1475 = vmatprep.mubr.bf16.mxu0 0
    %1476 = vmatmul.mubr.bf16.gmra.mrb[0].mxu0 %v1389
    %v1477 = vpop.f32.mrb[0].mxu0
    %v1478 = vadd.f32 0.0, %v1477
    %v1479 = vpop.f32.mrb[0].mxu0
    %v1480 = vpop.f32.mrb[0].mxu0
    %v1481 = vadd.f32 0.0, %v1480
    %v1482 = vpop.f32.mrb[0].mxu0
    %1483 = vdwg.mxu0
    %v1484 = vadd.f32 %v1350, %v1435
    %v1485 = vadd.f32 %v1351, %v1437
    %v1486 = vadd.f32 %v1352, %v1478
    %v1487 = vadd.f32 %v1353, %v1439
    %v1488 = vadd.f32 %v1354, %v1441
    %v1489 = vadd.f32 %v1355, %v1481
    %s1490 = scalar_lea.vmem [#allocation10], 48
    %v1491 = vld [vmem:[%s1490] sm:$0xf]
    %v1492 = vld [vmem:[%s1490 + $0x4] sm:$0x1]
    %v1495 = vunpack.c.l.b16 %v1491
    %v1496 = vunpack.c.l.b16 %v1492
    %v1497 = vpack.c.b16 %v1496, %v1495
    %1498 = vrot.lane.b32.xlu0 %v1372, 105
    %v1499 = vpop.permute.xlu0 %1498
    %1500 = vrot.lane.b32.xlu0 %v1373, 105
    %v1501 = vpop.permute.xlu0 %1500
    %1502 = vrot.lane.b32.xlu0 %v1374, 105
    %v1503 = vpop.permute.xlu0 %1502
    %1504 = vrot.lane.b32.xlu0 %v1375, 105
    %v1505 = vpop.permute.xlu0 %1504
    %vm1506 = vcmask 859136
    %v1507 = vsel %vm1506, %v1499, %v1501
    %v1508 = vsel %vm1506, %v1501, %v1503
    %v1509 = vsel %vm1506, %v1503, %v1505
    %v1511 = vsel %vm778, %v1497, 0
    %v1514 = vand.u32 %v1507, %v785
    %v1517 = vand.u32 %v1508, %v785
    %v1520 = vand.u32 %v1509, %v785
    %1522 = vmatprep.subr.bf16.mxu0 %v1517
    %1523 = vmatpush1.bf16.msra.mxu0 %v1514
    %1524 = vmatprep.subr.bf16.mxu0 0
    %1525 = vmatpush1.bf16.msra.mxu0 0
    %1526 = vmatprep.subr.bf16.mxu0 0
    %1527 = vmatpush1.bf16.msra.mxu0 0
    %1528 = vmatprep.subr.bf16.mxu0 0
    %1529 = vmatpush1.bf16.msra.mxu0 0
    %1530 = vmatprep.subr.bf16.mxu0 0
    %1531 = vmatpush1.bf16.msra.mxu0 0
    %1532 = vmatprep.subr.bf16.mxu0 0
    %1533 = vmatpush1.bf16.msra.mxu0 0
    %1534 = vmatprep.subr.bf16.mxu0 0
    %1535 = vmatpush1.bf16.msra.mxu0 0
    %1536 = vmatprep.subr.bf16.mxu0 0
    %1537 = vmatpush1.bf16.msra.mxu0 0
    %1538 = vmatprep.subr.bf16.mxu0 0
    %1539 = vmatpush1.bf16.msra.mxu0 0
    %1540 = vmatprep.subr.bf16.mxu0 0
    %1541 = vmatpush1.bf16.msra.mxu0 0
    %1542 = vmatprep.subr.bf16.mxu0 0
    %1543 = vmatpush1.bf16.msra.mxu0 0
    %1544 = vmatprep.subr.bf16.mxu0 0
    %1545 = vmatpush1.bf16.msra.mxu0 0
    %1546 = vmatprep.subr.bf16.mxu0 0
    %1547 = vmatpush1.bf16.msra.mxu0 0
    %1548 = vmatprep.subr.bf16.mxu0 0
    %1549 = vmatpush1.bf16.msra.mxu0 0
    %1550 = vmatprep.subr.bf16.mxu0 0
    %1551 = vmatpush1.bf16.msra.mxu0 0
    %1552 = vmatprep.subr.bf16.mxu0 0
    %1553 = vmatpush1.bf16.msra.mxu0 0
    %1554 = vmatprep.mubr.bf16.mxu0 0
    %1555 = vmatmul.mubr.bf16.gmra.mrb[0].mxu0 %v1511
    %v1556 = vpop.f32.mrb[0].mxu0
    %v1557 = vadd.f32 0.0, %v1556
    %v1558 = vpop.f32.mrb[0].mxu0
    %v1559 = vadd.f32 0.0, %v1558
    %v1560 = vpop.f32.mrb[0].mxu0
    %v1561 = vadd.f32 0.0, %v1560
    %v1562 = vpop.f32.mrb[0].mxu0
    %v1563 = vadd.f32 0.0, %v1562
    %1564 = vdwg.mxu0
    %1565 = vmatprep.subr.bf16.mxu0 0
    %1566 = vmatpush1.bf16.msra.mxu0 %v1520
    %1567 = vmatprep.subr.bf16.mxu0 0
    %1568 = vmatpush1.bf16.msra.mxu0 0
    %1569 = vmatprep.subr.bf16.mxu0 0
    %1570 = vmatpush1.bf16.msra.mxu0 0
    %1571 = vmatprep.subr.bf16.mxu0 0
    %1572 = vmatpush1.bf16.msra.mxu0 0
    %1573 = vmatprep.subr.bf16.mxu0 0
    %1574 = vmatpush1.bf16.msra.mxu0 0
    %1575 = vmatprep.subr.bf16.mxu0 0
    %1576 = vmatpush1.bf16.msra.mxu0 0
    %1577 = vmatprep.subr.bf16.mxu0 0
    %1578 = vmatpush1.bf16.msra.mxu0 0
    %1579 = vmatprep.subr.bf16.mxu0 0
    %1580 = vmatpush1.bf16.msra.mxu0 0
    %1581 = vmatprep.subr.bf16.mxu0 0
    %1582 = vmatpush1.bf16.msra.mxu0 0
    %1583 = vmatprep.subr.bf16.mxu0 0
    %1584 = vmatpush1.bf16.msra.mxu0 0
    %1585 = vmatprep.subr.bf16.mxu0 0
    %1586 = vmatpush1.bf16.msra.mxu0 0
    %1587 = vmatprep.subr.bf16.mxu0 0
    %1588 = vmatpush1.bf16.msra.mxu0 0
    %1589 = vmatprep.subr.bf16.mxu0 0
    %1590 = vmatpush1.bf16.msra.mxu0 0
    %1591 = vmatprep.subr.bf16.mxu0 0
    %1592 = vmatpush1.bf16.msra.mxu0 0
    %1593 = vmatprep.subr.bf16.mxu0 0
    %1594 = vmatpush1.bf16.msra.mxu0 0
    %1595 = vmatprep.subr.bf16.mxu0 0
    %1596 = vmatpush1.bf16.msra.mxu0 0
    %1597 = vmatprep.mubr.bf16.mxu0 0
    %1598 = vmatmul.mubr.bf16.gmra.mrb[0].mxu0 %v1511
    %v1599 = vpop.f32.mrb[0].mxu0
    %v1600 = vadd.f32 0.0, %v1599
    %v1601 = vpop.f32.mrb[0].mxu0
    %v1602 = vpop.f32.mrb[0].mxu0
    %v1603 = vadd.f32 0.0, %v1602
    %v1604 = vpop.f32.mrb[0].mxu0
    %1605 = vdwg.mxu0
    %v1606 = vadd.f32 %v1484, %v1557
    %v1607 = vadd.f32 %v1485, %v1559
    %v1608 = vadd.f32 %v1486, %v1600
    %v1609 = vadd.f32 %v1487, %v1561
    %v1610 = vadd.f32 %v1488, %v1563
    %v1611 = vadd.f32 %v1489, %v1603
    %s1612 = scalar_lea.vmem [#allocation10], 56
    %v1613 = vld [vmem:[%s1612] sm:$0xf]
    %v1614 = vld [vmem:[%s1612 + $0x4] sm:$0x1]
    %v1617 = vunpack.c.l.b16 %v1613
    %v1618 = vunpack.c.l.b16 %v1614
    %v1619 = vpack.c.b16 %v1618, %v1617
    %1620 = vrot.lane.b32.xlu0 %v1372, 104
    %v1621 = vpop.permute.xlu0 %1620
    %1622 = vrot.lane.b32.xlu0 %v1373, 104
    %v1623 = vpop.permute.xlu0 %1622
    %1624 = vrot.lane.b32.xlu0 %v1374, 104
    %v1625 = vpop.permute.xlu0 %1624
    %1626 = vrot.lane.b32.xlu0 %v1375, 104
    %v1627 = vpop.permute.xlu0 %1626
    %vm1628 = vcmask 850944
    %v1629 = vsel %vm1628, %v1621, %v1623
    %v1630 = vsel %vm1628, %v1623, %v1625
    %v1631 = vsel %vm1628, %v1625, %v1627
    %v1633 = vsel %vm778, %v1619, 0
    %v1636 = vand.u32 %v1629, %v785
    %v1639 = vand.u32 %v1630, %v785
    %v1642 = vand.u32 %v1631, %v785
    %1644 = vmatprep.subr.bf16.mxu0 %v1639
    %1645 = vmatpush1.bf16.msra.mxu0 %v1636
    %1646 = vmatprep.subr.bf16.mxu0 0
    %1647 = vmatpush1.bf16.msra.mxu0 0
    %1648 = vmatprep.subr.bf16.mxu0 0
    %1649 = vmatpush1.bf16.msra.mxu0 0
    %1650 = vmatprep.subr.bf16.mxu0 0
    %1651 = vmatpush1.bf16.msra.mxu0 0
    %1652 = vmatprep.subr.bf16.mxu0 0
    %1653 = vmatpush1.bf16.msra.mxu0 0
    %1654 = vmatprep.subr.bf16.mxu0 0
    %1655 = vmatpush1.bf16.msra.mxu0 0
    %1656 = vmatprep.subr.bf16.mxu0 0
    %1657 = vmatpush1.bf16.msra.mxu0 0
    %1658 = vmatprep.subr.bf16.mxu0 0
    %1659 = vmatpush1.bf16.msra.mxu0 0
    %1660 = vmatprep.subr.bf16.mxu0 0
    %1661 = vmatpush1.bf16.msra.mxu0 0
    %1662 = vmatprep.subr.bf16.mxu0 0
    %1663 = vmatpush1.bf16.msra.mxu0 0
    %1664 = vmatprep.subr.bf16.mxu0 0
    %1665 = vmatpush1.bf16.msra.mxu0 0
    %1666 = vmatprep.subr.bf16.mxu0 0
    %1667 = vmatpush1.bf16.msra.mxu0 0
    %1668 = vmatprep.subr.bf16.mxu0 0
    %1669 = vmatpush1.bf16.msra.mxu0 0
    %1670 = vmatprep.subr.bf16.mxu0 0
    %1671 = vmatpush1.bf16.msra.mxu0 0
    %1672 = vmatprep.subr.bf16.mxu0 0
    %1673 = vmatpush1.bf16.msra.mxu0 0
    %1674 = vmatprep.subr.bf16.mxu0 0
    %1675 = vmatpush1.bf16.msra.mxu0 0
    %1676 = vmatprep.mubr.bf16.mxu0 0
    %1677 = vmatmul.mubr.bf16.gmra.mrb[0].mxu0 %v1633
    %v1678 = vpop.f32.mrb[0].mxu0
    %v1679 = vadd.f32 0.0, %v1678
    %v1680 = vpop.f32.mrb[0].mxu0
    %v1681 = vadd.f32 0.0, %v1680
    %v1682 = vpop.f32.mrb[0].mxu0
    %v1683 = vadd.f32 0.0, %v1682
    %v1684 = vpop.f32.mrb[0].mxu0
    %v1685 = vadd.f32 0.0, %v1684
    %1686 = vdwg.mxu0
    %1687 = vmatprep.subr.bf16.mxu0 0
    %1688 = vmatpush1.bf16.msra.mxu0 %v1642
    %1689 = vmatprep.subr.bf16.mxu0 0
    %1690 = vmatpush1.bf16.msra.mxu0 0
    %1691 = vmatprep.subr.bf16.mxu0 0
    %1692 = vmatpush1.bf16.msra.mxu0 0
    %1693 = vmatprep.subr.bf16.mxu0 0
    %1694 = vmatpush1.bf16.msra.mxu0 0
    %1695 = vmatprep.subr.bf16.mxu0 0
    %1696 = vmatpush1.bf16.msra.mxu0 0
    %1697 = vmatprep.subr.bf16.mxu0 0
    %1698 = vmatpush1.bf16.msra.mxu0 0
    %1699 = vmatprep.subr.bf16.mxu0 0
    %1700 = vmatpush1.bf16.msra.mxu0 0
    %1701 = vmatprep.subr.bf16.mxu0 0
    %1702 = vmatpush1.bf16.msra.mxu0 0
    %1703 = vmatprep.subr.bf16.mxu0 0
    %1704 = vmatpush1.bf16.msra.mxu0 0
    %1705 = vmatprep.subr.bf16.mxu0 0
    %1706 = vmatpush1.bf16.msra.mxu0 0
    %1707 = vmatprep.subr.bf16.mxu0 0
    %1708 = vmatpush1.bf16.msra.mxu0 0
    %1709 = vmatprep.subr.bf16.mxu0 0
    %1710 = vmatpush1.bf16.msra.mxu0 0
    %1711 = vmatprep.subr.bf16.mxu0 0
    %1712 = vmatpush1.bf16.msra.mxu0 0
    %1713 = vmatprep.subr.bf16.mxu0 0
    %1714 = vmatpush1.bf16.msra.mxu0 0
    %1715 = vmatprep.subr.bf16.mxu0 0
    %1716 = vmatpush1.bf16.msra.mxu0 0
    %1717 = vmatprep.subr.bf16.mxu0 0
    %1718 = vmatpush1.bf16.msra.mxu0 0
    %1719 = vmatprep.mubr.bf16.mxu0 0
    %1720 = vmatmul.mubr.bf16.gmra.mrb[0].mxu0 %v1633
    %v1721 = vpop.f32.mrb[0].mxu0
    %v1722 = vadd.f32 0.0, %v1721
    %v1723 = vpop.f32.mrb[0].mxu0
    %v1724 = vpop.f32.mrb[0].mxu0
    %v1725 = vadd.f32 0.0, %v1724
    %v1726 = vpop.f32.mrb[0].mxu0
    %1727 = vdwg.mxu0
    %v1728 = vadd.f32 %v1606, %v1679
    %v1729 = vadd.f32 %v1607, %v1681
    %v1730 = vadd.f32 %v1608, %v1722
    %v1731 = vadd.f32 %v1609, %v1683
    %v1732 = vadd.f32 %v1610, %v1685
    %v1733 = vadd.f32 %v1611, %v1725
    %s1734 = scalar_lea.vmem [#allocation10], 64
    %v1735 = vld [vmem:[%s1734] sm:$0xf]
    %v1736 = vld [vmem:[%s1734 + $0x4] sm:$0x1]
    %v1739 = vunpack.c.l.b16 %v1735
    %v1740 = vunpack.c.l.b16 %v1736
    %v1741 = vpack.c.b16 %v1740, %v1739
    %1742 = vrot.lane.b32.xlu0 %v1372, 103
    %v1743 = vpop.permute.xlu0 %1742
    %1744 = vrot.lane.b32.xlu0 %v1373, 103
    %v1745 = vpop.permute.xlu0 %1744
    %1746 = vrot.lane.b32.xlu0 %v1374, 103
    %v1747 = vpop.permute.xlu0 %1746
    %1748 = vrot.lane.b32.xlu0 %v1375, 103
    %v1749 = vpop.permute.xlu0 %1748
    %vm1750 = vcmask 842752
    %v1751 = vsel %vm1750, %v1743, %v1745
    %v1752 = vsel %vm1750, %v1745, %v1747
    %v1753 = vsel %vm1750, %v1747, %v1749
    %v1755 = vsel %vm778, %v1741, 0
    %v1758 = vand.u32 %v1751, %v785
    %v1761 = vand.u32 %v1752, %v785
    %v1764 = vand.u32 %v1753, %v785
    %1766 = vmatprep.subr.bf16.mxu0 %v1761
    %1767 = vmatpush1.bf16.msra.mxu0 %v1758
    %1768 = vmatprep.subr.bf16.mxu0 0
    %1769 = vmatpush1.bf16.msra.mxu0 0
    %1770 = vmatprep.subr.bf16.mxu0 0
    %1771 = vmatpush1.bf16.msra.mxu0 0
    %1772 = vmatprep.subr.bf16.mxu0 0
    %1773 = vmatpush1.bf16.msra.mxu0 0
    %1774 = vmatprep.subr.bf16.mxu0 0
    %1775 = vmatpush1.bf16.msra.mxu0 0
    %1776 = vmatprep.subr.bf16.mxu0 0
    %1777 = vmatpush1.bf16.msra.mxu0 0
    %1778 = vmatprep.subr.bf16.mxu0 0
    %1779 = vmatpush1.bf16.msra.mxu0 0
    %1780 = vmatprep.subr.bf16.mxu0 0
    %1781 = vmatpush1.bf16.msra.mxu0 0
    %1782 = vmatprep.subr.bf16.mxu0 0
    %1783 = vmatpush1.bf16.msra.mxu0 0
    %1784 = vmatprep.subr.bf16.mxu0 0
    %1785 = vmatpush1.bf16.msra.mxu0 0
    %1786 = vmatprep.subr.bf16.mxu0 0
    %1787 = vmatpush1.bf16.msra.mxu0 0
    %1788 = vmatprep.subr.bf16.mxu0 0
    %1789 = vmatpush1.bf16.msra.mxu0 0
    %1790 = vmatprep.subr.bf16.mxu0 0
    %1791 = vmatpush1.bf16.msra.mxu0 0
    %1792 = vmatprep.subr.bf16.mxu0 0
    %1793 = vmatpush1.bf16.msra.mxu0 0
    %1794 = vmatprep.subr.bf16.mxu0 0
    %1795 = vmatpush1.bf16.msra.mxu0 0
    %1796 = vmatprep.subr.bf16.mxu0 0
    %1797 = vmatpush1.bf16.msra.mxu0 0
    %1798 = vmatprep.mubr.bf16.mxu0 0
    %1799 = vmatmul.mubr.bf16.gmra.mrb[0].mxu0 %v1755
    %v1800 = vpop.f32.mrb[0].mxu0
    %v1801 = vadd.f32 0.0, %v1800
    %v1802 = vpop.f32.mrb[0].mxu0
    %v1803 = vadd.f32 0.0, %v1802
    %v1804 = vpop.f32.mrb[0].mxu0
    %v1805 = vadd.f32 0.0, %v1804
    %v1806 = vpop.f32.mrb[0].mxu0
    %v1807 = vadd.f32 0.0, %v1806
    %1808 = vdwg.mxu0
    %1809 = vmatprep.subr.bf16.mxu0 0
    %1810 = vmatpush1.bf16.msra.mxu0 %v1764
    %1811 = vmatprep.subr.bf16.mxu0 0
    %1812 = vmatpush1.bf16.msra.mxu0 0
    %1813 = vmatprep.subr.bf16.mxu0 0
    %1814 = vmatpush1.bf16.msra.mxu0 0
    %1815 = vmatprep.subr.bf16.mxu0 0
    %1816 = vmatpush1.bf16.msra.mxu0 0
    %1817 = vmatprep.subr.bf16.mxu0 0
    %1818 = vmatpush1.bf16.msra.mxu0 0
    %1819 = vmatprep.subr.bf16.mxu0 0
    %1820 = vmatpush1.bf16.msra.mxu0 0
    %1821 = vmatprep.subr.bf16.mxu0 0
    %1822 = vmatpush1.bf16.msra.mxu0 0
    %1823 = vmatprep.subr.bf16.mxu0 0
    %1824 = vmatpush1.bf16.msra.mxu0 0
    %1825 = vmatprep.subr.bf16.mxu0 0
    %1826 = vmatpush1.bf16.msra.mxu0 0
    %1827 = vmatprep.subr.bf16.mxu0 0
    %1828 = vmatpush1.bf16.msra.mxu0 0
    %1829 = vmatprep.subr.bf16.mxu0 0
    %1830 = vmatpush1.bf16.msra.mxu0 0
    %1831 = vmatprep.subr.bf16.mxu0 0
    %1832 = vmatpush1.bf16.msra.mxu0 0
    %1833 = vmatprep.subr.bf16.mxu0 0
    %1834 = vmatpush1.bf16.msra.mxu0 0
    %1835 = vmatprep.subr.bf16.mxu0 0
    %1836 = vmatpush1.bf16.msra.mxu0 0
    %1837 = vmatprep.subr.bf16.mxu0 0
    %1838 = vmatpush1.bf16.msra.mxu0 0
    %1839 = vmatprep.subr.bf16.mxu0 0
    %1840 = vmatpush1.bf16.msra.mxu0 0
    %1841 = vmatprep.mubr.bf16.mxu0 0
    %1842 = vmatmul.mubr.bf16.gmra.mrb[0].mxu0 %v1755
    %v1843 = vpop.f32.mrb[0].mxu0
    %v1844 = vadd.f32 0.0, %v1843
    %v1845 = vpop.f32.mrb[0].mxu0
    %v1846 = vpop.f32.mrb[0].mxu0
    %v1847 = vadd.f32 0.0, %v1846
    %v1848 = vpop.f32.mrb[0].mxu0
    %1849 = vdwg.mxu0
    %v1850 = vadd.f32 %v1728, %v1801
    %v1851 = vadd.f32 %v1729, %v1803
    %v1852 = vadd.f32 %v1730, %v1844
    %v1853 = vadd.f32 %v1731, %v1805
    %v1854 = vadd.f32 %v1732, %v1807
    %v1855 = vadd.f32 %v1733, %v1847
    %1857 = vset.pattern.permute.xlu0 0
    %1858 = vperm.xlu0 %1857, %v244
    %v1859 = vpop.permute.xlu0 %1858
    %1862 = vset.pattern.permute.xlu0 0
    %1863 = vperm.xlu0 %1862, %v245
    %v1864 = vpop.permute.xlu0 %1863
    %v1866 = vadd.f32 %v1850, %v1859
    %v1867 = vadd.f32 %v1851, %v1859
    %v1868 = vadd.f32 %v1852, %v1859
    %v1869 = vadd.f32 %v1853, %v1864
    %v1870 = vadd.f32 %v1854, %v1864
    %v1871 = vadd.f32 %v1855, %v1864
    %v1872 = vtanh.pop %v1866
    %v1873 = vtanh.pop %v1867
    %v1874 = vtanh.pop %v1868
    %v1875 = vtanh.pop %v1869
    %v1876 = vtanh.pop %v1870
    %v1877 = vtanh.pop %v1871
    %v1878 = vpack.c.bf16 %v1875, %v1872
    %v1879 = vpack.c.bf16 %v1876, %v1873
    %v1880 = vpack.c.bf16 %v1877, %v1874
    %vm1881 = vcmask 80896
    %v1883 = vsel %vm1881, %v249, 0
    %vm1885 = vcmask 1044480
    %v1887 = vsel %vm1885, %v1878, 0
    %v1890 = vsel %vm1885, %v1879, 0
    %v1893 = vsel %vm1885, %v1880, 0
    %1895 = vmatprep.subr.bf16.mxu0 %v1890
    %1896 = vmatpush1.bf16.msra.mxu0 %v1887
    %1897 = vmatprep.subr.bf16.mxu0 0
    %1898 = vmatpush1.bf16.msra.mxu0 0
    %1899 = vmatprep.subr.bf16.mxu0 0
    %1900 = vmatpush1.bf16.msra.mxu0 0
    %1901 = vmatprep.subr.bf16.mxu0 0
    %1902 = vmatpush1.bf16.msra.mxu0 0
    %1903 = vmatprep.subr.bf16.mxu0 0
    %1904 = vmatpush1.bf16.msra.mxu0 0
    %1905 = vmatprep.subr.bf16.mxu0 0
    %1906 = vmatpush1.bf16.msra.mxu0 0
    %1907 = vmatprep.subr.bf16.mxu0 0
    %1908 = vmatpush1.bf16.msra.mxu0 0
    %1909 = vmatprep.subr.bf16.mxu0 0
    %1910 = vmatpush1.bf16.msra.mxu0 0
    %1911 = vmatprep.subr.bf16.mxu0 0
    %1912 = vmatpush1.bf16.msra.mxu0 0
    %1913 = vmatprep.subr.bf16.mxu0 0
    %1914 = vmatpush1.bf16.msra.mxu0 0
    %1915 = vmatprep.subr.bf16.mxu0 0
    %1916 = vmatpush1.bf16.msra.mxu0 0
    %1917 = vmatprep.subr.bf16.mxu0 0
    %1918 = vmatpush1.bf16.msra.mxu0 0
    %1919 = vmatprep.subr.bf16.mxu0 0
    %1920 = vmatpush1.bf16.msra.mxu0 0
    %1921 = vmatprep.subr.bf16.mxu0 0
    %1922 = vmatpush1.bf16.msra.mxu0 0
    %1923 = vmatprep.subr.bf16.mxu0 0
    %1924 = vmatpush1.bf16.msra.mxu0 0
    %1925 = vmatprep.subr.bf16.mxu0 0
    %1926 = vmatpush1.bf16.msra.mxu0 0
    %1927 = vmatprep.mubr.bf16.mxu0 0
    %1928 = vmatmul.mubr.bf16.gmra.mrb[0].mxu0 %v1883
    %v1929 = vpop.f32.mrb[0].mxu0
    %v1930 = vadd.f32 0.0, %v1929
    %v1931 = vpop.f32.mrb[0].mxu0
    %v1932 = vadd.f32 0.0, %v1931
    %v1933 = vpop.f32.mrb[0].mxu0
    %v1934 = vpop.f32.mrb[0].mxu0
    %1935 = vdwg.mxu0
    %1936 = vmatprep.subr.bf16.mxu0 0
    %1937 = vmatpush1.bf16.msra.mxu0 %v1893
    %1938 = vmatprep.subr.bf16.mxu0 0
    %1939 = vmatpush1.bf16.msra.mxu0 0
    %1940 = vmatprep.subr.bf16.mxu0 0
    %1941 = vmatpush1.bf16.msra.mxu0 0
    %1942 = vmatprep.subr.bf16.mxu0 0
    %1943 = vmatpush1.bf16.msra.mxu0 0
    %1944 = vmatprep.subr.bf16.mxu0 0
    %1945 = vmatpush1.bf16.msra.mxu0 0
    %1946 = vmatprep.subr.bf16.mxu0 0
    %1947 = vmatpush1.bf16.msra.mxu0 0
    %1948 = vmatprep.subr.bf16.mxu0 0
    %1949 = vmatpush1.bf16.msra.mxu0 0
    %1950 = vmatprep.subr.bf16.mxu0 0
    %1951 = vmatpush1.bf16.msra.mxu0 0
    %1952 = vmatprep.subr.bf16.mxu0 0
    %1953 = vmatpush1.bf16.msra.mxu0 0
    %1954 = vmatprep.subr.bf16.mxu0 0
    %1955 = vmatpush1.bf16.msra.mxu0 0
    %1956 = vmatprep.subr.bf16.mxu0 0
    %1957 = vmatpush1.bf16.msra.mxu0 0
    %1958 = vmatprep.subr.bf16.mxu0 0
    %1959 = vmatpush1.bf16.msra.mxu0 0
    %1960 = vmatprep.subr.bf16.mxu0 0
    %1961 = vmatpush1.bf16.msra.mxu0 0
    %1962 = vmatprep.subr.bf16.mxu0 0
    %1963 = vmatpush1.bf16.msra.mxu0 0
    %1964 = vmatprep.subr.bf16.mxu0 0
    %1965 = vmatpush1.bf16.msra.mxu0 0
    %1966 = vmatprep.subr.bf16.mxu0 0
    %1967 = vmatpush1.bf16.msra.mxu0 0
    %1968 = vmatprep.mubr.bf16.mxu0 0
    %1969 = vmatmul.mubr.bf16.gmra.mrb[0].mxu0 %v1883
    %v1970 = vpop.f32.mrb[0].mxu0
    %v1971 = vadd.f32 0.0, %v1970
    %v1972 = vpop.f32.mrb[0].mxu0
    %v1973 = vpop.f32.mrb[0].mxu0
    %v1974 = vpop.f32.mrb[0].mxu0
    %1975 = vdwg.mxu0
    %v1976 = vadd.f32 %v674, %v1930
    %v1977 = vadd.f32 %v676, %v1932
    %v1978 = vadd.f32 %v715, %v1971
    %v1982 = vunpack.c.l.b16 %v617
    %v1983 = vunpack.c.l.b16 %v618
    %v1984 = vunpack.c.l.b16 %v619
    %v1985 = vpack.c.b16 %v1983, %v1982
    %v1986 = vpack.c.b16 %v1984, %v1984
    %vm1987 = vsmask.f32 256
    %vm1988 = vsmask.f32 4368
    %vm1989 = vmor %vm1987, %vm1988
    %v1991 = vshrl.u32 %v726, 16
    %v1993 = vrot.slane %v1991, 7
    %v1994 = vrot.slane %v1993, 4
    %v1996 = vshrl.u32 %v1985, 16
    %v1998 = vrot.slane %v1996, 7
    %v1999 = vshll.u32 %v1985, 16
    %v2001 = vor.u32 %v1998, %v1999
    %v2002 = vsel %vm1989, %v1994, %v2001
    %v2004 = vshrl.u32 %v727, 16
    %v2006 = vrot.slane %v2004, 7
    %v2007 = vrot.slane %v2006, 4
    %v2009 = vshrl.u32 %v1986, 16
    %v2011 = vrot.slane %v2009, 7
    %v2012 = vshll.u32 %v1986, 16
    %v2014 = vor.u32 %v2011, %v2012
    %v2015 = vsel %vm1989, %v2007, %v2014
    %v2018 = vld [vmem:[#allocation3 + $0x4] sm:$0x77]
    %v2019 = vsel %vm737, %v2002, %v2018
    %2020 = vst [vmem:[#allocation3 + $0x4] sm:$0x77] %v2019
    %v2021 = vld [vmem:[#allocation3 + $0xc] sm:$0x7]
    %v2022 = vsel %vm254, %v2015, %v2021
    %2023 = vst [vmem:[#allocation3 + $0xc] sm:$0x7] %v2022
    %v2024 = vld [vmem:[#allocation13] sm:$0xf]
    %v2025 = vld [vmem:[#allocation13 + $0x4] sm:$0x1]
    %v2026 = vld [vmem:[#allocation3] sm:$0x77]
    %v2027 = vld [vmem:[#allocation3 + $0x8] sm:$0x77]
    %s2028 = scalar_lea.vmem [#allocation13], 8
    %v2029 = vld [vmem:[%s2028] sm:$0xf]
    %v2030 = vld [vmem:[%s2028 + $0x4] sm:$0x1]
    %v2033 = vunpack.c.l.b16 %v2029
    %v2034 = vunpack.c.l.b16 %v2030
    %v2035 = vpack.c.b16 %v2034, %v2033
    %v2038 = vunpack.c.l.b16 %v2026
    %v2039 = vunpack.c.h.b16 %v2026
    %v2040 = vunpack.c.l.b16 %v2027
    %v2041 = vunpack.c.h.b16 %v2027
    %v2042 = vpack.c.b16 %v2038, %v2038
    %v2043 = vpack.c.b16 %v2039, %v2039
    %v2044 = vpack.c.b16 %v2040, %v2040
    %v2045 = vpack.c.b16 %v2041, %v2041
    %2046 = vrot.lane.b32.xlu0 %v2042, 49
    %v2047 = vpop.permute.xlu0 %2046
    %2048 = vrot.lane.b32.xlu0 %v2043, 49
    %v2049 = vpop.permute.xlu0 %2048
    %2050 = vrot.lane.b32.xlu0 %v2044, 49
    %v2051 = vpop.permute.xlu0 %2050
    %2052 = vrot.lane.b32.xlu0 %v2045, 49
    %v2053 = vpop.permute.xlu0 %2052
    %vm2054 = vcmask 400384
    %v2055 = vsel %vm2054, %v2047, %v2049
    %v2056 = vsel %vm2054, %v2049, %v2051
    %v2057 = vsel %vm2054, %v2051, %v2053
    %v2059 = vsel %vm778, %v2035, 0
    %v2062 = vand.u32 %v2055, %v785
    %v2065 = vand.u32 %v2056, %v785
    %v2068 = vand.u32 %v2057, %v785
    %2070 = vmatprep.subr.bf16.mxu0 %v2065
    %2071 = vmatpush1.bf16.msra.mxu0 %v2062
    %2072 = vmatprep.subr.bf16.mxu0 0
    %2073 = vmatpush1.bf16.msra.mxu0 0
    %2074 = vmatprep.subr.bf16.mxu0 0
    %2075 = vmatpush1.bf16.msra.mxu0 0
    %2076 = vmatprep.subr.bf16.mxu0 0
    %2077 = vmatpush1.bf16.msra.mxu0 0
    %2078 = vmatprep.subr.bf16.mxu0 0
    %2079 = vmatpush1.bf16.msra.mxu0 0
    %2080 = vmatprep.subr.bf16.mxu0 0
    %2081 = vmatpush1.bf16.msra.mxu0 0
    %2082 = vmatprep.subr.bf16.mxu0 0
    %2083 = vmatpush1.bf16.msra.mxu0 0
    %2084 = vmatprep.subr.bf16.mxu0 0
    %2085 = vmatpush1.bf16.msra.mxu0 0
    %2086 = vmatprep.subr.bf16.mxu0 0
    %2087 = vmatpush1.bf16.msra.mxu0 0
    %2088 = vmatprep.subr.bf16.mxu0 0
    %2089 = vmatpush1.bf16.msra.mxu0 0
    %2090 = vmatprep.subr.bf16.mxu0 0
    %2091 = vmatpush1.bf16.msra.mxu0 0
    %2092 = vmatprep.subr.bf16.mxu0 0
    %2093 = vmatpush1.bf16.msra.mxu0 0
    %2094 = vmatprep.subr.bf16.mxu0 0
    %2095 = vmatpush1.bf16.msra.mxu0 0
    %2096 = vmatprep.subr.bf16.mxu0 0
    %2097 = vmatpush1.bf16.msra.mxu0 0
    %2098 = vmatprep.subr.bf16.mxu0 0
    %2099 = vmatpush1.bf16.msra.mxu0 0
    %2100 = vmatprep.subr.bf16.mxu0 0
    %2101 = vmatpush1.bf16.msra.mxu0 0
    %2102 = vmatprep.mubr.bf16.mxu0 0
    %2103 = vmatmul.mubr.bf16.gmra.mrb[0].mxu0 %v2059
    %v2104 = vpop.f32.mrb[0].mxu0
    %v2105 = vadd.f32 0.0, %v2104
    %v2106 = vpop.f32.mrb[0].mxu0
    %v2107 = vadd.f32 0.0, %v2106
    %v2108 = vpop.f32.mrb[0].mxu0
    %v2109 = vadd.f32 0.0, %v2108
    %v2110 = vpop.f32.mrb[0].mxu0
    %v2111 = vadd.f32 0.0, %v2110
    %2112 = vdwg.mxu0
    %2113 = vmatprep.subr.bf16.mxu0 0
    %2114 = vmatpush1.bf16.msra.mxu0 %v2068
    %2115 = vmatprep.subr.bf16.mxu0 0
    %2116 = vmatpush1.bf16.msra.mxu0 0
    %2117 = vmatprep.subr.bf16.mxu0 0
    %2118 = vmatpush1.bf16.msra.mxu0 0
    %2119 = vmatprep.subr.bf16.mxu0 0
    %2120 = vmatpush1.bf16.msra.mxu0 0
    %2121 = vmatprep.subr.bf16.mxu0 0
    %2122 = vmatpush1.bf16.msra.mxu0 0
    %2123 = vmatprep.subr.bf16.mxu0 0
    %2124 = vmatpush1.bf16.msra.mxu0 0
    %2125 = vmatprep.subr.bf16.mxu0 0
    %2126 = vmatpush1.bf16.msra.mxu0 0
    %2127 = vmatprep.subr.bf16.mxu0 0
    %2128 = vmatpush1.bf16.msra.mxu0 0
    %2129 = vmatprep.subr.bf16.mxu0 0
    %2130 = vmatpush1.bf16.msra.mxu0 0
    %2131 = vmatprep.subr.bf16.mxu0 0
    %2132 = vmatpush1.bf16.msra.mxu0 0
    %2133 = vmatprep.subr.bf16.mxu0 0
    %2134 = vmatpush1.bf16.msra.mxu0 0
    %2135 = vmatprep.subr.bf16.mxu0 0
    %2136 = vmatpush1.bf16.msra.mxu0 0
    %2137 = vmatprep.subr.bf16.mxu0 0
    %2138 = vmatpush1.bf16.msra.mxu0 0
    %2139 = vmatprep.subr.bf16.mxu0 0
    %2140 = vmatpush1.bf16.msra.mxu0 0
    %2141 = vmatprep.subr.bf16.mxu0 0
    %2142 = vmatpush1.bf16.msra.mxu0 0
    %2143 = vmatprep.subr.bf16.mxu0 0
    %2144 = vmatpush1.bf16.msra.mxu0 0
    %2145 = vmatprep.mubr.bf16.mxu0 0
    %2146 = vmatmul.mubr.bf16.gmra.mrb[0].mxu0 %v2059
    %v2147 = vpop.f32.mrb[0].mxu0
    %v2148 = vadd.f32 0.0, %v2147
    %v2149 = vpop.f32.mrb[0].mxu0
    %v2150 = vpop.f32.mrb[0].mxu0
    %v2151 = vadd.f32 0.0, %v2150
    %v2152 = vpop.f32.mrb[0].mxu0
    %2153 = vdwg.mxu0
    %v2156 = vunpack.c.l.b16 %v2024
    %v2157 = vunpack.c.l.b16 %v2025
    %v2158 = vpack.c.b16 %v2157, %v2156
    %2159 = vrot.lane.b32.xlu0 %v2042, 50
    %v2160 = vpop.permute.xlu0 %2159
    %2161 = vrot.lane.b32.xlu0 %v2043, 50
    %v2162 = vpop.permute.xlu0 %2161
    %2163 = vrot.lane.b32.xlu0 %v2044, 50
    %v2164 = vpop.permute.xlu0 %2163
    %2165 = vrot.lane.b32.xlu0 %v2045, 50
    %v2166 = vpop.permute.xlu0 %2165
    %vm2167 = vcmask 408576
    %v2168 = vsel %vm2167, %v2160, %v2162
    %v2169 = vsel %vm2167, %v2162, %v2164
    %v2170 = vsel %vm2167, %v2164, %v2166
    %v2172 = vsel %vm778, %v2158, 0
    %v2175 = vand.u32 %v2168, %v785
    %v2178 = vand.u32 %v2169, %v785
    %v2181 = vand.u32 %v2170, %v785
    %2183 = vmatprep.subr.bf16.mxu0 %v2178
    %2184 = vmatpush1.bf16.msra.mxu0 %v2175
    %2185 = vmatprep.subr.bf16.mxu0 0
    %2186 = vmatpush1.bf16.msra.mxu0 0
    %2187 = vmatprep.subr.bf16.mxu0 0
    %2188 = vmatpush1.bf16.msra.mxu0 0
    %2189 = vmatprep.subr.bf16.mxu0 0
    %2190 = vmatpush1.bf16.msra.mxu0 0
    %2191 = vmatprep.subr.bf16.mxu0 0
    %2192 = vmatpush1.bf16.msra.mxu0 0
    %2193 = vmatprep.subr.bf16.mxu0 0
    %2194 = vmatpush1.bf16.msra.mxu0 0
    %2195 = vmatprep.subr.bf16.mxu0 0
    %2196 = vmatpush1.bf16.msra.mxu0 0
    %2197 = vmatprep.subr.bf16.mxu0 0
    %2198 = vmatpush1.bf16.msra.mxu0 0
    %2199 = vmatprep.subr.bf16.mxu0 0
    %2200 = vmatpush1.bf16.msra.mxu0 0
    %2201 = vmatprep.subr.bf16.mxu0 0
    %2202 = vmatpush1.bf16.msra.mxu0 0
    %2203 = vmatprep.subr.bf16.mxu0 0
    %2204 = vmatpush1.bf16.msra.mxu0 0
    %2205 = vmatprep.subr.bf16.mxu0 0
    %2206 = vmatpush1.bf16.msra.mxu0 0
    %2207 = vmatprep.subr.bf16.mxu0 0
    %2208 = vmatpush1.bf16.msra.mxu0 0
    %2209 = vmatprep.subr.bf16.mxu0 0
    %2210 = vmatpush1.bf16.msra.mxu0 0
    %2211 = vmatprep.subr.bf16.mxu0 0
    %2212 = vmatpush1.bf16.msra.mxu0 0
    %2213 = vmatprep.subr.bf16.mxu0 0
    %2214 = vmatpush1.bf16.msra.mxu0 0
    %2215 = vmatprep.mubr.bf16.mxu0 0
    %2216 = vmatmul.mubr.bf16.gmra.mrb[0].mxu0 %v2172
    %v2217 = vpop.f32.mrb[0].mxu0
    %v2218 = vadd.f32 %v2105, %v2217
    %v2219 = vpop.f32.mrb[0].mxu0
    %v2220 = vadd.f32 %v2107, %v2219
    %v2221 = vpop.f32.mrb[0].mxu0
    %v2222 = vadd.f32 %v2109, %v2221
    %v2223 = vpop.f32.mrb[0].mxu0
    %v2224 = vadd.f32 %v2111, %v2223
    %2225 = vdwg.mxu0
    %2226 = vmatprep.subr.bf16.mxu0 0
    %2227 = vmatpush1.bf16.msra.mxu0 %v2181
    %2228 = vmatprep.subr.bf16.mxu0 0
    %2229 = vmatpush1.bf16.msra.mxu0 0
    %2230 = vmatprep.subr.bf16.mxu0 0
    %2231 = vmatpush1.bf16.msra.mxu0 0
    %2232 = vmatprep.subr.bf16.mxu0 0
    %2233 = vmatpush1.bf16.msra.mxu0 0
    %2234 = vmatprep.subr.bf16.mxu0 0
    %2235 = vmatpush1.bf16.msra.mxu0 0
    %2236 = vmatprep.subr.bf16.mxu0 0
    %2237 = vmatpush1.bf16.msra.mxu0 0
    %2238 = vmatprep.subr.bf16.mxu0 0
    %2239 = vmatpush1.bf16.msra.mxu0 0
    %2240 = vmatprep.subr.bf16.mxu0 0
    %2241 = vmatpush1.bf16.msra.mxu0 0
    %2242 = vmatprep.subr.bf16.mxu0 0
    %2243 = vmatpush1.bf16.msra.mxu0 0
    %2244 = vmatprep.subr.bf16.mxu0 0
    %2245 = vmatpush1.bf16.msra.mxu0 0
    %2246 = vmatprep.subr.bf16.mxu0 0
    %2247 = vmatpush1.bf16.msra.mxu0 0
    %2248 = vmatprep.subr.bf16.mxu0 0
    %2249 = vmatpush1.bf16.msra.mxu0 0
    %2250 = vmatprep.subr.bf16.mxu0 0
    %2251 = vmatpush1.bf16.msra.mxu0 0
    %2252 = vmatprep.subr.bf16.mxu0 0
    %2253 = vmatpush1.bf16.msra.mxu0 0
    %2254 = vmatprep.subr.bf16.mxu0 0
    %2255 = vmatpush1.bf16.msra.mxu0 0
    %2256 = vmatprep.subr.bf16.mxu0 0
    %2257 = vmatpush1.bf16.msra.mxu0 0
    %2258 = vmatprep.mubr.bf16.mxu0 0
    %2259 = vmatmul.mubr.bf16.gmra.mrb[0].mxu0 %v2172
    %v2260 = vpop.f32.mrb[0].mxu0
    %v2261 = vadd.f32 %v2148, %v2260
    %v2262 = vpop.f32.mrb[0].mxu0
    %v2263 = vpop.f32.mrb[0].mxu0
    %v2264 = vadd.f32 %v2151, %v2263
    %v2265 = vpop.f32.mrb[0].mxu0
    %2266 = vdwg.mxu0
    %s2267 = scalar_lea.vmem [#allocation13], 16
    %v2268 = vld [vmem:[%s2267] sm:$0xf]
    %v2269 = vld [vmem:[%s2267 + $0x4] sm:$0x1]
    %v2272 = vunpack.c.l.b16 %v2268
    %v2273 = vunpack.c.l.b16 %v2269
    %v2274 = vpack.c.b16 %v2273, %v2272
    %2275 = vrot.lane.b32.xlu0 %v2042, 48
    %v2276 = vpop.permute.xlu0 %2275
    %2277 = vrot.lane.b32.xlu0 %v2043, 48
    %v2278 = vpop.permute.xlu0 %2277
    %2279 = vrot.lane.b32.xlu0 %v2044, 48
    %v2280 = vpop.permute.xlu0 %2279
    %2281 = vrot.lane.b32.xlu0 %v2045, 48
    %v2282 = vpop.permute.xlu0 %2281
    %vm2283 = vcmask 392192
    %v2284 = vsel %vm2283, %v2276, %v2278
    %v2285 = vsel %vm2283, %v2278, %v2280
    %v2286 = vsel %vm2283, %v2280, %v2282
    %v2288 = vsel %vm778, %v2274, 0
    %v2291 = vand.u32 %v2284, %v785
    %v2294 = vand.u32 %v2285, %v785
    %v2297 = vand.u32 %v2286, %v785
    %2299 = vmatprep.subr.bf16.mxu0 %v2294
    %2300 = vmatpush1.bf16.msra.mxu0 %v2291
    %2301 = vmatprep.subr.bf16.mxu0 0
    %2302 = vmatpush1.bf16.msra.mxu0 0
    %2303 = vmatprep.subr.bf16.mxu0 0
    %2304 = vmatpush1.bf16.msra.mxu0 0
    %2305 = vmatprep.subr.bf16.mxu0 0
    %2306 = vmatpush1.bf16.msra.mxu0 0
    %2307 = vmatprep.subr.bf16.mxu0 0
    %2308 = vmatpush1.bf16.msra.mxu0 0
    %2309 = vmatprep.subr.bf16.mxu0 0
    %2310 = vmatpush1.bf16.msra.mxu0 0
    %2311 = vmatprep.subr.bf16.mxu0 0
    %2312 = vmatpush1.bf16.msra.mxu0 0
    %2313 = vmatprep.subr.bf16.mxu0 0
    %2314 = vmatpush1.bf16.msra.mxu0 0
    %2315 = vmatprep.subr.bf16.mxu0 0
    %2316 = vmatpush1.bf16.msra.mxu0 0
    %2317 = vmatprep.subr.bf16.mxu0 0
    %2318 = vmatpush1.bf16.msra.mxu0 0
    %2319 = vmatprep.subr.bf16.mxu0 0
    %2320 = vmatpush1.bf16.msra.mxu0 0
    %2321 = vmatprep.subr.bf16.mxu0 0
    %2322 = vmatpush1.bf16.msra.mxu0 0
    %2323 = vmatprep.subr.bf16.mxu0 0
    %2324 = vmatpush1.bf16.msra.mxu0 0
    %2325 = vmatprep.subr.bf16.mxu0 0
    %2326 = vmatpush1.bf16.msra.mxu0 0
    %2327 = vmatprep.subr.bf16.mxu0 0
    %2328 = vmatpush1.bf16.msra.mxu0 0
    %2329 = vmatprep.subr.bf16.mxu0 0
    %2330 = vmatpush1.bf16.msra.mxu0 0
    %2331 = vmatprep.mubr.bf16.mxu0 0
    %2332 = vmatmul.mubr.bf16.gmra.mrb[0].mxu0 %v2288
    %v2333 = vpop.f32.mrb[0].mxu0
    %v2334 = vadd.f32 0.0, %v2333
    %v2335 = vpop.f32.mrb[0].mxu0
    %v2336 = vadd.f32 0.0, %v2335
    %v2337 = vpop.f32.mrb[0].mxu0
    %v2338 = vadd.f32 0.0, %v2337
    %v2339 = vpop.f32.mrb[0].mxu0
    %v2340 = vadd.f32 0.0, %v2339
    %2341 = vdwg.mxu0
    %2342 = vmatprep.subr.bf16.mxu0 0
    %2343 = vmatpush1.bf16.msra.mxu0 %v2297
    %2344 = vmatprep.subr.bf16.mxu0 0
    %2345 = vmatpush1.bf16.msra.mxu0 0
    %2346 = vmatprep.subr.bf16.mxu0 0
    %2347 = vmatpush1.bf16.msra.mxu0 0
    %2348 = vmatprep.subr.bf16.mxu0 0
    %2349 = vmatpush1.bf16.msra.mxu0 0
    %2350 = vmatprep.subr.bf16.mxu0 0
    %2351 = vmatpush1.bf16.msra.mxu0 0
    %2352 = vmatprep.subr.bf16.mxu0 0
    %2353 = vmatpush1.bf16.msra.mxu0 0
    %2354 = vmatprep.subr.bf16.mxu0 0
    %2355 = vmatpush1.bf16.msra.mxu0 0
    %2356 = vmatprep.subr.bf16.mxu0 0
    %2357 = vmatpush1.bf16.msra.mxu0 0
    %2358 = vmatprep.subr.bf16.mxu0 0
    %2359 = vmatpush1.bf16.msra.mxu0 0
    %2360 = vmatprep.subr.bf16.mxu0 0
    %2361 = vmatpush1.bf16.msra.mxu0 0
    %2362 = vmatprep.subr.bf16.mxu0 0
    %2363 = vmatpush1.bf16.msra.mxu0 0
    %2364 = vmatprep.subr.bf16.mxu0 0
    %2365 = vmatpush1.bf16.msra.mxu0 0
    %2366 = vmatprep.subr.bf16.mxu0 0
    %2367 = vmatpush1.bf16.msra.mxu0 0
    %2368 = vmatprep.subr.bf16.mxu0 0
    %2369 = vmatpush1.bf16.msra.mxu0 0
    %2370 = vmatprep.subr.bf16.mxu0 0
    %2371 = vmatpush1.bf16.msra.mxu0 0
    %2372 = vmatprep.subr.bf16.mxu0 0
    %2373 = vmatpush1.bf16.msra.mxu0 0
    %2374 = vmatprep.mubr.bf16.mxu0 0
    %2375 = vmatmul.mubr.bf16.gmra.mrb[0].mxu0 %v2288
    %v2376 = vpop.f32.mrb[0].mxu0
    %v2377 = vadd.f32 0.0, %v2376
    %v2378 = vpop.f32.mrb[0].mxu0
    %v2379 = vpop.f32.mrb[0].mxu0
    %v2380 = vadd.f32 0.0, %v2379
    %v2381 = vpop.f32.mrb[0].mxu0
    %2382 = vdwg.mxu0
    %v2383 = vadd.f32 %v2218, %v2334
    %v2384 = vadd.f32 %v2220, %v2336
    %v2385 = vadd.f32 %v2261, %v2377
    %v2386 = vadd.f32 %v2222, %v2338
    %v2387 = vadd.f32 %v2224, %v2340
    %v2388 = vadd.f32 %v2264, %v2380
    %s2389 = scalar_lea.vmem [#allocation13], 24
    %v2390 = vld [vmem:[%s2389] sm:$0xf]
    %v2391 = vld [vmem:[%s2389 + $0x4] sm:$0x1]
    %v2394 = vunpack.c.l.b16 %v2390
    %v2395 = vunpack.c.l.b16 %v2391
    %v2396 = vpack.c.b16 %v2395, %v2394
    %2397 = vrot.lane.b32.xlu0 %v2042, 47
    %v2398 = vpop.permute.xlu0 %2397
    %2399 = vrot.lane.b32.xlu0 %v2043, 47
    %v2400 = vpop.permute.xlu0 %2399
    %2401 = vrot.lane.b32.xlu0 %v2044, 47
    %v2402 = vpop.permute.xlu0 %2401
    %2403 = vrot.lane.b32.xlu0 %v2045, 47
    %v2404 = vpop.permute.xlu0 %2403
    %vm2405 = vcmask 384000
    %v2406 = vsel %vm2405, %v2398, %v2400
    %v2407 = vsel %vm2405, %v2400, %v2402
    %v2408 = vsel %vm2405, %v2402, %v2404
    %v2410 = vsel %vm778, %v2396, 0
    %v2413 = vand.u32 %v2406, %v785
    %v2416 = vand.u32 %v2407, %v785
    %v2419 = vand.u32 %v2408, %v785
    %2421 = vmatprep.subr.bf16.mxu0 %v2416
    %2422 = vmatpush1.bf16.msra.mxu0 %v2413
    %2423 = vmatprep.subr.bf16.mxu0 0
    %2424 = vmatpush1.bf16.msra.mxu0 0
    %2425 = vmatprep.subr.bf16.mxu0 0
    %2426 = vmatpush1.bf16.msra.mxu0 0
    %2427 = vmatprep.subr.bf16.mxu0 0
    %2428 = vmatpush1.bf16.msra.mxu0 0
    %2429 = vmatprep.subr.bf16.mxu0 0
    %2430 = vmatpush1.bf16.msra.mxu0 0
    %2431 = vmatprep.subr.bf16.mxu0 0
    %2432 = vmatpush1.bf16.msra.mxu0 0
    %2433 = vmatprep.subr.bf16.mxu0 0
    %2434 = vmatpush1.bf16.msra.mxu0 0
    %2435 = vmatprep.subr.bf16.mxu0 0
    %2436 = vmatpush1.bf16.msra.mxu0 0
    %2437 = vmatprep.subr.bf16.mxu0 0
    %2438 = vmatpush1.bf16.msra.mxu0 0
    %2439 = vmatprep.subr.bf16.mxu0 0
    %2440 = vmatpush1.bf16.msra.mxu0 0
    %2441 = vmatprep.subr.bf16.mxu0 0
    %2442 = vmatpush1.bf16.msra.mxu0 0
    %2443 = vmatprep.subr.bf16.mxu0 0
    %2444 = vmatpush1.bf16.msra.mxu0 0
    %2445 = vmatprep.subr.bf16.mxu0 0
    %2446 = vmatpush1.bf16.msra.mxu0 0
    %2447 = vmatprep.subr.bf16.mxu0 0
    %2448 = vmatpush1.bf16.msra.mxu0 0
    %2449 = vmatprep.subr.bf16.mxu0 0
    %2450 = vmatpush1.bf16.msra.mxu0 0
    %2451 = vmatprep.subr.bf16.mxu0 0
    %2452 = vmatpush1.bf16.msra.mxu0 0
    %2453 = vmatprep.mubr.bf16.mxu0 0
    %2454 = vmatmul.mubr.bf16.gmra.mrb[0].mxu0 %v2410
    %v2455 = vpop.f32.mrb[0].mxu0
    %v2456 = vadd.f32 0.0, %v2455
    %v2457 = vpop.f32.mrb[0].mxu0
    %v2458 = vadd.f32 0.0, %v2457
    %v2459 = vpop.f32.mrb[0].mxu0
    %v2460 = vadd.f32 0.0, %v2459
    %v2461 = vpop.f32.mrb[0].mxu0
    %v2462 = vadd.f32 0.0, %v2461
    %2463 = vdwg.mxu0
    %2464 = vmatprep.subr.bf16.mxu0 0
    %2465 = vmatpush1.bf16.msra.mxu0 %v2419
    %2466 = vmatprep.subr.bf16.mxu0 0
    %2467 = vmatpush1.bf16.msra.mxu0 0
    %2468 = vmatprep.subr.bf16.mxu0 0
    %2469 = vmatpush1.bf16.msra.mxu0 0
    %2470 = vmatprep.subr.bf16.mxu0 0
    %2471 = vmatpush1.bf16.msra.mxu0 0
    %2472 = vmatprep.subr.bf16.mxu0 0
    %2473 = vmatpush1.bf16.msra.mxu0 0
    %2474 = vmatprep.subr.bf16.mxu0 0
    %2475 = vmatpush1.bf16.msra.mxu0 0
    %2476 = vmatprep.subr.bf16.mxu0 0
    %2477 = vmatpush1.bf16.msra.mxu0 0
    %2478 = vmatprep.subr.bf16.mxu0 0
    %2479 = vmatpush1.bf16.msra.mxu0 0
    %2480 = vmatprep.subr.bf16.mxu0 0
    %2481 = vmatpush1.bf16.msra.mxu0 0
    %2482 = vmatprep.subr.bf16.mxu0 0
    %2483 = vmatpush1.bf16.msra.mxu0 0
    %2484 = vmatprep.subr.bf16.mxu0 0
    %2485 = vmatpush1.bf16.msra.mxu0 0
    %2486 = vmatprep.subr.bf16.mxu0 0
    %2487 = vmatpush1.bf16.msra.mxu0 0
    %2488 = vmatprep.subr.bf16.mxu0 0
    %2489 = vmatpush1.bf16.msra.mxu0 0
    %2490 = vmatprep.subr.bf16.mxu0 0
    %2491 = vmatpush1.bf16.msra.mxu0 0
    %2492 = vmatprep.subr.bf16.mxu0 0
    %2493 = vmatpush1.bf16.msra.mxu0 0
    %2494 = vmatprep.subr.bf16.mxu0 0
    %2495 = vmatpush1.bf16.msra.mxu0 0
    %2496 = vmatprep.mubr.bf16.mxu0 0
    %2497 = vmatmul.mubr.bf16.gmra.mrb[0].mxu0 %v2410
    %v2498 = vpop.f32.mrb[0].mxu0
    %v2499 = vadd.f32 0.0, %v2498
    %v2500 = vpop.f32.mrb[0].mxu0
    %v2501 = vpop.f32.mrb[0].mxu0
    %v2502 = vadd.f32 0.0, %v2501
    %v2503 = vpop.f32.mrb[0].mxu0
    %2504 = vdwg.mxu0
    %v2505 = vadd.f32 %v2383, %v2456
    %v2506 = vadd.f32 %v2384, %v2458
    %v2507 = vadd.f32 %v2385, %v2499
    %v2508 = vadd.f32 %v2386, %v2460
    %v2509 = vadd.f32 %v2387, %v2462
    %v2510 = vadd.f32 %v2388, %v2502
    %s2511 = scalar_lea.vmem [#allocation13], 32
    %v2512 = vld [vmem:[%s2511] sm:$0xf]
    %v2513 = vld [vmem:[%s2511 + $0x4] sm:$0x1]
    %v2516 = vunpack.c.l.b16 %v2512
    %v2517 = vunpack.c.l.b16 %v2513
    %v2518 = vpack.c.b16 %v2517, %v2516
    %2519 = vrot.lane.b32.xlu0 %v2042, 46
    %v2520 = vpop.permute.xlu0 %2519
    %2521 = vrot.lane.b32.xlu0 %v2043, 46
    %v2522 = vpop.permute.xlu0 %2521
    %2523 = vrot.lane.b32.xlu0 %v2044, 46
    %v2524 = vpop.permute.xlu0 %2523
    %2525 = vrot.lane.b32.xlu0 %v2045, 46
    %v2526 = vpop.permute.xlu0 %2525
    %vm2527 = vcmask 375808
    %v2528 = vsel %vm2527, %v2520, %v2522
    %v2529 = vsel %vm2527, %v2522, %v2524
    %v2530 = vsel %vm2527, %v2524, %v2526
    %v2532 = vsel %vm778, %v2518, 0
    %v2535 = vand.u32 %v2528, %v785
    %v2538 = vand.u32 %v2529, %v785
    %v2541 = vand.u32 %v2530, %v785
    %2543 = vmatprep.subr.bf16.mxu0 %v2538
    %2544 = vmatpush1.bf16.msra.mxu0 %v2535
    %2545 = vmatprep.subr.bf16.mxu0 0
    %2546 = vmatpush1.bf16.msra.mxu0 0
    %2547 = vmatprep.subr.bf16.mxu0 0
    %2548 = vmatpush1.bf16.msra.mxu0 0
    %2549 = vmatprep.subr.bf16.mxu0 0
    %2550 = vmatpush1.bf16.msra.mxu0 0
    %2551 = vmatprep.subr.bf16.mxu0 0
    %2552 = vmatpush1.bf16.msra.mxu0 0
    %2553 = vmatprep.subr.bf16.mxu0 0
    %2554 = vmatpush1.bf16.msra.mxu0 0
    %2555 = vmatprep.subr.bf16.mxu0 0
    %2556 = vmatpush1.bf16.msra.mxu0 0
    %2557 = vmatprep.subr.bf16.mxu0 0
    %2558 = vmatpush1.bf16.msra.mxu0 0
    %2559 = vmatprep.subr.bf16.mxu0 0
    %2560 = vmatpush1.bf16.msra.mxu0 0
    %2561 = vmatprep.subr.bf16.mxu0 0
    %2562 = vmatpush1.bf16.msra.mxu0 0
    %2563 = vmatprep.subr.bf16.mxu0 0
    %2564 = vmatpush1.bf16.msra.mxu0 0
    %2565 = vmatprep.subr.bf16.mxu0 0
    %2566 = vmatpush1.bf16.msra.mxu0 0
    %2567 = vmatprep.subr.bf16.mxu0 0
    %2568 = vmatpush1.bf16.msra.mxu0 0
    %2569 = vmatprep.subr.bf16.mxu0 0
    %2570 = vmatpush1.bf16.msra.mxu0 0
    %2571 = vmatprep.subr.bf16.mxu0 0
    %2572 = vmatpush1.bf16.msra.mxu0 0
    %2573 = vmatprep.subr.bf16.mxu0 0
    %2574 = vmatpush1.bf16.msra.mxu0 0
    %2575 = vmatprep.mubr.bf16.mxu0 0
    %2576 = vmatmul.mubr.bf16.gmra.mrb[0].mxu0 %v2532
    %v2577 = vpop.f32.mrb[0].mxu0
    %v2578 = vadd.f32 0.0, %v2577
    %v2579 = vpop.f32.mrb[0].mxu0
    %v2580 = vadd.f32 0.0, %v2579
    %v2581 = vpop.f32.mrb[0].mxu0
    %v2582 = vadd.f32 0.0, %v2581
    %v2583 = vpop.f32.mrb[0].mxu0
    %v2584 = vadd.f32 0.0, %v2583
    %2585 = vdwg.mxu0
    %2586 = vmatprep.subr.bf16.mxu0 0
    %2587 = vmatpush1.bf16.msra.mxu0 %v2541
    %2588 = vmatprep.subr.bf16.mxu0 0
    %2589 = vmatpush1.bf16.msra.mxu0 0
    %2590 = vmatprep.subr.bf16.mxu0 0
    %2591 = vmatpush1.bf16.msra.mxu0 0
    %2592 = vmatprep.subr.bf16.mxu0 0
    %2593 = vmatpush1.bf16.msra.mxu0 0
    %2594 = vmatprep.subr.bf16.mxu0 0
    %2595 = vmatpush1.bf16.msra.mxu0 0
    %2596 = vmatprep.subr.bf16.mxu0 0
    %2597 = vmatpush1.bf16.msra.mxu0 0
    %2598 = vmatprep.subr.bf16.mxu0 0
    %2599 = vmatpush1.bf16.msra.mxu0 0
    %2600 = vmatprep.subr.bf16.mxu0 0
    %2601 = vmatpush1.bf16.msra.mxu0 0
    %2602 = vmatprep.subr.bf16.mxu0 0
    %2603 = vmatpush1.bf16.msra.mxu0 0
    %2604 = vmatprep.subr.bf16.mxu0 0
    %2605 = vmatpush1.bf16.msra.mxu0 0
    %2606 = vmatprep.subr.bf16.mxu0 0
    %2607 = vmatpush1.bf16.msra.mxu0 0
    %2608 = vmatprep.subr.bf16.mxu0 0
    %2609 = vmatpush1.bf16.msra.mxu0 0
    %2610 = vmatprep.subr.bf16.mxu0 0
    %2611 = vmatpush1.bf16.msra.mxu0 0
    %2612 = vmatprep.subr.bf16.mxu0 0
    %2613 = vmatpush1.bf16.msra.mxu0 0
    %2614 = vmatprep.subr.bf16.mxu0 0
    %2615 = vmatpush1.bf16.msra.mxu0 0
    %2616 = vmatprep.subr.bf16.mxu0 0
    %2617 = vmatpush1.bf16.msra.mxu0 0
    %2618 = vmatprep.mubr.bf16.mxu0 0
    %2619 = vmatmul.mubr.bf16.gmra.mrb[0].mxu0 %v2532
    %v2620 = vpop.f32.mrb[0].mxu0
    %v2621 = vadd.f32 0.0, %v2620
    %v2622 = vpop.f32.mrb[0].mxu0
    %v2623 = vpop.f32.mrb[0].mxu0
    %v2624 = vadd.f32 0.0, %v2623
    %v2625 = vpop.f32.mrb[0].mxu0
    %2626 = vdwg.mxu0
    %v2627 = vadd.f32 %v2505, %v2578
    %v2628 = vadd.f32 %v2506, %v2580
    %v2629 = vadd.f32 %v2507, %v2621
    %v2630 = vadd.f32 %v2508, %v2582
    %v2631 = vadd.f32 %v2509, %v2584
    %v2632 = vadd.f32 %v2510, %v2624
    %s2633 = scalar_lea.vmem [#allocation13], 40
    %v2634 = vld [vmem:[%s2633] sm:$0xf]
    %v2635 = vld [vmem:[%s2633 + $0x4] sm:$0x1]
    %v2638 = vunpack.c.l.b16 %v2634
    %v2639 = vunpack.c.l.b16 %v2635
    %v2640 = vpack.c.b16 %v2639, %v2638
    %2641 = vrot.lane.b32.xlu0 %v2042, 26
    %v2642 = vpop.permute.xlu0 %2641
    %2643 = vrot.lane.b32.xlu0 %v2043, 26
    %v2644 = vpop.permute.xlu0 %2643
    %2645 = vrot.lane.b32.xlu0 %v2044, 26
    %v2646 = vpop.permute.xlu0 %2645
    %2647 = vrot.lane.b32.xlu0 %v2045, 26
    %v2648 = vpop.permute.xlu0 %2647
    %vm2649 = vcmask 211968
    %v2650 = vsel %vm2649, %v2642, %v2644
    %v2651 = vsel %vm2649, %v2644, %v2646
    %v2652 = vsel %vm2649, %v2646, %v2648
    %v2654 = vsel %vm778, %v2640, 0
    %v2657 = vand.u32 %v2650, %v785
    %v2660 = vand.u32 %v2651, %v785
    %v2663 = vand.u32 %v2652, %v785
    %2665 = vmatprep.subr.bf16.mxu0 %v2660
    %2666 = vmatpush1.bf16.msra.mxu0 %v2657
    %2667 = vmatprep.subr.bf16.mxu0 0
    %2668 = vmatpush1.bf16.msra.mxu0 0
    %2669 = vmatprep.subr.bf16.mxu0 0
    %2670 = vmatpush1.bf16.msra.mxu0 0
    %2671 = vmatprep.subr.bf16.mxu0 0
    %2672 = vmatpush1.bf16.msra.mxu0 0
    %2673 = vmatprep.subr.bf16.mxu0 0
    %2674 = vmatpush1.bf16.msra.mxu0 0
    %2675 = vmatprep.subr.bf16.mxu0 0
    %2676 = vmatpush1.bf16.msra.mxu0 0
    %2677 = vmatprep.subr.bf16.mxu0 0
    %2678 = vmatpush1.bf16.msra.mxu0 0
    %2679 = vmatprep.subr.bf16.mxu0 0
    %2680 = vmatpush1.bf16.msra.mxu0 0
    %2681 = vmatprep.subr.bf16.mxu0 0
    %2682 = vmatpush1.bf16.msra.mxu0 0
    %2683 = vmatprep.subr.bf16.mxu0 0
    %2684 = vmatpush1.bf16.msra.mxu0 0
    %2685 = vmatprep.subr.bf16.mxu0 0
    %2686 = vmatpush1.bf16.msra.mxu0 0
    %2687 = vmatprep.subr.bf16.mxu0 0
    %2688 = vmatpush1.bf16.msra.mxu0 0
    %2689 = vmatprep.subr.bf16.mxu0 0
    %2690 = vmatpush1.bf16.msra.mxu0 0
    %2691 = vmatprep.subr.bf16.mxu0 0
    %2692 = vmatpush1.bf16.msra.mxu0 0
    %2693 = vmatprep.subr.bf16.mxu0 0
    %2694 = vmatpush1.bf16.msra.mxu0 0
    %2695 = vmatprep.subr.bf16.mxu0 0
    %2696 = vmatpush1.bf16.msra.mxu0 0
    %2697 = vmatprep.mubr.bf16.mxu0 0
    %2698 = vmatmul.mubr.bf16.gmra.mrb[0].mxu0 %v2654
    %v2699 = vpop.f32.mrb[0].mxu0
    %v2700 = vadd.f32 0.0, %v2699
    %v2701 = vpop.f32.mrb[0].mxu0
    %v2702 = vadd.f32 0.0, %v2701
    %v2703 = vpop.f32.mrb[0].mxu0
    %v2704 = vadd.f32 0.0, %v2703
    %v2705 = vpop.f32.mrb[0].mxu0
    %v2706 = vadd.f32 0.0, %v2705
    %2707 = vdwg.mxu0
    %2708 = vmatprep.subr.bf16.mxu0 0
    %2709 = vmatpush1.bf16.msra.mxu0 %v2663
    %2710 = vmatprep.subr.bf16.mxu0 0
    %2711 = vmatpush1.bf16.msra.mxu0 0
    %2712 = vmatprep.subr.bf16.mxu0 0
    %2713 = vmatpush1.bf16.msra.mxu0 0
    %2714 = vmatprep.subr.bf16.mxu0 0
    %2715 = vmatpush1.bf16.msra.mxu0 0
    %2716 = vmatprep.subr.bf16.mxu0 0
    %2717 = vmatpush1.bf16.msra.mxu0 0
    %2718 = vmatprep.subr.bf16.mxu0 0
    %2719 = vmatpush1.bf16.msra.mxu0 0
    %2720 = vmatprep.subr.bf16.mxu0 0
    %2721 = vmatpush1.bf16.msra.mxu0 0
    %2722 = vmatprep.subr.bf16.mxu0 0
    %2723 = vmatpush1.bf16.msra.mxu0 0
    %2724 = vmatprep.subr.bf16.mxu0 0
    %2725 = vmatpush1.bf16.msra.mxu0 0
    %2726 = vmatprep.subr.bf16.mxu0 0
    %2727 = vmatpush1.bf16.msra.mxu0 0
    %2728 = vmatprep.subr.bf16.mxu0 0
    %2729 = vmatpush1.bf16.msra.mxu0 0
    %2730 = vmatprep.subr.bf16.mxu0 0
    %2731 = vmatpush1.bf16.msra.mxu0 0
    %2732 = vmatprep.subr.bf16.mxu0 0
    %2733 = vmatpush1.bf16.msra.mxu0 0
    %2734 = vmatprep.subr.bf16.mxu0 0
    %2735 = vmatpush1.bf16.msra.mxu0 0
    %2736 = vmatprep.subr.bf16.mxu0 0
    %2737 = vmatpush1.bf16.msra.mxu0 0
    %2738 = vmatprep.subr.bf16.mxu0 0
    %2739 = vmatpush1.bf16.msra.mxu0 0
    %2740 = vmatprep.mubr.bf16.mxu0 0
    %2741 = vmatmul.mubr.bf16.gmra.mrb[0].mxu0 %v2654
    %v2742 = vpop.f32.mrb[0].mxu0
    %v2743 = vadd.f32 0.0, %v2742
    %v2744 = vpop.f32.mrb[0].mxu0
    %v2745 = vpop.f32.mrb[0].mxu0
    %v2746 = vadd.f32 0.0, %v2745
    %v2747 = vpop.f32.mrb[0].mxu0
    %2748 = vdwg.mxu0
    %v2749 = vadd.f32 %v2627, %v2700
    %v2750 = vadd.f32 %v2628, %v2702
    %v2751 = vadd.f32 %v2629, %v2743
    %v2752 = vadd.f32 %v2630, %v2704
    %v2753 = vadd.f32 %v2631, %v2706
    %v2754 = vadd.f32 %v2632, %v2746
    %s2755 = scalar_lea.vmem [#allocation13], 48
    %v2756 = vld [vmem:[%s2755] sm:$0xf]
    %v2757 = vld [vmem:[%s2755 + $0x4] sm:$0x1]
    %v2760 = vunpack.c.l.b16 %v2756
    %v2761 = vunpack.c.l.b16 %v2757
    %v2762 = vpack.c.b16 %v2761, %v2760
    %2763 = vrot.lane.b32.xlu0 %v2042, 25
    %v2764 = vpop.permute.xlu0 %2763
    %2765 = vrot.lane.b32.xlu0 %v2043, 25
    %v2766 = vpop.permute.xlu0 %2765
    %2767 = vrot.lane.b32.xlu0 %v2044, 25
    %v2768 = vpop.permute.xlu0 %2767
    %2769 = vrot.lane.b32.xlu0 %v2045, 25
    %v2770 = vpop.permute.xlu0 %2769
    %v2771 = vsel %vm892, %v2764, %v2766
    %v2772 = vsel %vm892, %v2766, %v2768
    %v2773 = vsel %vm892, %v2768, %v2770
    %v2775 = vsel %vm778, %v2762, 0
    %v2778 = vand.u32 %v2771, %v785
    %v2781 = vand.u32 %v2772, %v785
    %v2784 = vand.u32 %v2773, %v785
    %2786 = vmatprep.subr.bf16.mxu0 %v2781
    %2787 = vmatpush1.bf16.msra.mxu0 %v2778
    %2788 = vmatprep.subr.bf16.mxu0 0
    %2789 = vmatpush1.bf16.msra.mxu0 0
    %2790 = vmatprep.subr.bf16.mxu0 0
    %2791 = vmatpush1.bf16.msra.mxu0 0
    %2792 = vmatprep.subr.bf16.mxu0 0
    %2793 = vmatpush1.bf16.msra.mxu0 0
    %2794 = vmatprep.subr.bf16.mxu0 0
    %2795 = vmatpush1.bf16.msra.mxu0 0
    %2796 = vmatprep.subr.bf16.mxu0 0
    %2797 = vmatpush1.bf16.msra.mxu0 0
    %2798 = vmatprep.subr.bf16.mxu0 0
    %2799 = vmatpush1.bf16.msra.mxu0 0
    %2800 = vmatprep.subr.bf16.mxu0 0
    %2801 = vmatpush1.bf16.msra.mxu0 0
    %2802 = vmatprep.subr.bf16.mxu0 0
    %2803 = vmatpush1.bf16.msra.mxu0 0
    %2804 = vmatprep.subr.bf16.mxu0 0
    %2805 = vmatpush1.bf16.msra.mxu0 0
    %2806 = vmatprep.subr.bf16.mxu0 0
    %2807 = vmatpush1.bf16.msra.mxu0 0
    %2808 = vmatprep.subr.bf16.mxu0 0
    %2809 = vmatpush1.bf16.msra.mxu0 0
    %2810 = vmatprep.subr.bf16.mxu0 0
    %2811 = vmatpush1.bf16.msra.mxu0 0
    %2812 = vmatprep.subr.bf16.mxu0 0
    %2813 = vmatpush1.bf16.msra.mxu0 0
    %2814 = vmatprep.subr.bf16.mxu0 0
    %2815 = vmatpush1.bf16.msra.mxu0 0
    %2816 = vmatprep.subr.bf16.mxu0 0
    %2817 = vmatpush1.bf16.msra.mxu0 0
    %2818 = vmatprep.mubr.bf16.mxu0 0
    %2819 = vmatmul.mubr.bf16.gmra.mrb[0].mxu0 %v2775
    %v2820 = vpop.f32.mrb[0].mxu0
    %v2821 = vadd.f32 0.0, %v2820
    %v2822 = vpop.f32.mrb[0].mxu0
    %v2823 = vadd.f32 0.0, %v2822
    %v2824 = vpop.f32.mrb[0].mxu0
    %v2825 = vadd.f32 0.0, %v2824
    %v2826 = vpop.f32.mrb[0].mxu0
    %v2827 = vadd.f32 0.0, %v2826
    %2828 = vdwg.mxu0
    %2829 = vmatprep.subr.bf16.mxu0 0
    %2830 = vmatpush1.bf16.msra.mxu0 %v2784
    %2831 = vmatprep.subr.bf16.mxu0 0
    %2832 = vmatpush1.bf16.msra.mxu0 0
    %2833 = vmatprep.subr.bf16.mxu0 0
    %2834 = vmatpush1.bf16.msra.mxu0 0
    %2835 = vmatprep.subr.bf16.mxu0 0
    %2836 = vmatpush1.bf16.msra.mxu0 0
    %2837 = vmatprep.subr.bf16.mxu0 0
    %2838 = vmatpush1.bf16.msra.mxu0 0
    %2839 = vmatprep.subr.bf16.mxu0 0
    %2840 = vmatpush1.bf16.msra.mxu0 0
    %2841 = vmatprep.subr.bf16.mxu0 0
    %2842 = vmatpush1.bf16.msra.mxu0 0
    %2843 = vmatprep.subr.bf16.mxu0 0
    %2844 = vmatpush1.bf16.msra.mxu0 0
    %2845 = vmatprep.subr.bf16.mxu0 0
    %2846 = vmatpush1.bf16.msra.mxu0 0
    %2847 = vmatprep.subr.bf16.mxu0 0
    %2848 = vmatpush1.bf16.msra.mxu0 0
    %2849 = vmatprep.subr.bf16.mxu0 0
    %2850 = vmatpush1.bf16.msra.mxu0 0
    %2851 = vmatprep.subr.bf16.mxu0 0
    %2852 = vmatpush1.bf16.msra.mxu0 0
    %2853 = vmatprep.subr.bf16.mxu0 0
    %2854 = vmatpush1.bf16.msra.mxu0 0
    %2855 = vmatprep.subr.bf16.mxu0 0
    %2856 = vmatpush1.bf16.msra.mxu0 0
    %2857 = vmatprep.subr.bf16.mxu0 0
    %2858 = vmatpush1.bf16.msra.mxu0 0
    %2859 = vmatprep.subr.bf16.mxu0 0
    %2860 = vmatpush1.bf16.msra.mxu0 0
    %2861 = vmatprep.mubr.bf16.mxu0 0
    %2862 = vmatmul.mubr.bf16.gmra.mrb[0].mxu0 %v2775
    %v2863 = vpop.f32.mrb[0].mxu0
    %v2864 = vadd.f32 0.0, %v2863
    %v2865 = vpop.f32.mrb[0].mxu0
    %v2866 = vpop.f32.mrb[0].mxu0
    %v2867 = vadd.f32 0.0, %v2866
    %v2868 = vpop.f32.mrb[0].mxu0
    %2869 = vdwg.mxu0
    %v2870 = vadd.f32 %v2749, %v2821
    %v2871 = vadd.f32 %v2750, %v2823
    %v2872 = vadd.f32 %v2751, %v2864
    %v2873 = vadd.f32 %v2752, %v2825
    %v2874 = vadd.f32 %v2753, %v2827
    %v2875 = vadd.f32 %v2754, %v2867
    %s2876 = scalar_lea.vmem [#allocation13], 56
    %v2877 = vld [vmem:[%s2876] sm:$0xf]
    %v2878 = vld [vmem:[%s2876 + $0x4] sm:$0x1]
    %v2881 = vunpack.c.l.b16 %v2877
    %v2882 = vunpack.c.l.b16 %v2878
    %v2883 = vpack.c.b16 %v2882, %v2881
    %2884 = vrot.lane.b32.xlu0 %v2042, 24
    %v2885 = vpop.permute.xlu0 %2884
    %2886 = vrot.lane.b32.xlu0 %v2043, 24
    %v2887 = vpop.permute.xlu0 %2886
    %2888 = vrot.lane.b32.xlu0 %v2044, 24
    %v2889 = vpop.permute.xlu0 %2888
    %2890 = vrot.lane.b32.xlu0 %v2045, 24
    %v2891 = vpop.permute.xlu0 %2890
    %v2892 = vsel %vm774, %v2885, %v2887
    %v2893 = vsel %vm774, %v2887, %v2889
    %v2894 = vsel %vm774, %v2889, %v2891
    %v2896 = vsel %vm778, %v2883, 0
    %v2899 = vand.u32 %v2892, %v785
    %v2902 = vand.u32 %v2893, %v785
    %v2905 = vand.u32 %v2894, %v785
    %2907 = vmatprep.subr.bf16.mxu0 %v2902
    %2908 = vmatpush1.bf16.msra.mxu0 %v2899
    %2909 = vmatprep.subr.bf16.mxu0 0
    %2910 = vmatpush1.bf16.msra.mxu0 0
    %2911 = vmatprep.subr.bf16.mxu0 0
    %2912 = vmatpush1.bf16.msra.mxu0 0
    %2913 = vmatprep.subr.bf16.mxu0 0
    %2914 = vmatpush1.bf16.msra.mxu0 0
    %2915 = vmatprep.subr.bf16.mxu0 0
    %2916 = vmatpush1.bf16.msra.mxu0 0
    %2917 = vmatprep.subr.bf16.mxu0 0
    %2918 = vmatpush1.bf16.msra.mxu0 0
    %2919 = vmatprep.subr.bf16.mxu0 0
    %2920 = vmatpush1.bf16.msra.mxu0 0
    %2921 = vmatprep.subr.bf16.mxu0 0
    %2922 = vmatpush1.bf16.msra.mxu0 0
    %2923 = vmatprep.subr.bf16.mxu0 0
    %2924 = vmatpush1.bf16.msra.mxu0 0
    %2925 = vmatprep.subr.bf16.mxu0 0
    %2926 = vmatpush1.bf16.msra.mxu0 0
    %2927 = vmatprep.subr.bf16.mxu0 0
    %2928 = vmatpush1.bf16.msra.mxu0 0
    %2929 = vmatprep.subr.bf16.mxu0 0
    %2930 = vmatpush1.bf16.msra.mxu0 0
    %2931 = vmatprep.subr.bf16.mxu0 0
    %2932 = vmatpush1.bf16.msra.mxu0 0
    %2933 = vmatprep.subr.bf16.mxu0 0
    %2934 = vmatpush1.bf16.msra.mxu0 0
    %2935 = vmatprep.subr.bf16.mxu0 0
    %2936 = vmatpush1.bf16.msra.mxu0 0
    %2937 = vmatprep.subr.bf16.mxu0 0
    %2938 = vmatpush1.bf16.msra.mxu0 0
    %2939 = vmatprep.mubr.bf16.mxu0 0
    %2940 = vmatmul.mubr.bf16.gmra.mrb[0].mxu0 %v2896
    %v2941 = vpop.f32.mrb[0].mxu0
    %v2942 = vadd.f32 0.0, %v2941
    %v2943 = vpop.f32.mrb[0].mxu0
    %v2944 = vadd.f32 0.0, %v2943
    %v2945 = vpop.f32.mrb[0].mxu0
    %v2946 = vadd.f32 0.0, %v2945
    %v2947 = vpop.f32.mrb[0].mxu0
    %v2948 = vadd.f32 0.0, %v2947
    %2949 = vdwg.mxu0
    %2950 = vmatprep.subr.bf16.mxu0 0
    %2951 = vmatpush1.bf16.msra.mxu0 %v2905
    %2952 = vmatprep.subr.bf16.mxu0 0
    %2953 = vmatpush1.bf16.msra.mxu0 0
    %2954 = vmatprep.subr.bf16.mxu0 0
    %2955 = vmatpush1.bf16.msra.mxu0 0
    %2956 = vmatprep.subr.bf16.mxu0 0
    %2957 = vmatpush1.bf16.msra.mxu0 0
    %2958 = vmatprep.subr.bf16.mxu0 0
    %2959 = vmatpush1.bf16.msra.mxu0 0
    %2960 = vmatprep.subr.bf16.mxu0 0
    %2961 = vmatpush1.bf16.msra.mxu0 0
    %2962 = vmatprep.subr.bf16.mxu0 0
    %2963 = vmatpush1.bf16.msra.mxu0 0
    %2964 = vmatprep.subr.bf16.mxu0 0
    %2965 = vmatpush1.bf16.msra.mxu0 0
    %2966 = vmatprep.subr.bf16.mxu0 0
    %2967 = vmatpush1.bf16.msra.mxu0 0
    %2968 = vmatprep.subr.bf16.mxu0 0
    %2969 = vmatpush1.bf16.msra.mxu0 0
    %2970 = vmatprep.subr.bf16.mxu0 0
    %2971 = vmatpush1.bf16.msra.mxu0 0
    %2972 = vmatprep.subr.bf16.mxu0 0
    %2973 = vmatpush1.bf16.msra.mxu0 0
    %2974 = vmatprep.subr.bf16.mxu0 0
    %2975 = vmatpush1.bf16.msra.mxu0 0
    %2976 = vmatprep.subr.bf16.mxu0 0
    %2977 = vmatpush1.bf16.msra.mxu0 0
    %2978 = vmatprep.subr.bf16.mxu0 0
    %2979 = vmatpush1.bf16.msra.mxu0 0
    %2980 = vmatprep.subr.bf16.mxu0 0
    %2981 = vmatpush1.bf16.msra.mxu0 0
    %2982 = vmatprep.mubr.bf16.mxu0 0
    %2983 = vmatmul.mubr.bf16.gmra.mrb[0].mxu0 %v2896
    %v2984 = vpop.f32.mrb[0].mxu0
    %v2985 = vadd.f32 0.0, %v2984
    %v2986 = vpop.f32.mrb[0].mxu0
    %v2987 = vpop.f32.mrb[0].mxu0
    %v2988 = vadd.f32 0.0, %v2987
    %v2989 = vpop.f32.mrb[0].mxu0
    %2990 = vdwg.mxu0
    %v2991 = vadd.f32 %v2870, %v2942
    %v2992 = vadd.f32 %v2871, %v2944
    %v2993 = vadd.f32 %v2872, %v2985
    %v2994 = vadd.f32 %v2873, %v2946
    %v2995 = vadd.f32 %v2874, %v2948
    %v2996 = vadd.f32 %v2875, %v2988
    %s2997 = scalar_lea.vmem [#allocation13], 64
    %v2998 = vld [vmem:[%s2997] sm:$0xf]
    %v2999 = vld [vmem:[%s2997 + $0x4] sm:$0x1]
    %v3002 = vunpack.c.l.b16 %v2998
    %v3003 = vunpack.c.l.b16 %v2999
    %v3004 = vpack.c.b16 %v3003, %v3002
    %3005 = vrot.lane.b32.xlu0 %v2042, 23
    %v3006 = vpop.permute.xlu0 %3005
    %3007 = vrot.lane.b32.xlu0 %v2043, 23
    %v3008 = vpop.permute.xlu0 %3007
    %3009 = vrot.lane.b32.xlu0 %v2044, 23
    %v3010 = vpop.permute.xlu0 %3009
    %3011 = vrot.lane.b32.xlu0 %v2045, 23
    %v3012 = vpop.permute.xlu0 %3011
    %v3013 = vsel %vm1008, %v3006, %v3008
    %v3014 = vsel %vm1008, %v3008, %v3010
    %v3015 = vsel %vm1008, %v3010, %v3012
    %v3017 = vsel %vm778, %v3004, 0
    %v3020 = vand.u32 %v3013, %v785
    %v3023 = vand.u32 %v3014, %v785
    %v3026 = vand.u32 %v3015, %v785
    %3028 = vmatprep.subr.bf16.mxu0 %v3023
    %3029 = vmatpush1.bf16.msra.mxu0 %v3020
    %3030 = vmatprep.subr.bf16.mxu0 0
    %3031 = vmatpush1.bf16.msra.mxu0 0
    %3032 = vmatprep.subr.bf16.mxu0 0
    %3033 = vmatpush1.bf16.msra.mxu0 0
    %3034 = vmatprep.subr.bf16.mxu0 0
    %3035 = vmatpush1.bf16.msra.mxu0 0
    %3036 = vmatprep.subr.bf16.mxu0 0
    %3037 = vmatpush1.bf16.msra.mxu0 0
    %3038 = vmatprep.subr.bf16.mxu0 0
    %3039 = vmatpush1.bf16.msra.mxu0 0
    %3040 = vmatprep.subr.bf16.mxu0 0
    %3041 = vmatpush1.bf16.msra.mxu0 0
    %3042 = vmatprep.subr.bf16.mxu0 0
    %3043 = vmatpush1.bf16.msra.mxu0 0
    %3044 = vmatprep.subr.bf16.mxu0 0
    %3045 = vmatpush1.bf16.msra.mxu0 0
    %3046 = vmatprep.subr.bf16.mxu0 0
    %3047 = vmatpush1.bf16.msra.mxu0 0
    %3048 = vmatprep.subr.bf16.mxu0 0
    %3049 = vmatpush1.bf16.msra.mxu0 0
    %3050 = vmatprep.subr.bf16.mxu0 0
    %3051 = vmatpush1.bf16.msra.mxu0 0
    %3052 = vmatprep.subr.bf16.mxu0 0
    %3053 = vmatpush1.bf16.msra.mxu0 0
    %3054 = vmatprep.subr.bf16.mxu0 0
    %3055 = vmatpush1.bf16.msra.mxu0 0
    %3056 = vmatprep.subr.bf16.mxu0 0
    %3057 = vmatpush1.bf16.msra.mxu0 0
    %3058 = vmatprep.subr.bf16.mxu0 0
    %3059 = vmatpush1.bf16.msra.mxu0 0
    %3060 = vmatprep.mubr.bf16.mxu0 0
    %3061 = vmatmul.mubr.bf16.gmra.mrb[0].mxu0 %v3017
    %v3062 = vpop.f32.mrb[0].mxu0
    %v3063 = vadd.f32 0.0, %v3062
    %v3064 = vpop.f32.mrb[0].mxu0
    %v3065 = vadd.f32 0.0, %v3064
    %v3066 = vpop.f32.mrb[0].mxu0
    %v3067 = vadd.f32 0.0, %v3066
    %v3068 = vpop.f32.mrb[0].mxu0
    %v3069 = vadd.f32 0.0, %v3068
    %3070 = vdwg.mxu0
    %3071 = vmatprep.subr.bf16.mxu0 0
    %3072 = vmatpush1.bf16.msra.mxu0 %v3026
    %3073 = vmatprep.subr.bf16.mxu0 0
    %3074 = vmatpush1.bf16.msra.mxu0 0
    %3075 = vmatprep.subr.bf16.mxu0 0
    %3076 = vmatpush1.bf16.msra.mxu0 0
    %3077 = vmatprep.subr.bf16.mxu0 0
    %3078 = vmatpush1.bf16.msra.mxu0 0
    %3079 = vmatprep.subr.bf16.mxu0 0
    %3080 = vmatpush1.bf16.msra.mxu0 0
    %3081 = vmatprep.subr.bf16.mxu0 0
    %3082 = vmatpush1.bf16.msra.mxu0 0
    %3083 = vmatprep.subr.bf16.mxu0 0
    %3084 = vmatpush1.bf16.msra.mxu0 0
    %3085 = vmatprep.subr.bf16.mxu0 0
    %3086 = vmatpush1.bf16.msra.mxu0 0
    %3087 = vmatprep.subr.bf16.mxu0 0
    %3088 = vmatpush1.bf16.msra.mxu0 0
    %3089 = vmatprep.subr.bf16.mxu0 0
    %3090 = vmatpush1.bf16.msra.mxu0 0
    %3091 = vmatprep.subr.bf16.mxu0 0
    %3092 = vmatpush1.bf16.msra.mxu0 0
    %3093 = vmatprep.subr.bf16.mxu0 0
    %3094 = vmatpush1.bf16.msra.mxu0 0
    %3095 = vmatprep.subr.bf16.mxu0 0
    %3096 = vmatpush1.bf16.msra.mxu0 0
    %3097 = vmatprep.subr.bf16.mxu0 0
    %3098 = vmatpush1.bf16.msra.mxu0 0
    %3099 = vmatprep.subr.bf16.mxu0 0
    %3100 = vmatpush1.bf16.msra.mxu0 0
    %3101 = vmatprep.subr.bf16.mxu0 0
    %3102 = vmatpush1.bf16.msra.mxu0 0
    %3103 = vmatprep.mubr.bf16.mxu0 0
    %3104 = vmatmul.mubr.bf16.gmra.mrb[0].mxu0 %v3017
    %v3105 = vpop.f32.mrb[0].mxu0
    %v3106 = vadd.f32 0.0, %v3105
    %v3107 = vpop.f32.mrb[0].mxu0
    %v3108 = vpop.f32.mrb[0].mxu0
    %v3109 = vadd.f32 0.0, %v3108
    %v3110 = vpop.f32.mrb[0].mxu0
    %3111 = vdwg.mxu0
    %v3112 = vadd.f32 %v2991, %v3063
    %v3113 = vadd.f32 %v2992, %v3065
    %v3114 = vadd.f32 %v2993, %v3106
    %v3115 = vadd.f32 %v2994, %v3067
    %v3116 = vadd.f32 %v2995, %v3069
    %v3117 = vadd.f32 %v2996, %v3109
    %s3118 = scalar_lea.vmem [#allocation13], 72
    %v3119 = vld [vmem:[%s3118] sm:$0xf]
    %v3120 = vld [vmem:[%s3118 + $0x4] sm:$0x1]
    %v3123 = vunpack.c.l.b16 %v3119
    %v3124 = vunpack.c.l.b16 %v3120
    %v3125 = vpack.c.b16 %v3124, %v3123
    %3126 = vrot.lane.b32.xlu0 %v2042, 22
    %v3127 = vpop.permute.xlu0 %3126
    %3128 = vrot.lane.b32.xlu0 %v2043, 22
    %v3129 = vpop.permute.xlu0 %3128
    %3130 = vrot.lane.b32.xlu0 %v2044, 22
    %v3131 = vpop.permute.xlu0 %3130
    %3132 = vrot.lane.b32.xlu0 %v2045, 22
    %v3133 = vpop.permute.xlu0 %3132
    %vm3134 = vcmask 179200
    %v3135 = vsel %vm3134, %v3127, %v3129
    %v3136 = vsel %vm3134, %v3129, %v3131
    %v3137 = vsel %vm3134, %v3131, %v3133
    %v3139 = vsel %vm778, %v3125, 0
    %v3142 = vand.u32 %v3135, %v785
    %v3145 = vand.u32 %v3136, %v785
    %v3148 = vand.u32 %v3137, %v785
    %3150 = vmatprep.subr.bf16.mxu0 %v3145
    %3151 = vmatpush1.bf16.msra.mxu0 %v3142
    %3152 = vmatprep.subr.bf16.mxu0 0
    %3153 = vmatpush1.bf16.msra.mxu0 0
    %3154 = vmatprep.subr.bf16.mxu0 0
    %3155 = vmatpush1.bf16.msra.mxu0 0
    %3156 = vmatprep.subr.bf16.mxu0 0
    %3157 = vmatpush1.bf16.msra.mxu0 0
    %3158 = vmatprep.subr.bf16.mxu0 0
    %3159 = vmatpush1.bf16.msra.mxu0 0
    %3160 = vmatprep.subr.bf16.mxu0 0
    %3161 = vmatpush1.bf16.msra.mxu0 0
    %3162 = vmatprep.subr.bf16.mxu0 0
    %3163 = vmatpush1.bf16.msra.mxu0 0
    %3164 = vmatprep.subr.bf16.mxu0 0
    %3165 = vmatpush1.bf16.msra.mxu0 0
    %3166 = vmatprep.subr.bf16.mxu0 0
    %3167 = vmatpush1.bf16.msra.mxu0 0
    %3168 = vmatprep.subr.bf16.mxu0 0
    %3169 = vmatpush1.bf16.msra.mxu0 0
    %3170 = vmatprep.subr.bf16.mxu0 0
    %3171 = vmatpush1.bf16.msra.mxu0 0
    %3172 = vmatprep.subr.bf16.mxu0 0
    %3173 = vmatpush1.bf16.msra.mxu0 0
    %3174 = vmatprep.subr.bf16.mxu0 0
    %3175 = vmatpush1.bf16.msra.mxu0 0
    %3176 = vmatprep.subr.bf16.mxu0 0
    %3177 = vmatpush1.bf16.msra.mxu0 0
    %3178 = vmatprep.subr.bf16.mxu0 0
    %3179 = vmatpush1.bf16.msra.mxu0 0
    %3180 = vmatprep.subr.bf16.mxu0 0
    %3181 = vmatpush1.bf16.msra.mxu0 0
    %3182 = vmatprep.mubr.bf16.mxu0 0
    %3183 = vmatmul.mubr.bf16.gmra.mrb[0].mxu0 %v3139
    %v3184 = vpop.f32.mrb[0].mxu0
    %v3185 = vadd.f32 0.0, %v3184
    %v3186 = vpop.f32.mrb[0].mxu0
    %v3187 = vadd.f32 0.0, %v3186
    %v3188 = vpop.f32.mrb[0].mxu0
    %v3189 = vadd.f32 0.0, %v3188
    %v3190 = vpop.f32.mrb[0].mxu0
    %v3191 = vadd.f32 0.0, %v3190
    %3192 = vdwg.mxu0
    %3193 = vmatprep.subr.bf16.mxu0 0
    %3194 = vmatpush1.bf16.msra.mxu0 %v3148
    %3195 = vmatprep.subr.bf16.mxu0 0
    %3196 = vmatpush1.bf16.msra.mxu0 0
    %3197 = vmatprep.subr.bf16.mxu0 0
    %3198 = vmatpush1.bf16.msra.mxu0 0
    %3199 = vmatprep.subr.bf16.mxu0 0
    %3200 = vmatpush1.bf16.msra.mxu0 0
    %3201 = vmatprep.subr.bf16.mxu0 0
    %3202 = vmatpush1.bf16.msra.mxu0 0
    %3203 = vmatprep.subr.bf16.mxu0 0
    %3204 = vmatpush1.bf16.msra.mxu0 0
    %3205 = vmatprep.subr.bf16.mxu0 0
    %3206 = vmatpush1.bf16.msra.mxu0 0
    %3207 = vmatprep.subr.bf16.mxu0 0
    %3208 = vmatpush1.bf16.msra.mxu0 0
    %3209 = vmatprep.subr.bf16.mxu0 0
    %3210 = vmatpush1.bf16.msra.mxu0 0
    %3211 = vmatprep.subr.bf16.mxu0 0
    %3212 = vmatpush1.bf16.msra.mxu0 0
    %3213 = vmatprep.subr.bf16.mxu0 0
    %3214 = vmatpush1.bf16.msra.mxu0 0
    %3215 = vmatprep.subr.bf16.mxu0 0
    %3216 = vmatpush1.bf16.msra.mxu0 0
    %3217 = vmatprep.subr.bf16.mxu0 0
    %3218 = vmatpush1.bf16.msra.mxu0 0
    %3219 = vmatprep.subr.bf16.mxu0 0
    %3220 = vmatpush1.bf16.msra.mxu0 0
    %3221 = vmatprep.subr.bf16.mxu0 0
    %3222 = vmatpush1.bf16.msra.mxu0 0
    %3223 = vmatprep.subr.bf16.mxu0 0
    %3224 = vmatpush1.bf16.msra.mxu0 0
    %3225 = vmatprep.mubr.bf16.mxu0 0
    %3226 = vmatmul.mubr.bf16.gmra.mrb[0].mxu0 %v3139
    %v3227 = vpop.f32.mrb[0].mxu0
    %v3228 = vadd.f32 0.0, %v3227
    %v3229 = vpop.f32.mrb[0].mxu0
    %v3230 = vpop.f32.mrb[0].mxu0
    %v3231 = vadd.f32 0.0, %v3230
    %v3232 = vpop.f32.mrb[0].mxu0
    %3233 = vdwg.mxu0
    %v3234 = vadd.f32 %v3112, %v3185
    %v3235 = vadd.f32 %v3113, %v3187
    %v3236 = vadd.f32 %v3114, %v3228
    %v3237 = vadd.f32 %v3115, %v3189
    %v3238 = vadd.f32 %v3116, %v3191
    %v3239 = vadd.f32 %v3117, %v3231
    %s3240 = scalar_lea.vmem [#allocation13], 80
    %v3241 = vld [vmem:[%s3240] sm:$0xf]
    %v3242 = vld [vmem:[%s3240 + $0x4] sm:$0x1]
    %v3245 = vunpack.c.l.b16 %v3241
    %v3246 = vunpack.c.l.b16 %v3242
    %v3247 = vpack.c.b16 %v3246, %v3245
    %3248 = vrot.lane.b32.xlu0 %v2042, 2
    %v3249 = vpop.permute.xlu0 %3248
    %3250 = vrot.lane.b32.xlu0 %v2043, 2
    %v3251 = vpop.permute.xlu0 %3250
    %3252 = vrot.lane.b32.xlu0 %v2044, 2
    %v3253 = vpop.permute.xlu0 %3252
    %3254 = vrot.lane.b32.xlu0 %v2045, 2
    %v3255 = vpop.permute.xlu0 %3254
    %vm3256 = vcmask 15360
    %v3257 = vsel %vm3256, %v3249, %v3251
    %v3258 = vsel %vm3256, %v3251, %v3253
    %v3259 = vsel %vm3256, %v3253, %v3255
    %v3261 = vsel %vm778, %v3247, 0
    %v3264 = vand.u32 %v3257, %v785
    %v3267 = vand.u32 %v3258, %v785
    %v3270 = vand.u32 %v3259, %v785
    %3272 = vmatprep.subr.bf16.mxu0 %v3267
    %3273 = vmatpush1.bf16.msra.mxu0 %v3264
    %3274 = vmatprep.subr.bf16.mxu0 0
    %3275 = vmatpush1.bf16.msra.mxu0 0
    %3276 = vmatprep.subr.bf16.mxu0 0
    %3277 = vmatpush1.bf16.msra.mxu0 0
    %3278 = vmatprep.subr.bf16.mxu0 0
    %3279 = vmatpush1.bf16.msra.mxu0 0
    %3280 = vmatprep.subr.bf16.mxu0 0
    %3281 = vmatpush1.bf16.msra.mxu0 0
    %3282 = vmatprep.subr.bf16.mxu0 0
    %3283 = vmatpush1.bf16.msra.mxu0 0
    %3284 = vmatprep.subr.bf16.mxu0 0
    %3285 = vmatpush1.bf16.msra.mxu0 0
    %3286 = vmatprep.subr.bf16.mxu0 0
    %3287 = vmatpush1.bf16.msra.mxu0 0
    %3288 = vmatprep.subr.bf16.mxu0 0
    %3289 = vmatpush1.bf16.msra.mxu0 0
    %3290 = vmatprep.subr.bf16.mxu0 0
    %3291 = vmatpush1.bf16.msra.mxu0 0
    %3292 = vmatprep.subr.bf16.mxu0 0
    %3293 = vmatpush1.bf16.msra.mxu0 0
    %3294 = vmatprep.subr.bf16.mxu0 0
    %3295 = vmatpush1.bf16.msra.mxu0 0
    %3296 = vmatprep.subr.bf16.mxu0 0
    %3297 = vmatpush1.bf16.msra.mxu0 0
    %3298 = vmatprep.subr.bf16.mxu0 0
    %3299 = vmatpush1.bf16.msra.mxu0 0
    %3300 = vmatprep.subr.bf16.mxu0 0
    %3301 = vmatpush1.bf16.msra.mxu0 0
    %3302 = vmatprep.subr.bf16.mxu0 0
    %3303 = vmatpush1.bf16.msra.mxu0 0
    %3304 = vmatprep.mubr.bf16.mxu0 0
    %3305 = vmatmul.mubr.bf16.gmra.mrb[0].mxu0 %v3261
    %v3306 = vpop.f32.mrb[0].mxu0
    %v3307 = vadd.f32 0.0, %v3306
    %v3308 = vpop.f32.mrb[0].mxu0
    %v3309 = vadd.f32 0.0, %v3308
    %v3310 = vpop.f32.mrb[0].mxu0
    %v3311 = vadd.f32 0.0, %v3310
    %v3312 = vpop.f32.mrb[0].mxu0
    %v3313 = vadd.f32 0.0, %v3312
    %3314 = vdwg.mxu0
    %3315 = vmatprep.subr.bf16.mxu0 0
    %3316 = vmatpush1.bf16.msra.mxu0 %v3270
    %3317 = vmatprep.subr.bf16.mxu0 0
    %3318 = vmatpush1.bf16.msra.mxu0 0
    %3319 = vmatprep.subr.bf16.mxu0 0
    %3320 = vmatpush1.bf16.msra.mxu0 0
    %3321 = vmatprep.subr.bf16.mxu0 0
    %3322 = vmatpush1.bf16.msra.mxu0 0
    %3323 = vmatprep.subr.bf16.mxu0 0
    %3324 = vmatpush1.bf16.msra.mxu0 0
    %3325 = vmatprep.subr.bf16.mxu0 0
    %3326 = vmatpush1.bf16.msra.mxu0 0
    %3327 = vmatprep.subr.bf16.mxu0 0
    %3328 = vmatpush1.bf16.msra.mxu0 0
    %3329 = vmatprep.subr.bf16.mxu0 0
    %3330 = vmatpush1.bf16.msra.mxu0 0
    %3331 = vmatprep.subr.bf16.mxu0 0
    %3332 = vmatpush1.bf16.msra.mxu0 0
    %3333 = vmatprep.subr.bf16.mxu0 0
    %3334 = vmatpush1.bf16.msra.mxu0 0
    %3335 = vmatprep.subr.bf16.mxu0 0
    %3336 = vmatpush1.bf16.msra.mxu0 0
    %3337 = vmatprep.subr.bf16.mxu0 0
    %3338 = vmatpush1.bf16.msra.mxu0 0
    %3339 = vmatprep.subr.bf16.mxu0 0
    %3340 = vmatpush1.bf16.msra.mxu0 0
    %3341 = vmatprep.subr.bf16.mxu0 0
    %3342 = vmatpush1.bf16.msra.mxu0 0
    %3343 = vmatprep.subr.bf16.mxu0 0
    %3344 = vmatpush1.bf16.msra.mxu0 0
    %3345 = vmatprep.subr.bf16.mxu0 0
    %3346 = vmatpush1.bf16.msra.mxu0 0
    %3347 = vmatprep.mubr.bf16.mxu0 0
    %3348 = vmatmul.mubr.bf16.gmra.mrb[0].mxu0 %v3261
    %v3349 = vpop.f32.mrb[0].mxu0
    %v3350 = vadd.f32 0.0, %v3349
    %v3351 = vpop.f32.mrb[0].mxu0
    %v3352 = vpop.f32.mrb[0].mxu0
    %v3353 = vadd.f32 0.0, %v3352
    %v3354 = vpop.f32.mrb[0].mxu0
    %3355 = vdwg.mxu0
    %v3356 = vadd.f32 %v3234, %v3307
    %v3357 = vadd.f32 %v3235, %v3309
    %v3358 = vadd.f32 %v3236, %v3350
    %v3359 = vadd.f32 %v3237, %v3311
    %v3360 = vadd.f32 %v3238, %v3313
    %v3361 = vadd.f32 %v3239, %v3353
    %s3362 = scalar_lea.vmem [#allocation13], 88
    %v3363 = vld [vmem:[%s3362] sm:$0xf]
    %v3364 = vld [vmem:[%s3362 + $0x4] sm:$0x1]
    %v3367 = vunpack.c.l.b16 %v3363
    %v3368 = vunpack.c.l.b16 %v3364
    %v3369 = vpack.c.b16 %v3368, %v3367
    %3370 = vrot.lane.b32.xlu0 %v2042, 1
    %v3371 = vpop.permute.xlu0 %3370
    %3372 = vrot.lane.b32.xlu0 %v2043, 1
    %v3373 = vpop.permute.xlu0 %3372
    %3374 = vrot.lane.b32.xlu0 %v2044, 1
    %v3375 = vpop.permute.xlu0 %3374
    %3376 = vrot.lane.b32.xlu0 %v2045, 1
    %v3377 = vpop.permute.xlu0 %3376
    %v3378 = vsel %vm1130, %v3371, %v3373
    %v3379 = vsel %vm1130, %v3373, %v3375
    %v3380 = vsel %vm1130, %v3375, %v3377
    %v3382 = vsel %vm778, %v3369, 0
    %v3385 = vand.u32 %v3378, %v785
    %v3388 = vand.u32 %v3379, %v785
    %v3391 = vand.u32 %v3380, %v785
    %3393 = vmatprep.subr.bf16.mxu0 %v3388
    %3394 = vmatpush1.bf16.msra.mxu0 %v3385
    %3395 = vmatprep.subr.bf16.mxu0 0
    %3396 = vmatpush1.bf16.msra.mxu0 0
    %3397 = vmatprep.subr.bf16.mxu0 0
    %3398 = vmatpush1.bf16.msra.mxu0 0
    %3399 = vmatprep.subr.bf16.mxu0 0
    %3400 = vmatpush1.bf16.msra.mxu0 0
    %3401 = vmatprep.subr.bf16.mxu0 0
    %3402 = vmatpush1.bf16.msra.mxu0 0
    %3403 = vmatprep.subr.bf16.mxu0 0
    %3404 = vmatpush1.bf16.msra.mxu0 0
    %3405 = vmatprep.subr.bf16.mxu0 0
    %3406 = vmatpush1.bf16.msra.mxu0 0
    %3407 = vmatprep.subr.bf16.mxu0 0
    %3408 = vmatpush1.bf16.msra.mxu0 0
    %3409 = vmatprep.subr.bf16.mxu0 0
    %3410 = vmatpush1.bf16.msra.mxu0 0
    %3411 = vmatprep.subr.bf16.mxu0 0
    %3412 = vmatpush1.bf16.msra.mxu0 0
    %3413 = vmatprep.subr.bf16.mxu0 0
    %3414 = vmatpush1.bf16.msra.mxu0 0
    %3415 = vmatprep.subr.bf16.mxu0 0
    %3416 = vmatpush1.bf16.msra.mxu0 0
    %3417 = vmatprep.subr.bf16.mxu0 0
    %3418 = vmatpush1.bf16.msra.mxu0 0
    %3419 = vmatprep.subr.bf16.mxu0 0
    %3420 = vmatpush1.bf16.msra.mxu0 0
    %3421 = vmatprep.subr.bf16.mxu0 0
    %3422 = vmatpush1.bf16.msra.mxu0 0
    %3423 = vmatprep.subr.bf16.mxu0 0
    %3424 = vmatpush1.bf16.msra.mxu0 0
    %3425 = vmatprep.mubr.bf16.mxu0 0
    %3426 = vmatmul.mubr.bf16.gmra.mrb[0].mxu0 %v3382
    %v3427 = vpop.f32.mrb[0].mxu0
    %v3428 = vadd.f32 0.0, %v3427
    %v3429 = vpop.f32.mrb[0].mxu0
    %v3430 = vadd.f32 0.0, %v3429
    %v3431 = vpop.f32.mrb[0].mxu0
    %v3432 = vadd.f32 0.0, %v3431
    %v3433 = vpop.f32.mrb[0].mxu0
    %v3434 = vadd.f32 0.0, %v3433
    %3435 = vdwg.mxu0
    %3436 = vmatprep.subr.bf16.mxu0 0
    %3437 = vmatpush1.bf16.msra.mxu0 %v3391
    %3438 = vmatprep.subr.bf16.mxu0 0
    %3439 = vmatpush1.bf16.msra.mxu0 0
    %3440 = vmatprep.subr.bf16.mxu0 0
    %3441 = vmatpush1.bf16.msra.mxu0 0
    %3442 = vmatprep.subr.bf16.mxu0 0
    %3443 = vmatpush1.bf16.msra.mxu0 0
    %3444 = vmatprep.subr.bf16.mxu0 0
    %3445 = vmatpush1.bf16.msra.mxu0 0
    %3446 = vmatprep.subr.bf16.mxu0 0
    %3447 = vmatpush1.bf16.msra.mxu0 0
    %3448 = vmatprep.subr.bf16.mxu0 0
    %3449 = vmatpush1.bf16.msra.mxu0 0
    %3450 = vmatprep.subr.bf16.mxu0 0
    %3451 = vmatpush1.bf16.msra.mxu0 0
    %3452 = vmatprep.subr.bf16.mxu0 0
    %3453 = vmatpush1.bf16.msra.mxu0 0
    %3454 = vmatprep.subr.bf16.mxu0 0
    %3455 = vmatpush1.bf16.msra.mxu0 0
    %3456 = vmatprep.subr.bf16.mxu0 0
    %3457 = vmatpush1.bf16.msra.mxu0 0
    %3458 = vmatprep.subr.bf16.mxu0 0
    %3459 = vmatpush1.bf16.msra.mxu0 0
    %3460 = vmatprep.subr.bf16.mxu0 0
    %3461 = vmatpush1.bf16.msra.mxu0 0
    %3462 = vmatprep.subr.bf16.mxu0 0
    %3463 = vmatpush1.bf16.msra.mxu0 0
    %3464 = vmatprep.subr.bf16.mxu0 0
    %3465 = vmatpush1.bf16.msra.mxu0 0
    %3466 = vmatprep.subr.bf16.mxu0 0
    %3467 = vmatpush1.bf16.msra.mxu0 0
    %3468 = vmatprep.mubr.bf16.mxu0 0
    %3469 = vmatmul.mubr.bf16.gmra.mrb[0].mxu0 %v3382
    %v3470 = vpop.f32.mrb[0].mxu0
    %v3471 = vadd.f32 0.0, %v3470
    %v3472 = vpop.f32.mrb[0].mxu0
    %v3473 = vpop.f32.mrb[0].mxu0
    %v3474 = vadd.f32 0.0, %v3473
    %v3475 = vpop.f32.mrb[0].mxu0
    %3476 = vdwg.mxu0
    %v3477 = vadd.f32 %v3356, %v3428
    %v3478 = vadd.f32 %v3357, %v3430
    %v3479 = vadd.f32 %v3358, %v3471
    %v3480 = vadd.f32 %v3359, %v3432
    %v3481 = vadd.f32 %v3360, %v3434
    %v3482 = vadd.f32 %v3361, %v3474
    %s3483 = scalar_lea.vmem [#allocation13], 96
    %v3484 = vld [vmem:[%s3483] sm:$0xf]
    %v3485 = vld [vmem:[%s3483 + $0x4] sm:$0x1]
    %v3486 = vld [vmem:[#allocation3 + $0x4] sm:$0x77]
    %v3487 = vld [vmem:[#allocation3 + $0xc] sm:$0x7]
    %v3490 = vunpack.c.l.b16 %v3484
    %v3491 = vunpack.c.l.b16 %v3485
    %v3492 = vpack.c.b16 %v3491, %v3490
    %v3495 = vunpack.c.l.b16 %v3486
    %v3496 = vunpack.c.h.b16 %v3486
    %v3497 = vunpack.c.l.b16 %v3487
    %v3498 = vpack.c.b16 %v3495, %v3495
    %v3499 = vpack.c.b16 %v3496, %v3496
    %v3500 = vpack.c.b16 %v3497, %v3497
    %v3502 = vsel %vm778, %v3492, 0
    %v3505 = vand.u32 %v3498, %v785
    %v3508 = vand.u32 %v3499, %v785
    %v3511 = vand.u32 %v3500, %v785
    %3513 = vmatprep.subr.bf16.mxu0 %v3508
    %3514 = vmatpush1.bf16.msra.mxu0 %v3505
    %3515 = vmatprep.subr.bf16.mxu0 0
    %3516 = vmatpush1.bf16.msra.mxu0 0
    %3517 = vmatprep.subr.bf16.mxu0 0
    %3518 = vmatpush1.bf16.msra.mxu0 0
    %3519 = vmatprep.subr.bf16.mxu0 0
    %3520 = vmatpush1.bf16.msra.mxu0 0
    %3521 = vmatprep.subr.bf16.mxu0 0
    %3522 = vmatpush1.bf16.msra.mxu0 0
    %3523 = vmatprep.subr.bf16.mxu0 0
    %3524 = vmatpush1.bf16.msra.mxu0 0
    %3525 = vmatprep.subr.bf16.mxu0 0
    %3526 = vmatpush1.bf16.msra.mxu0 0
    %3527 = vmatprep.subr.bf16.mxu0 0
    %3528 = vmatpush1.bf16.msra.mxu0 0
    %3529 = vmatprep.subr.bf16.mxu0 0
    %3530 = vmatpush1.bf16.msra.mxu0 0
    %3531 = vmatprep.subr.bf16.mxu0 0
    %3532 = vmatpush1.bf16.msra.mxu0 0
    %3533 = vmatprep.subr.bf16.mxu0 0
    %3534 = vmatpush1.bf16.msra.mxu0 0
    %3535 = vmatprep.subr.bf16.mxu0 0
    %3536 = vmatpush1.bf16.msra.mxu0 0
    %3537 = vmatprep.subr.bf16.mxu0 0
    %3538 = vmatpush1.bf16.msra.mxu0 0
    %3539 = vmatprep.subr.bf16.mxu0 0
    %3540 = vmatpush1.bf16.msra.mxu0 0
    %3541 = vmatprep.subr.bf16.mxu0 0
    %3542 = vmatpush1.bf16.msra.mxu0 0
    %3543 = vmatprep.subr.bf16.mxu0 0
    %3544 = vmatpush1.bf16.msra.mxu0 0
    %3545 = vmatprep.mubr.bf16.mxu0 0
    %3546 = vmatmul.mubr.bf16.gmra.mrb[0].mxu0 %v3502
    %v3547 = vpop.f32.mrb[0].mxu0
    %v3548 = vadd.f32 0.0, %v3547
    %v3549 = vpop.f32.mrb[0].mxu0
    %v3550 = vadd.f32 0.0, %v3549
    %v3551 = vpop.f32.mrb[0].mxu0
    %v3552 = vadd.f32 0.0, %v3551
    %v3553 = vpop.f32.mrb[0].mxu0
    %v3554 = vadd.f32 0.0, %v3553
    %3555 = vdwg.mxu0
    %3556 = vmatprep.subr.bf16.mxu0 0
    %3557 = vmatpush1.bf16.msra.mxu0 %v3511
    %3558 = vmatprep.subr.bf16.mxu0 0
    %3559 = vmatpush1.bf16.msra.mxu0 0
    %3560 = vmatprep.subr.bf16.mxu0 0
    %3561 = vmatpush1.bf16.msra.mxu0 0
    %3562 = vmatprep.subr.bf16.mxu0 0
    %3563 = vmatpush1.bf16.msra.mxu0 0
    %3564 = vmatprep.subr.bf16.mxu0 0
    %3565 = vmatpush1.bf16.msra.mxu0 0
    %3566 = vmatprep.subr.bf16.mxu0 0
    %3567 = vmatpush1.bf16.msra.mxu0 0
    %3568 = vmatprep.subr.bf16.mxu0 0
    %3569 = vmatpush1.bf16.msra.mxu0 0
    %3570 = vmatprep.subr.bf16.mxu0 0
    %3571 = vmatpush1.bf16.msra.mxu0 0
    %3572 = vmatprep.subr.bf16.mxu0 0
    %3573 = vmatpush1.bf16.msra.mxu0 0
    %3574 = vmatprep.subr.bf16.mxu0 0
    %3575 = vmatpush1.bf16.msra.mxu0 0
    %3576 = vmatprep.subr.bf16.mxu0 0
    %3577 = vmatpush1.bf16.msra.mxu0 0
    %3578 = vmatprep.subr.bf16.mxu0 0
    %3579 = vmatpush1.bf16.msra.mxu0 0
    %3580 = vmatprep.subr.bf16.mxu0 0
    %3581 = vmatpush1.bf16.msra.mxu0 0
    %3582 = vmatprep.subr.bf16.mxu0 0
    %3583 = vmatpush1.bf16.msra.mxu0 0
    %3584 = vmatprep.subr.bf16.mxu0 0
    %3585 = vmatpush1.bf16.msra.mxu0 0
    %3586 = vmatprep.subr.bf16.mxu0 0
    %3587 = vmatpush1.bf16.msra.mxu0 0
    %3588 = vmatprep.mubr.bf16.mxu0 0
    %3589 = vmatmul.mubr.bf16.gmra.mrb[0].mxu0 %v3502
    %v3590 = vpop.f32.mrb[0].mxu0
    %v3591 = vadd.f32 0.0, %v3590
    %v3592 = vpop.f32.mrb[0].mxu0
    %v3593 = vpop.f32.mrb[0].mxu0
    %v3594 = vadd.f32 0.0, %v3593
    %v3595 = vpop.f32.mrb[0].mxu0
    %3596 = vdwg.mxu0
    %v3597 = vadd.f32 %v3477, %v3548
    %v3598 = vadd.f32 %v3478, %v3550
    %v3599 = vadd.f32 %v3479, %v3591
    %v3600 = vadd.f32 %v3480, %v3552
    %v3601 = vadd.f32 %v3481, %v3554
    %v3602 = vadd.f32 %v3482, %v3594
    %s3603 = scalar_lea.vmem [#allocation13], 104
    %v3604 = vld [vmem:[%s3603] sm:$0xf]
    %v3605 = vld [vmem:[%s3603 + $0x4] sm:$0x1]
    %v3606 = vld [vmem:[#allocation3 + $0x4] sm:$0x77]
    %v3607 = vld [vmem:[#allocation3 + $0xc] sm:$0x77]
    %v3610 = vunpack.c.l.b16 %v3604
    %v3611 = vunpack.c.l.b16 %v3605
    %v3612 = vpack.c.b16 %v3611, %v3610
    %v3615 = vunpack.c.l.b16 %v3606
    %v3616 = vunpack.c.h.b16 %v3606
    %v3617 = vunpack.c.l.b16 %v3607
    %v3618 = vunpack.c.h.b16 %v3607
    %v3619 = vpack.c.b16 %v3615, %v3615
    %v3620 = vpack.c.b16 %v3616, %v3616
    %v3621 = vpack.c.b16 %v3617, %v3617
    %v3622 = vpack.c.b16 %v3618, %v3618
    %3623 = vrot.lane.b32.xlu0 %v3619, 127
    %v3624 = vpop.permute.xlu0 %3623
    %3625 = vrot.lane.b32.xlu0 %v3620, 127
    %v3626 = vpop.permute.xlu0 %3625
    %3627 = vrot.lane.b32.xlu0 %v3621, 127
    %v3628 = vpop.permute.xlu0 %3627
    %3629 = vrot.lane.b32.xlu0 %v3622, 127
    %v3630 = vpop.permute.xlu0 %3629
    %v3631 = vsel %vm1384, %v3624, %v3626
    %v3632 = vsel %vm1384, %v3626, %v3628
    %v3633 = vsel %vm1384, %v3628, %v3630
    %v3635 = vsel %vm778, %v3612, 0
    %v3638 = vand.u32 %v3631, %v785
    %v3641 = vand.u32 %v3632, %v785
    %v3644 = vand.u32 %v3633, %v785
    %3646 = vmatprep.subr.bf16.mxu0 %v3641
    %3647 = vmatpush1.bf16.msra.mxu0 %v3638
    %3648 = vmatprep.subr.bf16.mxu0 0
    %3649 = vmatpush1.bf16.msra.mxu0 0
    %3650 = vmatprep.subr.bf16.mxu0 0
    %3651 = vmatpush1.bf16.msra.mxu0 0
    %3652 = vmatprep.subr.bf16.mxu0 0
    %3653 = vmatpush1.bf16.msra.mxu0 0
    %3654 = vmatprep.subr.bf16.mxu0 0
    %3655 = vmatpush1.bf16.msra.mxu0 0
    %3656 = vmatprep.subr.bf16.mxu0 0
    %3657 = vmatpush1.bf16.msra.mxu0 0
    %3658 = vmatprep.subr.bf16.mxu0 0
    %3659 = vmatpush1.bf16.msra.mxu0 0
    %3660 = vmatprep.subr.bf16.mxu0 0
    %3661 = vmatpush1.bf16.msra.mxu0 0
    %3662 = vmatprep.subr.bf16.mxu0 0
    %3663 = vmatpush1.bf16.msra.mxu0 0
    %3664 = vmatprep.subr.bf16.mxu0 0
    %3665 = vmatpush1.bf16.msra.mxu0 0
    %3666 = vmatprep.subr.bf16.mxu0 0
    %3667 = vmatpush1.bf16.msra.mxu0 0
    %3668 = vmatprep.subr.bf16.mxu0 0
    %3669 = vmatpush1.bf16.msra.mxu0 0
    %3670 = vmatprep.subr.bf16.mxu0 0
    %3671 = vmatpush1.bf16.msra.mxu0 0
    %3672 = vmatprep.subr.bf16.mxu0 0
    %3673 = vmatpush1.bf16.msra.mxu0 0
    %3674 = vmatprep.subr.bf16.mxu0 0
    %3675 = vmatpush1.bf16.msra.mxu0 0
    %3676 = vmatprep.subr.bf16.mxu0 0
    %3677 = vmatpush1.bf16.msra.mxu0 0
    %3678 = vmatprep.mubr.bf16.mxu0 0
    %3679 = vmatmul.mubr.bf16.gmra.mrb[0].mxu0 %v3635
    %v3680 = vpop.f32.mrb[0].mxu0
    %v3681 = vadd.f32 0.0, %v3680
    %v3682 = vpop.f32.mrb[0].mxu0
    %v3683 = vadd.f32 0.0, %v3682
    %v3684 = vpop.f32.mrb[0].mxu0
    %v3685 = vadd.f32 0.0, %v3684
    %v3686 = vpop.f32.mrb[0].mxu0
    %v3687 = vadd.f32 0.0, %v3686
    %3688 = vdwg.mxu0
    %3689 = vmatprep.subr.bf16.mxu0 0
    %3690 = vmatpush1.bf16.msra.mxu0 %v3644
    %3691 = vmatprep.subr.bf16.mxu0 0
    %3692 = vmatpush1.bf16.msra.mxu0 0
    %3693 = vmatprep.subr.bf16.mxu0 0
    %3694 = vmatpush1.bf16.msra.mxu0 0
    %3695 = vmatprep.subr.bf16.mxu0 0
    %3696 = vmatpush1.bf16.msra.mxu0 0
    %3697 = vmatprep.subr.bf16.mxu0 0
    %3698 = vmatpush1.bf16.msra.mxu0 0
    %3699 = vmatprep.subr.bf16.mxu0 0
    %3700 = vmatpush1.bf16.msra.mxu0 0
    %3701 = vmatprep.subr.bf16.mxu0 0
    %3702 = vmatpush1.bf16.msra.mxu0 0
    %3703 = vmatprep.subr.bf16.mxu0 0
    %3704 = vmatpush1.bf16.msra.mxu0 0
    %3705 = vmatprep.subr.bf16.mxu0 0
    %3706 = vmatpush1.bf16.msra.mxu0 0
    %3707 = vmatprep.subr.bf16.mxu0 0
    %3708 = vmatpush1.bf16.msra.mxu0 0
    %3709 = vmatprep.subr.bf16.mxu0 0
    %3710 = vmatpush1.bf16.msra.mxu0 0
    %3711 = vmatprep.subr.bf16.mxu0 0
    %3712 = vmatpush1.bf16.msra.mxu0 0
    %3713 = vmatprep.subr.bf16.mxu0 0
    %3714 = vmatpush1.bf16.msra.mxu0 0
    %3715 = vmatprep.subr.bf16.mxu0 0
    %3716 = vmatpush1.bf16.msra.mxu0 0
    %3717 = vmatprep.subr.bf16.mxu0 0
    %3718 = vmatpush1.bf16.msra.mxu0 0
    %3719 = vmatprep.subr.bf16.mxu0 0
    %3720 = vmatpush1.bf16.msra.mxu0 0
    %3721 = vmatprep.mubr.bf16.mxu0 0
    %3722 = vmatmul.mubr.bf16.gmra.mrb[0].mxu0 %v3635
    %v3723 = vpop.f32.mrb[0].mxu0
    %v3724 = vadd.f32 0.0, %v3723
    %v3725 = vpop.f32.mrb[0].mxu0
    %v3726 = vpop.f32.mrb[0].mxu0
    %v3727 = vadd.f32 0.0, %v3726
    %v3728 = vpop.f32.mrb[0].mxu0
    %3729 = vdwg.mxu0
    %v3730 = vadd.f32 %v3597, %v3681
    %v3731 = vadd.f32 %v3598, %v3683
    %v3732 = vadd.f32 %v3599, %v3724
    %v3733 = vadd.f32 %v3600, %v3685
    %v3734 = vadd.f32 %v3601, %v3687
    %v3735 = vadd.f32 %v3602, %v3727
    %s3736 = scalar_lea.vmem [#allocation13], 112
    %v3737 = vld [vmem:[%s3736] sm:$0xf]
    %v3738 = vld [vmem:[%s3736 + $0x4] sm:$0x1]
    %v3741 = vunpack.c.l.b16 %v3737
    %v3742 = vunpack.c.l.b16 %v3738
    %v3743 = vpack.c.b16 %v3742, %v3741
    %3744 = vrot.lane.b32.xlu0 %v3619, 126
    %v3745 = vpop.permute.xlu0 %3744
    %3746 = vrot.lane.b32.xlu0 %v3620, 126
    %v3747 = vpop.permute.xlu0 %3746
    %3748 = vrot.lane.b32.xlu0 %v3621, 126
    %v3749 = vpop.permute.xlu0 %3748
    %3750 = vrot.lane.b32.xlu0 %v3622, 126
    %v3751 = vpop.permute.xlu0 %3750
    %vm3752 = vcmask 1031168
    %v3753 = vsel %vm3752, %v3745, %v3747
    %v3754 = vsel %vm3752, %v3747, %v3749
    %v3755 = vsel %vm3752, %v3749, %v3751
    %v3757 = vsel %vm778, %v3743, 0
    %v3760 = vand.u32 %v3753, %v785
    %v3763 = vand.u32 %v3754, %v785
    %v3766 = vand.u32 %v3755, %v785
    %3768 = vmatprep.subr.bf16.mxu0 %v3763
    %3769 = vmatpush1.bf16.msra.mxu0 %v3760
    %3770 = vmatprep.subr.bf16.mxu0 0
    %3771 = vmatpush1.bf16.msra.mxu0 0
    %3772 = vmatprep.subr.bf16.mxu0 0
    %3773 = vmatpush1.bf16.msra.mxu0 0
    %3774 = vmatprep.subr.bf16.mxu0 0
    %3775 = vmatpush1.bf16.msra.mxu0 0
    %3776 = vmatprep.subr.bf16.mxu0 0
    %3777 = vmatpush1.bf16.msra.mxu0 0
    %3778 = vmatprep.subr.bf16.mxu0 0
    %3779 = vmatpush1.bf16.msra.mxu0 0
    %3780 = vmatprep.subr.bf16.mxu0 0
    %3781 = vmatpush1.bf16.msra.mxu0 0
    %3782 = vmatprep.subr.bf16.mxu0 0
    %3783 = vmatpush1.bf16.msra.mxu0 0
    %3784 = vmatprep.subr.bf16.mxu0 0
    %3785 = vmatpush1.bf16.msra.mxu0 0
    %3786 = vmatprep.subr.bf16.mxu0 0
    %3787 = vmatpush1.bf16.msra.mxu0 0
    %3788 = vmatprep.subr.bf16.mxu0 0
    %3789 = vmatpush1.bf16.msra.mxu0 0
    %3790 = vmatprep.subr.bf16.mxu0 0
    %3791 = vmatpush1.bf16.msra.mxu0 0
    %3792 = vmatprep.subr.bf16.mxu0 0
    %3793 = vmatpush1.bf16.msra.mxu0 0
    %3794 = vmatprep.subr.bf16.mxu0 0
    %3795 = vmatpush1.bf16.msra.mxu0 0
    %3796 = vmatprep.subr.bf16.mxu0 0
    %3797 = vmatpush1.bf16.msra.mxu0 0
    %3798 = vmatprep.subr.bf16.mxu0 0
    %3799 = vmatpush1.bf16.msra.mxu0 0
    %3800 = vmatprep.mubr.bf16.mxu0 0
    %3801 = vmatmul.mubr.bf16.gmra.mrb[0].mxu0 %v3757
    %v3802 = vpop.f32.mrb[0].mxu0
    %v3803 = vadd.f32 0.0, %v3802
    %v3804 = vpop.f32.mrb[0].mxu0
    %v3805 = vadd.f32 0.0, %v3804
    %v3806 = vpop.f32.mrb[0].mxu0
    %v3807 = vadd.f32 0.0, %v3806
    %v3808 = vpop.f32.mrb[0].mxu0
    %v3809 = vadd.f32 0.0, %v3808
    %3810 = vdwg.mxu0
    %3811 = vmatprep.subr.bf16.mxu0 0
    %3812 = vmatpush1.bf16.msra.mxu0 %v3766
    %3813 = vmatprep.subr.bf16.mxu0 0
    %3814 = vmatpush1.bf16.msra.mxu0 0
    %3815 = vmatprep.subr.bf16.mxu0 0
    %3816 = vmatpush1.bf16.msra.mxu0 0
    %3817 = vmatprep.subr.bf16.mxu0 0
    %3818 = vmatpush1.bf16.msra.mxu0 0
    %3819 = vmatprep.subr.bf16.mxu0 0
    %3820 = vmatpush1.bf16.msra.mxu0 0
    %3821 = vmatprep.subr.bf16.mxu0 0
    %3822 = vmatpush1.bf16.msra.mxu0 0
    %3823 = vmatprep.subr.bf16.mxu0 0
    %3824 = vmatpush1.bf16.msra.mxu0 0
    %3825 = vmatprep.subr.bf16.mxu0 0
    %3826 = vmatpush1.bf16.msra.mxu0 0
    %3827 = vmatprep.subr.bf16.mxu0 0
    %3828 = vmatpush1.bf16.msra.mxu0 0
    %3829 = vmatprep.subr.bf16.mxu0 0
    %3830 = vmatpush1.bf16.msra.mxu0 0
    %3831 = vmatprep.subr.bf16.mxu0 0
    %3832 = vmatpush1.bf16.msra.mxu0 0
    %3833 = vmatprep.subr.bf16.mxu0 0
    %3834 = vmatpush1.bf16.msra.mxu0 0
    %3835 = vmatprep.subr.bf16.mxu0 0
    %3836 = vmatpush1.bf16.msra.mxu0 0
    %3837 = vmatprep.subr.bf16.mxu0 0
    %3838 = vmatpush1.bf16.msra.mxu0 0
    %3839 = vmatprep.subr.bf16.mxu0 0
    %3840 = vmatpush1.bf16.msra.mxu0 0
    %3841 = vmatprep.subr.bf16.mxu0 0
    %3842 = vmatpush1.bf16.msra.mxu0 0
    %3843 = vmatprep.mubr.bf16.mxu0 0
    %3844 = vmatmul.mubr.bf16.gmra.mrb[0].mxu0 %v3757
    %v3845 = vpop.f32.mrb[0].mxu0
    %v3846 = vadd.f32 0.0, %v3845
    %v3847 = vpop.f32.mrb[0].mxu0
    %v3848 = vpop.f32.mrb[0].mxu0
    %v3849 = vadd.f32 0.0, %v3848
    %v3850 = vpop.f32.mrb[0].mxu0
    %3851 = vdwg.mxu0
    %v3852 = vadd.f32 %v3730, %v3803
    %v3853 = vadd.f32 %v3731, %v3805
    %v3854 = vadd.f32 %v3732, %v3846
    %v3855 = vadd.f32 %v3733, %v3807
    %v3856 = vadd.f32 %v3734, %v3809
    %v3857 = vadd.f32 %v3735, %v3849
    %s3858 = scalar_lea.vmem [#allocation13], 120
    %v3859 = vld [vmem:[%s3858] sm:$0xf]
    %v3860 = vld [vmem:[%s3858 + $0x4] sm:$0x1]
    %v3863 = vunpack.c.l.b16 %v3859
    %v3864 = vunpack.c.l.b16 %v3860
    %v3865 = vpack.c.b16 %v3864, %v3863
    %3866 = vrot.lane.b32.xlu0 %v3619, 106
    %v3867 = vpop.permute.xlu0 %3866
    %3868 = vrot.lane.b32.xlu0 %v3620, 106
    %v3869 = vpop.permute.xlu0 %3868
    %3870 = vrot.lane.b32.xlu0 %v3621, 106
    %v3871 = vpop.permute.xlu0 %3870
    %3872 = vrot.lane.b32.xlu0 %v3622, 106
    %v3873 = vpop.permute.xlu0 %3872
    %vm3874 = vcmask 867328
    %v3875 = vsel %vm3874, %v3867, %v3869
    %v3876 = vsel %vm3874, %v3869, %v3871
    %v3877 = vsel %vm3874, %v3871, %v3873
    %v3879 = vsel %vm778, %v3865, 0
    %v3882 = vand.u32 %v3875, %v785
    %v3885 = vand.u32 %v3876, %v785
    %v3888 = vand.u32 %v3877, %v785
    %3890 = vmatprep.subr.bf16.mxu0 %v3885
    %3891 = vmatpush1.bf16.msra.mxu0 %v3882
    %3892 = vmatprep.subr.bf16.mxu0 0
    %3893 = vmatpush1.bf16.msra.mxu0 0
    %3894 = vmatprep.subr.bf16.mxu0 0
    %3895 = vmatpush1.bf16.msra.mxu0 0
    %3896 = vmatprep.subr.bf16.mxu0 0
    %3897 = vmatpush1.bf16.msra.mxu0 0
    %3898 = vmatprep.subr.bf16.mxu0 0
    %3899 = vmatpush1.bf16.msra.mxu0 0
    %3900 = vmatprep.subr.bf16.mxu0 0
    %3901 = vmatpush1.bf16.msra.mxu0 0
    %3902 = vmatprep.subr.bf16.mxu0 0
    %3903 = vmatpush1.bf16.msra.mxu0 0
    %3904 = vmatprep.subr.bf16.mxu0 0
    %3905 = vmatpush1.bf16.msra.mxu0 0
    %3906 = vmatprep.subr.bf16.mxu0 0
    %3907 = vmatpush1.bf16.msra.mxu0 0
    %3908 = vmatprep.subr.bf16.mxu0 0
    %3909 = vmatpush1.bf16.msra.mxu0 0
    %3910 = vmatprep.subr.bf16.mxu0 0
    %3911 = vmatpush1.bf16.msra.mxu0 0
    %3912 = vmatprep.subr.bf16.mxu0 0
    %3913 = vmatpush1.bf16.msra.mxu0 0
    %3914 = vmatprep.subr.bf16.mxu0 0
    %3915 = vmatpush1.bf16.msra.mxu0 0
    %3916 = vmatprep.subr.bf16.mxu0 0
    %3917 = vmatpush1.bf16.msra.mxu0 0
    %3918 = vmatprep.subr.bf16.mxu0 0
    %3919 = vmatpush1.bf16.msra.mxu0 0
    %3920 = vmatprep.subr.bf16.mxu0 0
    %3921 = vmatpush1.bf16.msra.mxu0 0
    %3922 = vmatprep.mubr.bf16.mxu0 0
    %3923 = vmatmul.mubr.bf16.gmra.mrb[0].mxu0 %v3879
    %v3924 = vpop.f32.mrb[0].mxu0
    %v3925 = vadd.f32 0.0, %v3924
    %v3926 = vpop.f32.mrb[0].mxu0
    %v3927 = vadd.f32 0.0, %v3926
    %v3928 = vpop.f32.mrb[0].mxu0
    %v3929 = vadd.f32 0.0, %v3928
    %v3930 = vpop.f32.mrb[0].mxu0
    %v3931 = vadd.f32 0.0, %v3930
    %3932 = vdwg.mxu0
    %3933 = vmatprep.subr.bf16.mxu0 0
    %3934 = vmatpush1.bf16.msra.mxu0 %v3888
    %3935 = vmatprep.subr.bf16.mxu0 0
    %3936 = vmatpush1.bf16.msra.mxu0 0
    %3937 = vmatprep.subr.bf16.mxu0 0
    %3938 = vmatpush1.bf16.msra.mxu0 0
    %3939 = vmatprep.subr.bf16.mxu0 0
    %3940 = vmatpush1.bf16.msra.mxu0 0
    %3941 = vmatprep.subr.bf16.mxu0 0
    %3942 = vmatpush1.bf16.msra.mxu0 0
    %3943 = vmatprep.subr.bf16.mxu0 0
    %3944 = vmatpush1.bf16.msra.mxu0 0
    %3945 = vmatprep.subr.bf16.mxu0 0
    %3946 = vmatpush1.bf16.msra.mxu0 0
    %3947 = vmatprep.subr.bf16.mxu0 0
    %3948 = vmatpush1.bf16.msra.mxu0 0
    %3949 = vmatprep.subr.bf16.mxu0 0
    %3950 = vmatpush1.bf16.msra.mxu0 0
    %3951 = vmatprep.subr.bf16.mxu0 0
    %3952 = vmatpush1.bf16.msra.mxu0 0
    %3953 = vmatprep.subr.bf16.mxu0 0
    %3954 = vmatpush1.bf16.msra.mxu0 0
    %3955 = vmatprep.subr.bf16.mxu0 0
    %3956 = vmatpush1.bf16.msra.mxu0 0
    %3957 = vmatprep.subr.bf16.mxu0 0
    %3958 = vmatpush1.bf16.msra.mxu0 0
    %3959 = vmatprep.subr.bf16.mxu0 0
    %3960 = vmatpush1.bf16.msra.mxu0 0
    %3961 = vmatprep.subr.bf16.mxu0 0
    %3962 = vmatpush1.bf16.msra.mxu0 0
    %3963 = vmatprep.subr.bf16.mxu0 0
    %3964 = vmatpush1.bf16.msra.mxu0 0
    %3965 = vmatprep.mubr.bf16.mxu0 0
    %3966 = vmatmul.mubr.bf16.gmra.mrb[0].mxu0 %v3879
    %v3967 = vpop.f32.mrb[0].mxu0
    %v3968 = vadd.f32 0.0, %v3967
    %v3969 = vpop.f32.mrb[0].mxu0
    %v3970 = vpop.f32.mrb[0].mxu0
    %v3971 = vadd.f32 0.0, %v3970
    %v3972 = vpop.f32.mrb[0].mxu0
    %3973 = vdwg.mxu0
    %v3974 = vadd.f32 %v3852, %v3925
    %v3975 = vadd.f32 %v3853, %v3927
    %v3976 = vadd.f32 %v3854, %v3968
    %v3977 = vadd.f32 %v3855, %v3929
    %v3978 = vadd.f32 %v3856, %v3931
    %v3979 = vadd.f32 %v3857, %v3971
    %s3980 = scalar_lea.vmem [#allocation13], 128
    %v3981 = vld [vmem:[%s3980] sm:$0xf]
    %v3982 = vld [vmem:[%s3980 + $0x4] sm:$0x1]
    %v3985 = vunpack.c.l.b16 %v3981
    %v3986 = vunpack.c.l.b16 %v3982
    %v3987 = vpack.c.b16 %v3986, %v3985
    %3988 = vrot.lane.b32.xlu0 %v3619, 105
    %v3989 = vpop.permute.xlu0 %3988
    %3990 = vrot.lane.b32.xlu0 %v3620, 105
    %v3991 = vpop.permute.xlu0 %3990
    %3992 = vrot.lane.b32.xlu0 %v3621, 105
    %v3993 = vpop.permute.xlu0 %3992
    %3994 = vrot.lane.b32.xlu0 %v3622, 105
    %v3995 = vpop.permute.xlu0 %3994
    %v3996 = vsel %vm1506, %v3989, %v3991
    %v3997 = vsel %vm1506, %v3991, %v3993
    %v3998 = vsel %vm1506, %v3993, %v3995
    %v4000 = vsel %vm778, %v3987, 0
    %v4003 = vand.u32 %v3996, %v785
    %v4006 = vand.u32 %v3997, %v785
    %v4009 = vand.u32 %v3998, %v785
    %4011 = vmatprep.subr.bf16.mxu0 %v4006
    %4012 = vmatpush1.bf16.msra.mxu0 %v4003
    %4013 = vmatprep.subr.bf16.mxu0 0
    %4014 = vmatpush1.bf16.msra.mxu0 0
    %4015 = vmatprep.subr.bf16.mxu0 0
    %4016 = vmatpush1.bf16.msra.mxu0 0
    %4017 = vmatprep.subr.bf16.mxu0 0
    %4018 = vmatpush1.bf16.msra.mxu0 0
    %4019 = vmatprep.subr.bf16.mxu0 0
    %4020 = vmatpush1.bf16.msra.mxu0 0
    %4021 = vmatprep.subr.bf16.mxu0 0
    %4022 = vmatpush1.bf16.msra.mxu0 0
    %4023 = vmatprep.subr.bf16.mxu0 0
    %4024 = vmatpush1.bf16.msra.mxu0 0
    %4025 = vmatprep.subr.bf16.mxu0 0
    %4026 = vmatpush1.bf16.msra.mxu0 0
    %4027 = vmatprep.subr.bf16.mxu0 0
    %4028 = vmatpush1.bf16.msra.mxu0 0
    %4029 = vmatprep.subr.bf16.mxu0 0
    %4030 = vmatpush1.bf16.msra.mxu0 0
    %4031 = vmatprep.subr.bf16.mxu0 0
    %4032 = vmatpush1.bf16.msra.mxu0 0
    %4033 = vmatprep.subr.bf16.mxu0 0
    %4034 = vmatpush1.bf16.msra.mxu0 0
    %4035 = vmatprep.subr.bf16.mxu0 0
    %4036 = vmatpush1.bf16.msra.mxu0 0
    %4037 = vmatprep.subr.bf16.mxu0 0
    %4038 = vmatpush1.bf16.msra.mxu0 0
    %4039 = vmatprep.subr.bf16.mxu0 0
    %4040 = vmatpush1.bf16.msra.mxu0 0
    %4041 = vmatprep.subr.bf16.mxu0 0
    %4042 = vmatpush1.bf16.msra.mxu0 0
    %4043 = vmatprep.mubr.bf16.mxu0 0
    %4044 = vmatmul.mubr.bf16.gmra.mrb[0].mxu0 %v4000
    %v4045 = vpop.f32.mrb[0].mxu0
    %v4046 = vadd.f32 0.0, %v4045
    %v4047 = vpop.f32.mrb[0].mxu0
    %v4048 = vadd.f32 0.0, %v4047
    %v4049 = vpop.f32.mrb[0].mxu0
    %v4050 = vadd.f32 0.0, %v4049
    %v4051 = vpop.f32.mrb[0].mxu0
    %v4052 = vadd.f32 0.0, %v4051
    %4053 = vdwg.mxu0
    %4054 = vmatprep.subr.bf16.mxu0 0
    %4055 = vmatpush1.bf16.msra.mxu0 %v4009
    %4056 = vmatprep.subr.bf16.mxu0 0
    %4057 = vmatpush1.bf16.msra.mxu0 0
    %4058 = vmatprep.subr.bf16.mxu0 0
    %4059 = vmatpush1.bf16.msra.mxu0 0
    %4060 = vmatprep.subr.bf16.mxu0 0
    %4061 = vmatpush1.bf16.msra.mxu0 0
    %4062 = vmatprep.subr.bf16.mxu0 0
    %4063 = vmatpush1.bf16.msra.mxu0 0
    %4064 = vmatprep.subr.bf16.mxu0 0
    %4065 = vmatpush1.bf16.msra.mxu0 0
    %4066 = vmatprep.subr.bf16.mxu0 0
    %4067 = vmatpush1.bf16.msra.mxu0 0
    %4068 = vmatprep.subr.bf16.mxu0 0
    %4069 = vmatpush1.bf16.msra.mxu0 0
    %4070 = vmatprep.subr.bf16.mxu0 0
    %4071 = vmatpush1.bf16.msra.mxu0 0
    %4072 = vmatprep.subr.bf16.mxu0 0
    %4073 = vmatpush1.bf16.msra.mxu0 0
    %4074 = vmatprep.subr.bf16.mxu0 0
    %4075 = vmatpush1.bf16.msra.mxu0 0
    %4076 = vmatprep.subr.bf16.mxu0 0
    %4077 = vmatpush1.bf16.msra.mxu0 0
    %4078 = vmatprep.subr.bf16.mxu0 0
    %4079 = vmatpush1.bf16.msra.mxu0 0
    %4080 = vmatprep.subr.bf16.mxu0 0
    %4081 = vmatpush1.bf16.msra.mxu0 0
    %4082 = vmatprep.subr.bf16.mxu0 0
    %4083 = vmatpush1.bf16.msra.mxu0 0
    %4084 = vmatprep.subr.bf16.mxu0 0
    %4085 = vmatpush1.bf16.msra.mxu0 0
    %4086 = vmatprep.mubr.bf16.mxu0 0
    %4087 = vmatmul.mubr.bf16.gmra.mrb[0].mxu0 %v4000
    %v4088 = vpop.f32.mrb[0].mxu0
    %v4089 = vadd.f32 0.0, %v4088
    %v4090 = vpop.f32.mrb[0].mxu0
    %v4091 = vpop.f32.mrb[0].mxu0
    %v4092 = vadd.f32 0.0, %v4091
    %v4093 = vpop.f32.mrb[0].mxu0
    %4094 = vdwg.mxu0
    %v4095 = vadd.f32 %v3974, %v4046
    %v4096 = vadd.f32 %v3975, %v4048
    %v4097 = vadd.f32 %v3976, %v4089
    %v4098 = vadd.f32 %v3977, %v4050
    %v4099 = vadd.f32 %v3978, %v4052
    %v4100 = vadd.f32 %v3979, %v4092
    %s4101 = scalar_lea.vmem [#allocation13], 136
    %v4102 = vld [vmem:[%s4101] sm:$0xf]
    %v4103 = vld [vmem:[%s4101 + $0x4] sm:$0x1]
    %v4106 = vunpack.c.l.b16 %v4102
    %v4107 = vunpack.c.l.b16 %v4103
    %v4108 = vpack.c.b16 %v4107, %v4106
    %4109 = vrot.lane.b32.xlu0 %v3619, 104
    %v4110 = vpop.permute.xlu0 %4109
    %4111 = vrot.lane.b32.xlu0 %v3620, 104
    %v4112 = vpop.permute.xlu0 %4111
    %4113 = vrot.lane.b32.xlu0 %v3621, 104
    %v4114 = vpop.permute.xlu0 %4113
    %4115 = vrot.lane.b32.xlu0 %v3622, 104
    %v4116 = vpop.permute.xlu0 %4115
    %v4117 = vsel %vm1628, %v4110, %v4112
    %v4118 = vsel %vm1628, %v4112, %v4114
    %v4119 = vsel %vm1628, %v4114, %v4116
    %v4121 = vsel %vm778, %v4108, 0
    %v4124 = vand.u32 %v4117, %v785
    %v4127 = vand.u32 %v4118, %v785
    %v4130 = vand.u32 %v4119, %v785
    %4132 = vmatprep.subr.bf16.mxu0 %v4127
    %4133 = vmatpush1.bf16.msra.mxu0 %v4124
    %4134 = vmatprep.subr.bf16.mxu0 0
    %4135 = vmatpush1.bf16.msra.mxu0 0
    %4136 = vmatprep.subr.bf16.mxu0 0
    %4137 = vmatpush1.bf16.msra.mxu0 0
    %4138 = vmatprep.subr.bf16.mxu0 0
    %4139 = vmatpush1.bf16.msra.mxu0 0
    %4140 = vmatprep.subr.bf16.mxu0 0
    %4141 = vmatpush1.bf16.msra.mxu0 0
    %4142 = vmatprep.subr.bf16.mxu0 0
    %4143 = vmatpush1.bf16.msra.mxu0 0
    %4144 = vmatprep.subr.bf16.mxu0 0
    %4145 = vmatpush1.bf16.msra.mxu0 0
    %4146 = vmatprep.subr.bf16.mxu0 0
    %4147 = vmatpush1.bf16.msra.mxu0 0
    %4148 = vmatprep.subr.bf16.mxu0 0
    %4149 = vmatpush1.bf16.msra.mxu0 0
    %4150 = vmatprep.subr.bf16.mxu0 0
    %4151 = vmatpush1.bf16.msra.mxu0 0
    %4152 = vmatprep.subr.bf16.mxu0 0
    %4153 = vmatpush1.bf16.msra.mxu0 0
    %4154 = vmatprep.subr.bf16.mxu0 0
    %4155 = vmatpush1.bf16.msra.mxu0 0
    %4156 = vmatprep.subr.bf16.mxu0 0
    %4157 = vmatpush1.bf16.msra.mxu0 0
    %4158 = vmatprep.subr.bf16.mxu0 0
    %4159 = vmatpush1.bf16.msra.mxu0 0
    %4160 = vmatprep.subr.bf16.mxu0 0
    %4161 = vmatpush1.bf16.msra.mxu0 0
    %4162 = vmatprep.subr.bf16.mxu0 0
    %4163 = vmatpush1.bf16.msra.mxu0 0
    %4164 = vmatprep.mubr.bf16.mxu0 0
    %4165 = vmatmul.mubr.bf16.gmra.mrb[0].mxu0 %v4121
    %v4166 = vpop.f32.mrb[0].mxu0
    %v4167 = vadd.f32 0.0, %v4166
    %v4168 = vpop.f32.mrb[0].mxu0
    %v4169 = vadd.f32 0.0, %v4168
    %v4170 = vpop.f32.mrb[0].mxu0
    %v4171 = vadd.f32 0.0, %v4170
    %v4172 = vpop.f32.mrb[0].mxu0
    %v4173 = vadd.f32 0.0, %v4172
    %4174 = vdwg.mxu0
    %4175 = vmatprep.subr.bf16.mxu0 0
    %4176 = vmatpush1.bf16.msra.mxu0 %v4130
    %4177 = vmatprep.subr.bf16.mxu0 0
    %4178 = vmatpush1.bf16.msra.mxu0 0
    %4179 = vmatprep.subr.bf16.mxu0 0
    %4180 = vmatpush1.bf16.msra.mxu0 0
    %4181 = vmatprep.subr.bf16.mxu0 0
    %4182 = vmatpush1.bf16.msra.mxu0 0
    %4183 = vmatprep.subr.bf16.mxu0 0
    %4184 = vmatpush1.bf16.msra.mxu0 0
    %4185 = vmatprep.subr.bf16.mxu0 0
    %4186 = vmatpush1.bf16.msra.mxu0 0
    %4187 = vmatprep.subr.bf16.mxu0 0
    %4188 = vmatpush1.bf16.msra.mxu0 0
    %4189 = vmatprep.subr.bf16.mxu0 0
    %4190 = vmatpush1.bf16.msra.mxu0 0
    %4191 = vmatprep.subr.bf16.mxu0 0
    %4192 = vmatpush1.bf16.msra.mxu0 0
    %4193 = vmatprep.subr.bf16.mxu0 0
    %4194 = vmatpush1.bf16.msra.mxu0 0
    %4195 = vmatprep.subr.bf16.mxu0 0
    %4196 = vmatpush1.bf16.msra.mxu0 0
    %4197 = vmatprep.subr.bf16.mxu0 0
    %4198 = vmatpush1.bf16.msra.mxu0 0
    %4199 = vmatprep.subr.bf16.mxu0 0
    %4200 = vmatpush1.bf16.msra.mxu0 0
    %4201 = vmatprep.subr.bf16.mxu0 0
    %4202 = vmatpush1.bf16.msra.mxu0 0
    %4203 = vmatprep.subr.bf16.mxu0 0
    %4204 = vmatpush1.bf16.msra.mxu0 0
    %4205 = vmatprep.subr.bf16.mxu0 0
    %4206 = vmatpush1.bf16.msra.mxu0 0
    %4207 = vmatprep.mubr.bf16.mxu0 0
    %4208 = vmatmul.mubr.bf16.gmra.mrb[0].mxu0 %v4121
    %v4209 = vpop.f32.mrb[0].mxu0
    %v4210 = vadd.f32 0.0, %v4209
    %v4211 = vpop.f32.mrb[0].mxu0
    %v4212 = vpop.f32.mrb[0].mxu0
    %v4213 = vadd.f32 0.0, %v4212
    %v4214 = vpop.f32.mrb[0].mxu0
    %4215 = vdwg.mxu0
    %v4216 = vadd.f32 %v4095, %v4167
    %v4217 = vadd.f32 %v4096, %v4169
    %v4218 = vadd.f32 %v4097, %v4210
    %v4219 = vadd.f32 %v4098, %v4171
    %v4220 = vadd.f32 %v4099, %v4173
    %v4221 = vadd.f32 %v4100, %v4213
    %s4222 = scalar_lea.vmem [#allocation13], 144
    %v4223 = vld [vmem:[%s4222] sm:$0xf]
    %v4224 = vld [vmem:[%s4222 + $0x4] sm:$0x1]
    %v4227 = vunpack.c.l.b16 %v4223
    %v4228 = vunpack.c.l.b16 %v4224
    %v4229 = vpack.c.b16 %v4228, %v4227
    %4230 = vrot.lane.b32.xlu0 %v3619, 103
    %v4231 = vpop.permute.xlu0 %4230
    %4232 = vrot.lane.b32.xlu0 %v3620, 103
    %v4233 = vpop.permute.xlu0 %4232
    %4234 = vrot.lane.b32.xlu0 %v3621, 103
    %v4235 = vpop.permute.xlu0 %4234
    %4236 = vrot.lane.b32.xlu0 %v3622, 103
    %v4237 = vpop.permute.xlu0 %4236
    %v4238 = vsel %vm1750, %v4231, %v4233
    %v4239 = vsel %vm1750, %v4233, %v4235
    %v4240 = vsel %vm1750, %v4235, %v4237
    %v4242 = vsel %vm778, %v4229, 0
    %v4245 = vand.u32 %v4238, %v785
    %v4248 = vand.u32 %v4239, %v785
    %v4251 = vand.u32 %v4240, %v785
    %4253 = vmatprep.subr.bf16.mxu0 %v4248
    %4254 = vmatpush1.bf16.msra.mxu0 %v4245
    %4255 = vmatprep.subr.bf16.mxu0 0
    %4256 = vmatpush1.bf16.msra.mxu0 0
    %4257 = vmatprep.subr.bf16.mxu0 0
    %4258 = vmatpush1.bf16.msra.mxu0 0
    %4259 = vmatprep.subr.bf16.mxu0 0
    %4260 = vmatpush1.bf16.msra.mxu0 0
    %4261 = vmatprep.subr.bf16.mxu0 0
    %4262 = vmatpush1.bf16.msra.mxu0 0
    %4263 = vmatprep.subr.bf16.mxu0 0
    %4264 = vmatpush1.bf16.msra.mxu0 0
    %4265 = vmatprep.subr.bf16.mxu0 0
    %4266 = vmatpush1.bf16.msra.mxu0 0
    %4267 = vmatprep.subr.bf16.mxu0 0
    %4268 = vmatpush1.bf16.msra.mxu0 0
    %4269 = vmatprep.subr.bf16.mxu0 0
    %4270 = vmatpush1.bf16.msra.mxu0 0
    %4271 = vmatprep.subr.bf16.mxu0 0
    %4272 = vmatpush1.bf16.msra.mxu0 0
    %4273 = vmatprep.subr.bf16.mxu0 0
    %4274 = vmatpush1.bf16.msra.mxu0 0
    %4275 = vmatprep.subr.bf16.mxu0 0
    %4276 = vmatpush1.bf16.msra.mxu0 0
    %4277 = vmatprep.subr.bf16.mxu0 0
    %4278 = vmatpush1.bf16.msra.mxu0 0
    %4279 = vmatprep.subr.bf16.mxu0 0
    %4280 = vmatpush1.bf16.msra.mxu0 0
    %4281 = vmatprep.subr.bf16.mxu0 0
    %4282 = vmatpush1.bf16.msra.mxu0 0
    %4283 = vmatprep.subr.bf16.mxu0 0
    %4284 = vmatpush1.bf16.msra.mxu0 0
    %4285 = vmatprep.mubr.bf16.mxu0 0
    %4286 = vmatmul.mubr.bf16.gmra.mrb[0].mxu0 %v4242
    %v4287 = vpop.f32.mrb[0].mxu0
    %v4288 = vadd.f32 0.0, %v4287
    %v4289 = vpop.f32.mrb[0].mxu0
    %v4290 = vadd.f32 0.0, %v4289
    %v4291 = vpop.f32.mrb[0].mxu0
    %v4292 = vadd.f32 0.0, %v4291
    %v4293 = vpop.f32.mrb[0].mxu0
    %v4294 = vadd.f32 0.0, %v4293
    %4295 = vdwg.mxu0
    %4296 = vmatprep.subr.bf16.mxu0 0
    %4297 = vmatpush1.bf16.msra.mxu0 %v4251
    %4298 = vmatprep.subr.bf16.mxu0 0
    %4299 = vmatpush1.bf16.msra.mxu0 0
    %4300 = vmatprep.subr.bf16.mxu0 0
    %4301 = vmatpush1.bf16.msra.mxu0 0
    %4302 = vmatprep.subr.bf16.mxu0 0
    %4303 = vmatpush1.bf16.msra.mxu0 0
    %4304 = vmatprep.subr.bf16.mxu0 0
    %4305 = vmatpush1.bf16.msra.mxu0 0
    %4306 = vmatprep.subr.bf16.mxu0 0
    %4307 = vmatpush1.bf16.msra.mxu0 0
    %4308 = vmatprep.subr.bf16.mxu0 0
    %4309 = vmatpush1.bf16.msra.mxu0 0
    %4310 = vmatprep.subr.bf16.mxu0 0
    %4311 = vmatpush1.bf16.msra.mxu0 0
    %4312 = vmatprep.subr.bf16.mxu0 0
    %4313 = vmatpush1.bf16.msra.mxu0 0
    %4314 = vmatprep.subr.bf16.mxu0 0
    %4315 = vmatpush1.bf16.msra.mxu0 0
    %4316 = vmatprep.subr.bf16.mxu0 0
    %4317 = vmatpush1.bf16.msra.mxu0 0
    %4318 = vmatprep.subr.bf16.mxu0 0
    %4319 = vmatpush1.bf16.msra.mxu0 0
    %4320 = vmatprep.subr.bf16.mxu0 0
    %4321 = vmatpush1.bf16.msra.mxu0 0
    %4322 = vmatprep.subr.bf16.mxu0 0
    %4323 = vmatpush1.bf16.msra.mxu0 0
    %4324 = vmatprep.subr.bf16.mxu0 0
    %4325 = vmatpush1.bf16.msra.mxu0 0
    %4326 = vmatprep.subr.bf16.mxu0 0
    %4327 = vmatpush1.bf16.msra.mxu0 0
    %4328 = vmatprep.mubr.bf16.mxu0 0
    %4329 = vmatmul.mubr.bf16.gmra.mrb[0].mxu0 %v4242
    %v4330 = vpop.f32.mrb[0].mxu0
    %v4331 = vadd.f32 0.0, %v4330
    %v4332 = vpop.f32.mrb[0].mxu0
    %v4333 = vpop.f32.mrb[0].mxu0
    %v4334 = vadd.f32 0.0, %v4333
    %v4335 = vpop.f32.mrb[0].mxu0
    %4336 = vdwg.mxu0
    %v4337 = vadd.f32 %v4216, %v4288
    %v4338 = vadd.f32 %v4217, %v4290
    %v4339 = vadd.f32 %v4218, %v4331
    %v4340 = vadd.f32 %v4219, %v4292
    %v4341 = vadd.f32 %v4220, %v4294
    %v4342 = vadd.f32 %v4221, %v4334
    %s4343 = scalar_lea.vmem [#allocation13], 152
    %v4344 = vld [vmem:[%s4343] sm:$0xf]
    %v4345 = vld [vmem:[%s4343 + $0x4] sm:$0x1]
    %v4348 = vunpack.c.l.b16 %v4344
    %v4349 = vunpack.c.l.b16 %v4345
    %v4350 = vpack.c.b16 %v4349, %v4348
    %4351 = vrot.lane.b32.xlu0 %v3619, 102
    %v4352 = vpop.permute.xlu0 %4351
    %4353 = vrot.lane.b32.xlu0 %v3620, 102
    %v4354 = vpop.permute.xlu0 %4353
    %4355 = vrot.lane.b32.xlu0 %v3621, 102
    %v4356 = vpop.permute.xlu0 %4355
    %4357 = vrot.lane.b32.xlu0 %v3622, 102
    %v4358 = vpop.permute.xlu0 %4357
    %vm4359 = vcmask 834560
    %v4360 = vsel %vm4359, %v4352, %v4354
    %v4361 = vsel %vm4359, %v4354, %v4356
    %v4362 = vsel %vm4359, %v4356, %v4358
    %v4364 = vsel %vm778, %v4350, 0
    %v4367 = vand.u32 %v4360, %v785
    %v4370 = vand.u32 %v4361, %v785
    %v4373 = vand.u32 %v4362, %v785
    %4375 = vmatprep.subr.bf16.mxu0 %v4370
    %4376 = vmatpush1.bf16.msra.mxu0 %v4367
    %4377 = vmatprep.subr.bf16.mxu0 0
    %4378 = vmatpush1.bf16.msra.mxu0 0
    %4379 = vmatprep.subr.bf16.mxu0 0
    %4380 = vmatpush1.bf16.msra.mxu0 0
    %4381 = vmatprep.subr.bf16.mxu0 0
    %4382 = vmatpush1.bf16.msra.mxu0 0
    %4383 = vmatprep.subr.bf16.mxu0 0
    %4384 = vmatpush1.bf16.msra.mxu0 0
    %4385 = vmatprep.subr.bf16.mxu0 0
    %4386 = vmatpush1.bf16.msra.mxu0 0
    %4387 = vmatprep.subr.bf16.mxu0 0
    %4388 = vmatpush1.bf16.msra.mxu0 0
    %4389 = vmatprep.subr.bf16.mxu0 0
    %4390 = vmatpush1.bf16.msra.mxu0 0
    %4391 = vmatprep.subr.bf16.mxu0 0
    %4392 = vmatpush1.bf16.msra.mxu0 0
    %4393 = vmatprep.subr.bf16.mxu0 0
    %4394 = vmatpush1.bf16.msra.mxu0 0
    %4395 = vmatprep.subr.bf16.mxu0 0
    %4396 = vmatpush1.bf16.msra.mxu0 0
    %4397 = vmatprep.subr.bf16.mxu0 0
    %4398 = vmatpush1.bf16.msra.mxu0 0
    %4399 = vmatprep.subr.bf16.mxu0 0
    %4400 = vmatpush1.bf16.msra.mxu0 0
    %4401 = vmatprep.subr.bf16.mxu0 0
    %4402 = vmatpush1.bf16.msra.mxu0 0
    %4403 = vmatprep.subr.bf16.mxu0 0
    %4404 = vmatpush1.bf16.msra.mxu0 0
    %4405 = vmatprep.subr.bf16.mxu0 0
    %4406 = vmatpush1.bf16.msra.mxu0 0
    %4407 = vmatprep.mubr.bf16.mxu0 0
    %4408 = vmatmul.mubr.bf16.gmra.mrb[0].mxu0 %v4364
    %v4409 = vpop.f32.mrb[0].mxu0
    %v4410 = vadd.f32 0.0, %v4409
    %v4411 = vpop.f32.mrb[0].mxu0
    %v4412 = vadd.f32 0.0, %v4411
    %v4413 = vpop.f32.mrb[0].mxu0
    %v4414 = vadd.f32 0.0, %v4413
    %v4415 = vpop.f32.mrb[0].mxu0
    %v4416 = vadd.f32 0.0, %v4415
    %4417 = vdwg.mxu0
    %4418 = vmatprep.subr.bf16.mxu0 0
    %4419 = vmatpush1.bf16.msra.mxu0 %v4373
    %4420 = vmatprep.subr.bf16.mxu0 0
    %4421 = vmatpush1.bf16.msra.mxu0 0
    %4422 = vmatprep.subr.bf16.mxu0 0
    %4423 = vmatpush1.bf16.msra.mxu0 0
    %4424 = vmatprep.subr.bf16.mxu0 0
    %4425 = vmatpush1.bf16.msra.mxu0 0
    %4426 = vmatprep.subr.bf16.mxu0 0
    %4427 = vmatpush1.bf16.msra.mxu0 0
    %4428 = vmatprep.subr.bf16.mxu0 0
    %4429 = vmatpush1.bf16.msra.mxu0 0
    %4430 = vmatprep.subr.bf16.mxu0 0
    %4431 = vmatpush1.bf16.msra.mxu0 0
    %4432 = vmatprep.subr.bf16.mxu0 0
    %4433 = vmatpush1.bf16.msra.mxu0 0
    %4434 = vmatprep.subr.bf16.mxu0 0
    %4435 = vmatpush1.bf16.msra.mxu0 0
    %4436 = vmatprep.subr.bf16.mxu0 0
    %4437 = vmatpush1.bf16.msra.mxu0 0
    %4438 = vmatprep.subr.bf16.mxu0 0
    %4439 = vmatpush1.bf16.msra.mxu0 0
    %4440 = vmatprep.subr.bf16.mxu0 0
    %4441 = vmatpush1.bf16.msra.mxu0 0
    %4442 = vmatprep.subr.bf16.mxu0 0
    %4443 = vmatpush1.bf16.msra.mxu0 0
    %4444 = vmatprep.subr.bf16.mxu0 0
    %4445 = vmatpush1.bf16.msra.mxu0 0
    %4446 = vmatprep.subr.bf16.mxu0 0
    %4447 = vmatpush1.bf16.msra.mxu0 0
    %4448 = vmatprep.subr.bf16.mxu0 0
    %4449 = vmatpush1.bf16.msra.mxu0 0
    %4450 = vmatprep.mubr.bf16.mxu0 0
    %4451 = vmatmul.mubr.bf16.gmra.mrb[0].mxu0 %v4364
    %v4452 = vpop.f32.mrb[0].mxu0
    %v4453 = vadd.f32 0.0, %v4452
    %v4454 = vpop.f32.mrb[0].mxu0
    %v4455 = vpop.f32.mrb[0].mxu0
    %v4456 = vadd.f32 0.0, %v4455
    %v4457 = vpop.f32.mrb[0].mxu0
    %4458 = vdwg.mxu0
    %v4459 = vadd.f32 %v4337, %v4410
    %v4460 = vadd.f32 %v4338, %v4412
    %v4461 = vadd.f32 %v4339, %v4453
    %v4462 = vadd.f32 %v4340, %v4414
    %v4463 = vadd.f32 %v4341, %v4416
    %v4464 = vadd.f32 %v4342, %v4456
    %s4465 = scalar_lea.vmem [#allocation13], 160
    %v4466 = vld [vmem:[%s4465] sm:$0xf]
    %v4467 = vld [vmem:[%s4465 + $0x4] sm:$0x1]
    %v4470 = vunpack.c.l.b16 %v4466
    %v4471 = vunpack.c.l.b16 %v4467
    %v4472 = vpack.c.b16 %v4471, %v4470
    %4473 = vrot.lane.b32.xlu0 %v3619, 82
    %v4474 = vpop.permute.xlu0 %4473
    %4475 = vrot.lane.b32.xlu0 %v3620, 82
    %v4476 = vpop.permute.xlu0 %4475
    %4477 = vrot.lane.b32.xlu0 %v3621, 82
    %v4478 = vpop.permute.xlu0 %4477
    %4479 = vrot.lane.b32.xlu0 %v3622, 82
    %v4480 = vpop.permute.xlu0 %4479
    %vm4481 = vcmask 670720
    %v4482 = vsel %vm4481, %v4474, %v4476
    %v4483 = vsel %vm4481, %v4476, %v4478
    %v4484 = vsel %vm4481, %v4478, %v4480
    %v4486 = vsel %vm778, %v4472, 0
    %v4489 = vand.u32 %v4482, %v785
    %v4492 = vand.u32 %v4483, %v785
    %v4495 = vand.u32 %v4484, %v785
    %4497 = vmatprep.subr.bf16.mxu0 %v4492
    %4498 = vmatpush1.bf16.msra.mxu0 %v4489
    %4499 = vmatprep.subr.bf16.mxu0 0
    %4500 = vmatpush1.bf16.msra.mxu0 0
    %4501 = vmatprep.subr.bf16.mxu0 0
    %4502 = vmatpush1.bf16.msra.mxu0 0
    %4503 = vmatprep.subr.bf16.mxu0 0
    %4504 = vmatpush1.bf16.msra.mxu0 0
    %4505 = vmatprep.subr.bf16.mxu0 0
    %4506 = vmatpush1.bf16.msra.mxu0 0
    %4507 = vmatprep.subr.bf16.mxu0 0
    %4508 = vmatpush1.bf16.msra.mxu0 0
    %4509 = vmatprep.subr.bf16.mxu0 0
    %4510 = vmatpush1.bf16.msra.mxu0 0
    %4511 = vmatprep.subr.bf16.mxu0 0
    %4512 = vmatpush1.bf16.msra.mxu0 0
    %4513 = vmatprep.subr.bf16.mxu0 0
    %4514 = vmatpush1.bf16.msra.mxu0 0
    %4515 = vmatprep.subr.bf16.mxu0 0
    %4516 = vmatpush1.bf16.msra.mxu0 0
    %4517 = vmatprep.subr.bf16.mxu0 0
    %4518 = vmatpush1.bf16.msra.mxu0 0
    %4519 = vmatprep.subr.bf16.mxu0 0
    %4520 = vmatpush1.bf16.msra.mxu0 0
    %4521 = vmatprep.subr.bf16.mxu0 0
    %4522 = vmatpush1.bf16.msra.mxu0 0
    %4523 = vmatprep.subr.bf16.mxu0 0
    %4524 = vmatpush1.bf16.msra.mxu0 0
    %4525 = vmatprep.subr.bf16.mxu0 0
    %4526 = vmatpush1.bf16.msra.mxu0 0
    %4527 = vmatprep.subr.bf16.mxu0 0
    %4528 = vmatpush1.bf16.msra.mxu0 0
    %4529 = vmatprep.mubr.bf16.mxu0 0
    %4530 = vmatmul.mubr.bf16.gmra.mrb[0].mxu0 %v4486
    %v4531 = vpop.f32.mrb[0].mxu0
    %v4532 = vadd.f32 0.0, %v4531
    %v4533 = vpop.f32.mrb[0].mxu0
    %v4534 = vadd.f32 0.0, %v4533
    %v4535 = vpop.f32.mrb[0].mxu0
    %v4536 = vadd.f32 0.0, %v4535
    %v4537 = vpop.f32.mrb[0].mxu0
    %v4538 = vadd.f32 0.0, %v4537
    %4539 = vdwg.mxu0
    %4540 = vmatprep.subr.bf16.mxu0 0
    %4541 = vmatpush1.bf16.msra.mxu0 %v4495
    %4542 = vmatprep.subr.bf16.mxu0 0
    %4543 = vmatpush1.bf16.msra.mxu0 0
    %4544 = vmatprep.subr.bf16.mxu0 0
    %4545 = vmatpush1.bf16.msra.mxu0 0
    %4546 = vmatprep.subr.bf16.mxu0 0
    %4547 = vmatpush1.bf16.msra.mxu0 0
    %4548 = vmatprep.subr.bf16.mxu0 0
    %4549 = vmatpush1.bf16.msra.mxu0 0
    %4550 = vmatprep.subr.bf16.mxu0 0
    %4551 = vmatpush1.bf16.msra.mxu0 0
    %4552 = vmatprep.subr.bf16.mxu0 0
    %4553 = vmatpush1.bf16.msra.mxu0 0
    %4554 = vmatprep.subr.bf16.mxu0 0
    %4555 = vmatpush1.bf16.msra.mxu0 0
    %4556 = vmatprep.subr.bf16.mxu0 0
    %4557 = vmatpush1.bf16.msra.mxu0 0
    %4558 = vmatprep.subr.bf16.mxu0 0
    %4559 = vmatpush1.bf16.msra.mxu0 0
    %4560 = vmatprep.subr.bf16.mxu0 0
    %4561 = vmatpush1.bf16.msra.mxu0 0
    %4562 = vmatprep.subr.bf16.mxu0 0
    %4563 = vmatpush1.bf16.msra.mxu0 0
    %4564 = vmatprep.subr.bf16.mxu0 0
    %4565 = vmatpush1.bf16.msra.mxu0 0
    %4566 = vmatprep.subr.bf16.mxu0 0
    %4567 = vmatpush1.bf16.msra.mxu0 0
    %4568 = vmatprep.subr.bf16.mxu0 0
    %4569 = vmatpush1.bf16.msra.mxu0 0
    %4570 = vmatprep.subr.bf16.mxu0 0
    %4571 = vmatpush1.bf16.msra.mxu0 0
    %4572 = vmatprep.mubr.bf16.mxu0 0
    %4573 = vmatmul.mubr.bf16.gmra.mrb[0].mxu0 %v4486
    %v4574 = vpop.f32.mrb[0].mxu0
    %v4575 = vadd.f32 0.0, %v4574
    %v4576 = vpop.f32.mrb[0].mxu0
    %v4577 = vpop.f32.mrb[0].mxu0
    %v4578 = vadd.f32 0.0, %v4577
    %v4579 = vpop.f32.mrb[0].mxu0
    %4580 = vdwg.mxu0
    %v4581 = vadd.f32 %v4459, %v4532
    %v4582 = vadd.f32 %v4460, %v4534
    %v4583 = vadd.f32 %v4461, %v4575
    %v4584 = vadd.f32 %v4462, %v4536
    %v4585 = vadd.f32 %v4463, %v4538
    %v4586 = vadd.f32 %v4464, %v4578
    %s4587 = scalar_lea.vmem [#allocation13], 168
    %v4588 = vld [vmem:[%s4587] sm:$0xf]
    %v4589 = vld [vmem:[%s4587 + $0x4] sm:$0x1]
    %v4592 = vunpack.c.l.b16 %v4588
    %v4593 = vunpack.c.l.b16 %v4589
    %v4594 = vpack.c.b16 %v4593, %v4592
    %4595 = vrot.lane.b32.xlu0 %v3619, 81
    %v4596 = vpop.permute.xlu0 %4595
    %4597 = vrot.lane.b32.xlu0 %v3620, 81
    %v4598 = vpop.permute.xlu0 %4597
    %4599 = vrot.lane.b32.xlu0 %v3621, 81
    %v4600 = vpop.permute.xlu0 %4599
    %4601 = vrot.lane.b32.xlu0 %v3622, 81
    %v4602 = vpop.permute.xlu0 %4601
    %vm4603 = vcmask 662528
    %v4604 = vsel %vm4603, %v4596, %v4598
    %v4605 = vsel %vm4603, %v4598, %v4600
    %v4606 = vsel %vm4603, %v4600, %v4602
    %v4608 = vsel %vm778, %v4594, 0
    %v4611 = vand.u32 %v4604, %v785
    %v4614 = vand.u32 %v4605, %v785
    %v4617 = vand.u32 %v4606, %v785
    %4619 = vmatprep.subr.bf16.mxu0 %v4614
    %4620 = vmatpush1.bf16.msra.mxu0 %v4611
    %4621 = vmatprep.subr.bf16.mxu0 0
    %4622 = vmatpush1.bf16.msra.mxu0 0
    %4623 = vmatprep.subr.bf16.mxu0 0
    %4624 = vmatpush1.bf16.msra.mxu0 0
    %4625 = vmatprep.subr.bf16.mxu0 0
    %4626 = vmatpush1.bf16.msra.mxu0 0
    %4627 = vmatprep.subr.bf16.mxu0 0
    %4628 = vmatpush1.bf16.msra.mxu0 0
    %4629 = vmatprep.subr.bf16.mxu0 0
    %4630 = vmatpush1.bf16.msra.mxu0 0
    %4631 = vmatprep.subr.bf16.mxu0 0
    %4632 = vmatpush1.bf16.msra.mxu0 0
    %4633 = vmatprep.subr.bf16.mxu0 0
    %4634 = vmatpush1.bf16.msra.mxu0 0
    %4635 = vmatprep.subr.bf16.mxu0 0
    %4636 = vmatpush1.bf16.msra.mxu0 0
    %4637 = vmatprep.subr.bf16.mxu0 0
    %4638 = vmatpush1.bf16.msra.mxu0 0
    %4639 = vmatprep.subr.bf16.mxu0 0
    %4640 = vmatpush1.bf16.msra.mxu0 0
    %4641 = vmatprep.subr.bf16.mxu0 0
    %4642 = vmatpush1.bf16.msra.mxu0 0
    %4643 = vmatprep.subr.bf16.mxu0 0
    %4644 = vmatpush1.bf16.msra.mxu0 0
    %4645 = vmatprep.subr.bf16.mxu0 0
    %4646 = vmatpush1.bf16.msra.mxu0 0
    %4647 = vmatprep.subr.bf16.mxu0 0
    %4648 = vmatpush1.bf16.msra.mxu0 0
    %4649 = vmatprep.subr.bf16.mxu0 0
    %4650 = vmatpush1.bf16.msra.mxu0 0
    %4651 = vmatprep.mubr.bf16.mxu0 0
    %4652 = vmatmul.mubr.bf16.gmra.mrb[0].mxu0 %v4608
    %v4653 = vpop.f32.mrb[0].mxu0
    %v4654 = vadd.f32 0.0, %v4653
    %v4655 = vpop.f32.mrb[0].mxu0
    %v4656 = vadd.f32 0.0, %v4655
    %v4657 = vpop.f32.mrb[0].mxu0
    %v4658 = vadd.f32 0.0, %v4657
    %v4659 = vpop.f32.mrb[0].mxu0
    %v4660 = vadd.f32 0.0, %v4659
    %4661 = vdwg.mxu0
    %4662 = vmatprep.subr.bf16.mxu0 0
    %4663 = vmatpush1.bf16.msra.mxu0 %v4617
    %4664 = vmatprep.subr.bf16.mxu0 0
    %4665 = vmatpush1.bf16.msra.mxu0 0
    %4666 = vmatprep.subr.bf16.mxu0 0
    %4667 = vmatpush1.bf16.msra.mxu0 0
    %4668 = vmatprep.subr.bf16.mxu0 0
    %4669 = vmatpush1.bf16.msra.mxu0 0
    %4670 = vmatprep.subr.bf16.mxu0 0
    %4671 = vmatpush1.bf16.msra.mxu0 0
    %4672 = vmatprep.subr.bf16.mxu0 0
    %4673 = vmatpush1.bf16.msra.mxu0 0
    %4674 = vmatprep.subr.bf16.mxu0 0
    %4675 = vmatpush1.bf16.msra.mxu0 0
    %4676 = vmatprep.subr.bf16.mxu0 0
    %4677 = vmatpush1.bf16.msra.mxu0 0
    %4678 = vmatprep.subr.bf16.mxu0 0
    %4679 = vmatpush1.bf16.msra.mxu0 0
    %4680 = vmatprep.subr.bf16.mxu0 0
    %4681 = vmatpush1.bf16.msra.mxu0 0
    %4682 = vmatprep.subr.bf16.mxu0 0
    %4683 = vmatpush1.bf16.msra.mxu0 0
    %4684 = vmatprep.subr.bf16.mxu0 0
    %4685 = vmatpush1.bf16.msra.mxu0 0
    %4686 = vmatprep.subr.bf16.mxu0 0
    %4687 = vmatpush1.bf16.msra.mxu0 0
    %4688 = vmatprep.subr.bf16.mxu0 0
    %4689 = vmatpush1.bf16.msra.mxu0 0
    %4690 = vmatprep.subr.bf16.mxu0 0
    %4691 = vmatpush1.bf16.msra.mxu0 0
    %4692 = vmatprep.subr.bf16.mxu0 0
    %4693 = vmatpush1.bf16.msra.mxu0 0
    %4694 = vmatprep.mubr.bf16.mxu0 0
    %4695 = vmatmul.mubr.bf16.gmra.mrb[0].mxu0 %v4608
    %v4696 = vpop.f32.mrb[0].mxu0
    %v4697 = vadd.f32 0.0, %v4696
    %v4698 = vpop.f32.mrb[0].mxu0
    %v4699 = vpop.f32.mrb[0].mxu0
    %v4700 = vadd.f32 0.0, %v4699
    %v4701 = vpop.f32.mrb[0].mxu0
    %4702 = vdwg.mxu0
    %v4703 = vadd.f32 %v4581, %v4654
    %v4704 = vadd.f32 %v4582, %v4656
    %v4705 = vadd.f32 %v4583, %v4697
    %v4706 = vadd.f32 %v4584, %v4658
    %v4707 = vadd.f32 %v4585, %v4660
    %v4708 = vadd.f32 %v4586, %v4700
    %s4709 = scalar_lea.vmem [#allocation13], 176
    %v4710 = vld [vmem:[%s4709] sm:$0xf]
    %v4711 = vld [vmem:[%s4709 + $0x4] sm:$0x1]
    %v4714 = vunpack.c.l.b16 %v4710
    %v4715 = vunpack.c.l.b16 %v4711
    %v4716 = vpack.c.b16 %v4715, %v4714
    %4717 = vrot.lane.b32.xlu0 %v3619, 80
    %v4718 = vpop.permute.xlu0 %4717
    %4719 = vrot.lane.b32.xlu0 %v3620, 80
    %v4720 = vpop.permute.xlu0 %4719
    %4721 = vrot.lane.b32.xlu0 %v3621, 80
    %v4722 = vpop.permute.xlu0 %4721
    %4723 = vrot.lane.b32.xlu0 %v3622, 80
    %v4724 = vpop.permute.xlu0 %4723
    %vm4725 = vcmask 654336
    %v4726 = vsel %vm4725, %v4718, %v4720
    %v4727 = vsel %vm4725, %v4720, %v4722
    %v4728 = vsel %vm4725, %v4722, %v4724
    %v4730 = vsel %vm778, %v4716, 0
    %v4733 = vand.u32 %v4726, %v785
    %v4736 = vand.u32 %v4727, %v785
    %v4739 = vand.u32 %v4728, %v785
    %4741 = vmatprep.subr.bf16.mxu0 %v4736
    %4742 = vmatpush1.bf16.msra.mxu0 %v4733
    %4743 = vmatprep.subr.bf16.mxu0 0
    %4744 = vmatpush1.bf16.msra.mxu0 0
    %4745 = vmatprep.subr.bf16.mxu0 0
    %4746 = vmatpush1.bf16.msra.mxu0 0
    %4747 = vmatprep.subr.bf16.mxu0 0
    %4748 = vmatpush1.bf16.msra.mxu0 0
    %4749 = vmatprep.subr.bf16.mxu0 0
    %4750 = vmatpush1.bf16.msra.mxu0 0
    %4751 = vmatprep.subr.bf16.mxu0 0
    %4752 = vmatpush1.bf16.msra.mxu0 0
    %4753 = vmatprep.subr.bf16.mxu0 0
    %4754 = vmatpush1.bf16.msra.mxu0 0
    %4755 = vmatprep.subr.bf16.mxu0 0
    %4756 = vmatpush1.bf16.msra.mxu0 0
    %4757 = vmatprep.subr.bf16.mxu0 0
    %4758 = vmatpush1.bf16.msra.mxu0 0
    %4759 = vmatprep.subr.bf16.mxu0 0
    %4760 = vmatpush1.bf16.msra.mxu0 0
    %4761 = vmatprep.subr.bf16.mxu0 0
    %4762 = vmatpush1.bf16.msra.mxu0 0
    %4763 = vmatprep.subr.bf16.mxu0 0
    %4764 = vmatpush1.bf16.msra.mxu0 0
    %4765 = vmatprep.subr.bf16.mxu0 0
    %4766 = vmatpush1.bf16.msra.mxu0 0
    %4767 = vmatprep.subr.bf16.mxu0 0
    %4768 = vmatpush1.bf16.msra.mxu0 0
    %4769 = vmatprep.subr.bf16.mxu0 0
    %4770 = vmatpush1.bf16.msra.mxu0 0
    %4771 = vmatprep.subr.bf16.mxu0 0
    %4772 = vmatpush1.bf16.msra.mxu0 0
    %4773 = vmatprep.mubr.bf16.mxu0 0
    %4774 = vmatmul.mubr.bf16.gmra.mrb[0].mxu0 %v4730
    %v4775 = vpop.f32.mrb[0].mxu0
    %v4776 = vadd.f32 0.0, %v4775
    %v4777 = vpop.f32.mrb[0].mxu0
    %v4778 = vadd.f32 0.0, %v4777
    %v4779 = vpop.f32.mrb[0].mxu0
    %v4780 = vadd.f32 0.0, %v4779
    %v4781 = vpop.f32.mrb[0].mxu0
    %v4782 = vadd.f32 0.0, %v4781
    %4783 = vdwg.mxu0
    %4784 = vmatprep.subr.bf16.mxu0 0
    %4785 = vmatpush1.bf16.msra.mxu0 %v4739
    %4786 = vmatprep.subr.bf16.mxu0 0
    %4787 = vmatpush1.bf16.msra.mxu0 0
    %4788 = vmatprep.subr.bf16.mxu0 0
    %4789 = vmatpush1.bf16.msra.mxu0 0
    %4790 = vmatprep.subr.bf16.mxu0 0
    %4791 = vmatpush1.bf16.msra.mxu0 0
    %4792 = vmatprep.subr.bf16.mxu0 0
    %4793 = vmatpush1.bf16.msra.mxu0 0
    %4794 = vmatprep.subr.bf16.mxu0 0
    %4795 = vmatpush1.bf16.msra.mxu0 0
    %4796 = vmatprep.subr.bf16.mxu0 0
    %4797 = vmatpush1.bf16.msra.mxu0 0
    %4798 = vmatprep.subr.bf16.mxu0 0
    %4799 = vmatpush1.bf16.msra.mxu0 0
    %4800 = vmatprep.subr.bf16.mxu0 0
    %4801 = vmatpush1.bf16.msra.mxu0 0
    %4802 = vmatprep.subr.bf16.mxu0 0
    %4803 = vmatpush1.bf16.msra.mxu0 0
    %4804 = vmatprep.subr.bf16.mxu0 0
    %4805 = vmatpush1.bf16.msra.mxu0 0
    %4806 = vmatprep.subr.bf16.mxu0 0
    %4807 = vmatpush1.bf16.msra.mxu0 0
    %4808 = vmatprep.subr.bf16.mxu0 0
    %4809 = vmatpush1.bf16.msra.mxu0 0
    %4810 = vmatprep.subr.bf16.mxu0 0
    %4811 = vmatpush1.bf16.msra.mxu0 0
    %4812 = vmatprep.subr.bf16.mxu0 0
    %4813 = vmatpush1.bf16.msra.mxu0 0
    %4814 = vmatprep.subr.bf16.mxu0 0
    %4815 = vmatpush1.bf16.msra.mxu0 0
    %4816 = vmatprep.mubr.bf16.mxu0 0
    %4817 = vmatmul.mubr.bf16.gmra.mrb[0].mxu0 %v4730
    %v4818 = vpop.f32.mrb[0].mxu0
    %v4819 = vadd.f32 0.0, %v4818
    %v4820 = vpop.f32.mrb[0].mxu0
    %v4821 = vpop.f32.mrb[0].mxu0
    %v4822 = vadd.f32 0.0, %v4821
    %v4823 = vpop.f32.mrb[0].mxu0
    %4824 = vdwg.mxu0
    %v4825 = vadd.f32 %v4703, %v4776
    %v4826 = vadd.f32 %v4704, %v4778
    %v4827 = vadd.f32 %v4705, %v4819
    %v4828 = vadd.f32 %v4706, %v4780
    %v4829 = vadd.f32 %v4707, %v4782
    %v4830 = vadd.f32 %v4708, %v4822
    %s4831 = scalar_lea.vmem [#allocation13], 184
    %v4832 = vld [vmem:[%s4831] sm:$0xf]
    %v4833 = vld [vmem:[%s4831 + $0x4] sm:$0x1]
    %v4836 = vunpack.c.l.b16 %v4832
    %v4837 = vunpack.c.l.b16 %v4833
    %v4838 = vpack.c.b16 %v4837, %v4836
    %4839 = vrot.lane.b32.xlu0 %v3619, 79
    %v4840 = vpop.permute.xlu0 %4839
    %4841 = vrot.lane.b32.xlu0 %v3620, 79
    %v4842 = vpop.permute.xlu0 %4841
    %4843 = vrot.lane.b32.xlu0 %v3621, 79
    %v4844 = vpop.permute.xlu0 %4843
    %4845 = vrot.lane.b32.xlu0 %v3622, 79
    %v4846 = vpop.permute.xlu0 %4845
    %vm4847 = vcmask 646144
    %v4848 = vsel %vm4847, %v4840, %v4842
    %v4849 = vsel %vm4847, %v4842, %v4844
    %v4850 = vsel %vm4847, %v4844, %v4846
    %v4852 = vsel %vm778, %v4838, 0
    %v4855 = vand.u32 %v4848, %v785
    %v4858 = vand.u32 %v4849, %v785
    %v4861 = vand.u32 %v4850, %v785
    %4863 = vmatprep.subr.bf16.mxu0 %v4858
    %4864 = vmatpush1.bf16.msra.mxu0 %v4855
    %4865 = vmatprep.subr.bf16.mxu0 0
    %4866 = vmatpush1.bf16.msra.mxu0 0
    %4867 = vmatprep.subr.bf16.mxu0 0
    %4868 = vmatpush1.bf16.msra.mxu0 0
    %4869 = vmatprep.subr.bf16.mxu0 0
    %4870 = vmatpush1.bf16.msra.mxu0 0
    %4871 = vmatprep.subr.bf16.mxu0 0
    %4872 = vmatpush1.bf16.msra.mxu0 0
    %4873 = vmatprep.subr.bf16.mxu0 0
    %4874 = vmatpush1.bf16.msra.mxu0 0
    %4875 = vmatprep.subr.bf16.mxu0 0
    %4876 = vmatpush1.bf16.msra.mxu0 0
    %4877 = vmatprep.subr.bf16.mxu0 0
    %4878 = vmatpush1.bf16.msra.mxu0 0
    %4879 = vmatprep.subr.bf16.mxu0 0
    %4880 = vmatpush1.bf16.msra.mxu0 0
    %4881 = vmatprep.subr.bf16.mxu0 0
    %4882 = vmatpush1.bf16.msra.mxu0 0
    %4883 = vmatprep.subr.bf16.mxu0 0
    %4884 = vmatpush1.bf16.msra.mxu0 0
    %4885 = vmatprep.subr.bf16.mxu0 0
    %4886 = vmatpush1.bf16.msra.mxu0 0
    %4887 = vmatprep.subr.bf16.mxu0 0
    %4888 = vmatpush1.bf16.msra.mxu0 0
    %4889 = vmatprep.subr.bf16.mxu0 0
    %4890 = vmatpush1.bf16.msra.mxu0 0
    %4891 = vmatprep.subr.bf16.mxu0 0
    %4892 = vmatpush1.bf16.msra.mxu0 0
    %4893 = vmatprep.subr.bf16.mxu0 0
    %4894 = vmatpush1.bf16.msra.mxu0 0
    %4895 = vmatprep.mubr.bf16.mxu0 0
    %4896 = vmatmul.mubr.bf16.gmra.mrb[0].mxu0 %v4852
    %v4897 = vpop.f32.mrb[0].mxu0
    %v4898 = vadd.f32 0.0, %v4897
    %v4899 = vpop.f32.mrb[0].mxu0
    %v4900 = vadd.f32 0.0, %v4899
    %v4901 = vpop.f32.mrb[0].mxu0
    %v4902 = vadd.f32 0.0, %v4901
    %v4903 = vpop.f32.mrb[0].mxu0
    %v4904 = vadd.f32 0.0, %v4903
    %4905 = vdwg.mxu0
    %4906 = vmatprep.subr.bf16.mxu0 0
    %4907 = vmatpush1.bf16.msra.mxu0 %v4861
    %4908 = vmatprep.subr.bf16.mxu0 0
    %4909 = vmatpush1.bf16.msra.mxu0 0
    %4910 = vmatprep.subr.bf16.mxu0 0
    %4911 = vmatpush1.bf16.msra.mxu0 0
    %4912 = vmatprep.subr.bf16.mxu0 0
    %4913 = vmatpush1.bf16.msra.mxu0 0
    %4914 = vmatprep.subr.bf16.mxu0 0
    %4915 = vmatpush1.bf16.msra.mxu0 0
    %4916 = vmatprep.subr.bf16.mxu0 0
    %4917 = vmatpush1.bf16.msra.mxu0 0
    %4918 = vmatprep.subr.bf16.mxu0 0
    %4919 = vmatpush1.bf16.msra.mxu0 0
    %4920 = vmatprep.subr.bf16.mxu0 0
    %4921 = vmatpush1.bf16.msra.mxu0 0
    %4922 = vmatprep.subr.bf16.mxu0 0
    %4923 = vmatpush1.bf16.msra.mxu0 0
    %4924 = vmatprep.subr.bf16.mxu0 0
    %4925 = vmatpush1.bf16.msra.mxu0 0
    %4926 = vmatprep.subr.bf16.mxu0 0
    %4927 = vmatpush1.bf16.msra.mxu0 0
    %4928 = vmatprep.subr.bf16.mxu0 0
    %4929 = vmatpush1.bf16.msra.mxu0 0
    %4930 = vmatprep.subr.bf16.mxu0 0
    %4931 = vmatpush1.bf16.msra.mxu0 0
    %4932 = vmatprep.subr.bf16.mxu0 0
    %4933 = vmatpush1.bf16.msra.mxu0 0
    %4934 = vmatprep.subr.bf16.mxu0 0
    %4935 = vmatpush1.bf16.msra.mxu0 0
    %4936 = vmatprep.subr.bf16.mxu0 0
    %4937 = vmatpush1.bf16.msra.mxu0 0
    %4938 = vmatprep.mubr.bf16.mxu0 0
    %4939 = vmatmul.mubr.bf16.gmra.mrb[0].mxu0 %v4852
    %v4940 = vpop.f32.mrb[0].mxu0
    %v4941 = vadd.f32 0.0, %v4940
    %v4942 = vpop.f32.mrb[0].mxu0
    %v4943 = vpop.f32.mrb[0].mxu0
    %v4944 = vadd.f32 0.0, %v4943
    %v4945 = vpop.f32.mrb[0].mxu0
    %4946 = vdwg.mxu0
    %v4947 = vadd.f32 %v4825, %v4898
    %v4948 = vadd.f32 %v4826, %v4900
    %v4949 = vadd.f32 %v4827, %v4941
    %v4950 = vadd.f32 %v4828, %v4902
    %v4951 = vadd.f32 %v4829, %v4904
    %v4952 = vadd.f32 %v4830, %v4944
    %s4953 = scalar_lea.vmem [#allocation13], 192
    %v4954 = vld [vmem:[%s4953] sm:$0xf]
    %v4955 = vld [vmem:[%s4953 + $0x4] sm:$0x1]
    %v4958 = vunpack.c.l.b16 %v4954
    %v4959 = vunpack.c.l.b16 %v4955
    %v4960 = vpack.c.b16 %v4959, %v4958
    %4961 = vrot.lane.b32.xlu0 %v3619, 78
    %v4962 = vpop.permute.xlu0 %4961
    %4963 = vrot.lane.b32.xlu0 %v3620, 78
    %v4964 = vpop.permute.xlu0 %4963
    %4965 = vrot.lane.b32.xlu0 %v3621, 78
    %v4966 = vpop.permute.xlu0 %4965
    %4967 = vrot.lane.b32.xlu0 %v3622, 78
    %v4968 = vpop.permute.xlu0 %4967
    %vm4969 = vcmask 637952
    %v4970 = vsel %vm4969, %v4962, %v4964
    %v4971 = vsel %vm4969, %v4964, %v4966
    %v4972 = vsel %vm4969, %v4966, %v4968
    %v4974 = vsel %vm778, %v4960, 0
    %v4977 = vand.u32 %v4970, %v785
    %v4980 = vand.u32 %v4971, %v785
    %v4983 = vand.u32 %v4972, %v785
    %4985 = vmatprep.subr.bf16.mxu0 %v4980
    %4986 = vmatpush1.bf16.msra.mxu0 %v4977
    %4987 = vmatprep.subr.bf16.mxu0 0
    %4988 = vmatpush1.bf16.msra.mxu0 0
    %4989 = vmatprep.subr.bf16.mxu0 0
    %4990 = vmatpush1.bf16.msra.mxu0 0
    %4991 = vmatprep.subr.bf16.mxu0 0
    %4992 = vmatpush1.bf16.msra.mxu0 0
    %4993 = vmatprep.subr.bf16.mxu0 0
    %4994 = vmatpush1.bf16.msra.mxu0 0
    %4995 = vmatprep.subr.bf16.mxu0 0
    %4996 = vmatpush1.bf16.msra.mxu0 0
    %4997 = vmatprep.subr.bf16.mxu0 0
    %4998 = vmatpush1.bf16.msra.mxu0 0
    %4999 = vmatprep.subr.bf16.mxu0 0
    %5000 = vmatpush1.bf16.msra.mxu0 0
    %5001 = vmatprep.subr.bf16.mxu0 0
    %5002 = vmatpush1.bf16.msra.mxu0 0
    %5003 = vmatprep.subr.bf16.mxu0 0
    %5004 = vmatpush1.bf16.msra.mxu0 0
    %5005 = vmatprep.subr.bf16.mxu0 0
    %5006 = vmatpush1.bf16.msra.mxu0 0
    %5007 = vmatprep.subr.bf16.mxu0 0
    %5008 = vmatpush1.bf16.msra.mxu0 0
    %5009 = vmatprep.subr.bf16.mxu0 0
    %5010 = vmatpush1.bf16.msra.mxu0 0
    %5011 = vmatprep.subr.bf16.mxu0 0
    %5012 = vmatpush1.bf16.msra.mxu0 0
    %5013 = vmatprep.subr.bf16.mxu0 0
    %5014 = vmatpush1.bf16.msra.mxu0 0
    %5015 = vmatprep.subr.bf16.mxu0 0
    %5016 = vmatpush1.bf16.msra.mxu0 0
    %5017 = vmatprep.mubr.bf16.mxu0 0
    %5018 = vmatmul.mubr.bf16.gmra.mrb[0].mxu0 %v4974
    %v5019 = vpop.f32.mrb[0].mxu0
    %v5020 = vadd.f32 0.0, %v5019
    %v5021 = vpop.f32.mrb[0].mxu0
    %v5022 = vadd.f32 0.0, %v5021
    %v5023 = vpop.f32.mrb[0].mxu0
    %v5024 = vadd.f32 0.0, %v5023
    %v5025 = vpop.f32.mrb[0].mxu0
    %v5026 = vadd.f32 0.0, %v5025
    %5027 = vdwg.mxu0
    %5028 = vmatprep.subr.bf16.mxu0 0
    %5029 = vmatpush1.bf16.msra.mxu0 %v4983
    %5030 = vmatprep.subr.bf16.mxu0 0
    %5031 = vmatpush1.bf16.msra.mxu0 0
    %5032 = vmatprep.subr.bf16.mxu0 0
    %5033 = vmatpush1.bf16.msra.mxu0 0
    %5034 = vmatprep.subr.bf16.mxu0 0
    %5035 = vmatpush1.bf16.msra.mxu0 0
    %5036 = vmatprep.subr.bf16.mxu0 0
    %5037 = vmatpush1.bf16.msra.mxu0 0
    %5038 = vmatprep.subr.bf16.mxu0 0
    %5039 = vmatpush1.bf16.msra.mxu0 0
    %5040 = vmatprep.subr.bf16.mxu0 0
    %5041 = vmatpush1.bf16.msra.mxu0 0
    %5042 = vmatprep.subr.bf16.mxu0 0
    %5043 = vmatpush1.bf16.msra.mxu0 0
    %5044 = vmatprep.subr.bf16.mxu0 0
    %5045 = vmatpush1.bf16.msra.mxu0 0
    %5046 = vmatprep.subr.bf16.mxu0 0
    %5047 = vmatpush1.bf16.msra.mxu0 0
    %5048 = vmatprep.subr.bf16.mxu0 0
    %5049 = vmatpush1.bf16.msra.mxu0 0
    %5050 = vmatprep.subr.bf16.mxu0 0
    %5051 = vmatpush1.bf16.msra.mxu0 0
    %5052 = vmatprep.subr.bf16.mxu0 0
    %5053 = vmatpush1.bf16.msra.mxu0 0
    %5054 = vmatprep.subr.bf16.mxu0 0
    %5055 = vmatpush1.bf16.msra.mxu0 0
    %5056 = vmatprep.subr.bf16.mxu0 0
    %5057 = vmatpush1.bf16.msra.mxu0 0
    %5058 = vmatprep.subr.bf16.mxu0 0
    %5059 = vmatpush1.bf16.msra.mxu0 0
    %5060 = vmatprep.mubr.bf16.mxu0 0
    %5061 = vmatmul.mubr.bf16.gmra.mrb[0].mxu0 %v4974
    %v5062 = vpop.f32.mrb[0].mxu0
    %v5063 = vadd.f32 0.0, %v5062
    %v5064 = vpop.f32.mrb[0].mxu0
    %v5065 = vpop.f32.mrb[0].mxu0
    %v5066 = vadd.f32 0.0, %v5065
    %v5067 = vpop.f32.mrb[0].mxu0
    %5068 = vdwg.mxu0
    %v5069 = vadd.f32 %v4947, %v5020
    %v5070 = vadd.f32 %v4948, %v5022
    %v5071 = vadd.f32 %v4949, %v5063
    %v5072 = vadd.f32 %v4950, %v5024
    %v5073 = vadd.f32 %v4951, %v5026
    %v5074 = vadd.f32 %v4952, %v5066
    %5076 = vset.pattern.permute.xlu0 0
    %5077 = vperm.xlu0 %5076, %v246
    %v5078 = vpop.permute.xlu0 %5077
    %5081 = vset.pattern.permute.xlu0 0
    %5082 = vperm.xlu0 %5081, %v247
    %v5083 = vpop.permute.xlu0 %5082
    %v5085 = vadd.f32 %v5069, %v5078
    %v5086 = vadd.f32 %v5070, %v5078
    %v5087 = vadd.f32 %v5071, %v5078
    %v5088 = vadd.f32 %v5072, %v5083
    %v5089 = vadd.f32 %v5073, %v5083
    %v5090 = vadd.f32 %v5074, %v5083
    %v5091 = vtanh.pop %v5085
    %v5092 = vtanh.pop %v5086
    %v5093 = vtanh.pop %v5087
    %v5094 = vtanh.pop %v5088
    %v5095 = vtanh.pop %v5089
    %v5096 = vtanh.pop %v5090
    %v5097 = vpack.c.bf16 %v5094, %v5091
    %v5098 = vpack.c.bf16 %v5095, %v5092
    %v5099 = vpack.c.bf16 %v5096, %v5093
    %v5101 = vsel %vm1881, %v250, 0
    %v5104 = vsel %vm1885, %v5097, 0
    %v5107 = vsel %vm1885, %v5098, 0
    %v5110 = vsel %vm1885, %v5099, 0
    %5112 = vmatprep.subr.bf16.mxu0 %v5107
    %5113 = vmatpush1.bf16.msra.mxu0 %v5104
    %5114 = vmatprep.subr.bf16.mxu0 0
    %5115 = vmatpush1.bf16.msra.mxu0 0
    %5116 = vmatprep.subr.bf16.mxu0 0
    %5117 = vmatpush1.bf16.msra.mxu0 0
    %5118 = vmatprep.subr.bf16.mxu0 0
    %5119 = vmatpush1.bf16.msra.mxu0 0
    %5120 = vmatprep.subr.bf16.mxu0 0
    %5121 = vmatpush1.bf16.msra.mxu0 0
    %5122 = vmatprep.subr.bf16.mxu0 0
    %5123 = vmatpush1.bf16.msra.mxu0 0
    %5124 = vmatprep.subr.bf16.mxu0 0
    %5125 = vmatpush1.bf16.msra.mxu0 0
    %5126 = vmatprep.subr.bf16.mxu0 0
    %5127 = vmatpush1.bf16.msra.mxu0 0
    %5128 = vmatprep.subr.bf16.mxu0 0
    %5129 = vmatpush1.bf16.msra.mxu0 0
    %5130 = vmatprep.subr.bf16.mxu0 0
    %5131 = vmatpush1.bf16.msra.mxu0 0
    %5132 = vmatprep.subr.bf16.mxu0 0
    %5133 = vmatpush1.bf16.msra.mxu0 0
    %5134 = vmatprep.subr.bf16.mxu0 0
    %5135 = vmatpush1.bf16.msra.mxu0 0
    %5136 = vmatprep.subr.bf16.mxu0 0
    %5137 = vmatpush1.bf16.msra.mxu0 0
    %5138 = vmatprep.subr.bf16.mxu0 0
    %5139 = vmatpush1.bf16.msra.mxu0 0
    %5140 = vmatprep.subr.bf16.mxu0 0
    %5141 = vmatpush1.bf16.msra.mxu0 0
    %5142 = vmatprep.subr.bf16.mxu0 0
    %5143 = vmatpush1.bf16.msra.mxu0 0
    %5144 = vmatprep.mubr.bf16.mxu0 0
    %5145 = vmatmul.mubr.bf16.gmra.mrb[0].mxu0 %v5101
    %v5146 = vpop.f32.mrb[0].mxu0
    %v5147 = vadd.f32 0.0, %v5146
    %v5148 = vpop.f32.mrb[0].mxu0
    %v5149 = vadd.f32 0.0, %v5148
    %v5150 = vpop.f32.mrb[0].mxu0
    %v5151 = vpop.f32.mrb[0].mxu0
    %5152 = vdwg.mxu0
    %5153 = vmatprep.subr.bf16.mxu0 0
    %5154 = vmatpush1.bf16.msra.mxu0 %v5110
    %5155 = vmatprep.subr.bf16.mxu0 0
    %5156 = vmatpush1.bf16.msra.mxu0 0
    %5157 = vmatprep.subr.bf16.mxu0 0
    %5158 = vmatpush1.bf16.msra.mxu0 0
    %5159 = vmatprep.subr.bf16.mxu0 0
    %5160 = vmatpush1.bf16.msra.mxu0 0
    %5161 = vmatprep.subr.bf16.mxu0 0
    %5162 = vmatpush1.bf16.msra.mxu0 0
    %5163 = vmatprep.subr.bf16.mxu0 0
    %5164 = vmatpush1.bf16.msra.mxu0 0
    %5165 = vmatprep.subr.bf16.mxu0 0
    %5166 = vmatpush1.bf16.msra.mxu0 0
    %5167 = vmatprep.subr.bf16.mxu0 0
    %5168 = vmatpush1.bf16.msra.mxu0 0
    %5169 = vmatprep.subr.bf16.mxu0 0
    %5170 = vmatpush1.bf16.msra.mxu0 0
    %5171 = vmatprep.subr.bf16.mxu0 0
    %5172 = vmatpush1.bf16.msra.mxu0 0
    %5173 = vmatprep.subr.bf16.mxu0 0
    %5174 = vmatpush1.bf16.msra.mxu0 0
    %5175 = vmatprep.subr.bf16.mxu0 0
    %5176 = vmatpush1.bf16.msra.mxu0 0
    %5177 = vmatprep.subr.bf16.mxu0 0
    %5178 = vmatpush1.bf16.msra.mxu0 0
    %5179 = vmatprep.subr.bf16.mxu0 0
    %5180 = vmatpush1.bf16.msra.mxu0 0
    %5181 = vmatprep.subr.bf16.mxu0 0
    %5182 = vmatpush1.bf16.msra.mxu0 0
    %5183 = vmatprep.subr.bf16.mxu0 0
    %5184 = vmatpush1.bf16.msra.mxu0 0
    %5185 = vmatprep.mubr.bf16.mxu0 0
    %5186 = vmatmul.mubr.bf16.gmra.mrb[0].mxu0 %v5101
    %v5187 = vpop.f32.mrb[0].mxu0
    %v5188 = vadd.f32 0.0, %v5187
    %v5189 = vpop.f32.mrb[0].mxu0
    %v5190 = vpop.f32.mrb[0].mxu0
    %v5191 = vpop.f32.mrb[0].mxu0
    %5192 = vdwg.mxu0
    %v5193 = vadd.f32 %v1976, %v5147
    %v5194 = vadd.f32 %v1977, %v5149
    %v5195 = vadd.f32 %v1978, %v5188
    %v5196 = vtanh.pop %v5193
    %v5197 = vtanh.pop %v5194
    %v5198 = vtanh.pop %v5195
    %v5199 = vtanh.pop %v5196
    %v5200 = vtanh.pop %v5197
    %v5201 = vtanh.pop %v5198
    %5202 = vst [vmem:[#allocation22] sm:$0xff] %v5199
    %5203 = vst [vmem:[#allocation22 + $0x8] sm:$0xff] %v5200
    %5204 = vst [vmem:[#allocation22 + $0x10] sm:$0xff] %v5201
    %s5205 = scalar_lea.vmem [#allocation4], 16
    %v5206 = vld [vmem:[%s5205] sm:$0xff]
    %v5207 = vld [vmem:[%s5205 + $0x8] sm:$0xff]
    %5210 = vrot.lane.b32.xlu0 %v5206, 127
    %v5211 = vpop.permute.xlu0 %5210
    %5212 = vrot.lane.b32.xlu0 %v5207, 127
    %v5213 = vpop.permute.xlu0 %5212
    %v5214 = vrot.slane %v5211, 4
    %v5215 = vrot.slane %v5213, 4
    %v5216 = vsel %vm277, %v5214, %v5215
    %v5217 = vsel %vm279, %v5211, %v5216
    %v5218 = vsel %vm279, %v5213, %v5215
    %v5221 = vmax.f32 %v5206, %v5217
    %v5222 = vmax.f32 %v5207, %v5218
    %5223 = vrot.lane.b32.xlu0 %v5206, 126
    %v5224 = vpop.permute.xlu0 %5223
    %5225 = vrot.lane.b32.xlu0 %v5207, 126
    %v5226 = vpop.permute.xlu0 %5225
    %v5227 = vrot.slane %v5224, 4
    %v5228 = vrot.slane %v5226, 4
    %v5229 = vsel %vm277, %v5227, %v5228
    %v5230 = vsel %vm293, %v5224, %v5229
    %v5231 = vsel %vm293, %v5226, %v5228
    %v5234 = vmax.f32 %v5221, %v5230
    %v5235 = vmax.f32 %v5222, %v5231
    %5236 = vrot.lane.b32.xlu0 %v5206, 104
    %v5237 = vpop.permute.xlu0 %5236
    %5238 = vrot.lane.b32.xlu0 %v5207, 104
    %v5239 = vpop.permute.xlu0 %5238
    %v5240 = vrot.slane %v5237, 4
    %v5241 = vrot.slane %v5239, 4
    %v5242 = vsel %vm277, %v5240, %v5241
    %v5243 = vsel %vm307, %v5237, %v5242
    %v5244 = vsel %vm307, %v5239, %v5241
    %v5247 = vmax.f32 %v5234, %v5243
    %v5248 = vmax.f32 %v5235, %v5244
    %5249 = vrot.lane.b32.xlu0 %v5206, 103
    %v5250 = vpop.permute.xlu0 %5249
    %5251 = vrot.lane.b32.xlu0 %v5207, 103
    %v5252 = vpop.permute.xlu0 %5251
    %v5253 = vrot.slane %v5250, 4
    %v5254 = vrot.slane %v5252, 4
    %v5255 = vsel %vm277, %v5253, %v5254
    %v5256 = vsel %vm321, %v5250, %v5255
    %v5257 = vsel %vm321, %v5252, %v5254
    %v5260 = vmax.f32 %v5247, %v5256
    %v5261 = vmax.f32 %v5248, %v5257
    %5262 = vrot.lane.b32.xlu0 %v5206, 102
    %v5263 = vpop.permute.xlu0 %5262
    %5264 = vrot.lane.b32.xlu0 %v5207, 102
    %v5265 = vpop.permute.xlu0 %5264
    %v5266 = vrot.slane %v5263, 4
    %v5267 = vrot.slane %v5265, 4
    %v5268 = vsel %vm277, %v5266, %v5267
    %v5269 = vsel %vm335, %v5263, %v5268
    %v5270 = vsel %vm335, %v5265, %v5267
    %v5273 = vmax.f32 %v5260, %v5269
    %v5274 = vmax.f32 %v5261, %v5270
    %5275 = vrot.lane.b32.xlu0 %v5206, 80
    %v5276 = vpop.permute.xlu0 %5275
    %5277 = vrot.lane.b32.xlu0 %v5207, 80
    %v5278 = vpop.permute.xlu0 %5277
    %v5279 = vrot.slane %v5276, 4
    %v5280 = vrot.slane %v5278, 4
    %v5281 = vsel %vm277, %v5279, %v5280
    %v5282 = vsel %vm349, %v5276, %v5281
    %v5283 = vsel %vm349, %v5278, %v5280
    %v5286 = vmax.f32 %v5273, %v5282
    %v5287 = vmax.f32 %v5274, %v5283
    %5288 = vrot.lane.b32.xlu0 %v5206, 79
    %v5289 = vpop.permute.xlu0 %5288
    %5290 = vrot.lane.b32.xlu0 %v5207, 79
    %v5291 = vpop.permute.xlu0 %5290
    %v5292 = vrot.slane %v5289, 4
    %v5293 = vrot.slane %v5291, 4
    %v5294 = vsel %vm277, %v5292, %v5293
    %v5295 = vsel %vm363, %v5289, %v5294
    %v5296 = vsel %vm363, %v5291, %v5293
    %v5299 = vmax.f32 %v5286, %v5295
    %v5300 = vmax.f32 %v5287, %v5296
    %5301 = vrot.lane.b32.xlu0 %v5206, 78
    %v5302 = vpop.permute.xlu0 %5301
    %5303 = vrot.lane.b32.xlu0 %v5207, 78
    %v5304 = vpop.permute.xlu0 %5303
    %v5305 = vrot.slane %v5302, 4
    %v5306 = vrot.slane %v5304, 4
    %v5307 = vsel %vm277, %v5305, %v5306
    %v5308 = vsel %vm377, %v5302, %v5307
    %v5309 = vsel %vm377, %v5304, %v5306
    %v5312 = vmax.f32 %v5299, %v5308
    %v5313 = vmax.f32 %v5300, %v5309
    %v5314 = vcombine.high %v5206, %v5206
    %v5315 = vcombine.high %v5207, %v5207
    %v5320 = vcombine.low %v5312, %v5312
    %v5321 = vcombine.low %v5313, %v5313
    %5322 = vrot.lane.b32.xlu0 %v5320, 25
    %v5323 = vpop.permute.xlu0 %5322
    %5324 = vrot.lane.b32.xlu0 %v5312, 25
    %v5325 = vpop.permute.xlu0 %5324
    %5326 = vrot.lane.b32.xlu0 %v5321, 25
    %v5327 = vpop.permute.xlu0 %5326
    %5328 = vrot.lane.b32.xlu0 %v5313, 25
    %v5329 = vpop.permute.xlu0 %5328
    %v5330 = vsel %vm400, %v5323, %v5325
    %v5331 = vsel %vm400, %v5325, %v5327
    %v5332 = vsel %vm400, %v5327, %v5329
    %v5337 = vsel %vm277, %v5206, %v5323
    %v5338 = vsel %vm277, %v5314, %v5330
    %v5339 = vsel %vm277, %v5207, %v5331
    %v5340 = vsel %vm277, %v5315, %v5332
    %5345 = vrot.lane.b32.xlu0 %v5337, 78
    %v5346 = vpop.permute.xlu0 %5345
    %5347 = vrot.lane.b32.xlu0 %v5338, 78
    %v5348 = vpop.permute.xlu0 %5347
    %5349 = vrot.lane.b32.xlu0 %v5339, 78
    %v5350 = vpop.permute.xlu0 %5349
    %5351 = vrot.lane.b32.xlu0 %v5340, 78
    %v5352 = vpop.permute.xlu0 %5351
    %v5353 = vsel %vm377, %v5346, %v5348
    %v5354 = vsel %vm377, %v5348, %v5350
    %v5355 = vsel %vm377, %v5350, %v5352
    %v5359 = vsel %vm415, %v5353, 0.0
    %v5360 = vsel %vm416, %v5354, 0.0
    %v5361 = vsel %vm417, %v5355, 0.0
    %v5362 = vpack.c.bf16 %v5359, %v5359
    %v5363 = vpack.c.bf16 %v5360, %v5360
    %v5364 = vpack.c.bf16 %v5361, %v5361
    %v5366 = vsel %vm277, %v5362, 0
    %v5369 = vsel %vm277, %v5363, 0
    %v5372 = vsel %vm277, %v5364, 0
    %5374 = vmatprep.subr.bf16.mxu0 %v5369
    %5375 = vmatpush1.bf16.msra.mxu0 %v5366
    %5376 = vmatprep.subr.bf16.mxu0 0
    %5377 = vmatpush1.bf16.msra.mxu0 0
    %5378 = vmatprep.subr.bf16.mxu0 0
    %5379 = vmatpush1.bf16.msra.mxu0 0
    %5380 = vmatprep.subr.bf16.mxu0 0
    %5381 = vmatpush1.bf16.msra.mxu0 0
    %5382 = vmatprep.subr.bf16.mxu0 0
    %5383 = vmatpush1.bf16.msra.mxu0 0
    %5384 = vmatprep.subr.bf16.mxu0 0
    %5385 = vmatpush1.bf16.msra.mxu0 0
    %5386 = vmatprep.subr.bf16.mxu0 0
    %5387 = vmatpush1.bf16.msra.mxu0 0
    %5388 = vmatprep.subr.bf16.mxu0 0
    %5389 = vmatpush1.bf16.msra.mxu0 0
    %5390 = vmatprep.subr.bf16.mxu0 0
    %5391 = vmatpush1.bf16.msra.mxu0 0
    %5392 = vmatprep.subr.bf16.mxu0 0
    %5393 = vmatpush1.bf16.msra.mxu0 0
    %5394 = vmatprep.subr.bf16.mxu0 0
    %5395 = vmatpush1.bf16.msra.mxu0 0
    %5396 = vmatprep.subr.bf16.mxu0 0
    %5397 = vmatpush1.bf16.msra.mxu0 0
    %5398 = vmatprep.subr.bf16.mxu0 0
    %5399 = vmatpush1.bf16.msra.mxu0 0
    %5400 = vmatprep.subr.bf16.mxu0 0
    %5401 = vmatpush1.bf16.msra.mxu0 0
    %5402 = vmatprep.subr.bf16.mxu0 0
    %5403 = vmatpush1.bf16.msra.mxu0 0
    %5404 = vmatprep.subr.bf16.mxu0 0
    %5405 = vmatpush1.bf16.msra.mxu0 0
    %5406 = vmatprep.mubr.bf16.mxu0 0
    %5407 = vmatmul.mubr.bf16.gmra.mrb[0].mxu0 %v474
    %v5408 = vpop.f32.mrb[0].mxu0
    %v5409 = vadd.f32 %v445, %v5408
    %v5410 = vpop.f32.mrb[0].mxu0
    %v5411 = vadd.f32 %v445, %v5410
    %v5412 = vpop.f32.mrb[0].mxu0
    %v5413 = vadd.f32 %v450, %v5412
    %v5414 = vpop.f32.mrb[0].mxu0
    %v5415 = vadd.f32 %v450, %v5414
    %5416 = vmatprep.mubr.bf16.mxu0 0
    %5417 = vmatmul.mubr.bf16.gmra.mrb[0].mxu0 %v477
    %v5418 = vpop.f32.mrb[0].mxu0
    %v5419 = vadd.f32 %v455, %v5418
    %v5420 = vpop.f32.mrb[0].mxu0
    %v5421 = vadd.f32 %v455, %v5420
    %v5422 = vpop.f32.mrb[0].mxu0
    %v5423 = vadd.f32 %v460, %v5422
    %v5424 = vpop.f32.mrb[0].mxu0
    %v5425 = vadd.f32 %v460, %v5424
    %5426 = vdwg.mxu0
    %5427 = vmatprep.subr.bf16.mxu0 0
    %5428 = vmatpush1.bf16.msra.mxu0 %v5372
    %5429 = vmatprep.subr.bf16.mxu0 0
    %5430 = vmatpush1.bf16.msra.mxu0 0
    %5431 = vmatprep.subr.bf16.mxu0 0
    %5432 = vmatpush1.bf16.msra.mxu0 0
    %5433 = vmatprep.subr.bf16.mxu0 0
    %5434 = vmatpush1.bf16.msra.mxu0 0
    %5435 = vmatprep.subr.bf16.mxu0 0
    %5436 = vmatpush1.bf16.msra.mxu0 0
    %5437 = vmatprep.subr.bf16.mxu0 0
    %5438 = vmatpush1.bf16.msra.mxu0 0
    %5439 = vmatprep.subr.bf16.mxu0 0
    %5440 = vmatpush1.bf16.msra.mxu0 0
    %5441 = vmatprep.subr.bf16.mxu0 0
    %5442 = vmatpush1.bf16.msra.mxu0 0
    %5443 = vmatprep.subr.bf16.mxu0 0
    %5444 = vmatpush1.bf16.msra.mxu0 0
    %5445 = vmatprep.subr.bf16.mxu0 0
    %5446 = vmatpush1.bf16.msra.mxu0 0
    %5447 = vmatprep.subr.bf16.mxu0 0
    %5448 = vmatpush1.bf16.msra.mxu0 0
    %5449 = vmatprep.subr.bf16.mxu0 0
    %5450 = vmatpush1.bf16.msra.mxu0 0
    %5451 = vmatprep.subr.bf16.mxu0 0
    %5452 = vmatpush1.bf16.msra.mxu0 0
    %5453 = vmatprep.subr.bf16.mxu0 0
    %5454 = vmatpush1.bf16.msra.mxu0 0
    %5455 = vmatprep.subr.bf16.mxu0 0
    %5456 = vmatpush1.bf16.msra.mxu0 0
    %5457 = vmatprep.subr.bf16.mxu0 0
    %5458 = vmatpush1.bf16.msra.mxu0 0
    %5459 = vmatprep.mubr.bf16.mxu0 0
    %5460 = vmatmul.mubr.bf16.gmra.mrb[0].mxu0 %v474
    %v5461 = vpop.f32.mrb[0].mxu0
    %v5462 = vadd.f32 %v445, %v5461
    %v5463 = vpop.f32.mrb[0].mxu0
    %v5464 = vpop.f32.mrb[0].mxu0
    %v5465 = vadd.f32 %v450, %v5464
    %v5466 = vpop.f32.mrb[0].mxu0
    %5467 = vmatprep.mubr.bf16.mxu0 0
    %5468 = vmatmul.mubr.bf16.gmra.mrb[0].mxu0 %v477
    %v5469 = vpop.f32.mrb[0].mxu0
    %v5470 = vadd.f32 %v455, %v5469
    %v5471 = vpop.f32.mrb[0].mxu0
    %v5472 = vpop.f32.mrb[0].mxu0
    %v5473 = vadd.f32 %v460, %v5472
    %v5474 = vpop.f32.mrb[0].mxu0
    %5475 = vdwg.mxu0
    %v5476 = vtanh.pop %v5409
    %v5477 = vtanh.pop %v5411
    %v5478 = vtanh.pop %v5462
    %v5479 = vtanh.pop %v5413
    %v5480 = vtanh.pop %v5415
    %v5481 = vtanh.pop %v5465
    %v5482 = vtanh.pop %v5419
    %v5483 = vtanh.pop %v5421
    %v5484 = vtanh.pop %v5470
    %v5485 = vtanh.pop %v5423
    %v5486 = vtanh.pop %v5425
    %v5487 = vtanh.pop %v5473
    %v5488 = vsel %vm415, %v5476, 0.0
    %v5489 = vsel %vm416, %v5477, 0.0
    %v5490 = vsel %vm417, %v5478, 0.0
    %v5491 = vsel %vm415, %v5479, 0.0
    %v5492 = vsel %vm416, %v5480, 0.0
    %v5493 = vsel %vm417, %v5481, 0.0
    %v5494 = vsel %vm415, %v5482, 0.0
    %v5495 = vsel %vm416, %v5483, 0.0
    %v5496 = vsel %vm417, %v5484, 0.0
    %v5497 = vsel %vm415, %v5485, 0.0
    %v5498 = vsel %vm416, %v5486, 0.0
    %v5499 = vsel %vm417, %v5487, 0.0
    %v5500 = vpack.c.bf16 %v5491, %v5488
    %v5501 = vpack.c.bf16 %v5492, %v5489
    %v5502 = vpack.c.bf16 %v5493, %v5490
    %v5503 = vpack.c.bf16 %v5497, %v5494
    %v5504 = vpack.c.bf16 %v5498, %v5495
    %v5505 = vpack.c.bf16 %v5499, %v5496
    %v5507 = vsel %vm629, %v5503, 0
    %v5510 = vsel %vm629, %v5504, 0
    %v5513 = vsel %vm629, %v5505, 0
    %5515 = vmatprep.subr.bf16.mxu0 %v5501
    %5516 = vmatpush1.bf16.msra.mxu0 %v5500
    %5517 = vmatprep.subr.bf16.mxu0 %v5510
    %5518 = vmatpush1.bf16.msra.mxu0 %v5507
    %5519 = vmatprep.subr.bf16.mxu0 0
    %5520 = vmatpush1.bf16.msra.mxu0 0
    %5521 = vmatprep.subr.bf16.mxu0 0
    %5522 = vmatpush1.bf16.msra.mxu0 0
    %5523 = vmatprep.subr.bf16.mxu0 0
    %5524 = vmatpush1.bf16.msra.mxu0 0
    %5525 = vmatprep.subr.bf16.mxu0 0
    %5526 = vmatpush1.bf16.msra.mxu0 0
    %5527 = vmatprep.subr.bf16.mxu0 0
    %5528 = vmatpush1.bf16.msra.mxu0 0
    %5529 = vmatprep.subr.bf16.mxu0 0
    %5530 = vmatpush1.bf16.msra.mxu0 0
    %5531 = vmatprep.subr.bf16.mxu0 0
    %5532 = vmatpush1.bf16.msra.mxu0 0
    %5533 = vmatprep.subr.bf16.mxu0 0
    %5534 = vmatpush1.bf16.msra.mxu0 0
    %5535 = vmatprep.subr.bf16.mxu0 0
    %5536 = vmatpush1.bf16.msra.mxu0 0
    %5537 = vmatprep.subr.bf16.mxu0 0
    %5538 = vmatpush1.bf16.msra.mxu0 0
    %5539 = vmatprep.subr.bf16.mxu0 0
    %5540 = vmatpush1.bf16.msra.mxu0 0
    %5541 = vmatprep.subr.bf16.mxu0 0
    %5542 = vmatpush1.bf16.msra.mxu0 0
    %5543 = vmatprep.subr.bf16.mxu0 0
    %5544 = vmatpush1.bf16.msra.mxu0 0
    %5545 = vmatprep.subr.bf16.mxu0 0
    %5546 = vmatpush1.bf16.msra.mxu0 0
    %5547 = vmatprep.mubr.bf16.mxu0 0
    %5548 = vmatmul.mubr.bf16.gmra.mrb[0].mxu0 %v627
    %v5549 = vpop.f32.mrb[0].mxu0
    %v5550 = vadd.f32 %v623, %v5549
    %v5551 = vpop.f32.mrb[0].mxu0
    %v5552 = vadd.f32 %v623, %v5551
    %v5553 = vpop.f32.mrb[0].mxu0
    %v5554 = vpop.f32.mrb[0].mxu0
    %5555 = vdwg.mxu0
    %5556 = vmatprep.subr.bf16.mxu0 0
    %5557 = vmatpush1.bf16.msra.mxu0 %v5502
    %5558 = vmatprep.subr.bf16.mxu0 0
    %5559 = vmatpush1.bf16.msra.mxu0 %v5513
    %5560 = vmatprep.subr.bf16.mxu0 0
    %5561 = vmatpush1.bf16.msra.mxu0 0
    %5562 = vmatprep.subr.bf16.mxu0 0
    %5563 = vmatpush1.bf16.msra.mxu0 0
    %5564 = vmatprep.subr.bf16.mxu0 0
    %5565 = vmatpush1.bf16.msra.mxu0 0
    %5566 = vmatprep.subr.bf16.mxu0 0
    %5567 = vmatpush1.bf16.msra.mxu0 0
    %5568 = vmatprep.subr.bf16.mxu0 0
    %5569 = vmatpush1.bf16.msra.mxu0 0
    %5570 = vmatprep.subr.bf16.mxu0 0
    %5571 = vmatpush1.bf16.msra.mxu0 0
    %5572 = vmatprep.subr.bf16.mxu0 0
    %5573 = vmatpush1.bf16.msra.mxu0 0
    %5574 = vmatprep.subr.bf16.mxu0 0
    %5575 = vmatpush1.bf16.msra.mxu0 0
    %5576 = vmatprep.subr.bf16.mxu0 0
    %5577 = vmatpush1.bf16.msra.mxu0 0
    %5578 = vmatprep.subr.bf16.mxu0 0
    %5579 = vmatpush1.bf16.msra.mxu0 0
    %5580 = vmatprep.subr.bf16.mxu0 0
    %5581 = vmatpush1.bf16.msra.mxu0 0
    %5582 = vmatprep.subr.bf16.mxu0 0
    %5583 = vmatpush1.bf16.msra.mxu0 0
    %5584 = vmatprep.subr.bf16.mxu0 0
    %5585 = vmatpush1.bf16.msra.mxu0 0
    %5586 = vmatprep.subr.bf16.mxu0 0
    %5587 = vmatpush1.bf16.msra.mxu0 0
    %5588 = vmatprep.mubr.bf16.mxu0 0
    %5589 = vmatmul.mubr.bf16.gmra.mrb[0].mxu0 %v627
    %v5590 = vpop.f32.mrb[0].mxu0
    %v5591 = vadd.f32 %v623, %v5590
    %v5592 = vpop.f32.mrb[0].mxu0
    %v5593 = vpop.f32.mrb[0].mxu0
    %v5594 = vpop.f32.mrb[0].mxu0
    %5595 = vdwg.mxu0
    %v5599 = vunpack.c.h.b16 %v5500
    %v5600 = vunpack.c.h.b16 %v5501
    %v5601 = vunpack.c.h.b16 %v5502
    %v5602 = vpack.c.b16 %v5600, %v5599
    %v5603 = vpack.c.b16 %v5601, %v5601
    %v5604 = vrot.slane %v5602, 5
    %v5605 = vrot.slane %v5604, 4
    %v5606 = vrot.slane %v5603, 5
    %v5607 = vrot.slane %v5606, 4
    %v5610 = vld [vmem:[#allocation2 + $0x4] sm:$0x77]
    %v5611 = vsel %vm737, %v5605, %v5610
    %5612 = vst [vmem:[#allocation2 + $0x4] sm:$0x77] %v5611
    %v5613 = vld [vmem:[#allocation2 + $0xc] sm:$0x7]
    %v5614 = vsel %vm254, %v5607, %v5613
    %5615 = vst [vmem:[#allocation2 + $0xc] sm:$0x7] %v5614
    %v5616 = vld [vmem:[#allocation10] sm:$0xf]
    %v5617 = vld [vmem:[#allocation10 + $0x4] sm:$0x1]
    %v5618 = vld [vmem:[#allocation2] sm:$0x77]
    %v5619 = vld [vmem:[#allocation2 + $0x8] sm:$0x77]
    %v5620 = vld [vmem:[%s748] sm:$0xf]
    %v5621 = vld [vmem:[%s748 + $0x4] sm:$0x1]
    %v5624 = vunpack.c.l.b16 %v5620
    %v5625 = vunpack.c.l.b16 %v5621
    %v5626 = vpack.c.b16 %v5625, %v5624
    %v5629 = vunpack.c.l.b16 %v5618
    %v5630 = vunpack.c.h.b16 %v5618
    %v5631 = vunpack.c.l.b16 %v5619
    %v5632 = vunpack.c.h.b16 %v5619
    %v5633 = vpack.c.b16 %v5629, %v5629
    %v5634 = vpack.c.b16 %v5630, %v5630
    %v5635 = vpack.c.b16 %v5631, %v5631
    %v5636 = vpack.c.b16 %v5632, %v5632
    %5637 = vrot.lane.b32.xlu0 %v5633, 24
    %v5638 = vpop.permute.xlu0 %5637
    %5639 = vrot.lane.b32.xlu0 %v5634, 24
    %v5640 = vpop.permute.xlu0 %5639
    %5641 = vrot.lane.b32.xlu0 %v5635, 24
    %v5642 = vpop.permute.xlu0 %5641
    %5643 = vrot.lane.b32.xlu0 %v5636, 24
    %v5644 = vpop.permute.xlu0 %5643
    %v5645 = vsel %vm774, %v5638, %v5640
    %v5646 = vsel %vm774, %v5640, %v5642
    %v5647 = vsel %vm774, %v5642, %v5644
    %v5649 = vsel %vm778, %v5626, 0
    %v5652 = vand.u32 %v5645, %v785
    %v5655 = vand.u32 %v5646, %v785
    %v5658 = vand.u32 %v5647, %v785
    %5660 = vmatprep.subr.bf16.mxu0 %v5655
    %5661 = vmatpush1.bf16.msra.mxu0 %v5652
    %5662 = vmatprep.subr.bf16.mxu0 0
    %5663 = vmatpush1.bf16.msra.mxu0 0
    %5664 = vmatprep.subr.bf16.mxu0 0
    %5665 = vmatpush1.bf16.msra.mxu0 0
    %5666 = vmatprep.subr.bf16.mxu0 0
    %5667 = vmatpush1.bf16.msra.mxu0 0
    %5668 = vmatprep.subr.bf16.mxu0 0
    %5669 = vmatpush1.bf16.msra.mxu0 0
    %5670 = vmatprep.subr.bf16.mxu0 0
    %5671 = vmatpush1.bf16.msra.mxu0 0
    %5672 = vmatprep.subr.bf16.mxu0 0
    %5673 = vmatpush1.bf16.msra.mxu0 0
    %5674 = vmatprep.subr.bf16.mxu0 0
    %5675 = vmatpush1.bf16.msra.mxu0 0
    %5676 = vmatprep.subr.bf16.mxu0 0
    %5677 = vmatpush1.bf16.msra.mxu0 0
    %5678 = vmatprep.subr.bf16.mxu0 0
    %5679 = vmatpush1.bf16.msra.mxu0 0
    %5680 = vmatprep.subr.bf16.mxu0 0
    %5681 = vmatpush1.bf16.msra.mxu0 0
    %5682 = vmatprep.subr.bf16.mxu0 0
    %5683 = vmatpush1.bf16.msra.mxu0 0
    %5684 = vmatprep.subr.bf16.mxu0 0
    %5685 = vmatpush1.bf16.msra.mxu0 0
    %5686 = vmatprep.subr.bf16.mxu0 0
    %5687 = vmatpush1.bf16.msra.mxu0 0
    %5688 = vmatprep.subr.bf16.mxu0 0
    %5689 = vmatpush1.bf16.msra.mxu0 0
    %5690 = vmatprep.subr.bf16.mxu0 0
    %5691 = vmatpush1.bf16.msra.mxu0 0
    %5692 = vmatprep.mubr.bf16.mxu0 0
    %5693 = vmatmul.mubr.bf16.gmra.mrb[0].mxu0 %v5649
    %v5694 = vpop.f32.mrb[0].mxu0
    %v5695 = vadd.f32 0.0, %v5694
    %v5696 = vpop.f32.mrb[0].mxu0
    %v5697 = vadd.f32 0.0, %v5696
    %v5698 = vpop.f32.mrb[0].mxu0
    %v5699 = vadd.f32 0.0, %v5698
    %v5700 = vpop.f32.mrb[0].mxu0
    %v5701 = vadd.f32 0.0, %v5700
    %5702 = vdwg.mxu0
    %5703 = vmatprep.subr.bf16.mxu0 0
    %5704 = vmatpush1.bf16.msra.mxu0 %v5658
    %5705 = vmatprep.subr.bf16.mxu0 0
    %5706 = vmatpush1.bf16.msra.mxu0 0
    %5707 = vmatprep.subr.bf16.mxu0 0
    %5708 = vmatpush1.bf16.msra.mxu0 0
    %5709 = vmatprep.subr.bf16.mxu0 0
    %5710 = vmatpush1.bf16.msra.mxu0 0
    %5711 = vmatprep.subr.bf16.mxu0 0
    %5712 = vmatpush1.bf16.msra.mxu0 0
    %5713 = vmatprep.subr.bf16.mxu0 0
    %5714 = vmatpush1.bf16.msra.mxu0 0
    %5715 = vmatprep.subr.bf16.mxu0 0
    %5716 = vmatpush1.bf16.msra.mxu0 0
    %5717 = vmatprep.subr.bf16.mxu0 0
    %5718 = vmatpush1.bf16.msra.mxu0 0
    %5719 = vmatprep.subr.bf16.mxu0 0
    %5720 = vmatpush1.bf16.msra.mxu0 0
    %5721 = vmatprep.subr.bf16.mxu0 0
    %5722 = vmatpush1.bf16.msra.mxu0 0
    %5723 = vmatprep.subr.bf16.mxu0 0
    %5724 = vmatpush1.bf16.msra.mxu0 0
    %5725 = vmatprep.subr.bf16.mxu0 0
    %5726 = vmatpush1.bf16.msra.mxu0 0
    %5727 = vmatprep.subr.bf16.mxu0 0
    %5728 = vmatpush1.bf16.msra.mxu0 0
    %5729 = vmatprep.subr.bf16.mxu0 0
    %5730 = vmatpush1.bf16.msra.mxu0 0
    %5731 = vmatprep.subr.bf16.mxu0 0
    %5732 = vmatpush1.bf16.msra.mxu0 0
    %5733 = vmatprep.subr.bf16.mxu0 0
    %5734 = vmatpush1.bf16.msra.mxu0 0
    %5735 = vmatprep.mubr.bf16.mxu0 0
    %5736 = vmatmul.mubr.bf16.gmra.mrb[0].mxu0 %v5649
    %v5737 = vpop.f32.mrb[0].mxu0
    %v5738 = vadd.f32 0.0, %v5737
    %v5739 = vpop.f32.mrb[0].mxu0
    %v5740 = vpop.f32.mrb[0].mxu0
    %v5741 = vadd.f32 0.0, %v5740
    %v5742 = vpop.f32.mrb[0].mxu0
    %5743 = vdwg.mxu0
    %v5746 = vunpack.c.l.b16 %v5616
    %v5747 = vunpack.c.l.b16 %v5617
    %v5748 = vpack.c.b16 %v5747, %v5746
    %5749 = vrot.lane.b32.xlu0 %v5633, 25
    %v5750 = vpop.permute.xlu0 %5749
    %5751 = vrot.lane.b32.xlu0 %v5634, 25
    %v5752 = vpop.permute.xlu0 %5751
    %5753 = vrot.lane.b32.xlu0 %v5635, 25
    %v5754 = vpop.permute.xlu0 %5753
    %5755 = vrot.lane.b32.xlu0 %v5636, 25
    %v5756 = vpop.permute.xlu0 %5755
    %v5757 = vsel %vm892, %v5750, %v5752
    %v5758 = vsel %vm892, %v5752, %v5754
    %v5759 = vsel %vm892, %v5754, %v5756
    %v5761 = vsel %vm778, %v5748, 0
    %v5764 = vand.u32 %v5757, %v785
    %v5767 = vand.u32 %v5758, %v785
    %v5770 = vand.u32 %v5759, %v785
    %5772 = vmatprep.subr.bf16.mxu0 %v5767
    %5773 = vmatpush1.bf16.msra.mxu0 %v5764
    %5774 = vmatprep.subr.bf16.mxu0 0
    %5775 = vmatpush1.bf16.msra.mxu0 0
    %5776 = vmatprep.subr.bf16.mxu0 0
    %5777 = vmatpush1.bf16.msra.mxu0 0
    %5778 = vmatprep.subr.bf16.mxu0 0
    %5779 = vmatpush1.bf16.msra.mxu0 0
    %5780 = vmatprep.subr.bf16.mxu0 0
    %5781 = vmatpush1.bf16.msra.mxu0 0
    %5782 = vmatprep.subr.bf16.mxu0 0
    %5783 = vmatpush1.bf16.msra.mxu0 0
    %5784 = vmatprep.subr.bf16.mxu0 0
    %5785 = vmatpush1.bf16.msra.mxu0 0
    %5786 = vmatprep.subr.bf16.mxu0 0
    %5787 = vmatpush1.bf16.msra.mxu0 0
    %5788 = vmatprep.subr.bf16.mxu0 0
    %5789 = vmatpush1.bf16.msra.mxu0 0
    %5790 = vmatprep.subr.bf16.mxu0 0
    %5791 = vmatpush1.bf16.msra.mxu0 0
    %5792 = vmatprep.subr.bf16.mxu0 0
    %5793 = vmatpush1.bf16.msra.mxu0 0
    %5794 = vmatprep.subr.bf16.mxu0 0
    %5795 = vmatpush1.bf16.msra.mxu0 0
    %5796 = vmatprep.subr.bf16.mxu0 0
    %5797 = vmatpush1.bf16.msra.mxu0 0
    %5798 = vmatprep.subr.bf16.mxu0 0
    %5799 = vmatpush1.bf16.msra.mxu0 0
    %5800 = vmatprep.subr.bf16.mxu0 0
    %5801 = vmatpush1.bf16.msra.mxu0 0
    %5802 = vmatprep.subr.bf16.mxu0 0
    %5803 = vmatpush1.bf16.msra.mxu0 0
    %5804 = vmatprep.mubr.bf16.mxu0 0
    %5805 = vmatmul.mubr.bf16.gmra.mrb[0].mxu0 %v5761
    %v5806 = vpop.f32.mrb[0].mxu0
    %v5807 = vadd.f32 %v5695, %v5806
    %v5808 = vpop.f32.mrb[0].mxu0
    %v5809 = vadd.f32 %v5697, %v5808
    %v5810 = vpop.f32.mrb[0].mxu0
    %v5811 = vadd.f32 %v5699, %v5810
    %v5812 = vpop.f32.mrb[0].mxu0
    %v5813 = vadd.f32 %v5701, %v5812
    %5814 = vdwg.mxu0
    %5815 = vmatprep.subr.bf16.mxu0 0
    %5816 = vmatpush1.bf16.msra.mxu0 %v5770
    %5817 = vmatprep.subr.bf16.mxu0 0
    %5818 = vmatpush1.bf16.msra.mxu0 0
    %5819 = vmatprep.subr.bf16.mxu0 0
    %5820 = vmatpush1.bf16.msra.mxu0 0
    %5821 = vmatprep.subr.bf16.mxu0 0
    %5822 = vmatpush1.bf16.msra.mxu0 0
    %5823 = vmatprep.subr.bf16.mxu0 0
    %5824 = vmatpush1.bf16.msra.mxu0 0
    %5825 = vmatprep.subr.bf16.mxu0 0
    %5826 = vmatpush1.bf16.msra.mxu0 0
    %5827 = vmatprep.subr.bf16.mxu0 0
    %5828 = vmatpush1.bf16.msra.mxu0 0
    %5829 = vmatprep.subr.bf16.mxu0 0
    %5830 = vmatpush1.bf16.msra.mxu0 0
    %5831 = vmatprep.subr.bf16.mxu0 0
    %5832 = vmatpush1.bf16.msra.mxu0 0
    %5833 = vmatprep.subr.bf16.mxu0 0
    %5834 = vmatpush1.bf16.msra.mxu0 0
    %5835 = vmatprep.subr.bf16.mxu0 0
    %5836 = vmatpush1.bf16.msra.mxu0 0
    %5837 = vmatprep.subr.bf16.mxu0 0
    %5838 = vmatpush1.bf16.msra.mxu0 0
    %5839 = vmatprep.subr.bf16.mxu0 0
    %5840 = vmatpush1.bf16.msra.mxu0 0
    %5841 = vmatprep.subr.bf16.mxu0 0
    %5842 = vmatpush1.bf16.msra.mxu0 0
    %5843 = vmatprep.subr.bf16.mxu0 0
    %5844 = vmatpush1.bf16.msra.mxu0 0
    %5845 = vmatprep.subr.bf16.mxu0 0
    %5846 = vmatpush1.bf16.msra.mxu0 0
    %5847 = vmatprep.mubr.bf16.mxu0 0
    %5848 = vmatmul.mubr.bf16.gmra.mrb[0].mxu0 %v5761
    %v5849 = vpop.f32.mrb[0].mxu0
    %v5850 = vadd.f32 %v5738, %v5849
    %v5851 = vpop.f32.mrb[0].mxu0
    %v5852 = vpop.f32.mrb[0].mxu0
    %v5853 = vadd.f32 %v5741, %v5852
    %v5854 = vpop.f32.mrb[0].mxu0
    %5855 = vdwg.mxu0
    %v5856 = vld [vmem:[%s992] sm:$0xf]
    %v5857 = vld [vmem:[%s992 + $0x4] sm:$0x1]
    %v5860 = vunpack.c.l.b16 %v5856
    %v5861 = vunpack.c.l.b16 %v5857
    %v5862 = vpack.c.b16 %v5861, %v5860
    %5863 = vrot.lane.b32.xlu0 %v5633, 23
    %v5864 = vpop.permute.xlu0 %5863
    %5865 = vrot.lane.b32.xlu0 %v5634, 23
    %v5866 = vpop.permute.xlu0 %5865
    %5867 = vrot.lane.b32.xlu0 %v5635, 23
    %v5868 = vpop.permute.xlu0 %5867
    %5869 = vrot.lane.b32.xlu0 %v5636, 23
    %v5870 = vpop.permute.xlu0 %5869
    %v5871 = vsel %vm1008, %v5864, %v5866
    %v5872 = vsel %vm1008, %v5866, %v5868
    %v5873 = vsel %vm1008, %v5868, %v5870
    %v5875 = vsel %vm778, %v5862, 0
    %v5878 = vand.u32 %v5871, %v785
    %v5881 = vand.u32 %v5872, %v785
    %v5884 = vand.u32 %v5873, %v785
    %5886 = vmatprep.subr.bf16.mxu0 %v5881
    %5887 = vmatpush1.bf16.msra.mxu0 %v5878
    %5888 = vmatprep.subr.bf16.mxu0 0
    %5889 = vmatpush1.bf16.msra.mxu0 0
    %5890 = vmatprep.subr.bf16.mxu0 0
    %5891 = vmatpush1.bf16.msra.mxu0 0
    %5892 = vmatprep.subr.bf16.mxu0 0
    %5893 = vmatpush1.bf16.msra.mxu0 0
    %5894 = vmatprep.subr.bf16.mxu0 0
    %5895 = vmatpush1.bf16.msra.mxu0 0
    %5896 = vmatprep.subr.bf16.mxu0 0
    %5897 = vmatpush1.bf16.msra.mxu0 0
    %5898 = vmatprep.subr.bf16.mxu0 0
    %5899 = vmatpush1.bf16.msra.mxu0 0
    %5900 = vmatprep.subr.bf16.mxu0 0
    %5901 = vmatpush1.bf16.msra.mxu0 0
    %5902 = vmatprep.subr.bf16.mxu0 0
    %5903 = vmatpush1.bf16.msra.mxu0 0
    %5904 = vmatprep.subr.bf16.mxu0 0
    %5905 = vmatpush1.bf16.msra.mxu0 0
    %5906 = vmatprep.subr.bf16.mxu0 0
    %5907 = vmatpush1.bf16.msra.mxu0 0
    %5908 = vmatprep.subr.bf16.mxu0 0
    %5909 = vmatpush1.bf16.msra.mxu0 0
    %5910 = vmatprep.subr.bf16.mxu0 0
    %5911 = vmatpush1.bf16.msra.mxu0 0
    %5912 = vmatprep.subr.bf16.mxu0 0
    %5913 = vmatpush1.bf16.msra.mxu0 0
    %5914 = vmatprep.subr.bf16.mxu0 0
    %5915 = vmatpush1.bf16.msra.mxu0 0
    %5916 = vmatprep.subr.bf16.mxu0 0
    %5917 = vmatpush1.bf16.msra.mxu0 0
    %5918 = vmatprep.mubr.bf16.mxu0 0
    %5919 = vmatmul.mubr.bf16.gmra.mrb[0].mxu0 %v5875
    %v5920 = vpop.f32.mrb[0].mxu0
    %v5921 = vadd.f32 0.0, %v5920
    %v5922 = vpop.f32.mrb[0].mxu0
    %v5923 = vadd.f32 0.0, %v5922
    %v5924 = vpop.f32.mrb[0].mxu0
    %v5925 = vadd.f32 0.0, %v5924
    %v5926 = vpop.f32.mrb[0].mxu0
    %v5927 = vadd.f32 0.0, %v5926
    %5928 = vdwg.mxu0
    %5929 = vmatprep.subr.bf16.mxu0 0
    %5930 = vmatpush1.bf16.msra.mxu0 %v5884
    %5931 = vmatprep.subr.bf16.mxu0 0
    %5932 = vmatpush1.bf16.msra.mxu0 0
    %5933 = vmatprep.subr.bf16.mxu0 0
    %5934 = vmatpush1.bf16.msra.mxu0 0
    %5935 = vmatprep.subr.bf16.mxu0 0
    %5936 = vmatpush1.bf16.msra.mxu0 0
    %5937 = vmatprep.subr.bf16.mxu0 0
    %5938 = vmatpush1.bf16.msra.mxu0 0
    %5939 = vmatprep.subr.bf16.mxu0 0
    %5940 = vmatpush1.bf16.msra.mxu0 0
    %5941 = vmatprep.subr.bf16.mxu0 0
    %5942 = vmatpush1.bf16.msra.mxu0 0
    %5943 = vmatprep.subr.bf16.mxu0 0
    %5944 = vmatpush1.bf16.msra.mxu0 0
    %5945 = vmatprep.subr.bf16.mxu0 0
    %5946 = vmatpush1.bf16.msra.mxu0 0
    %5947 = vmatprep.subr.bf16.mxu0 0
    %5948 = vmatpush1.bf16.msra.mxu0 0
    %5949 = vmatprep.subr.bf16.mxu0 0
    %5950 = vmatpush1.bf16.msra.mxu0 0
    %5951 = vmatprep.subr.bf16.mxu0 0
    %5952 = vmatpush1.bf16.msra.mxu0 0
    %5953 = vmatprep.subr.bf16.mxu0 0
    %5954 = vmatpush1.bf16.msra.mxu0 0
    %5955 = vmatprep.subr.bf16.mxu0 0
    %5956 = vmatpush1.bf16.msra.mxu0 0
    %5957 = vmatprep.subr.bf16.mxu0 0
    %5958 = vmatpush1.bf16.msra.mxu0 0
    %5959 = vmatprep.subr.bf16.mxu0 0
    %5960 = vmatpush1.bf16.msra.mxu0 0
    %5961 = vmatprep.mubr.bf16.mxu0 0
    %5962 = vmatmul.mubr.bf16.gmra.mrb[0].mxu0 %v5875
    %v5963 = vpop.f32.mrb[0].mxu0
    %v5964 = vadd.f32 0.0, %v5963
    %v5965 = vpop.f32.mrb[0].mxu0
    %v5966 = vpop.f32.mrb[0].mxu0
    %v5967 = vadd.f32 0.0, %v5966
    %v5968 = vpop.f32.mrb[0].mxu0
    %5969 = vdwg.mxu0
    %v5970 = vadd.f32 %v5807, %v5921
    %v5971 = vadd.f32 %v5809, %v5923
    %v5972 = vadd.f32 %v5850, %v5964
    %v5973 = vadd.f32 %v5811, %v5925
    %v5974 = vadd.f32 %v5813, %v5927
    %v5975 = vadd.f32 %v5853, %v5967
    %v5976 = vld [vmem:[%s1114] sm:$0xf]
    %v5977 = vld [vmem:[%s1114 + $0x4] sm:$0x1]
    %v5980 = vunpack.c.l.b16 %v5976
    %v5981 = vunpack.c.l.b16 %v5977
    %v5982 = vpack.c.b16 %v5981, %v5980
    %5983 = vrot.lane.b32.xlu0 %v5633, 1
    %v5984 = vpop.permute.xlu0 %5983
    %5985 = vrot.lane.b32.xlu0 %v5634, 1
    %v5986 = vpop.permute.xlu0 %5985
    %5987 = vrot.lane.b32.xlu0 %v5635, 1
    %v5988 = vpop.permute.xlu0 %5987
    %5989 = vrot.lane.b32.xlu0 %v5636, 1
    %v5990 = vpop.permute.xlu0 %5989
    %v5991 = vsel %vm1130, %v5984, %v5986
    %v5992 = vsel %vm1130, %v5986, %v5988
    %v5993 = vsel %vm1130, %v5988, %v5990
    %v5995 = vsel %vm778, %v5982, 0
    %v5998 = vand.u32 %v5991, %v785
    %v6001 = vand.u32 %v5992, %v785
    %v6004 = vand.u32 %v5993, %v785
    %6006 = vmatprep.subr.bf16.mxu0 %v6001
    %6007 = vmatpush1.bf16.msra.mxu0 %v5998
    %6008 = vmatprep.subr.bf16.mxu0 0
    %6009 = vmatpush1.bf16.msra.mxu0 0
    %6010 = vmatprep.subr.bf16.mxu0 0
    %6011 = vmatpush1.bf16.msra.mxu0 0
    %6012 = vmatprep.subr.bf16.mxu0 0
    %6013 = vmatpush1.bf16.msra.mxu0 0
    %6014 = vmatprep.subr.bf16.mxu0 0
    %6015 = vmatpush1.bf16.msra.mxu0 0
    %6016 = vmatprep.subr.bf16.mxu0 0
    %6017 = vmatpush1.bf16.msra.mxu0 0
    %6018 = vmatprep.subr.bf16.mxu0 0
    %6019 = vmatpush1.bf16.msra.mxu0 0
    %6020 = vmatprep.subr.bf16.mxu0 0
    %6021 = vmatpush1.bf16.msra.mxu0 0
    %6022 = vmatprep.subr.bf16.mxu0 0
    %6023 = vmatpush1.bf16.msra.mxu0 0
    %6024 = vmatprep.subr.bf16.mxu0 0
    %6025 = vmatpush1.bf16.msra.mxu0 0
    %6026 = vmatprep.subr.bf16.mxu0 0
    %6027 = vmatpush1.bf16.msra.mxu0 0
    %6028 = vmatprep.subr.bf16.mxu0 0
    %6029 = vmatpush1.bf16.msra.mxu0 0
    %6030 = vmatprep.subr.bf16.mxu0 0
    %6031 = vmatpush1.bf16.msra.mxu0 0
    %6032 = vmatprep.subr.bf16.mxu0 0
    %6033 = vmatpush1.bf16.msra.mxu0 0
    %6034 = vmatprep.subr.bf16.mxu0 0
    %6035 = vmatpush1.bf16.msra.mxu0 0
    %6036 = vmatprep.subr.bf16.mxu0 0
    %6037 = vmatpush1.bf16.msra.mxu0 0
    %6038 = vmatprep.mubr.bf16.mxu0 0
    %6039 = vmatmul.mubr.bf16.gmra.mrb[0].mxu0 %v5995
    %v6040 = vpop.f32.mrb[0].mxu0
    %v6041 = vadd.f32 0.0, %v6040
    %v6042 = vpop.f32.mrb[0].mxu0
    %v6043 = vadd.f32 0.0, %v6042
    %v6044 = vpop.f32.mrb[0].mxu0
    %v6045 = vadd.f32 0.0, %v6044
    %v6046 = vpop.f32.mrb[0].mxu0
    %v6047 = vadd.f32 0.0, %v6046
    %6048 = vdwg.mxu0
    %6049 = vmatprep.subr.bf16.mxu0 0
    %6050 = vmatpush1.bf16.msra.mxu0 %v6004
    %6051 = vmatprep.subr.bf16.mxu0 0
    %6052 = vmatpush1.bf16.msra.mxu0 0
    %6053 = vmatprep.subr.bf16.mxu0 0
    %6054 = vmatpush1.bf16.msra.mxu0 0
    %6055 = vmatprep.subr.bf16.mxu0 0
    %6056 = vmatpush1.bf16.msra.mxu0 0
    %6057 = vmatprep.subr.bf16.mxu0 0
    %6058 = vmatpush1.bf16.msra.mxu0 0
    %6059 = vmatprep.subr.bf16.mxu0 0
    %6060 = vmatpush1.bf16.msra.mxu0 0
    %6061 = vmatprep.subr.bf16.mxu0 0
    %6062 = vmatpush1.bf16.msra.mxu0 0
    %6063 = vmatprep.subr.bf16.mxu0 0
    %6064 = vmatpush1.bf16.msra.mxu0 0
    %6065 = vmatprep.subr.bf16.mxu0 0
    %6066 = vmatpush1.bf16.msra.mxu0 0
    %6067 = vmatprep.subr.bf16.mxu0 0
    %6068 = vmatpush1.bf16.msra.mxu0 0
    %6069 = vmatprep.subr.bf16.mxu0 0
    %6070 = vmatpush1.bf16.msra.mxu0 0
    %6071 = vmatprep.subr.bf16.mxu0 0
    %6072 = vmatpush1.bf16.msra.mxu0 0
    %6073 = vmatprep.subr.bf16.mxu0 0
    %6074 = vmatpush1.bf16.msra.mxu0 0
    %6075 = vmatprep.subr.bf16.mxu0 0
    %6076 = vmatpush1.bf16.msra.mxu0 0
    %6077 = vmatprep.subr.bf16.mxu0 0
    %6078 = vmatpush1.bf16.msra.mxu0 0
    %6079 = vmatprep.subr.bf16.mxu0 0
    %6080 = vmatpush1.bf16.msra.mxu0 0
    %6081 = vmatprep.mubr.bf16.mxu0 0
    %6082 = vmatmul.mubr.bf16.gmra.mrb[0].mxu0 %v5995
    %v6083 = vpop.f32.mrb[0].mxu0
    %v6084 = vadd.f32 0.0, %v6083
    %v6085 = vpop.f32.mrb[0].mxu0
    %v6086 = vpop.f32.mrb[0].mxu0
    %v6087 = vadd.f32 0.0, %v6086
    %v6088 = vpop.f32.mrb[0].mxu0
    %6089 = vdwg.mxu0
    %v6090 = vadd.f32 %v5970, %v6041
    %v6091 = vadd.f32 %v5971, %v6043
    %v6092 = vadd.f32 %v5972, %v6084
    %v6093 = vadd.f32 %v5973, %v6045
    %v6094 = vadd.f32 %v5974, %v6047
    %v6095 = vadd.f32 %v5975, %v6087
    %v6096 = vld [vmem:[%s1236] sm:$0xf]
    %v6097 = vld [vmem:[%s1236 + $0x4] sm:$0x1]
    %v6098 = vld [vmem:[#allocation2 + $0x4] sm:$0x77]
    %v6099 = vld [vmem:[#allocation2 + $0xc] sm:$0x7]
    %v6102 = vunpack.c.l.b16 %v6096
    %v6103 = vunpack.c.l.b16 %v6097
    %v6104 = vpack.c.b16 %v6103, %v6102
    %v6107 = vunpack.c.l.b16 %v6098
    %v6108 = vunpack.c.h.b16 %v6098
    %v6109 = vunpack.c.l.b16 %v6099
    %v6110 = vpack.c.b16 %v6107, %v6107
    %v6111 = vpack.c.b16 %v6108, %v6108
    %v6112 = vpack.c.b16 %v6109, %v6109
    %v6114 = vsel %vm778, %v6104, 0
    %v6117 = vand.u32 %v6110, %v785
    %v6120 = vand.u32 %v6111, %v785
    %v6123 = vand.u32 %v6112, %v785
    %6125 = vmatprep.subr.bf16.mxu0 %v6120
    %6126 = vmatpush1.bf16.msra.mxu0 %v6117
    %6127 = vmatprep.subr.bf16.mxu0 0
    %6128 = vmatpush1.bf16.msra.mxu0 0
    %6129 = vmatprep.subr.bf16.mxu0 0
    %6130 = vmatpush1.bf16.msra.mxu0 0
    %6131 = vmatprep.subr.bf16.mxu0 0
    %6132 = vmatpush1.bf16.msra.mxu0 0
    %6133 = vmatprep.subr.bf16.mxu0 0
    %6134 = vmatpush1.bf16.msra.mxu0 0
    %6135 = vmatprep.subr.bf16.mxu0 0
    %6136 = vmatpush1.bf16.msra.mxu0 0
    %6137 = vmatprep.subr.bf16.mxu0 0
    %6138 = vmatpush1.bf16.msra.mxu0 0
    %6139 = vmatprep.subr.bf16.mxu0 0
    %6140 = vmatpush1.bf16.msra.mxu0 0
    %6141 = vmatprep.subr.bf16.mxu0 0
    %6142 = vmatpush1.bf16.msra.mxu0 0
    %6143 = vmatprep.subr.bf16.mxu0 0
    %6144 = vmatpush1.bf16.msra.mxu0 0
    %6145 = vmatprep.subr.bf16.mxu0 0
    %6146 = vmatpush1.bf16.msra.mxu0 0
    %6147 = vmatprep.subr.bf16.mxu0 0
    %6148 = vmatpush1.bf16.msra.mxu0 0
    %6149 = vmatprep.subr.bf16.mxu0 0
    %6150 = vmatpush1.bf16.msra.mxu0 0
    %6151 = vmatprep.subr.bf16.mxu0 0
    %6152 = vmatpush1.bf16.msra.mxu0 0
    %6153 = vmatprep.subr.bf16.mxu0 0
    %6154 = vmatpush1.bf16.msra.mxu0 0
    %6155 = vmatprep.subr.bf16.mxu0 0
    %6156 = vmatpush1.bf16.msra.mxu0 0
    %6157 = vmatprep.mubr.bf16.mxu0 0
    %6158 = vmatmul.mubr.bf16.gmra.mrb[0].mxu0 %v6114
    %v6159 = vpop.f32.mrb[0].mxu0
    %v6160 = vadd.f32 0.0, %v6159
    %v6161 = vpop.f32.mrb[0].mxu0
    %v6162 = vadd.f32 0.0, %v6161
    %v6163 = vpop.f32.mrb[0].mxu0
    %v6164 = vadd.f32 0.0, %v6163
    %v6165 = vpop.f32.mrb[0].mxu0
    %v6166 = vadd.f32 0.0, %v6165
    %6167 = vdwg.mxu0
    %6168 = vmatprep.subr.bf16.mxu0 0
    %6169 = vmatpush1.bf16.msra.mxu0 %v6123
    %6170 = vmatprep.subr.bf16.mxu0 0
    %6171 = vmatpush1.bf16.msra.mxu0 0
    %6172 = vmatprep.subr.bf16.mxu0 0
    %6173 = vmatpush1.bf16.msra.mxu0 0
    %6174 = vmatprep.subr.bf16.mxu0 0
    %6175 = vmatpush1.bf16.msra.mxu0 0
    %6176 = vmatprep.subr.bf16.mxu0 0
    %6177 = vmatpush1.bf16.msra.mxu0 0
    %6178 = vmatprep.subr.bf16.mxu0 0
    %6179 = vmatpush1.bf16.msra.mxu0 0
    %6180 = vmatprep.subr.bf16.mxu0 0
    %6181 = vmatpush1.bf16.msra.mxu0 0
    %6182 = vmatprep.subr.bf16.mxu0 0
    %6183 = vmatpush1.bf16.msra.mxu0 0
    %6184 = vmatprep.subr.bf16.mxu0 0
    %6185 = vmatpush1.bf16.msra.mxu0 0
    %6186 = vmatprep.subr.bf16.mxu0 0
    %6187 = vmatpush1.bf16.msra.mxu0 0
    %6188 = vmatprep.subr.bf16.mxu0 0
    %6189 = vmatpush1.bf16.msra.mxu0 0
    %6190 = vmatprep.subr.bf16.mxu0 0
    %6191 = vmatpush1.bf16.msra.mxu0 0
    %6192 = vmatprep.subr.bf16.mxu0 0
    %6193 = vmatpush1.bf16.msra.mxu0 0
    %6194 = vmatprep.subr.bf16.mxu0 0
    %6195 = vmatpush1.bf16.msra.mxu0 0
    %6196 = vmatprep.subr.bf16.mxu0 0
    %6197 = vmatpush1.bf16.msra.mxu0 0
    %6198 = vmatprep.subr.bf16.mxu0 0
    %6199 = vmatpush1.bf16.msra.mxu0 0
    %6200 = vmatprep.mubr.bf16.mxu0 0
    %6201 = vmatmul.mubr.bf16.gmra.mrb[0].mxu0 %v6114
    %v6202 = vpop.f32.mrb[0].mxu0
    %v6203 = vadd.f32 0.0, %v6202
    %v6204 = vpop.f32.mrb[0].mxu0
    %v6205 = vpop.f32.mrb[0].mxu0
    %v6206 = vadd.f32 0.0, %v6205
    %v6207 = vpop.f32.mrb[0].mxu0
    %6208 = vdwg.mxu0
    %v6209 = vadd.f32 %v6090, %v6160
    %v6210 = vadd.f32 %v6091, %v6162
    %v6211 = vadd.f32 %v6092, %v6203
    %v6212 = vadd.f32 %v6093, %v6164
    %v6213 = vadd.f32 %v6094, %v6166
    %v6214 = vadd.f32 %v6095, %v6206
    %v6215 = vld [vmem:[%s1356] sm:$0xf]
    %v6216 = vld [vmem:[%s1356 + $0x4] sm:$0x1]
    %v6217 = vld [vmem:[#allocation2 + $0x4] sm:$0x77]
    %v6218 = vld [vmem:[#allocation2 + $0xc] sm:$0x77]
    %v6221 = vunpack.c.l.b16 %v6215
    %v6222 = vunpack.c.l.b16 %v6216
    %v6223 = vpack.c.b16 %v6222, %v6221
    %v6226 = vunpack.c.l.b16 %v6217
    %v6227 = vunpack.c.h.b16 %v6217
    %v6228 = vunpack.c.l.b16 %v6218
    %v6229 = vunpack.c.h.b16 %v6218
    %v6230 = vpack.c.b16 %v6226, %v6226
    %v6231 = vpack.c.b16 %v6227, %v6227
    %v6232 = vpack.c.b16 %v6228, %v6228
    %v6233 = vpack.c.b16 %v6229, %v6229
    %6234 = vrot.lane.b32.xlu0 %v6230, 127
    %v6235 = vpop.permute.xlu0 %6234
    %6236 = vrot.lane.b32.xlu0 %v6231, 127
    %v6237 = vpop.permute.xlu0 %6236
    %6238 = vrot.lane.b32.xlu0 %v6232, 127
    %v6239 = vpop.permute.xlu0 %6238
    %6240 = vrot.lane.b32.xlu0 %v6233, 127
    %v6241 = vpop.permute.xlu0 %6240
    %v6242 = vsel %vm1384, %v6235, %v6237
    %v6243 = vsel %vm1384, %v6237, %v6239
    %v6244 = vsel %vm1384, %v6239, %v6241
    %v6246 = vsel %vm778, %v6223, 0
    %v6249 = vand.u32 %v6242, %v785
    %v6252 = vand.u32 %v6243, %v785
    %v6255 = vand.u32 %v6244, %v785
    %6257 = vmatprep.subr.bf16.mxu0 %v6252
    %6258 = vmatpush1.bf16.msra.mxu0 %v6249
    %6259 = vmatprep.subr.bf16.mxu0 0
    %6260 = vmatpush1.bf16.msra.mxu0 0
    %6261 = vmatprep.subr.bf16.mxu0 0
    %6262 = vmatpush1.bf16.msra.mxu0 0
    %6263 = vmatprep.subr.bf16.mxu0 0
    %6264 = vmatpush1.bf16.msra.mxu0 0
    %6265 = vmatprep.subr.bf16.mxu0 0
    %6266 = vmatpush1.bf16.msra.mxu0 0
    %6267 = vmatprep.subr.bf16.mxu0 0
    %6268 = vmatpush1.bf16.msra.mxu0 0
    %6269 = vmatprep.subr.bf16.mxu0 0
    %6270 = vmatpush1.bf16.msra.mxu0 0
    %6271 = vmatprep.subr.bf16.mxu0 0
    %6272 = vmatpush1.bf16.msra.mxu0 0
    %6273 = vmatprep.subr.bf16.mxu0 0
    %6274 = vmatpush1.bf16.msra.mxu0 0
    %6275 = vmatprep.subr.bf16.mxu0 0
    %6276 = vmatpush1.bf16.msra.mxu0 0
    %6277 = vmatprep.subr.bf16.mxu0 0
    %6278 = vmatpush1.bf16.msra.mxu0 0
    %6279 = vmatprep.subr.bf16.mxu0 0
    %6280 = vmatpush1.bf16.msra.mxu0 0
    %6281 = vmatprep.subr.bf16.mxu0 0
    %6282 = vmatpush1.bf16.msra.mxu0 0
    %6283 = vmatprep.subr.bf16.mxu0 0
    %6284 = vmatpush1.bf16.msra.mxu0 0
    %6285 = vmatprep.subr.bf16.mxu0 0
    %6286 = vmatpush1.bf16.msra.mxu0 0
    %6287 = vmatprep.subr.bf16.mxu0 0
    %6288 = vmatpush1.bf16.msra.mxu0 0
    %6289 = vmatprep.mubr.bf16.mxu0 0
    %6290 = vmatmul.mubr.bf16.gmra.mrb[0].mxu0 %v6246
    %v6291 = vpop.f32.mrb[0].mxu0
    %v6292 = vadd.f32 0.0, %v6291
    %v6293 = vpop.f32.mrb[0].mxu0
    %v6294 = vadd.f32 0.0, %v6293
    %v6295 = vpop.f32.mrb[0].mxu0
    %v6296 = vadd.f32 0.0, %v6295
    %v6297 = vpop.f32.mrb[0].mxu0
    %v6298 = vadd.f32 0.0, %v6297
    %6299 = vdwg.mxu0
    %6300 = vmatprep.subr.bf16.mxu0 0
    %6301 = vmatpush1.bf16.msra.mxu0 %v6255
    %6302 = vmatprep.subr.bf16.mxu0 0
    %6303 = vmatpush1.bf16.msra.mxu0 0
    %6304 = vmatprep.subr.bf16.mxu0 0
    %6305 = vmatpush1.bf16.msra.mxu0 0
    %6306 = vmatprep.subr.bf16.mxu0 0
    %6307 = vmatpush1.bf16.msra.mxu0 0
    %6308 = vmatprep.subr.bf16.mxu0 0
    %6309 = vmatpush1.bf16.msra.mxu0 0
    %6310 = vmatprep.subr.bf16.mxu0 0
    %6311 = vmatpush1.bf16.msra.mxu0 0
    %6312 = vmatprep.subr.bf16.mxu0 0
    %6313 = vmatpush1.bf16.msra.mxu0 0
    %6314 = vmatprep.subr.bf16.mxu0 0
    %6315 = vmatpush1.bf16.msra.mxu0 0
    %6316 = vmatprep.subr.bf16.mxu0 0
    %6317 = vmatpush1.bf16.msra.mxu0 0
    %6318 = vmatprep.subr.bf16.mxu0 0
    %6319 = vmatpush1.bf16.msra.mxu0 0
    %6320 = vmatprep.subr.bf16.mxu0 0
    %6321 = vmatpush1.bf16.msra.mxu0 0
    %6322 = vmatprep.subr.bf16.mxu0 0
    %6323 = vmatpush1.bf16.msra.mxu0 0
    %6324 = vmatprep.subr.bf16.mxu0 0
    %6325 = vmatpush1.bf16.msra.mxu0 0
    %6326 = vmatprep.subr.bf16.mxu0 0
    %6327 = vmatpush1.bf16.msra.mxu0 0
    %6328 = vmatprep.subr.bf16.mxu0 0
    %6329 = vmatpush1.bf16.msra.mxu0 0
    %6330 = vmatprep.subr.bf16.mxu0 0
    %6331 = vmatpush1.bf16.msra.mxu0 0
    %6332 = vmatprep.mubr.bf16.mxu0 0
    %6333 = vmatmul.mubr.bf16.gmra.mrb[0].mxu0 %v6246
    %v6334 = vpop.f32.mrb[0].mxu0
    %v6335 = vadd.f32 0.0, %v6334
    %v6336 = vpop.f32.mrb[0].mxu0
    %v6337 = vpop.f32.mrb[0].mxu0
    %v6338 = vadd.f32 0.0, %v6337
    %v6339 = vpop.f32.mrb[0].mxu0
    %6340 = vdwg.mxu0
    %v6341 = vadd.f32 %v6209, %v6292
    %v6342 = vadd.f32 %v6210, %v6294
    %v6343 = vadd.f32 %v6211, %v6335
    %v6344 = vadd.f32 %v6212, %v6296
    %v6345 = vadd.f32 %v6213, %v6298
    %v6346 = vadd.f32 %v6214, %v6338
    %v6347 = vld [vmem:[%s1490] sm:$0xf]
    %v6348 = vld [vmem:[%s1490 + $0x4] sm:$0x1]
    %v6351 = vunpack.c.l.b16 %v6347
    %v6352 = vunpack.c.l.b16 %v6348
    %v6353 = vpack.c.b16 %v6352, %v6351
    %6354 = vrot.lane.b32.xlu0 %v6230, 105
    %v6355 = vpop.permute.xlu0 %6354
    %6356 = vrot.lane.b32.xlu0 %v6231, 105
    %v6357 = vpop.permute.xlu0 %6356
    %6358 = vrot.lane.b32.xlu0 %v6232, 105
    %v6359 = vpop.permute.xlu0 %6358
    %6360 = vrot.lane.b32.xlu0 %v6233, 105
    %v6361 = vpop.permute.xlu0 %6360
    %v6362 = vsel %vm1506, %v6355, %v6357
    %v6363 = vsel %vm1506, %v6357, %v6359
    %v6364 = vsel %vm1506, %v6359, %v6361
    %v6366 = vsel %vm778, %v6353, 0
    %v6369 = vand.u32 %v6362, %v785
    %v6372 = vand.u32 %v6363, %v785
    %v6375 = vand.u32 %v6364, %v785
    %6377 = vmatprep.subr.bf16.mxu0 %v6372
    %6378 = vmatpush1.bf16.msra.mxu0 %v6369
    %6379 = vmatprep.subr.bf16.mxu0 0
    %6380 = vmatpush1.bf16.msra.mxu0 0
    %6381 = vmatprep.subr.bf16.mxu0 0
    %6382 = vmatpush1.bf16.msra.mxu0 0
    %6383 = vmatprep.subr.bf16.mxu0 0
    %6384 = vmatpush1.bf16.msra.mxu0 0
    %6385 = vmatprep.subr.bf16.mxu0 0
    %6386 = vmatpush1.bf16.msra.mxu0 0
    %6387 = vmatprep.subr.bf16.mxu0 0
    %6388 = vmatpush1.bf16.msra.mxu0 0
    %6389 = vmatprep.subr.bf16.mxu0 0
    %6390 = vmatpush1.bf16.msra.mxu0 0
    %6391 = vmatprep.subr.bf16.mxu0 0
    %6392 = vmatpush1.bf16.msra.mxu0 0
    %6393 = vmatprep.subr.bf16.mxu0 0
    %6394 = vmatpush1.bf16.msra.mxu0 0
    %6395 = vmatprep.subr.bf16.mxu0 0
    %6396 = vmatpush1.bf16.msra.mxu0 0
    %6397 = vmatprep.subr.bf16.mxu0 0
    %6398 = vmatpush1.bf16.msra.mxu0 0
    %6399 = vmatprep.subr.bf16.mxu0 0
    %6400 = vmatpush1.bf16.msra.mxu0 0
    %6401 = vmatprep.subr.bf16.mxu0 0
    %6402 = vmatpush1.bf16.msra.mxu0 0
    %6403 = vmatprep.subr.bf16.mxu0 0
    %6404 = vmatpush1.bf16.msra.mxu0 0
    %6405 = vmatprep.subr.bf16.mxu0 0
    %6406 = vmatpush1.bf16.msra.mxu0 0
    %6407 = vmatprep.subr.bf16.mxu0 0
    %6408 = vmatpush1.bf16.msra.mxu0 0
    %6409 = vmatprep.mubr.bf16.mxu0 0
    %6410 = vmatmul.mubr.bf16.gmra.mrb[0].mxu0 %v6366
    %v6411 = vpop.f32.mrb[0].mxu0
    %v6412 = vadd.f32 0.0, %v6411
    %v6413 = vpop.f32.mrb[0].mxu0
    %v6414 = vadd.f32 0.0, %v6413
    %v6415 = vpop.f32.mrb[0].mxu0
    %v6416 = vadd.f32 0.0, %v6415
    %v6417 = vpop.f32.mrb[0].mxu0
    %v6418 = vadd.f32 0.0, %v6417
    %6419 = vdwg.mxu0
    %6420 = vmatprep.subr.bf16.mxu0 0
    %6421 = vmatpush1.bf16.msra.mxu0 %v6375
    %6422 = vmatprep.subr.bf16.mxu0 0
    %6423 = vmatpush1.bf16.msra.mxu0 0
    %6424 = vmatprep.subr.bf16.mxu0 0
    %6425 = vmatpush1.bf16.msra.mxu0 0
    %6426 = vmatprep.subr.bf16.mxu0 0
    %6427 = vmatpush1.bf16.msra.mxu0 0
    %6428 = vmatprep.subr.bf16.mxu0 0
    %6429 = vmatpush1.bf16.msra.mxu0 0
    %6430 = vmatprep.subr.bf16.mxu0 0
    %6431 = vmatpush1.bf16.msra.mxu0 0
    %6432 = vmatprep.subr.bf16.mxu0 0
    %6433 = vmatpush1.bf16.msra.mxu0 0
    %6434 = vmatprep.subr.bf16.mxu0 0
    %6435 = vmatpush1.bf16.msra.mxu0 0
    %6436 = vmatprep.subr.bf16.mxu0 0
    %6437 = vmatpush1.bf16.msra.mxu0 0
    %6438 = vmatprep.subr.bf16.mxu0 0
    %6439 = vmatpush1.bf16.msra.mxu0 0
    %6440 = vmatprep.subr.bf16.mxu0 0
    %6441 = vmatpush1.bf16.msra.mxu0 0
    %6442 = vmatprep.subr.bf16.mxu0 0
    %6443 = vmatpush1.bf16.msra.mxu0 0
    %6444 = vmatprep.subr.bf16.mxu0 0
    %6445 = vmatpush1.bf16.msra.mxu0 0
    %6446 = vmatprep.subr.bf16.mxu0 0
    %6447 = vmatpush1.bf16.msra.mxu0 0
    %6448 = vmatprep.subr.bf16.mxu0 0
    %6449 = vmatpush1.bf16.msra.mxu0 0
    %6450 = vmatprep.subr.bf16.mxu0 0
    %6451 = vmatpush1.bf16.msra.mxu0 0
    %6452 = vmatprep.mubr.bf16.mxu0 0
    %6453 = vmatmul.mubr.bf16.gmra.mrb[0].mxu0 %v6366
    %v6454 = vpop.f32.mrb[0].mxu0
    %v6455 = vadd.f32 0.0, %v6454
    %v6456 = vpop.f32.mrb[0].mxu0
    %v6457 = vpop.f32.mrb[0].mxu0
    %v6458 = vadd.f32 0.0, %v6457
    %v6459 = vpop.f32.mrb[0].mxu0
    %6460 = vdwg.mxu0
    %v6461 = vadd.f32 %v6341, %v6412
    %v6462 = vadd.f32 %v6342, %v6414
    %v6463 = vadd.f32 %v6343, %v6455
    %v6464 = vadd.f32 %v6344, %v6416
    %v6465 = vadd.f32 %v6345, %v6418
    %v6466 = vadd.f32 %v6346, %v6458
    %v6467 = vld [vmem:[%s1612] sm:$0xf]
    %v6468 = vld [vmem:[%s1612 + $0x4] sm:$0x1]
    %v6471 = vunpack.c.l.b16 %v6467
    %v6472 = vunpack.c.l.b16 %v6468
    %v6473 = vpack.c.b16 %v6472, %v6471
    %6474 = vrot.lane.b32.xlu0 %v6230, 104
    %v6475 = vpop.permute.xlu0 %6474
    %6476 = vrot.lane.b32.xlu0 %v6231, 104
    %v6477 = vpop.permute.xlu0 %6476
    %6478 = vrot.lane.b32.xlu0 %v6232, 104
    %v6479 = vpop.permute.xlu0 %6478
    %6480 = vrot.lane.b32.xlu0 %v6233, 104
    %v6481 = vpop.permute.xlu0 %6480
    %v6482 = vsel %vm1628, %v6475, %v6477
    %v6483 = vsel %vm1628, %v6477, %v6479
    %v6484 = vsel %vm1628, %v6479, %v6481
    %v6486 = vsel %vm778, %v6473, 0
    %v6489 = vand.u32 %v6482, %v785
    %v6492 = vand.u32 %v6483, %v785
    %v6495 = vand.u32 %v6484, %v785
    %6497 = vmatprep.subr.bf16.mxu0 %v6492
    %6498 = vmatpush1.bf16.msra.mxu0 %v6489
    %6499 = vmatprep.subr.bf16.mxu0 0
    %6500 = vmatpush1.bf16.msra.mxu0 0
    %6501 = vmatprep.subr.bf16.mxu0 0
    %6502 = vmatpush1.bf16.msra.mxu0 0
    %6503 = vmatprep.subr.bf16.mxu0 0
    %6504 = vmatpush1.bf16.msra.mxu0 0
    %6505 = vmatprep.subr.bf16.mxu0 0
    %6506 = vmatpush1.bf16.msra.mxu0 0
    %6507 = vmatprep.subr.bf16.mxu0 0
    %6508 = vmatpush1.bf16.msra.mxu0 0
    %6509 = vmatprep.subr.bf16.mxu0 0
    %6510 = vmatpush1.bf16.msra.mxu0 0
    %6511 = vmatprep.subr.bf16.mxu0 0
    %6512 = vmatpush1.bf16.msra.mxu0 0
    %6513 = vmatprep.subr.bf16.mxu0 0
    %6514 = vmatpush1.bf16.msra.mxu0 0
    %6515 = vmatprep.subr.bf16.mxu0 0
    %6516 = vmatpush1.bf16.msra.mxu0 0
    %6517 = vmatprep.subr.bf16.mxu0 0
    %6518 = vmatpush1.bf16.msra.mxu0 0
    %6519 = vmatprep.subr.bf16.mxu0 0
    %6520 = vmatpush1.bf16.msra.mxu0 0
    %6521 = vmatprep.subr.bf16.mxu0 0
    %6522 = vmatpush1.bf16.msra.mxu0 0
    %6523 = vmatprep.subr.bf16.mxu0 0
    %6524 = vmatpush1.bf16.msra.mxu0 0
    %6525 = vmatprep.subr.bf16.mxu0 0
    %6526 = vmatpush1.bf16.msra.mxu0 0
    %6527 = vmatprep.subr.bf16.mxu0 0
    %6528 = vmatpush1.bf16.msra.mxu0 0
    %6529 = vmatprep.mubr.bf16.mxu0 0
    %6530 = vmatmul.mubr.bf16.gmra.mrb[0].mxu0 %v6486
    %v6531 = vpop.f32.mrb[0].mxu0
    %v6532 = vadd.f32 0.0, %v6531
    %v6533 = vpop.f32.mrb[0].mxu0
    %v6534 = vadd.f32 0.0, %v6533
    %v6535 = vpop.f32.mrb[0].mxu0
    %v6536 = vadd.f32 0.0, %v6535
    %v6537 = vpop.f32.mrb[0].mxu0
    %v6538 = vadd.f32 0.0, %v6537
    %6539 = vdwg.mxu0
    %6540 = vmatprep.subr.bf16.mxu0 0
    %6541 = vmatpush1.bf16.msra.mxu0 %v6495
    %6542 = vmatprep.subr.bf16.mxu0 0
    %6543 = vmatpush1.bf16.msra.mxu0 0
    %6544 = vmatprep.subr.bf16.mxu0 0
    %6545 = vmatpush1.bf16.msra.mxu0 0
    %6546 = vmatprep.subr.bf16.mxu0 0
    %6547 = vmatpush1.bf16.msra.mxu0 0
    %6548 = vmatprep.subr.bf16.mxu0 0
    %6549 = vmatpush1.bf16.msra.mxu0 0
    %6550 = vmatprep.subr.bf16.mxu0 0
    %6551 = vmatpush1.bf16.msra.mxu0 0
    %6552 = vmatprep.subr.bf16.mxu0 0
    %6553 = vmatpush1.bf16.msra.mxu0 0
    %6554 = vmatprep.subr.bf16.mxu0 0
    %6555 = vmatpush1.bf16.msra.mxu0 0
    %6556 = vmatprep.subr.bf16.mxu0 0
    %6557 = vmatpush1.bf16.msra.mxu0 0
    %6558 = vmatprep.subr.bf16.mxu0 0
    %6559 = vmatpush1.bf16.msra.mxu0 0
    %6560 = vmatprep.subr.bf16.mxu0 0
    %6561 = vmatpush1.bf16.msra.mxu0 0
    %6562 = vmatprep.subr.bf16.mxu0 0
    %6563 = vmatpush1.bf16.msra.mxu0 0
    %6564 = vmatprep.subr.bf16.mxu0 0
    %6565 = vmatpush1.bf16.msra.mxu0 0
    %6566 = vmatprep.subr.bf16.mxu0 0
    %6567 = vmatpush1.bf16.msra.mxu0 0
    %6568 = vmatprep.subr.bf16.mxu0 0
    %6569 = vmatpush1.bf16.msra.mxu0 0
    %6570 = vmatprep.subr.bf16.mxu0 0
    %6571 = vmatpush1.bf16.msra.mxu0 0
    %6572 = vmatprep.mubr.bf16.mxu0 0
    %6573 = vmatmul.mubr.bf16.gmra.mrb[0].mxu0 %v6486
    %v6574 = vpop.f32.mrb[0].mxu0
    %v6575 = vadd.f32 0.0, %v6574
    %v6576 = vpop.f32.mrb[0].mxu0
    %v6577 = vpop.f32.mrb[0].mxu0
    %v6578 = vadd.f32 0.0, %v6577
    %v6579 = vpop.f32.mrb[0].mxu0
    %6580 = vdwg.mxu0
    %v6581 = vadd.f32 %v6461, %v6532
    %v6582 = vadd.f32 %v6462, %v6534
    %v6583 = vadd.f32 %v6463, %v6575
    %v6584 = vadd.f32 %v6464, %v6536
    %v6585 = vadd.f32 %v6465, %v6538
    %v6586 = vadd.f32 %v6466, %v6578
    %v6587 = vld [vmem:[%s1734] sm:$0xf]
    %v6588 = vld [vmem:[%s1734 + $0x4] sm:$0x1]
    %v6591 = vunpack.c.l.b16 %v6587
    %v6592 = vunpack.c.l.b16 %v6588
    %v6593 = vpack.c.b16 %v6592, %v6591
    %6594 = vrot.lane.b32.xlu0 %v6230, 103
    %v6595 = vpop.permute.xlu0 %6594
    %6596 = vrot.lane.b32.xlu0 %v6231, 103
    %v6597 = vpop.permute.xlu0 %6596
    %6598 = vrot.lane.b32.xlu0 %v6232, 103
    %v6599 = vpop.permute.xlu0 %6598
    %6600 = vrot.lane.b32.xlu0 %v6233, 103
    %v6601 = vpop.permute.xlu0 %6600
    %v6602 = vsel %vm1750, %v6595, %v6597
    %v6603 = vsel %vm1750, %v6597, %v6599
    %v6604 = vsel %vm1750, %v6599, %v6601
    %v6606 = vsel %vm778, %v6593, 0
    %v6609 = vand.u32 %v6602, %v785
    %v6612 = vand.u32 %v6603, %v785
    %v6615 = vand.u32 %v6604, %v785
    %6617 = vmatprep.subr.bf16.mxu0 %v6612
    %6618 = vmatpush1.bf16.msra.mxu0 %v6609
    %6619 = vmatprep.subr.bf16.mxu0 0
    %6620 = vmatpush1.bf16.msra.mxu0 0
    %6621 = vmatprep.subr.bf16.mxu0 0
    %6622 = vmatpush1.bf16.msra.mxu0 0
    %6623 = vmatprep.subr.bf16.mxu0 0
    %6624 = vmatpush1.bf16.msra.mxu0 0
    %6625 = vmatprep.subr.bf16.mxu0 0
    %6626 = vmatpush1.bf16.msra.mxu0 0
    %6627 = vmatprep.subr.bf16.mxu0 0
    %6628 = vmatpush1.bf16.msra.mxu0 0
    %6629 = vmatprep.subr.bf16.mxu0 0
    %6630 = vmatpush1.bf16.msra.mxu0 0
    %6631 = vmatprep.subr.bf16.mxu0 0
    %6632 = vmatpush1.bf16.msra.mxu0 0
    %6633 = vmatprep.subr.bf16.mxu0 0
    %6634 = vmatpush1.bf16.msra.mxu0 0
    %6635 = vmatprep.subr.bf16.mxu0 0
    %6636 = vmatpush1.bf16.msra.mxu0 0
    %6637 = vmatprep.subr.bf16.mxu0 0
    %6638 = vmatpush1.bf16.msra.mxu0 0
    %6639 = vmatprep.subr.bf16.mxu0 0
    %6640 = vmatpush1.bf16.msra.mxu0 0
    %6641 = vmatprep.subr.bf16.mxu0 0
    %6642 = vmatpush1.bf16.msra.mxu0 0
    %6643 = vmatprep.subr.bf16.mxu0 0
    %6644 = vmatpush1.bf16.msra.mxu0 0
    %6645 = vmatprep.subr.bf16.mxu0 0
    %6646 = vmatpush1.bf16.msra.mxu0 0
    %6647 = vmatprep.subr.bf16.mxu0 0
    %6648 = vmatpush1.bf16.msra.mxu0 0
    %6649 = vmatprep.mubr.bf16.mxu0 0
    %6650 = vmatmul.mubr.bf16.gmra.mrb[0].mxu0 %v6606
    %v6651 = vpop.f32.mrb[0].mxu0
    %v6652 = vadd.f32 0.0, %v6651
    %v6653 = vpop.f32.mrb[0].mxu0
    %v6654 = vadd.f32 0.0, %v6653
    %v6655 = vpop.f32.mrb[0].mxu0
    %v6656 = vadd.f32 0.0, %v6655
    %v6657 = vpop.f32.mrb[0].mxu0
    %v6658 = vadd.f32 0.0, %v6657
    %6659 = vdwg.mxu0
    %6660 = vmatprep.subr.bf16.mxu0 0
    %6661 = vmatpush1.bf16.msra.mxu0 %v6615
    %6662 = vmatprep.subr.bf16.mxu0 0
    %6663 = vmatpush1.bf16.msra.mxu0 0
    %6664 = vmatprep.subr.bf16.mxu0 0
    %6665 = vmatpush1.bf16.msra.mxu0 0
    %6666 = vmatprep.subr.bf16.mxu0 0
    %6667 = vmatpush1.bf16.msra.mxu0 0
    %6668 = vmatprep.subr.bf16.mxu0 0
    %6669 = vmatpush1.bf16.msra.mxu0 0
    %6670 = vmatprep.subr.bf16.mxu0 0
    %6671 = vmatpush1.bf16.msra.mxu0 0
    %6672 = vmatprep.subr.bf16.mxu0 0
    %6673 = vmatpush1.bf16.msra.mxu0 0
    %6674 = vmatprep.subr.bf16.mxu0 0
    %6675 = vmatpush1.bf16.msra.mxu0 0
    %6676 = vmatprep.subr.bf16.mxu0 0
    %6677 = vmatpush1.bf16.msra.mxu0 0
    %6678 = vmatprep.subr.bf16.mxu0 0
    %6679 = vmatpush1.bf16.msra.mxu0 0
    %6680 = vmatprep.subr.bf16.mxu0 0
    %6681 = vmatpush1.bf16.msra.mxu0 0
    %6682 = vmatprep.subr.bf16.mxu0 0
    %6683 = vmatpush1.bf16.msra.mxu0 0
    %6684 = vmatprep.subr.bf16.mxu0 0
    %6685 = vmatpush1.bf16.msra.mxu0 0
    %6686 = vmatprep.subr.bf16.mxu0 0
    %6687 = vmatpush1.bf16.msra.mxu0 0
    %6688 = vmatprep.subr.bf16.mxu0 0
    %6689 = vmatpush1.bf16.msra.mxu0 0
    %6690 = vmatprep.subr.bf16.mxu0 0
    %6691 = vmatpush1.bf16.msra.mxu0 0
    %6692 = vmatprep.mubr.bf16.mxu0 0
    %6693 = vmatmul.mubr.bf16.gmra.mrb[0].mxu0 %v6606
    %v6694 = vpop.f32.mrb[0].mxu0
    %v6695 = vadd.f32 0.0, %v6694
    %v6696 = vpop.f32.mrb[0].mxu0
    %v6697 = vpop.f32.mrb[0].mxu0
    %v6698 = vadd.f32 0.0, %v6697
    %v6699 = vpop.f32.mrb[0].mxu0
    %6700 = vdwg.mxu0
    %v6701 = vadd.f32 %v6581, %v6652
    %v6702 = vadd.f32 %v6582, %v6654
    %v6703 = vadd.f32 %v6583, %v6695
    %v6704 = vadd.f32 %v6584, %v6656
    %v6705 = vadd.f32 %v6585, %v6658
    %v6706 = vadd.f32 %v6586, %v6698
    %v6707 = vadd.f32 %v6701, %v1859
    %v6708 = vadd.f32 %v6702, %v1859
    %v6709 = vadd.f32 %v6703, %v1859
    %v6710 = vadd.f32 %v6704, %v1864
    %v6711 = vadd.f32 %v6705, %v1864
    %v6712 = vadd.f32 %v6706, %v1864
    %v6713 = vtanh.pop %v6707
    %v6714 = vtanh.pop %v6708
    %v6715 = vtanh.pop %v6709
    %v6716 = vtanh.pop %v6710
    %v6717 = vtanh.pop %v6711
    %v6718 = vtanh.pop %v6712
    %v6719 = vpack.c.bf16 %v6716, %v6713
    %v6720 = vpack.c.bf16 %v6717, %v6714
    %v6721 = vpack.c.bf16 %v6718, %v6715
    %v6723 = vsel %vm1885, %v6719, 0
    %v6726 = vsel %vm1885, %v6720, 0
    %v6729 = vsel %vm1885, %v6721, 0
    %6731 = vmatprep.subr.bf16.mxu0 %v6726
    %6732 = vmatpush1.bf16.msra.mxu0 %v6723
    %6733 = vmatprep.subr.bf16.mxu0 0
    %6734 = vmatpush1.bf16.msra.mxu0 0
    %6735 = vmatprep.subr.bf16.mxu0 0
    %6736 = vmatpush1.bf16.msra.mxu0 0
    %6737 = vmatprep.subr.bf16.mxu0 0
    %6738 = vmatpush1.bf16.msra.mxu0 0
    %6739 = vmatprep.subr.bf16.mxu0 0
    %6740 = vmatpush1.bf16.msra.mxu0 0
    %6741 = vmatprep.subr.bf16.mxu0 0
    %6742 = vmatpush1.bf16.msra.mxu0 0
    %6743 = vmatprep.subr.bf16.mxu0 0
    %6744 = vmatpush1.bf16.msra.mxu0 0
    %6745 = vmatprep.subr.bf16.mxu0 0
    %6746 = vmatpush1.bf16.msra.mxu0 0
    %6747 = vmatprep.subr.bf16.mxu0 0
    %6748 = vmatpush1.bf16.msra.mxu0 0
    %6749 = vmatprep.subr.bf16.mxu0 0
    %6750 = vmatpush1.bf16.msra.mxu0 0
    %6751 = vmatprep.subr.bf16.mxu0 0
    %6752 = vmatpush1.bf16.msra.mxu0 0
    %6753 = vmatprep.subr.bf16.mxu0 0
    %6754 = vmatpush1.bf16.msra.mxu0 0
    %6755 = vmatprep.subr.bf16.mxu0 0
    %6756 = vmatpush1.bf16.msra.mxu0 0
    %6757 = vmatprep.subr.bf16.mxu0 0
    %6758 = vmatpush1.bf16.msra.mxu0 0
    %6759 = vmatprep.subr.bf16.mxu0 0
    %6760 = vmatpush1.bf16.msra.mxu0 0
    %6761 = vmatprep.subr.bf16.mxu0 0
    %6762 = vmatpush1.bf16.msra.mxu0 0
    %6763 = vmatprep.mubr.bf16.mxu0 0
    %6764 = vmatmul.mubr.bf16.gmra.mrb[0].mxu0 %v1883
    %v6765 = vpop.f32.mrb[0].mxu0
    %v6766 = vadd.f32 0.0, %v6765
    %v6767 = vpop.f32.mrb[0].mxu0
    %v6768 = vadd.f32 0.0, %v6767
    %v6769 = vpop.f32.mrb[0].mxu0
    %v6770 = vpop.f32.mrb[0].mxu0
    %6771 = vdwg.mxu0
    %6772 = vmatprep.subr.bf16.mxu0 0
    %6773 = vmatpush1.bf16.msra.mxu0 %v6729
    %6774 = vmatprep.subr.bf16.mxu0 0
    %6775 = vmatpush1.bf16.msra.mxu0 0
    %6776 = vmatprep.subr.bf16.mxu0 0
    %6777 = vmatpush1.bf16.msra.mxu0 0
    %6778 = vmatprep.subr.bf16.mxu0 0
    %6779 = vmatpush1.bf16.msra.mxu0 0
    %6780 = vmatprep.subr.bf16.mxu0 0
    %6781 = vmatpush1.bf16.msra.mxu0 0
    %6782 = vmatprep.subr.bf16.mxu0 0
    %6783 = vmatpush1.bf16.msra.mxu0 0
    %6784 = vmatprep.subr.bf16.mxu0 0
    %6785 = vmatpush1.bf16.msra.mxu0 0
    %6786 = vmatprep.subr.bf16.mxu0 0
    %6787 = vmatpush1.bf16.msra.mxu0 0
    %6788 = vmatprep.subr.bf16.mxu0 0
    %6789 = vmatpush1.bf16.msra.mxu0 0
    %6790 = vmatprep.subr.bf16.mxu0 0
    %6791 = vmatpush1.bf16.msra.mxu0 0
    %6792 = vmatprep.subr.bf16.mxu0 0
    %6793 = vmatpush1.bf16.msra.mxu0 0
    %6794 = vmatprep.subr.bf16.mxu0 0
    %6795 = vmatpush1.bf16.msra.mxu0 0
    %6796 = vmatprep.subr.bf16.mxu0 0
    %6797 = vmatpush1.bf16.msra.mxu0 0
    %6798 = vmatprep.subr.bf16.mxu0 0
    %6799 = vmatpush1.bf16.msra.mxu0 0
    %6800 = vmatprep.subr.bf16.mxu0 0
    %6801 = vmatpush1.bf16.msra.mxu0 0
    %6802 = vmatprep.subr.bf16.mxu0 0
    %6803 = vmatpush1.bf16.msra.mxu0 0
    %6804 = vmatprep.mubr.bf16.mxu0 0
    %6805 = vmatmul.mubr.bf16.gmra.mrb[0].mxu0 %v1883
    %v6806 = vpop.f32.mrb[0].mxu0
    %v6807 = vadd.f32 0.0, %v6806
    %v6808 = vpop.f32.mrb[0].mxu0
    %v6809 = vpop.f32.mrb[0].mxu0
    %v6810 = vpop.f32.mrb[0].mxu0
    %6811 = vdwg.mxu0
    %v6812 = vadd.f32 %v5550, %v6766
    %v6813 = vadd.f32 %v5552, %v6768
    %v6814 = vadd.f32 %v5591, %v6807
    %v6818 = vunpack.c.l.b16 %v5503
    %v6819 = vunpack.c.l.b16 %v5504
    %v6820 = vunpack.c.l.b16 %v5505
    %v6821 = vpack.c.b16 %v6819, %v6818
    %v6822 = vpack.c.b16 %v6820, %v6820
    %v6824 = vshrl.u32 %v5602, 16
    %v6826 = vrot.slane %v6824, 7
    %v6827 = vrot.slane %v6826, 4
    %v6829 = vshrl.u32 %v6821, 16
    %v6831 = vrot.slane %v6829, 7
    %v6832 = vshll.u32 %v6821, 16
    %v6834 = vor.u32 %v6831, %v6832
    %v6835 = vsel %vm1989, %v6827, %v6834
    %v6837 = vshrl.u32 %v5603, 16
    %v6839 = vrot.slane %v6837, 7
    %v6840 = vrot.slane %v6839, 4
    %v6842 = vshrl.u32 %v6822, 16
    %v6844 = vrot.slane %v6842, 7
    %v6845 = vshll.u32 %v6822, 16
    %v6847 = vor.u32 %v6844, %v6845
    %v6848 = vsel %vm1989, %v6840, %v6847
    %v6851 = vld [vmem:[#allocation3 + $0x4] sm:$0x77]
    %v6852 = vsel %vm737, %v6835, %v6851
    %6853 = vst [vmem:[#allocation3 + $0x4] sm:$0x77] %v6852
    %v6854 = vld [vmem:[#allocation3 + $0xc] sm:$0x7]
    %v6855 = vsel %vm254, %v6848, %v6854
    %6856 = vst [vmem:[#allocation3 + $0xc] sm:$0x7] %v6855
    %v6857 = vld [vmem:[#allocation13] sm:$0xf]
    %v6858 = vld [vmem:[#allocation13 + $0x4] sm:$0x1]
    %v6859 = vld [vmem:[#allocation3] sm:$0x77]
    %v6860 = vld [vmem:[#allocation3 + $0x8] sm:$0x77]
    %v6861 = vld [vmem:[%s2028] sm:$0xf]
    %v6862 = vld [vmem:[%s2028 + $0x4] sm:$0x1]
    %v6865 = vunpack.c.l.b16 %v6861
    %v6866 = vunpack.c.l.b16 %v6862
    %v6867 = vpack.c.b16 %v6866, %v6865
    %v6870 = vunpack.c.l.b16 %v6859
    %v6871 = vunpack.c.h.b16 %v6859
    %v6872 = vunpack.c.l.b16 %v6860
    %v6873 = vunpack.c.h.b16 %v6860
    %v6874 = vpack.c.b16 %v6870, %v6870
    %v6875 = vpack.c.b16 %v6871, %v6871
    %v6876 = vpack.c.b16 %v6872, %v6872
    %v6877 = vpack.c.b16 %v6873, %v6873
    %6878 = vrot.lane.b32.xlu0 %v6874, 49
    %v6879 = vpop.permute.xlu0 %6878
    %6880 = vrot.lane.b32.xlu0 %v6875, 49
    %v6881 = vpop.permute.xlu0 %6880
    %6882 = vrot.lane.b32.xlu0 %v6876, 49
    %v6883 = vpop.permute.xlu0 %6882
    %6884 = vrot.lane.b32.xlu0 %v6877, 49
    %v6885 = vpop.permute.xlu0 %6884
    %v6886 = vsel %vm2054, %v6879, %v6881
    %v6887 = vsel %vm2054, %v6881, %v6883
    %v6888 = vsel %vm2054, %v6883, %v6885
    %v6890 = vsel %vm778, %v6867, 0
    %v6893 = vand.u32 %v6886, %v785
    %v6896 = vand.u32 %v6887, %v785
    %v6899 = vand.u32 %v6888, %v785
    %6901 = vmatprep.subr.bf16.mxu0 %v6896
    %6902 = vmatpush1.bf16.msra.mxu0 %v6893
    %6903 = vmatprep.subr.bf16.mxu0 0
    %6904 = vmatpush1.bf16.msra.mxu0 0
    %6905 = vmatprep.subr.bf16.mxu0 0
    %6906 = vmatpush1.bf16.msra.mxu0 0
    %6907 = vmatprep.subr.bf16.mxu0 0
    %6908 = vmatpush1.bf16.msra.mxu0 0
    %6909 = vmatprep.subr.bf16.mxu0 0
    %6910 = vmatpush1.bf16.msra.mxu0 0
    %6911 = vmatprep.subr.bf16.mxu0 0
    %6912 = vmatpush1.bf16.msra.mxu0 0
    %6913 = vmatprep.subr.bf16.mxu0 0
    %6914 = vmatpush1.bf16.msra.mxu0 0
    %6915 = vmatprep.subr.bf16.mxu0 0
    %6916 = vmatpush1.bf16.msra.mxu0 0
    %6917 = vmatprep.subr.bf16.mxu0 0
    %6918 = vmatpush1.bf16.msra.mxu0 0
    %6919 = vmatprep.subr.bf16.mxu0 0
    %6920 = vmatpush1.bf16.msra.mxu0 0
    %6921 = vmatprep.subr.bf16.mxu0 0
    %6922 = vmatpush1.bf16.msra.mxu0 0
    %6923 = vmatprep.subr.bf16.mxu0 0
    %6924 = vmatpush1.bf16.msra.mxu0 0
    %6925 = vmatprep.subr.bf16.mxu0 0
    %6926 = vmatpush1.bf16.msra.mxu0 0
    %6927 = vmatprep.subr.bf16.mxu0 0
    %6928 = vmatpush1.bf16.msra.mxu0 0
    %6929 = vmatprep.subr.bf16.mxu0 0
    %6930 = vmatpush1.bf16.msra.mxu0 0
    %6931 = vmatprep.subr.bf16.mxu0 0
    %6932 = vmatpush1.bf16.msra.mxu0 0
    %6933 = vmatprep.mubr.bf16.mxu0 0
    %6934 = vmatmul.mubr.bf16.gmra.mrb[0].mxu0 %v6890
    %v6935 = vpop.f32.mrb[0].mxu0
    %v6936 = vadd.f32 0.0, %v6935
    %v6937 = vpop.f32.mrb[0].mxu0
    %v6938 = vadd.f32 0.0, %v6937
    %v6939 = vpop.f32.mrb[0].mxu0
    %v6940 = vadd.f32 0.0, %v6939
    %v6941 = vpop.f32.mrb[0].mxu0
    %v6942 = vadd.f32 0.0, %v6941
    %6943 = vdwg.mxu0
    %6944 = vmatprep.subr.bf16.mxu0 0
    %6945 = vmatpush1.bf16.msra.mxu0 %v6899
    %6946 = vmatprep.subr.bf16.mxu0 0
    %6947 = vmatpush1.bf16.msra.mxu0 0
    %6948 = vmatprep.subr.bf16.mxu0 0
    %6949 = vmatpush1.bf16.msra.mxu0 0
    %6950 = vmatprep.subr.bf16.mxu0 0
    %6951 = vmatpush1.bf16.msra.mxu0 0
    %6952 = vmatprep.subr.bf16.mxu0 0
    %6953 = vmatpush1.bf16.msra.mxu0 0
    %6954 = vmatprep.subr.bf16.mxu0 0
    %6955 = vmatpush1.bf16.msra.mxu0 0
    %6956 = vmatprep.subr.bf16.mxu0 0
    %6957 = vmatpush1.bf16.msra.mxu0 0
    %6958 = vmatprep.subr.bf16.mxu0 0
    %6959 = vmatpush1.bf16.msra.mxu0 0
    %6960 = vmatprep.subr.bf16.mxu0 0
    %6961 = vmatpush1.bf16.msra.mxu0 0
    %6962 = vmatprep.subr.bf16.mxu0 0
    %6963 = vmatpush1.bf16.msra.mxu0 0
    %6964 = vmatprep.subr.bf16.mxu0 0
    %6965 = vmatpush1.bf16.msra.mxu0 0
    %6966 = vmatprep.subr.bf16.mxu0 0
    %6967 = vmatpush1.bf16.msra.mxu0 0
    %6968 = vmatprep.subr.bf16.mxu0 0
    %6969 = vmatpush1.bf16.msra.mxu0 0
    %6970 = vmatprep.subr.bf16.mxu0 0
    %6971 = vmatpush1.bf16.msra.mxu0 0
    %6972 = vmatprep.subr.bf16.mxu0 0
    %6973 = vmatpush1.bf16.msra.mxu0 0
    %6974 = vmatprep.subr.bf16.mxu0 0
    %6975 = vmatpush1.bf16.msra.mxu0 0
    %6976 = vmatprep.mubr.bf16.mxu0 0
    %6977 = vmatmul.mubr.bf16.gmra.mrb[0].mxu0 %v6890
    %v6978 = vpop.f32.mrb[0].mxu0
    %v6979 = vadd.f32 0.0, %v6978
    %v6980 = vpop.f32.mrb[0].mxu0
    %v6981 = vpop.f32.mrb[0].mxu0
    %v6982 = vadd.f32 0.0, %v6981
    %v6983 = vpop.f32.mrb[0].mxu0
    %6984 = vdwg.mxu0
    %v6987 = vunpack.c.l.b16 %v6857
    %v6988 = vunpack.c.l.b16 %v6858
    %v6989 = vpack.c.b16 %v6988, %v6987
    %6990 = vrot.lane.b32.xlu0 %v6874, 50
    %v6991 = vpop.permute.xlu0 %6990
    %6992 = vrot.lane.b32.xlu0 %v6875, 50
    %v6993 = vpop.permute.xlu0 %6992
    %6994 = vrot.lane.b32.xlu0 %v6876, 50
    %v6995 = vpop.permute.xlu0 %6994
    %6996 = vrot.lane.b32.xlu0 %v6877, 50
    %v6997 = vpop.permute.xlu0 %6996
    %v6998 = vsel %vm2167, %v6991, %v6993
    %v6999 = vsel %vm2167, %v6993, %v6995
    %v7000 = vsel %vm2167, %v6995, %v6997
    %v7002 = vsel %vm778, %v6989, 0
    %v7005 = vand.u32 %v6998, %v785
    %v7008 = vand.u32 %v6999, %v785
    %v7011 = vand.u32 %v7000, %v785
    %7013 = vmatprep.subr.bf16.mxu0 %v7008
    %7014 = vmatpush1.bf16.msra.mxu0 %v7005
    %7015 = vmatprep.subr.bf16.mxu0 0
    %7016 = vmatpush1.bf16.msra.mxu0 0
    %7017 = vmatprep.subr.bf16.mxu0 0
    %7018 = vmatpush1.bf16.msra.mxu0 0
    %7019 = vmatprep.subr.bf16.mxu0 0
    %7020 = vmatpush1.bf16.msra.mxu0 0
    %7021 = vmatprep.subr.bf16.mxu0 0
    %7022 = vmatpush1.bf16.msra.mxu0 0
    %7023 = vmatprep.subr.bf16.mxu0 0
    %7024 = vmatpush1.bf16.msra.mxu0 0
    %7025 = vmatprep.subr.bf16.mxu0 0
    %7026 = vmatpush1.bf16.msra.mxu0 0
    %7027 = vmatprep.subr.bf16.mxu0 0
    %7028 = vmatpush1.bf16.msra.mxu0 0
    %7029 = vmatprep.subr.bf16.mxu0 0
    %7030 = vmatpush1.bf16.msra.mxu0 0
    %7031 = vmatprep.subr.bf16.mxu0 0
    %7032 = vmatpush1.bf16.msra.mxu0 0
    %7033 = vmatprep.subr.bf16.mxu0 0
    %7034 = vmatpush1.bf16.msra.mxu0 0
    %7035 = vmatprep.subr.bf16.mxu0 0
    %7036 = vmatpush1.bf16.msra.mxu0 0
    %7037 = vmatprep.subr.bf16.mxu0 0
    %7038 = vmatpush1.bf16.msra.mxu0 0
    %7039 = vmatprep.subr.bf16.mxu0 0
    %7040 = vmatpush1.bf16.msra.mxu0 0
    %7041 = vmatprep.subr.bf16.mxu0 0
    %7042 = vmatpush1.bf16.msra.mxu0 0
    %7043 = vmatprep.subr.bf16.mxu0 0
    %7044 = vmatpush1.bf16.msra.mxu0 0
    %7045 = vmatprep.mubr.bf16.mxu0 0
    %7046 = vmatmul.mubr.bf16.gmra.mrb[0].mxu0 %v7002
    %v7047 = vpop.f32.mrb[0].mxu0
    %v7048 = vadd.f32 %v6936, %v7047
    %v7049 = vpop.f32.mrb[0].mxu0
    %v7050 = vadd.f32 %v6938, %v7049
    %v7051 = vpop.f32.mrb[0].mxu0
    %v7052 = vadd.f32 %v6940, %v7051
    %v7053 = vpop.f32.mrb[0].mxu0
    %v7054 = vadd.f32 %v6942, %v7053
    %7055 = vdwg.mxu0
    %7056 = vmatprep.subr.bf16.mxu0 0
    %7057 = vmatpush1.bf16.msra.mxu0 %v7011
    %7058 = vmatprep.subr.bf16.mxu0 0
    %7059 = vmatpush1.bf16.msra.mxu0 0
    %7060 = vmatprep.subr.bf16.mxu0 0
    %7061 = vmatpush1.bf16.msra.mxu0 0
    %7062 = vmatprep.subr.bf16.mxu0 0
    %7063 = vmatpush1.bf16.msra.mxu0 0
    %7064 = vmatprep.subr.bf16.mxu0 0
    %7065 = vmatpush1.bf16.msra.mxu0 0
    %7066 = vmatprep.subr.bf16.mxu0 0
    %7067 = vmatpush1.bf16.msra.mxu0 0
    %7068 = vmatprep.subr.bf16.mxu0 0
    %7069 = vmatpush1.bf16.msra.mxu0 0
    %7070 = vmatprep.subr.bf16.mxu0 0
    %7071 = vmatpush1.bf16.msra.mxu0 0
    %7072 = vmatprep.subr.bf16.mxu0 0
    %7073 = vmatpush1.bf16.msra.mxu0 0
    %7074 = vmatprep.subr.bf16.mxu0 0
    %7075 = vmatpush1.bf16.msra.mxu0 0
    %7076 = vmatprep.subr.bf16.mxu0 0
    %7077 = vmatpush1.bf16.msra.mxu0 0
    %7078 = vmatprep.subr.bf16.mxu0 0
    %7079 = vmatpush1.bf16.msra.mxu0 0
    %7080 = vmatprep.subr.bf16.mxu0 0
    %7081 = vmatpush1.bf16.msra.mxu0 0
    %7082 = vmatprep.subr.bf16.mxu0 0
    %7083 = vmatpush1.bf16.msra.mxu0 0
    %7084 = vmatprep.subr.bf16.mxu0 0
    %7085 = vmatpush1.bf16.msra.mxu0 0
    %7086 = vmatprep.subr.bf16.mxu0 0
    %7087 = vmatpush1.bf16.msra.mxu0 0
    %7088 = vmatprep.mubr.bf16.mxu0 0
    %7089 = vmatmul.mubr.bf16.gmra.mrb[0].mxu0 %v7002
    %v7090 = vpop.f32.mrb[0].mxu0
    %v7091 = vadd.f32 %v6979, %v7090
    %v7092 = vpop.f32.mrb[0].mxu0
    %v7093 = vpop.f32.mrb[0].mxu0
    %v7094 = vadd.f32 %v6982, %v7093
    %v7095 = vpop.f32.mrb[0].mxu0
    %7096 = vdwg.mxu0
    %v7097 = vld [vmem:[%s2267] sm:$0xf]
    %v7098 = vld [vmem:[%s2267 + $0x4] sm:$0x1]
    %v7101 = vunpack.c.l.b16 %v7097
    %v7102 = vunpack.c.l.b16 %v7098
    %v7103 = vpack.c.b16 %v7102, %v7101
    %7104 = vrot.lane.b32.xlu0 %v6874, 48
    %v7105 = vpop.permute.xlu0 %7104
    %7106 = vrot.lane.b32.xlu0 %v6875, 48
    %v7107 = vpop.permute.xlu0 %7106
    %7108 = vrot.lane.b32.xlu0 %v6876, 48
    %v7109 = vpop.permute.xlu0 %7108
    %7110 = vrot.lane.b32.xlu0 %v6877, 48
    %v7111 = vpop.permute.xlu0 %7110
    %v7112 = vsel %vm2283, %v7105, %v7107
    %v7113 = vsel %vm2283, %v7107, %v7109
    %v7114 = vsel %vm2283, %v7109, %v7111
    %v7116 = vsel %vm778, %v7103, 0
    %v7119 = vand.u32 %v7112, %v785
    %v7122 = vand.u32 %v7113, %v785
    %v7125 = vand.u32 %v7114, %v785
    %7127 = vmatprep.subr.bf16.mxu0 %v7122
    %7128 = vmatpush1.bf16.msra.mxu0 %v7119
    %7129 = vmatprep.subr.bf16.mxu0 0
    %7130 = vmatpush1.bf16.msra.mxu0 0
    %7131 = vmatprep.subr.bf16.mxu0 0
    %7132 = vmatpush1.bf16.msra.mxu0 0
    %7133 = vmatprep.subr.bf16.mxu0 0
    %7134 = vmatpush1.bf16.msra.mxu0 0
    %7135 = vmatprep.subr.bf16.mxu0 0
    %7136 = vmatpush1.bf16.msra.mxu0 0
    %7137 = vmatprep.subr.bf16.mxu0 0
    %7138 = vmatpush1.bf16.msra.mxu0 0
    %7139 = vmatprep.subr.bf16.mxu0 0
    %7140 = vmatpush1.bf16.msra.mxu0 0
    %7141 = vmatprep.subr.bf16.mxu0 0
    %7142 = vmatpush1.bf16.msra.mxu0 0
    %7143 = vmatprep.subr.bf16.mxu0 0
    %7144 = vmatpush1.bf16.msra.mxu0 0
    %7145 = vmatprep.subr.bf16.mxu0 0
    %7146 = vmatpush1.bf16.msra.mxu0 0
    %7147 = vmatprep.subr.bf16.mxu0 0
    %7148 = vmatpush1.bf16.msra.mxu0 0
    %7149 = vmatprep.subr.bf16.mxu0 0
    %7150 = vmatpush1.bf16.msra.mxu0 0
    %7151 = vmatprep.subr.bf16.mxu0 0
    %7152 = vmatpush1.bf16.msra.mxu0 0
    %7153 = vmatprep.subr.bf16.mxu0 0
    %7154 = vmatpush1.bf16.msra.mxu0 0
    %7155 = vmatprep.subr.bf16.mxu0 0
    %7156 = vmatpush1.bf16.msra.mxu0 0
    %7157 = vmatprep.subr.bf16.mxu0 0
    %7158 = vmatpush1.bf16.msra.mxu0 0
    %7159 = vmatprep.mubr.bf16.mxu0 0
    %7160 = vmatmul.mubr.bf16.gmra.mrb[0].mxu0 %v7116
    %v7161 = vpop.f32.mrb[0].mxu0
    %v7162 = vadd.f32 0.0, %v7161
    %v7163 = vpop.f32.mrb[0].mxu0
    %v7164 = vadd.f32 0.0, %v7163
    %v7165 = vpop.f32.mrb[0].mxu0
    %v7166 = vadd.f32 0.0, %v7165
    %v7167 = vpop.f32.mrb[0].mxu0
    %v7168 = vadd.f32 0.0, %v7167
    %7169 = vdwg.mxu0
    %7170 = vmatprep.subr.bf16.mxu0 0
    %7171 = vmatpush1.bf16.msra.mxu0 %v7125
    %7172 = vmatprep.subr.bf16.mxu0 0
    %7173 = vmatpush1.bf16.msra.mxu0 0
    %7174 = vmatprep.subr.bf16.mxu0 0
    %7175 = vmatpush1.bf16.msra.mxu0 0
    %7176 = vmatprep.subr.bf16.mxu0 0
    %7177 = vmatpush1.bf16.msra.mxu0 0
    %7178 = vmatprep.subr.bf16.mxu0 0
    %7179 = vmatpush1.bf16.msra.mxu0 0
    %7180 = vmatprep.subr.bf16.mxu0 0
    %7181 = vmatpush1.bf16.msra.mxu0 0
    %7182 = vmatprep.subr.bf16.mxu0 0
    %7183 = vmatpush1.bf16.msra.mxu0 0
    %7184 = vmatprep.subr.bf16.mxu0 0
    %7185 = vmatpush1.bf16.msra.mxu0 0
    %7186 = vmatprep.subr.bf16.mxu0 0
    %7187 = vmatpush1.bf16.msra.mxu0 0
    %7188 = vmatprep.subr.bf16.mxu0 0
    %7189 = vmatpush1.bf16.msra.mxu0 0
    %7190 = vmatprep.subr.bf16.mxu0 0
    %7191 = vmatpush1.bf16.msra.mxu0 0
    %7192 = vmatprep.subr.bf16.mxu0 0
    %7193 = vmatpush1.bf16.msra.mxu0 0
    %7194 = vmatprep.subr.bf16.mxu0 0
    %7195 = vmatpush1.bf16.msra.mxu0 0
    %7196 = vmatprep.subr.bf16.mxu0 0
    %7197 = vmatpush1.bf16.msra.mxu0 0
    %7198 = vmatprep.subr.bf16.mxu0 0
    %7199 = vmatpush1.bf16.msra.mxu0 0
    %7200 = vmatprep.subr.bf16.mxu0 0
    %7201 = vmatpush1.bf16.msra.mxu0 0
    %7202 = vmatprep.mubr.bf16.mxu0 0
    %7203 = vmatmul.mubr.bf16.gmra.mrb[0].mxu0 %v7116
    %v7204 = vpop.f32.mrb[0].mxu0
    %v7205 = vadd.f32 0.0, %v7204
    %v7206 = vpop.f32.mrb[0].mxu0
    %v7207 = vpop.f32.mrb[0].mxu0
    %v7208 = vadd.f32 0.0, %v7207
    %v7209 = vpop.f32.mrb[0].mxu0
    %7210 = vdwg.mxu0
    %v7211 = vadd.f32 %v7048, %v7162
    %v7212 = vadd.f32 %v7050, %v7164
    %v7213 = vadd.f32 %v7091, %v7205
    %v7214 = vadd.f32 %v7052, %v7166
    %v7215 = vadd.f32 %v7054, %v7168
    %v7216 = vadd.f32 %v7094, %v7208
    %v7217 = vld [vmem:[%s2389] sm:$0xf]
    %v7218 = vld [vmem:[%s2389 + $0x4] sm:$0x1]
    %v7221 = vunpack.c.l.b16 %v7217
    %v7222 = vunpack.c.l.b16 %v7218
    %v7223 = vpack.c.b16 %v7222, %v7221
    %7224 = vrot.lane.b32.xlu0 %v6874, 47
    %v7225 = vpop.permute.xlu0 %7224
    %7226 = vrot.lane.b32.xlu0 %v6875, 47
    %v7227 = vpop.permute.xlu0 %7226
    %7228 = vrot.lane.b32.xlu0 %v6876, 47
    %v7229 = vpop.permute.xlu0 %7228
    %7230 = vrot.lane.b32.xlu0 %v6877, 47
    %v7231 = vpop.permute.xlu0 %7230
    %v7232 = vsel %vm2405, %v7225, %v7227
    %v7233 = vsel %vm2405, %v7227, %v7229
    %v7234 = vsel %vm2405, %v7229, %v7231
    %v7236 = vsel %vm778, %v7223, 0
    %v7239 = vand.u32 %v7232, %v785
    %v7242 = vand.u32 %v7233, %v785
    %v7245 = vand.u32 %v7234, %v785
    %7247 = vmatprep.subr.bf16.mxu0 %v7242
    %7248 = vmatpush1.bf16.msra.mxu0 %v7239
    %7249 = vmatprep.subr.bf16.mxu0 0
    %7250 = vmatpush1.bf16.msra.mxu0 0
    %7251 = vmatprep.subr.bf16.mxu0 0
    %7252 = vmatpush1.bf16.msra.mxu0 0
    %7253 = vmatprep.subr.bf16.mxu0 0
    %7254 = vmatpush1.bf16.msra.mxu0 0
    %7255 = vmatprep.subr.bf16.mxu0 0
    %7256 = vmatpush1.bf16.msra.mxu0 0
    %7257 = vmatprep.subr.bf16.mxu0 0
    %7258 = vmatpush1.bf16.msra.mxu0 0
    %7259 = vmatprep.subr.bf16.mxu0 0
    %7260 = vmatpush1.bf16.msra.mxu0 0
    %7261 = vmatprep.subr.bf16.mxu0 0
    %7262 = vmatpush1.bf16.msra.mxu0 0
    %7263 = vmatprep.subr.bf16.mxu0 0
    %7264 = vmatpush1.bf16.msra.mxu0 0
    %7265 = vmatprep.subr.bf16.mxu0 0
    %7266 = vmatpush1.bf16.msra.mxu0 0
    %7267 = vmatprep.subr.bf16.mxu0 0
    %7268 = vmatpush1.bf16.msra.mxu0 0
    %7269 = vmatprep.subr.bf16.mxu0 0
    %7270 = vmatpush1.bf16.msra.mxu0 0
    %7271 = vmatprep.subr.bf16.mxu0 0
    %7272 = vmatpush1.bf16.msra.mxu0 0
    %7273 = vmatprep.subr.bf16.mxu0 0
    %7274 = vmatpush1.bf16.msra.mxu0 0
    %7275 = vmatprep.subr.bf16.mxu0 0
    %7276 = vmatpush1.bf16.msra.mxu0 0
    %7277 = vmatprep.subr.bf16.mxu0 0
    %7278 = vmatpush1.bf16.msra.mxu0 0
    %7279 = vmatprep.mubr.bf16.mxu0 0
    %7280 = vmatmul.mubr.bf16.gmra.mrb[0].mxu0 %v7236
    %v7281 = vpop.f32.mrb[0].mxu0
    %v7282 = vadd.f32 0.0, %v7281
    %v7283 = vpop.f32.mrb[0].mxu0
    %v7284 = vadd.f32 0.0, %v7283
    %v7285 = vpop.f32.mrb[0].mxu0
    %v7286 = vadd.f32 0.0, %v7285
    %v7287 = vpop.f32.mrb[0].mxu0
    %v7288 = vadd.f32 0.0, %v7287
    %7289 = vdwg.mxu0
    %7290 = vmatprep.subr.bf16.mxu0 0
    %7291 = vmatpush1.bf16.msra.mxu0 %v7245
    %7292 = vmatprep.subr.bf16.mxu0 0
    %7293 = vmatpush1.bf16.msra.mxu0 0
    %7294 = vmatprep.subr.bf16.mxu0 0
    %7295 = vmatpush1.bf16.msra.mxu0 0
    %7296 = vmatprep.subr.bf16.mxu0 0
    %7297 = vmatpush1.bf16.msra.mxu0 0
    %7298 = vmatprep.subr.bf16.mxu0 0
    %7299 = vmatpush1.bf16.msra.mxu0 0
    %7300 = vmatprep.subr.bf16.mxu0 0
    %7301 = vmatpush1.bf16.msra.mxu0 0
    %7302 = vmatprep.subr.bf16.mxu0 0
    %7303 = vmatpush1.bf16.msra.mxu0 0
    %7304 = vmatprep.subr.bf16.mxu0 0
    %7305 = vmatpush1.bf16.msra.mxu0 0
    %7306 = vmatprep.subr.bf16.mxu0 0
    %7307 = vmatpush1.bf16.msra.mxu0 0
    %7308 = vmatprep.subr.bf16.mxu0 0
    %7309 = vmatpush1.bf16.msra.mxu0 0
    %7310 = vmatprep.subr.bf16.mxu0 0
    %7311 = vmatpush1.bf16.msra.mxu0 0
    %7312 = vmatprep.subr.bf16.mxu0 0
    %7313 = vmatpush1.bf16.msra.mxu0 0
    %7314 = vmatprep.subr.bf16.mxu0 0
    %7315 = vmatpush1.bf16.msra.mxu0 0
    %7316 = vmatprep.subr.bf16.mxu0 0
    %7317 = vmatpush1.bf16.msra.mxu0 0
    %7318 = vmatprep.subr.bf16.mxu0 0
    %7319 = vmatpush1.bf16.msra.mxu0 0
    %7320 = vmatprep.subr.bf16.mxu0 0
    %7321 = vmatpush1.bf16.msra.mxu0 0
    %7322 = vmatprep.mubr.bf16.mxu0 0
    %7323 = vmatmul.mubr.bf16.gmra.mrb[0].mxu0 %v7236
    %v7324 = vpop.f32.mrb[0].mxu0
    %v7325 = vadd.f32 0.0, %v7324
    %v7326 = vpop.f32.mrb[0].mxu0
    %v7327 = vpop.f32.mrb[0].mxu0
    %v7328 = vadd.f32 0.0, %v7327
    %v7329 = vpop.f32.mrb[0].mxu0
    %7330 = vdwg.mxu0
    %v7331 = vadd.f32 %v7211, %v7282
    %v7332 = vadd.f32 %v7212, %v7284
    %v7333 = vadd.f32 %v7213, %v7325
    %v7334 = vadd.f32 %v7214, %v7286
    %v7335 = vadd.f32 %v7215, %v7288
    %v7336 = vadd.f32 %v7216, %v7328
    %v7337 = vld [vmem:[%s2511] sm:$0xf]
    %v7338 = vld [vmem:[%s2511 + $0x4] sm:$0x1]
    %v7341 = vunpack.c.l.b16 %v7337
    %v7342 = vunpack.c.l.b16 %v7338
    %v7343 = vpack.c.b16 %v7342, %v7341
    %7344 = vrot.lane.b32.xlu0 %v6874, 46
    %v7345 = vpop.permute.xlu0 %7344
    %7346 = vrot.lane.b32.xlu0 %v6875, 46
    %v7347 = vpop.permute.xlu0 %7346
    %7348 = vrot.lane.b32.xlu0 %v6876, 46
    %v7349 = vpop.permute.xlu0 %7348
    %7350 = vrot.lane.b32.xlu0 %v6877, 46
    %v7351 = vpop.permute.xlu0 %7350
    %v7352 = vsel %vm2527, %v7345, %v7347
    %v7353 = vsel %vm2527, %v7347, %v7349
    %v7354 = vsel %vm2527, %v7349, %v7351
    %v7356 = vsel %vm778, %v7343, 0
    %v7359 = vand.u32 %v7352, %v785
    %v7362 = vand.u32 %v7353, %v785
    %v7365 = vand.u32 %v7354, %v785
    %7367 = vmatprep.subr.bf16.mxu0 %v7362
    %7368 = vmatpush1.bf16.msra.mxu0 %v7359
    %7369 = vmatprep.subr.bf16.mxu0 0
    %7370 = vmatpush1.bf16.msra.mxu0 0
    %7371 = vmatprep.subr.bf16.mxu0 0
    %7372 = vmatpush1.bf16.msra.mxu0 0
    %7373 = vmatprep.subr.bf16.mxu0 0
    %7374 = vmatpush1.bf16.msra.mxu0 0
    %7375 = vmatprep.subr.bf16.mxu0 0
    %7376 = vmatpush1.bf16.msra.mxu0 0
    %7377 = vmatprep.subr.bf16.mxu0 0
    %7378 = vmatpush1.bf16.msra.mxu0 0
    %7379 = vmatprep.subr.bf16.mxu0 0
    %7380 = vmatpush1.bf16.msra.mxu0 0
    %7381 = vmatprep.subr.bf16.mxu0 0
    %7382 = vmatpush1.bf16.msra.mxu0 0
    %7383 = vmatprep.subr.bf16.mxu0 0
    %7384 = vmatpush1.bf16.msra.mxu0 0
    %7385 = vmatprep.subr.bf16.mxu0 0
    %7386 = vmatpush1.bf16.msra.mxu0 0
    %7387 = vmatprep.subr.bf16.mxu0 0
    %7388 = vmatpush1.bf16.msra.mxu0 0
    %7389 = vmatprep.subr.bf16.mxu0 0
    %7390 = vmatpush1.bf16.msra.mxu0 0
    %7391 = vmatprep.subr.bf16.mxu0 0
    %7392 = vmatpush1.bf16.msra.mxu0 0
    %7393 = vmatprep.subr.bf16.mxu0 0
    %7394 = vmatpush1.bf16.msra.mxu0 0
    %7395 = vmatprep.subr.bf16.mxu0 0
    %7396 = vmatpush1.bf16.msra.mxu0 0
    %7397 = vmatprep.subr.bf16.mxu0 0
    %7398 = vmatpush1.bf16.msra.mxu0 0
    %7399 = vmatprep.mubr.bf16.mxu0 0
    %7400 = vmatmul.mubr.bf16.gmra.mrb[0].mxu0 %v7356
    %v7401 = vpop.f32.mrb[0].mxu0
    %v7402 = vadd.f32 0.0, %v7401
    %v7403 = vpop.f32.mrb[0].mxu0
    %v7404 = vadd.f32 0.0, %v7403
    %v7405 = vpop.f32.mrb[0].mxu0
    %v7406 = vadd.f32 0.0, %v7405
    %v7407 = vpop.f32.mrb[0].mxu0
    %v7408 = vadd.f32 0.0, %v7407
    %7409 = vdwg.mxu0
    %7410 = vmatprep.subr.bf16.mxu0 0
    %7411 = vmatpush1.bf16.msra.mxu0 %v7365
    %7412 = vmatprep.subr.bf16.mxu0 0
    %7413 = vmatpush1.bf16.msra.mxu0 0
    %7414 = vmatprep.subr.bf16.mxu0 0
    %7415 = vmatpush1.bf16.msra.mxu0 0
    %7416 = vmatprep.subr.bf16.mxu0 0
    %7417 = vmatpush1.bf16.msra.mxu0 0
    %7418 = vmatprep.subr.bf16.mxu0 0
    %7419 = vmatpush1.bf16.msra.mxu0 0
    %7420 = vmatprep.subr.bf16.mxu0 0
    %7421 = vmatpush1.bf16.msra.mxu0 0
    %7422 = vmatprep.subr.bf16.mxu0 0
    %7423 = vmatpush1.bf16.msra.mxu0 0
    %7424 = vmatprep.subr.bf16.mxu0 0
    %7425 = vmatpush1.bf16.msra.mxu0 0
    %7426 = vmatprep.subr.bf16.mxu0 0
    %7427 = vmatpush1.bf16.msra.mxu0 0
    %7428 = vmatprep.subr.bf16.mxu0 0
    %7429 = vmatpush1.bf16.msra.mxu0 0
    %7430 = vmatprep.subr.bf16.mxu0 0
    %7431 = vmatpush1.bf16.msra.mxu0 0
    %7432 = vmatprep.subr.bf16.mxu0 0
    %7433 = vmatpush1.bf16.msra.mxu0 0
    %7434 = vmatprep.subr.bf16.mxu0 0
    %7435 = vmatpush1.bf16.msra.mxu0 0
    %7436 = vmatprep.subr.bf16.mxu0 0
    %7437 = vmatpush1.bf16.msra.mxu0 0
    %7438 = vmatprep.subr.bf16.mxu0 0
    %7439 = vmatpush1.bf16.msra.mxu0 0
    %7440 = vmatprep.subr.bf16.mxu0 0
    %7441 = vmatpush1.bf16.msra.mxu0 0
    %7442 = vmatprep.mubr.bf16.mxu0 0
    %7443 = vmatmul.mubr.bf16.gmra.mrb[0].mxu0 %v7356
    %v7444 = vpop.f32.mrb[0].mxu0
    %v7445 = vadd.f32 0.0, %v7444
    %v7446 = vpop.f32.mrb[0].mxu0
    %v7447 = vpop.f32.mrb[0].mxu0
    %v7448 = vadd.f32 0.0, %v7447
    %v7449 = vpop.f32.mrb[0].mxu0
    %7450 = vdwg.mxu0
    %v7451 = vadd.f32 %v7331, %v7402
    %v7452 = vadd.f32 %v7332, %v7404
    %v7453 = vadd.f32 %v7333, %v7445
    %v7454 = vadd.f32 %v7334, %v7406
    %v7455 = vadd.f32 %v7335, %v7408
    %v7456 = vadd.f32 %v7336, %v7448
    %v7457 = vld [vmem:[%s2633] sm:$0xf]
    %v7458 = vld [vmem:[%s2633 + $0x4] sm:$0x1]
    %v7461 = vunpack.c.l.b16 %v7457
    %v7462 = vunpack.c.l.b16 %v7458
    %v7463 = vpack.c.b16 %v7462, %v7461
    %7464 = vrot.lane.b32.xlu0 %v6874, 26
    %v7465 = vpop.permute.xlu0 %7464
    %7466 = vrot.lane.b32.xlu0 %v6875, 26
    %v7467 = vpop.permute.xlu0 %7466
    %7468 = vrot.lane.b32.xlu0 %v6876, 26
    %v7469 = vpop.permute.xlu0 %7468
    %7470 = vrot.lane.b32.xlu0 %v6877, 26
    %v7471 = vpop.permute.xlu0 %7470
    %v7472 = vsel %vm2649, %v7465, %v7467
    %v7473 = vsel %vm2649, %v7467, %v7469
    %v7474 = vsel %vm2649, %v7469, %v7471
    %v7476 = vsel %vm778, %v7463, 0
    %v7479 = vand.u32 %v7472, %v785
    %v7482 = vand.u32 %v7473, %v785
    %v7485 = vand.u32 %v7474, %v785
    %7487 = vmatprep.subr.bf16.mxu0 %v7482
    %7488 = vmatpush1.bf16.msra.mxu0 %v7479
    %7489 = vmatprep.subr.bf16.mxu0 0
    %7490 = vmatpush1.bf16.msra.mxu0 0
    %7491 = vmatprep.subr.bf16.mxu0 0
    %7492 = vmatpush1.bf16.msra.mxu0 0
    %7493 = vmatprep.subr.bf16.mxu0 0
    %7494 = vmatpush1.bf16.msra.mxu0 0
    %7495 = vmatprep.subr.bf16.mxu0 0
    %7496 = vmatpush1.bf16.msra.mxu0 0
    %7497 = vmatprep.subr.bf16.mxu0 0
    %7498 = vmatpush1.bf16.msra.mxu0 0
    %7499 = vmatprep.subr.bf16.mxu0 0
    %7500 = vmatpush1.bf16.msra.mxu0 0
    %7501 = vmatprep.subr.bf16.mxu0 0
    %7502 = vmatpush1.bf16.msra.mxu0 0
    %7503 = vmatprep.subr.bf16.mxu0 0
    %7504 = vmatpush1.bf16.msra.mxu0 0
    %7505 = vmatprep.subr.bf16.mxu0 0
    %7506 = vmatpush1.bf16.msra.mxu0 0
    %7507 = vmatprep.subr.bf16.mxu0 0
    %7508 = vmatpush1.bf16.msra.mxu0 0
    %7509 = vmatprep.subr.bf16.mxu0 0
    %7510 = vmatpush1.bf16.msra.mxu0 0
    %7511 = vmatprep.subr.bf16.mxu0 0
    %7512 = vmatpush1.bf16.msra.mxu0 0
    %7513 = vmatprep.subr.bf16.mxu0 0
    %7514 = vmatpush1.bf16.msra.mxu0 0
    %7515 = vmatprep.subr.bf16.mxu0 0
    %7516 = vmatpush1.bf16.msra.mxu0 0
    %7517 = vmatprep.subr.bf16.mxu0 0
    %7518 = vmatpush1.bf16.msra.mxu0 0
    %7519 = vmatprep.mubr.bf16.mxu0 0
    %7520 = vmatmul.mubr.bf16.gmra.mrb[0].mxu0 %v7476
    %v7521 = vpop.f32.mrb[0].mxu0
    %v7522 = vadd.f32 0.0, %v7521
    %v7523 = vpop.f32.mrb[0].mxu0
    %v7524 = vadd.f32 0.0, %v7523
    %v7525 = vpop.f32.mrb[0].mxu0
    %v7526 = vadd.f32 0.0, %v7525
    %v7527 = vpop.f32.mrb[0].mxu0
    %v7528 = vadd.f32 0.0, %v7527
    %7529 = vdwg.mxu0
    %7530 = vmatprep.subr.bf16.mxu0 0
    %7531 = vmatpush1.bf16.msra.mxu0 %v7485
    %7532 = vmatprep.subr.bf16.mxu0 0
    %7533 = vmatpush1.bf16.msra.mxu0 0
    %7534 = vmatprep.subr.bf16.mxu0 0
    %7535 = vmatpush1.bf16.msra.mxu0 0
    %7536 = vmatprep.subr.bf16.mxu0 0
    %7537 = vmatpush1.bf16.msra.mxu0 0
    %7538 = vmatprep.subr.bf16.mxu0 0
    %7539 = vmatpush1.bf16.msra.mxu0 0
    %7540 = vmatprep.subr.bf16.mxu0 0
    %7541 = vmatpush1.bf16.msra.mxu0 0
    %7542 = vmatprep.subr.bf16.mxu0 0
    %7543 = vmatpush1.bf16.msra.mxu0 0
    %7544 = vmatprep.subr.bf16.mxu0 0
    %7545 = vmatpush1.bf16.msra.mxu0 0
    %7546 = vmatprep.subr.bf16.mxu0 0
    %7547 = vmatpush1.bf16.msra.mxu0 0
    %7548 = vmatprep.subr.bf16.mxu0 0
    %7549 = vmatpush1.bf16.msra.mxu0 0
    %7550 = vmatprep.subr.bf16.mxu0 0
    %7551 = vmatpush1.bf16.msra.mxu0 0
    %7552 = vmatprep.subr.bf16.mxu0 0
    %7553 = vmatpush1.bf16.msra.mxu0 0
    %7554 = vmatprep.subr.bf16.mxu0 0
    %7555 = vmatpush1.bf16.msra.mxu0 0
    %7556 = vmatprep.subr.bf16.mxu0 0
    %7557 = vmatpush1.bf16.msra.mxu0 0
    %7558 = vmatprep.subr.bf16.mxu0 0
    %7559 = vmatpush1.bf16.msra.mxu0 0
    %7560 = vmatprep.subr.bf16.mxu0 0
    %7561 = vmatpush1.bf16.msra.mxu0 0
    %7562 = vmatprep.mubr.bf16.mxu0 0
    %7563 = vmatmul.mubr.bf16.gmra.mrb[0].mxu0 %v7476
    %v7564 = vpop.f32.mrb[0].mxu0
    %v7565 = vadd.f32 0.0, %v7564
    %v7566 = vpop.f32.mrb[0].mxu0
    %v7567 = vpop.f32.mrb[0].mxu0
    %v7568 = vadd.f32 0.0, %v7567
    %v7569 = vpop.f32.mrb[0].mxu0
    %7570 = vdwg.mxu0
    %v7571 = vadd.f32 %v7451, %v7522
    %v7572 = vadd.f32 %v7452, %v7524
    %v7573 = vadd.f32 %v7453, %v7565
    %v7574 = vadd.f32 %v7454, %v7526
    %v7575 = vadd.f32 %v7455, %v7528
    %v7576 = vadd.f32 %v7456, %v7568
    %v7577 = vld [vmem:[%s2755] sm:$0xf]
    %v7578 = vld [vmem:[%s2755 + $0x4] sm:$0x1]
    %v7581 = vunpack.c.l.b16 %v7577
    %v7582 = vunpack.c.l.b16 %v7578
    %v7583 = vpack.c.b16 %v7582, %v7581
    %7584 = vrot.lane.b32.xlu0 %v6874, 25
    %v7585 = vpop.permute.xlu0 %7584
    %7586 = vrot.lane.b32.xlu0 %v6875, 25
    %v7587 = vpop.permute.xlu0 %7586
    %7588 = vrot.lane.b32.xlu0 %v6876, 25
    %v7589 = vpop.permute.xlu0 %7588
    %7590 = vrot.lane.b32.xlu0 %v6877, 25
    %v7591 = vpop.permute.xlu0 %7590
    %v7592 = vsel %vm892, %v7585, %v7587
    %v7593 = vsel %vm892, %v7587, %v7589
    %v7594 = vsel %vm892, %v7589, %v7591
    %v7596 = vsel %vm778, %v7583, 0
    %v7599 = vand.u32 %v7592, %v785
    %v7602 = vand.u32 %v7593, %v785
    %v7605 = vand.u32 %v7594, %v785
    %7607 = vmatprep.subr.bf16.mxu0 %v7602
    %7608 = vmatpush1.bf16.msra.mxu0 %v7599
    %7609 = vmatprep.subr.bf16.mxu0 0
    %7610 = vmatpush1.bf16.msra.mxu0 0
    %7611 = vmatprep.subr.bf16.mxu0 0
    %7612 = vmatpush1.bf16.msra.mxu0 0
    %7613 = vmatprep.subr.bf16.mxu0 0
    %7614 = vmatpush1.bf16.msra.mxu0 0
    %7615 = vmatprep.subr.bf16.mxu0 0
    %7616 = vmatpush1.bf16.msra.mxu0 0
    %7617 = vmatprep.subr.bf16.mxu0 0
    %7618 = vmatpush1.bf16.msra.mxu0 0
    %7619 = vmatprep.subr.bf16.mxu0 0
    %7620 = vmatpush1.bf16.msra.mxu0 0
    %7621 = vmatprep.subr.bf16.mxu0 0
    %7622 = vmatpush1.bf16.msra.mxu0 0
    %7623 = vmatprep.subr.bf16.mxu0 0
    %7624 = vmatpush1.bf16.msra.mxu0 0
    %7625 = vmatprep.subr.bf16.mxu0 0
    %7626 = vmatpush1.bf16.msra.mxu0 0
    %7627 = vmatprep.subr.bf16.mxu0 0
    %7628 = vmatpush1.bf16.msra.mxu0 0
    %7629 = vmatprep.subr.bf16.mxu0 0
    %7630 = vmatpush1.bf16.msra.mxu0 0
    %7631 = vmatprep.subr.bf16.mxu0 0
    %7632 = vmatpush1.bf16.msra.mxu0 0
    %7633 = vmatprep.subr.bf16.mxu0 0
    %7634 = vmatpush1.bf16.msra.mxu0 0
    %7635 = vmatprep.subr.bf16.mxu0 0
    %7636 = vmatpush1.bf16.msra.mxu0 0
    %7637 = vmatprep.subr.bf16.mxu0 0
    %7638 = vmatpush1.bf16.msra.mxu0 0
    %7639 = vmatprep.mubr.bf16.mxu0 0
    %7640 = vmatmul.mubr.bf16.gmra.mrb[0].mxu0 %v7596
    %v7641 = vpop.f32.mrb[0].mxu0
    %v7642 = vadd.f32 0.0, %v7641
    %v7643 = vpop.f32.mrb[0].mxu0
    %v7644 = vadd.f32 0.0, %v7643
    %v7645 = vpop.f32.mrb[0].mxu0
    %v7646 = vadd.f32 0.0, %v7645
    %v7647 = vpop.f32.mrb[0].mxu0
    %v7648 = vadd.f32 0.0, %v7647
    %7649 = vdwg.mxu0
    %7650 = vmatprep.subr.bf16.mxu0 0
    %7651 = vmatpush1.bf16.msra.mxu0 %v7605
    %7652 = vmatprep.subr.bf16.mxu0 0
    %7653 = vmatpush1.bf16.msra.mxu0 0
    %7654 = vmatprep.subr.bf16.mxu0 0
    %7655 = vmatpush1.bf16.msra.mxu0 0
    %7656 = vmatprep.subr.bf16.mxu0 0
    %7657 = vmatpush1.bf16.msra.mxu0 0
    %7658 = vmatprep.subr.bf16.mxu0 0
    %7659 = vmatpush1.bf16.msra.mxu0 0
    %7660 = vmatprep.subr.bf16.mxu0 0
    %7661 = vmatpush1.bf16.msra.mxu0 0
    %7662 = vmatprep.subr.bf16.mxu0 0
    %7663 = vmatpush1.bf16.msra.mxu0 0
    %7664 = vmatprep.subr.bf16.mxu0 0
    %7665 = vmatpush1.bf16.msra.mxu0 0
    %7666 = vmatprep.subr.bf16.mxu0 0
    %7667 = vmatpush1.bf16.msra.mxu0 0
    %7668 = vmatprep.subr.bf16.mxu0 0
    %7669 = vmatpush1.bf16.msra.mxu0 0
    %7670 = vmatprep.subr.bf16.mxu0 0
    %7671 = vmatpush1.bf16.msra.mxu0 0
    %7672 = vmatprep.subr.bf16.mxu0 0
    %7673 = vmatpush1.bf16.msra.mxu0 0
    %7674 = vmatprep.subr.bf16.mxu0 0
    %7675 = vmatpush1.bf16.msra.mxu0 0
    %7676 = vmatprep.subr.bf16.mxu0 0
    %7677 = vmatpush1.bf16.msra.mxu0 0
    %7678 = vmatprep.subr.bf16.mxu0 0
    %7679 = vmatpush1.bf16.msra.mxu0 0
    %7680 = vmatprep.subr.bf16.mxu0 0
    %7681 = vmatpush1.bf16.msra.mxu0 0
    %7682 = vmatprep.mubr.bf16.mxu0 0
    %7683 = vmatmul.mubr.bf16.gmra.mrb[0].mxu0 %v7596
    %v7684 = vpop.f32.mrb[0].mxu0
    %v7685 = vadd.f32 0.0, %v7684
    %v7686 = vpop.f32.mrb[0].mxu0
    %v7687 = vpop.f32.mrb[0].mxu0
    %v7688 = vadd.f32 0.0, %v7687
    %v7689 = vpop.f32.mrb[0].mxu0
    %7690 = vdwg.mxu0
    %v7691 = vadd.f32 %v7571, %v7642
    %v7692 = vadd.f32 %v7572, %v7644
    %v7693 = vadd.f32 %v7573, %v7685
    %v7694 = vadd.f32 %v7574, %v7646
    %v7695 = vadd.f32 %v7575, %v7648
    %v7696 = vadd.f32 %v7576, %v7688
    %v7697 = vld [vmem:[%s2876] sm:$0xf]
    %v7698 = vld [vmem:[%s2876 + $0x4] sm:$0x1]
    %v7701 = vunpack.c.l.b16 %v7697
    %v7702 = vunpack.c.l.b16 %v7698
    %v7703 = vpack.c.b16 %v7702, %v7701
    %7704 = vrot.lane.b32.xlu0 %v6874, 24
    %v7705 = vpop.permute.xlu0 %7704
    %7706 = vrot.lane.b32.xlu0 %v6875, 24
    %v7707 = vpop.permute.xlu0 %7706
    %7708 = vrot.lane.b32.xlu0 %v6876, 24
    %v7709 = vpop.permute.xlu0 %7708
    %7710 = vrot.lane.b32.xlu0 %v6877, 24
    %v7711 = vpop.permute.xlu0 %7710
    %v7712 = vsel %vm774, %v7705, %v7707
    %v7713 = vsel %vm774, %v7707, %v7709
    %v7714 = vsel %vm774, %v7709, %v7711
    %v7716 = vsel %vm778, %v7703, 0
    %v7719 = vand.u32 %v7712, %v785
    %v7722 = vand.u32 %v7713, %v785
    %v7725 = vand.u32 %v7714, %v785
    %7727 = vmatprep.subr.bf16.mxu0 %v7722
    %7728 = vmatpush1.bf16.msra.mxu0 %v7719
    %7729 = vmatprep.subr.bf16.mxu0 0
    %7730 = vmatpush1.bf16.msra.mxu0 0
    %7731 = vmatprep.subr.bf16.mxu0 0
    %7732 = vmatpush1.bf16.msra.mxu0 0
    %7733 = vmatprep.subr.bf16.mxu0 0
    %7734 = vmatpush1.bf16.msra.mxu0 0
    %7735 = vmatprep.subr.bf16.mxu0 0
    %7736 = vmatpush1.bf16.msra.mxu0 0
    %7737 = vmatprep.subr.bf16.mxu0 0
    %7738 = vmatpush1.bf16.msra.mxu0 0
    %7739 = vmatprep.subr.bf16.mxu0 0
    %7740 = vmatpush1.bf16.msra.mxu0 0
    %7741 = vmatprep.subr.bf16.mxu0 0
    %7742 = vmatpush1.bf16.msra.mxu0 0
    %7743 = vmatprep.subr.bf16.mxu0 0
    %7744 = vmatpush1.bf16.msra.mxu0 0
    %7745 = vmatprep.subr.bf16.mxu0 0
    %7746 = vmatpush1.bf16.msra.mxu0 0
    %7747 = vmatprep.subr.bf16.mxu0 0
    %7748 = vmatpush1.bf16.msra.mxu0 0
    %7749 = vmatprep.subr.bf16.mxu0 0
    %7750 = vmatpush1.bf16.msra.mxu0 0
    %7751 = vmatprep.subr.bf16.mxu0 0
    %7752 = vmatpush1.bf16.msra.mxu0 0
    %7753 = vmatprep.subr.bf16.mxu0 0
    %7754 = vmatpush1.bf16.msra.mxu0 0
    %7755 = vmatprep.subr.bf16.mxu0 0
    %7756 = vmatpush1.bf16.msra.mxu0 0
    %7757 = vmatprep.subr.bf16.mxu0 0
    %7758 = vmatpush1.bf16.msra.mxu0 0
    %7759 = vmatprep.mubr.bf16.mxu0 0
    %7760 = vmatmul.mubr.bf16.gmra.mrb[0].mxu0 %v7716
    %v7761 = vpop.f32.mrb[0].mxu0
    %v7762 = vadd.f32 0.0, %v7761
    %v7763 = vpop.f32.mrb[0].mxu0
    %v7764 = vadd.f32 0.0, %v7763
    %v7765 = vpop.f32.mrb[0].mxu0
    %v7766 = vadd.f32 0.0, %v7765
    %v7767 = vpop.f32.mrb[0].mxu0
    %v7768 = vadd.f32 0.0, %v7767
    %7769 = vdwg.mxu0
    %7770 = vmatprep.subr.bf16.mxu0 0
    %7771 = vmatpush1.bf16.msra.mxu0 %v7725
    %7772 = vmatprep.subr.bf16.mxu0 0
    %7773 = vmatpush1.bf16.msra.mxu0 0
    %7774 = vmatprep.subr.bf16.mxu0 0
    %7775 = vmatpush1.bf16.msra.mxu0 0
    %7776 = vmatprep.subr.bf16.mxu0 0
    %7777 = vmatpush1.bf16.msra.mxu0 0
    %7778 = vmatprep.subr.bf16.mxu0 0
    %7779 = vmatpush1.bf16.msra.mxu0 0
    %7780 = vmatprep.subr.bf16.mxu0 0
    %7781 = vmatpush1.bf16.msra.mxu0 0
    %7782 = vmatprep.subr.bf16.mxu0 0
    %7783 = vmatpush1.bf16.msra.mxu0 0
    %7784 = vmatprep.subr.bf16.mxu0 0
    %7785 = vmatpush1.bf16.msra.mxu0 0
    %7786 = vmatprep.subr.bf16.mxu0 0
    %7787 = vmatpush1.bf16.msra.mxu0 0
    %7788 = vmatprep.subr.bf16.mxu0 0
    %7789 = vmatpush1.bf16.msra.mxu0 0
    %7790 = vmatprep.subr.bf16.mxu0 0
    %7791 = vmatpush1.bf16.msra.mxu0 0
    %7792 = vmatprep.subr.bf16.mxu0 0
    %7793 = vmatpush1.bf16.msra.mxu0 0
    %7794 = vmatprep.subr.bf16.mxu0 0
    %7795 = vmatpush1.bf16.msra.mxu0 0
    %7796 = vmatprep.subr.bf16.mxu0 0
    %7797 = vmatpush1.bf16.msra.mxu0 0
    %7798 = vmatprep.subr.bf16.mxu0 0
    %7799 = vmatpush1.bf16.msra.mxu0 0
    %7800 = vmatprep.subr.bf16.mxu0 0
    %7801 = vmatpush1.bf16.msra.mxu0 0
    %7802 = vmatprep.mubr.bf16.mxu0 0
    %7803 = vmatmul.mubr.bf16.gmra.mrb[0].mxu0 %v7716
    %v7804 = vpop.f32.mrb[0].mxu0
    %v7805 = vadd.f32 0.0, %v7804
    %v7806 = vpop.f32.mrb[0].mxu0
    %v7807 = vpop.f32.mrb[0].mxu0
    %v7808 = vadd.f32 0.0, %v7807
    %v7809 = vpop.f32.mrb[0].mxu0
    %7810 = vdwg.mxu0
    %v7811 = vadd.f32 %v7691, %v7762
    %v7812 = vadd.f32 %v7692, %v7764
    %v7813 = vadd.f32 %v7693, %v7805
    %v7814 = vadd.f32 %v7694, %v7766
    %v7815 = vadd.f32 %v7695, %v7768
    %v7816 = vadd.f32 %v7696, %v7808
    %v7817 = vld [vmem:[%s2997] sm:$0xf]
    %v7818 = vld [vmem:[%s2997 + $0x4] sm:$0x1]
    %v7821 = vunpack.c.l.b16 %v7817
    %v7822 = vunpack.c.l.b16 %v7818
    %v7823 = vpack.c.b16 %v7822, %v7821
    %7824 = vrot.lane.b32.xlu0 %v6874, 23
    %v7825 = vpop.permute.xlu0 %7824
    %7826 = vrot.lane.b32.xlu0 %v6875, 23
    %v7827 = vpop.permute.xlu0 %7826
    %7828 = vrot.lane.b32.xlu0 %v6876, 23
    %v7829 = vpop.permute.xlu0 %7828
    %7830 = vrot.lane.b32.xlu0 %v6877, 23
    %v7831 = vpop.permute.xlu0 %7830
    %v7832 = vsel %vm1008, %v7825, %v7827
    %v7833 = vsel %vm1008, %v7827, %v7829
    %v7834 = vsel %vm1008, %v7829, %v7831
    %v7836 = vsel %vm778, %v7823, 0
    %v7839 = vand.u32 %v7832, %v785
    %v7842 = vand.u32 %v7833, %v785
    %v7845 = vand.u32 %v7834, %v785
    %7847 = vmatprep.subr.bf16.mxu0 %v7842
    %7848 = vmatpush1.bf16.msra.mxu0 %v7839
    %7849 = vmatprep.subr.bf16.mxu0 0
    %7850 = vmatpush1.bf16.msra.mxu0 0
    %7851 = vmatprep.subr.bf16.mxu0 0
    %7852 = vmatpush1.bf16.msra.mxu0 0
    %7853 = vmatprep.subr.bf16.mxu0 0
    %7854 = vmatpush1.bf16.msra.mxu0 0
    %7855 = vmatprep.subr.bf16.mxu0 0
    %7856 = vmatpush1.bf16.msra.mxu0 0
    %7857 = vmatprep.subr.bf16.mxu0 0
    %7858 = vmatpush1.bf16.msra.mxu0 0
    %7859 = vmatprep.subr.bf16.mxu0 0
    %7860 = vmatpush1.bf16.msra.mxu0 0
    %7861 = vmatprep.subr.bf16.mxu0 0
    %7862 = vmatpush1.bf16.msra.mxu0 0
    %7863 = vmatprep.subr.bf16.mxu0 0
    %7864 = vmatpush1.bf16.msra.mxu0 0
    %7865 = vmatprep.subr.bf16.mxu0 0
    %7866 = vmatpush1.bf16.msra.mxu0 0
    %7867 = vmatprep.subr.bf16.mxu0 0
    %7868 = vmatpush1.bf16.msra.mxu0 0
    %7869 = vmatprep.subr.bf16.mxu0 0
    %7870 = vmatpush1.bf16.msra.mxu0 0
    %7871 = vmatprep.subr.bf16.mxu0 0
    %7872 = vmatpush1.bf16.msra.mxu0 0
    %7873 = vmatprep.subr.bf16.mxu0 0
    %7874 = vmatpush1.bf16.msra.mxu0 0
    %7875 = vmatprep.subr.bf16.mxu0 0
    %7876 = vmatpush1.bf16.msra.mxu0 0
    %7877 = vmatprep.subr.bf16.mxu0 0
    %7878 = vmatpush1.bf16.msra.mxu0 0
    %7879 = vmatprep.mubr.bf16.mxu0 0
    %7880 = vmatmul.mubr.bf16.gmra.mrb[0].mxu0 %v7836
    %v7881 = vpop.f32.mrb[0].mxu0
    %v7882 = vadd.f32 0.0, %v7881
    %v7883 = vpop.f32.mrb[0].mxu0
    %v7884 = vadd.f32 0.0, %v7883
    %v7885 = vpop.f32.mrb[0].mxu0
    %v7886 = vadd.f32 0.0, %v7885
    %v7887 = vpop.f32.mrb[0].mxu0
    %v7888 = vadd.f32 0.0, %v7887
    %7889 = vdwg.mxu0
    %7890 = vmatprep.subr.bf16.mxu0 0
    %7891 = vmatpush1.bf16.msra.mxu0 %v7845
    %7892 = vmatprep.subr.bf16.mxu0 0
    %7893 = vmatpush1.bf16.msra.mxu0 0
    %7894 = vmatprep.subr.bf16.mxu0 0
    %7895 = vmatpush1.bf16.msra.mxu0 0
    %7896 = vmatprep.subr.bf16.mxu0 0
    %7897 = vmatpush1.bf16.msra.mxu0 0
    %7898 = vmatprep.subr.bf16.mxu0 0
    %7899 = vmatpush1.bf16.msra.mxu0 0
    %7900 = vmatprep.subr.bf16.mxu0 0
    %7901 = vmatpush1.bf16.msra.mxu0 0
    %7902 = vmatprep.subr.bf16.mxu0 0
    %7903 = vmatpush1.bf16.msra.mxu0 0
    %7904 = vmatprep.subr.bf16.mxu0 0
    %7905 = vmatpush1.bf16.msra.mxu0 0
    %7906 = vmatprep.subr.bf16.mxu0 0
    %7907 = vmatpush1.bf16.msra.mxu0 0
    %7908 = vmatprep.subr.bf16.mxu0 0
    %7909 = vmatpush1.bf16.msra.mxu0 0
    %7910 = vmatprep.subr.bf16.mxu0 0
    %7911 = vmatpush1.bf16.msra.mxu0 0
    %7912 = vmatprep.subr.bf16.mxu0 0
    %7913 = vmatpush1.bf16.msra.mxu0 0
    %7914 = vmatprep.subr.bf16.mxu0 0
    %7915 = vmatpush1.bf16.msra.mxu0 0
    %7916 = vmatprep.subr.bf16.mxu0 0
    %7917 = vmatpush1.bf16.msra.mxu0 0
    %7918 = vmatprep.subr.bf16.mxu0 0
    %7919 = vmatpush1.bf16.msra.mxu0 0
    %7920 = vmatprep.subr.bf16.mxu0 0
    %7921 = vmatpush1.bf16.msra.mxu0 0
    %7922 = vmatprep.mubr.bf16.mxu0 0
    %7923 = vmatmul.mubr.bf16.gmra.mrb[0].mxu0 %v7836
    %v7924 = vpop.f32.mrb[0].mxu0
    %v7925 = vadd.f32 0.0, %v7924
    %v7926 = vpop.f32.mrb[0].mxu0
    %v7927 = vpop.f32.mrb[0].mxu0
    %v7928 = vadd.f32 0.0, %v7927
    %v7929 = vpop.f32.mrb[0].mxu0
    %7930 = vdwg.mxu0
    %v7931 = vadd.f32 %v7811, %v7882
    %v7932 = vadd.f32 %v7812, %v7884
    %v7933 = vadd.f32 %v7813, %v7925
    %v7934 = vadd.f32 %v7814, %v7886
    %v7935 = vadd.f32 %v7815, %v7888
    %v7936 = vadd.f32 %v7816, %v7928
    %v7937 = vld [vmem:[%s3118] sm:$0xf]
    %v7938 = vld [vmem:[%s3118 + $0x4] sm:$0x1]
    %v7941 = vunpack.c.l.b16 %v7937
    %v7942 = vunpack.c.l.b16 %v7938
    %v7943 = vpack.c.b16 %v7942, %v7941
    %7944 = vrot.lane.b32.xlu0 %v6874, 22
    %v7945 = vpop.permute.xlu0 %7944
    %7946 = vrot.lane.b32.xlu0 %v6875, 22
    %v7947 = vpop.permute.xlu0 %7946
    %7948 = vrot.lane.b32.xlu0 %v6876, 22
    %v7949 = vpop.permute.xlu0 %7948
    %7950 = vrot.lane.b32.xlu0 %v6877, 22
    %v7951 = vpop.permute.xlu0 %7950
    %v7952 = vsel %vm3134, %v7945, %v7947
    %v7953 = vsel %vm3134, %v7947, %v7949
    %v7954 = vsel %vm3134, %v7949, %v7951
    %v7956 = vsel %vm778, %v7943, 0
    %v7959 = vand.u32 %v7952, %v785
    %v7962 = vand.u32 %v7953, %v785
    %v7965 = vand.u32 %v7954, %v785
    %7967 = vmatprep.subr.bf16.mxu0 %v7962
    %7968 = vmatpush1.bf16.msra.mxu0 %v7959
    %7969 = vmatprep.subr.bf16.mxu0 0
    %7970 = vmatpush1.bf16.msra.mxu0 0
    %7971 = vmatprep.subr.bf16.mxu0 0
    %7972 = vmatpush1.bf16.msra.mxu0 0
    %7973 = vmatprep.subr.bf16.mxu0 0
    %7974 = vmatpush1.bf16.msra.mxu0 0
    %7975 = vmatprep.subr.bf16.mxu0 0
    %7976 = vmatpush1.bf16.msra.mxu0 0
    %7977 = vmatprep.subr.bf16.mxu0 0
    %7978 = vmatpush1.bf16.msra.mxu0 0
    %7979 = vmatprep.subr.bf16.mxu0 0
    %7980 = vmatpush1.bf16.msra.mxu0 0
    %7981 = vmatprep.subr.bf16.mxu0 0
    %7982 = vmatpush1.bf16.msra.mxu0 0
    %7983 = vmatprep.subr.bf16.mxu0 0
    %7984 = vmatpush1.bf16.msra.mxu0 0
    %7985 = vmatprep.subr.bf16.mxu0 0
    %7986 = vmatpush1.bf16.msra.mxu0 0
    %7987 = vmatprep.subr.bf16.mxu0 0
    %7988 = vmatpush1.bf16.msra.mxu0 0
    %7989 = vmatprep.subr.bf16.mxu0 0
    %7990 = vmatpush1.bf16.msra.mxu0 0
    %7991 = vmatprep.subr.bf16.mxu0 0
    %7992 = vmatpush1.bf16.msra.mxu0 0
    %7993 = vmatprep.subr.bf16.mxu0 0
    %7994 = vmatpush1.bf16.msra.mxu0 0
    %7995 = vmatprep.subr.bf16.mxu0 0
    %7996 = vmatpush1.bf16.msra.mxu0 0
    %7997 = vmatprep.subr.bf16.mxu0 0
    %7998 = vmatpush1.bf16.msra.mxu0 0
    %7999 = vmatprep.mubr.bf16.mxu0 0
    %8000 = vmatmul.mubr.bf16.gmra.mrb[0].mxu0 %v7956
    %v8001 = vpop.f32.mrb[0].mxu0
    %v8002 = vadd.f32 0.0, %v8001
    %v8003 = vpop.f32.mrb[0].mxu0
    %v8004 = vadd.f32 0.0, %v8003
    %v8005 = vpop.f32.mrb[0].mxu0
    %v8006 = vadd.f32 0.0, %v8005
    %v8007 = vpop.f32.mrb[0].mxu0
    %v8008 = vadd.f32 0.0, %v8007
    %8009 = vdwg.mxu0
    %8010 = vmatprep.subr.bf16.mxu0 0
    %8011 = vmatpush1.bf16.msra.mxu0 %v7965
    %8012 = vmatprep.subr.bf16.mxu0 0
    %8013 = vmatpush1.bf16.msra.mxu0 0
    %8014 = vmatprep.subr.bf16.mxu0 0
    %8015 = vmatpush1.bf16.msra.mxu0 0
    %8016 = vmatprep.subr.bf16.mxu0 0
    %8017 = vmatpush1.bf16.msra.mxu0 0
    %8018 = vmatprep.subr.bf16.mxu0 0
    %8019 = vmatpush1.bf16.msra.mxu0 0
    %8020 = vmatprep.subr.bf16.mxu0 0
    %8021 = vmatpush1.bf16.msra.mxu0 0
    %8022 = vmatprep.subr.bf16.mxu0 0
    %8023 = vmatpush1.bf16.msra.mxu0 0
    %8024 = vmatprep.subr.bf16.mxu0 0
    %8025 = vmatpush1.bf16.msra.mxu0 0
    %8026 = vmatprep.subr.bf16.mxu0 0
    %8027 = vmatpush1.bf16.msra.mxu0 0
    %8028 = vmatprep.subr.bf16.mxu0 0
    %8029 = vmatpush1.bf16.msra.mxu0 0
    %8030 = vmatprep.subr.bf16.mxu0 0
    %8031 = vmatpush1.bf16.msra.mxu0 0
    %8032 = vmatprep.subr.bf16.mxu0 0
    %8033 = vmatpush1.bf16.msra.mxu0 0
    %8034 = vmatprep.subr.bf16.mxu0 0
    %8035 = vmatpush1.bf16.msra.mxu0 0
    %8036 = vmatprep.subr.bf16.mxu0 0
    %8037 = vmatpush1.bf16.msra.mxu0 0
    %8038 = vmatprep.subr.bf16.mxu0 0
    %8039 = vmatpush1.bf16.msra.mxu0 0
    %8040 = vmatprep.subr.bf16.mxu0 0
    %8041 = vmatpush1.bf16.msra.mxu0 0
    %8042 = vmatprep.mubr.bf16.mxu0 0
    %8043 = vmatmul.mubr.bf16.gmra.mrb[0].mxu0 %v7956
    %v8044 = vpop.f32.mrb[0].mxu0
    %v8045 = vadd.f32 0.0, %v8044
    %v8046 = vpop.f32.mrb[0].mxu0
    %v8047 = vpop.f32.mrb[0].mxu0
    %v8048 = vadd.f32 0.0, %v8047
    %v8049 = vpop.f32.mrb[0].mxu0
    %8050 = vdwg.mxu0
    %v8051 = vadd.f32 %v7931, %v8002
    %v8052 = vadd.f32 %v7932, %v8004
    %v8053 = vadd.f32 %v7933, %v8045
    %v8054 = vadd.f32 %v7934, %v8006
    %v8055 = vadd.f32 %v7935, %v8008
    %v8056 = vadd.f32 %v7936, %v8048
    %v8057 = vld [vmem:[%s3240] sm:$0xf]
    %v8058 = vld [vmem:[%s3240 + $0x4] sm:$0x1]
    %v8061 = vunpack.c.l.b16 %v8057
    %v8062 = vunpack.c.l.b16 %v8058
    %v8063 = vpack.c.b16 %v8062, %v8061
    %8064 = vrot.lane.b32.xlu0 %v6874, 2
    %v8065 = vpop.permute.xlu0 %8064
    %8066 = vrot.lane.b32.xlu0 %v6875, 2
    %v8067 = vpop.permute.xlu0 %8066
    %8068 = vrot.lane.b32.xlu0 %v6876, 2
    %v8069 = vpop.permute.xlu0 %8068
    %8070 = vrot.lane.b32.xlu0 %v6877, 2
    %v8071 = vpop.permute.xlu0 %8070
    %v8072 = vsel %vm3256, %v8065, %v8067
    %v8073 = vsel %vm3256, %v8067, %v8069
    %v8074 = vsel %vm3256, %v8069, %v8071
    %v8076 = vsel %vm778, %v8063, 0
    %v8079 = vand.u32 %v8072, %v785
    %v8082 = vand.u32 %v8073, %v785
    %v8085 = vand.u32 %v8074, %v785
    %8087 = vmatprep.subr.bf16.mxu0 %v8082
    %8088 = vmatpush1.bf16.msra.mxu0 %v8079
    %8089 = vmatprep.subr.bf16.mxu0 0
    %8090 = vmatpush1.bf16.msra.mxu0 0
    %8091 = vmatprep.subr.bf16.mxu0 0
    %8092 = vmatpush1.bf16.msra.mxu0 0
    %8093 = vmatprep.subr.bf16.mxu0 0
    %8094 = vmatpush1.bf16.msra.mxu0 0
    %8095 = vmatprep.subr.bf16.mxu0 0
    %8096 = vmatpush1.bf16.msra.mxu0 0
    %8097 = vmatprep.subr.bf16.mxu0 0
    %8098 = vmatpush1.bf16.msra.mxu0 0
    %8099 = vmatprep.subr.bf16.mxu0 0
    %8100 = vmatpush1.bf16.msra.mxu0 0
    %8101 = vmatprep.subr.bf16.mxu0 0
    %8102 = vmatpush1.bf16.msra.mxu0 0
    %8103 = vmatprep.subr.bf16.mxu0 0
    %8104 = vmatpush1.bf16.msra.mxu0 0
    %8105 = vmatprep.subr.bf16.mxu0 0
    %8106 = vmatpush1.bf16.msra.mxu0 0
    %8107 = vmatprep.subr.bf16.mxu0 0
    %8108 = vmatpush1.bf16.msra.mxu0 0
    %8109 = vmatprep.subr.bf16.mxu0 0
    %8110 = vmatpush1.bf16.msra.mxu0 0
    %8111 = vmatprep.subr.bf16.mxu0 0
    %8112 = vmatpush1.bf16.msra.mxu0 0
    %8113 = vmatprep.subr.bf16.mxu0 0
    %8114 = vmatpush1.bf16.msra.mxu0 0
    %8115 = vmatprep.subr.bf16.mxu0 0
    %8116 = vmatpush1.bf16.msra.mxu0 0
    %8117 = vmatprep.subr.bf16.mxu0 0
    %8118 = vmatpush1.bf16.msra.mxu0 0
    %8119 = vmatprep.mubr.bf16.mxu0 0
    %8120 = vmatmul.mubr.bf16.gmra.mrb[0].mxu0 %v8076
    %v8121 = vpop.f32.mrb[0].mxu0
    %v8122 = vadd.f32 0.0, %v8121
    %v8123 = vpop.f32.mrb[0].mxu0
    %v8124 = vadd.f32 0.0, %v8123
    %v8125 = vpop.f32.mrb[0].mxu0
    %v8126 = vadd.f32 0.0, %v8125
    %v8127 = vpop.f32.mrb[0].mxu0
    %v8128 = vadd.f32 0.0, %v8127
    %8129 = vdwg.mxu0
    %8130 = vmatprep.subr.bf16.mxu0 0
    %8131 = vmatpush1.bf16.msra.mxu0 %v8085
    %8132 = vmatprep.subr.bf16.mxu0 0
    %8133 = vmatpush1.bf16.msra.mxu0 0
    %8134 = vmatprep.subr.bf16.mxu0 0
    %8135 = vmatpush1.bf16.msra.mxu0 0
    %8136 = vmatprep.subr.bf16.mxu0 0
    %8137 = vmatpush1.bf16.msra.mxu0 0
    %8138 = vmatprep.subr.bf16.mxu0 0
    %8139 = vmatpush1.bf16.msra.mxu0 0
    %8140 = vmatprep.subr.bf16.mxu0 0
    %8141 = vmatpush1.bf16.msra.mxu0 0
    %8142 = vmatprep.subr.bf16.mxu0 0
    %8143 = vmatpush1.bf16.msra.mxu0 0
    %8144 = vmatprep.subr.bf16.mxu0 0
    %8145 = vmatpush1.bf16.msra.mxu0 0
    %8146 = vmatprep.subr.bf16.mxu0 0
    %8147 = vmatpush1.bf16.msra.mxu0 0
    %8148 = vmatprep.subr.bf16.mxu0 0
    %8149 = vmatpush1.bf16.msra.mxu0 0
    %8150 = vmatprep.subr.bf16.mxu0 0
    %8151 = vmatpush1.bf16.msra.mxu0 0
    %8152 = vmatprep.subr.bf16.mxu0 0
    %8153 = vmatpush1.bf16.msra.mxu0 0
    %8154 = vmatprep.subr.bf16.mxu0 0
    %8155 = vmatpush1.bf16.msra.mxu0 0
    %8156 = vmatprep.subr.bf16.mxu0 0
    %8157 = vmatpush1.bf16.msra.mxu0 0
    %8158 = vmatprep.subr.bf16.mxu0 0
    %8159 = vmatpush1.bf16.msra.mxu0 0
    %8160 = vmatprep.subr.bf16.mxu0 0
    %8161 = vmatpush1.bf16.msra.mxu0 0
    %8162 = vmatprep.mubr.bf16.mxu0 0
    %8163 = vmatmul.mubr.bf16.gmra.mrb[0].mxu0 %v8076
    %v8164 = vpop.f32.mrb[0].mxu0
    %v8165 = vadd.f32 0.0, %v8164
    %v8166 = vpop.f32.mrb[0].mxu0
    %v8167 = vpop.f32.mrb[0].mxu0
    %v8168 = vadd.f32 0.0, %v8167
    %v8169 = vpop.f32.mrb[0].mxu0
    %8170 = vdwg.mxu0
    %v8171 = vadd.f32 %v8051, %v8122
    %v8172 = vadd.f32 %v8052, %v8124
    %v8173 = vadd.f32 %v8053, %v8165
    %v8174 = vadd.f32 %v8054, %v8126
    %v8175 = vadd.f32 %v8055, %v8128
    %v8176 = vadd.f32 %v8056, %v8168
    %v8177 = vld [vmem:[%s3362] sm:$0xf]
    %v8178 = vld [vmem:[%s3362 + $0x4] sm:$0x1]
    %v8181 = vunpack.c.l.b16 %v8177
    %v8182 = vunpack.c.l.b16 %v8178
    %v8183 = vpack.c.b16 %v8182, %v8181
    %8184 = vrot.lane.b32.xlu0 %v6874, 1
    %v8185 = vpop.permute.xlu0 %8184
    %8186 = vrot.lane.b32.xlu0 %v6875, 1
    %v8187 = vpop.permute.xlu0 %8186
    %8188 = vrot.lane.b32.xlu0 %v6876, 1
    %v8189 = vpop.permute.xlu0 %8188
    %8190 = vrot.lane.b32.xlu0 %v6877, 1
    %v8191 = vpop.permute.xlu0 %8190
    %v8192 = vsel %vm1130, %v8185, %v8187
    %v8193 = vsel %vm1130, %v8187, %v8189
    %v8194 = vsel %vm1130, %v8189, %v8191
    %v8196 = vsel %vm778, %v8183, 0
    %v8199 = vand.u32 %v8192, %v785
    %v8202 = vand.u32 %v8193, %v785
    %v8205 = vand.u32 %v8194, %v785
    %8207 = vmatprep.subr.bf16.mxu0 %v8202
    %8208 = vmatpush1.bf16.msra.mxu0 %v8199
    %8209 = vmatprep.subr.bf16.mxu0 0
    %8210 = vmatpush1.bf16.msra.mxu0 0
    %8211 = vmatprep.subr.bf16.mxu0 0
    %8212 = vmatpush1.bf16.msra.mxu0 0
    %8213 = vmatprep.subr.bf16.mxu0 0
    %8214 = vmatpush1.bf16.msra.mxu0 0
    %8215 = vmatprep.subr.bf16.mxu0 0
    %8216 = vmatpush1.bf16.msra.mxu0 0
    %8217 = vmatprep.subr.bf16.mxu0 0
    %8218 = vmatpush1.bf16.msra.mxu0 0
    %8219 = vmatprep.subr.bf16.mxu0 0
    %8220 = vmatpush1.bf16.msra.mxu0 0
    %8221 = vmatprep.subr.bf16.mxu0 0
    %8222 = vmatpush1.bf16.msra.mxu0 0
    %8223 = vmatprep.subr.bf16.mxu0 0
    %8224 = vmatpush1.bf16.msra.mxu0 0
    %8225 = vmatprep.subr.bf16.mxu0 0
    %8226 = vmatpush1.bf16.msra.mxu0 0
    %8227 = vmatprep.subr.bf16.mxu0 0
    %8228 = vmatpush1.bf16.msra.mxu0 0
    %8229 = vmatprep.subr.bf16.mxu0 0
    %8230 = vmatpush1.bf16.msra.mxu0 0
    %8231 = vmatprep.subr.bf16.mxu0 0
    %8232 = vmatpush1.bf16.msra.mxu0 0
    %8233 = vmatprep.subr.bf16.mxu0 0
    %8234 = vmatpush1.bf16.msra.mxu0 0
    %8235 = vmatprep.subr.bf16.mxu0 0
    %8236 = vmatpush1.bf16.msra.mxu0 0
    %8237 = vmatprep.subr.bf16.mxu0 0
    %8238 = vmatpush1.bf16.msra.mxu0 0
    %8239 = vmatprep.mubr.bf16.mxu0 0
    %8240 = vmatmul.mubr.bf16.gmra.mrb[0].mxu0 %v8196
    %v8241 = vpop.f32.mrb[0].mxu0
    %v8242 = vadd.f32 0.0, %v8241
    %v8243 = vpop.f32.mrb[0].mxu0
    %v8244 = vadd.f32 0.0, %v8243
    %v8245 = vpop.f32.mrb[0].mxu0
    %v8246 = vadd.f32 0.0, %v8245
    %v8247 = vpop.f32.mrb[0].mxu0
    %v8248 = vadd.f32 0.0, %v8247
    %8249 = vdwg.mxu0
    %8250 = vmatprep.subr.bf16.mxu0 0
    %8251 = vmatpush1.bf16.msra.mxu0 %v8205
    %8252 = vmatprep.subr.bf16.mxu0 0
    %8253 = vmatpush1.bf16.msra.mxu0 0
    %8254 = vmatprep.subr.bf16.mxu0 0
    %8255 = vmatpush1.bf16.msra.mxu0 0
    %8256 = vmatprep.subr.bf16.mxu0 0
    %8257 = vmatpush1.bf16.msra.mxu0 0
    %8258 = vmatprep.subr.bf16.mxu0 0
    %8259 = vmatpush1.bf16.msra.mxu0 0
    %8260 = vmatprep.subr.bf16.mxu0 0
    %8261 = vmatpush1.bf16.msra.mxu0 0
    %8262 = vmatprep.subr.bf16.mxu0 0
    %8263 = vmatpush1.bf16.msra.mxu0 0
    %8264 = vmatprep.subr.bf16.mxu0 0
    %8265 = vmatpush1.bf16.msra.mxu0 0
    %8266 = vmatprep.subr.bf16.mxu0 0
    %8267 = vmatpush1.bf16.msra.mxu0 0
    %8268 = vmatprep.subr.bf16.mxu0 0
    %8269 = vmatpush1.bf16.msra.mxu0 0
    %8270 = vmatprep.subr.bf16.mxu0 0
    %8271 = vmatpush1.bf16.msra.mxu0 0
    %8272 = vmatprep.subr.bf16.mxu0 0
    %8273 = vmatpush1.bf16.msra.mxu0 0
    %8274 = vmatprep.subr.bf16.mxu0 0
    %8275 = vmatpush1.bf16.msra.mxu0 0
    %8276 = vmatprep.subr.bf16.mxu0 0
    %8277 = vmatpush1.bf16.msra.mxu0 0
    %8278 = vmatprep.subr.bf16.mxu0 0
    %8279 = vmatpush1.bf16.msra.mxu0 0
    %8280 = vmatprep.subr.bf16.mxu0 0
    %8281 = vmatpush1.bf16.msra.mxu0 0
    %8282 = vmatprep.mubr.bf16.mxu0 0
    %8283 = vmatmul.mubr.bf16.gmra.mrb[0].mxu0 %v8196
    %v8284 = vpop.f32.mrb[0].mxu0
    %v8285 = vadd.f32 0.0, %v8284
    %v8286 = vpop.f32.mrb[0].mxu0
    %v8287 = vpop.f32.mrb[0].mxu0
    %v8288 = vadd.f32 0.0, %v8287
    %v8289 = vpop.f32.mrb[0].mxu0
    %8290 = vdwg.mxu0
    %v8291 = vadd.f32 %v8171, %v8242
    %v8292 = vadd.f32 %v8172, %v8244
    %v8293 = vadd.f32 %v8173, %v8285
    %v8294 = vadd.f32 %v8174, %v8246
    %v8295 = vadd.f32 %v8175, %v8248
    %v8296 = vadd.f32 %v8176, %v8288
    %v8297 = vld [vmem:[%s3483] sm:$0xf]
    %v8298 = vld [vmem:[%s3483 + $0x4] sm:$0x1]
    %v8299 = vld [vmem:[#allocation3 + $0x4] sm:$0x77]
    %v8300 = vld [vmem:[#allocation3 + $0xc] sm:$0x7]
    %v8303 = vunpack.c.l.b16 %v8297
    %v8304 = vunpack.c.l.b16 %v8298
    %v8305 = vpack.c.b16 %v8304, %v8303
    %v8308 = vunpack.c.l.b16 %v8299
    %v8309 = vunpack.c.h.b16 %v8299
    %v8310 = vunpack.c.l.b16 %v8300
    %v8311 = vpack.c.b16 %v8308, %v8308
    %v8312 = vpack.c.b16 %v8309, %v8309
    %v8313 = vpack.c.b16 %v8310, %v8310
    %v8315 = vsel %vm778, %v8305, 0
    %v8318 = vand.u32 %v8311, %v785
    %v8321 = vand.u32 %v8312, %v785
    %v8324 = vand.u32 %v8313, %v785
    %8326 = vmatprep.subr.bf16.mxu0 %v8321
    %8327 = vmatpush1.bf16.msra.mxu0 %v8318
    %8328 = vmatprep.subr.bf16.mxu0 0
    %8329 = vmatpush1.bf16.msra.mxu0 0
    %8330 = vmatprep.subr.bf16.mxu0 0
    %8331 = vmatpush1.bf16.msra.mxu0 0
    %8332 = vmatprep.subr.bf16.mxu0 0
    %8333 = vmatpush1.bf16.msra.mxu0 0
    %8334 = vmatprep.subr.bf16.mxu0 0
    %8335 = vmatpush1.bf16.msra.mxu0 0
    %8336 = vmatprep.subr.bf16.mxu0 0
    %8337 = vmatpush1.bf16.msra.mxu0 0
    %8338 = vmatprep.subr.bf16.mxu0 0
    %8339 = vmatpush1.bf16.msra.mxu0 0
    %8340 = vmatprep.subr.bf16.mxu0 0
    %8341 = vmatpush1.bf16.msra.mxu0 0
    %8342 = vmatprep.subr.bf16.mxu0 0
    %8343 = vmatpush1.bf16.msra.mxu0 0
    %8344 = vmatprep.subr.bf16.mxu0 0
    %8345 = vmatpush1.bf16.msra.mxu0 0
    %8346 = vmatprep.subr.bf16.mxu0 0
    %8347 = vmatpush1.bf16.msra.mxu0 0
    %8348 = vmatprep.subr.bf16.mxu0 0
    %8349 = vmatpush1.bf16.msra.mxu0 0
    %8350 = vmatprep.subr.bf16.mxu0 0
    %8351 = vmatpush1.bf16.msra.mxu0 0
    %8352 = vmatprep.subr.bf16.mxu0 0
    %8353 = vmatpush1.bf16.msra.mxu0 0
    %8354 = vmatprep.subr.bf16.mxu0 0
    %8355 = vmatpush1.bf16.msra.mxu0 0
    %8356 = vmatprep.subr.bf16.mxu0 0
    %8357 = vmatpush1.bf16.msra.mxu0 0
    %8358 = vmatprep.mubr.bf16.mxu0 0
    %8359 = vmatmul.mubr.bf16.gmra.mrb[0].mxu0 %v8315
    %v8360 = vpop.f32.mrb[0].mxu0
    %v8361 = vadd.f32 0.0, %v8360
    %v8362 = vpop.f32.mrb[0].mxu0
    %v8363 = vadd.f32 0.0, %v8362
    %v8364 = vpop.f32.mrb[0].mxu0
    %v8365 = vadd.f32 0.0, %v8364
    %v8366 = vpop.f32.mrb[0].mxu0
    %v8367 = vadd.f32 0.0, %v8366
    %8368 = vdwg.mxu0
    %8369 = vmatprep.subr.bf16.mxu0 0
    %8370 = vmatpush1.bf16.msra.mxu0 %v8324
    %8371 = vmatprep.subr.bf16.mxu0 0
    %8372 = vmatpush1.bf16.msra.mxu0 0
    %8373 = vmatprep.subr.bf16.mxu0 0
    %8374 = vmatpush1.bf16.msra.mxu0 0
    %8375 = vmatprep.subr.bf16.mxu0 0
    %8376 = vmatpush1.bf16.msra.mxu0 0
    %8377 = vmatprep.subr.bf16.mxu0 0
    %8378 = vmatpush1.bf16.msra.mxu0 0
    %8379 = vmatprep.subr.bf16.mxu0 0
    %8380 = vmatpush1.bf16.msra.mxu0 0
    %8381 = vmatprep.subr.bf16.mxu0 0
    %8382 = vmatpush1.bf16.msra.mxu0 0
    %8383 = vmatprep.subr.bf16.mxu0 0
    %8384 = vmatpush1.bf16.msra.mxu0 0
    %8385 = vmatprep.subr.bf16.mxu0 0
    %8386 = vmatpush1.bf16.msra.mxu0 0
    %8387 = vmatprep.subr.bf16.mxu0 0
    %8388 = vmatpush1.bf16.msra.mxu0 0
    %8389 = vmatprep.subr.bf16.mxu0 0
    %8390 = vmatpush1.bf16.msra.mxu0 0
    %8391 = vmatprep.subr.bf16.mxu0 0
    %8392 = vmatpush1.bf16.msra.mxu0 0
    %8393 = vmatprep.subr.bf16.mxu0 0
    %8394 = vmatpush1.bf16.msra.mxu0 0
    %8395 = vmatprep.subr.bf16.mxu0 0
    %8396 = vmatpush1.bf16.msra.mxu0 0
    %8397 = vmatprep.subr.bf16.mxu0 0
    %8398 = vmatpush1.bf16.msra.mxu0 0
    %8399 = vmatprep.subr.bf16.mxu0 0
    %8400 = vmatpush1.bf16.msra.mxu0 0
    %8401 = vmatprep.mubr.bf16.mxu0 0
    %8402 = vmatmul.mubr.bf16.gmra.mrb[0].mxu0 %v8315
    %v8403 = vpop.f32.mrb[0].mxu0
    %v8404 = vadd.f32 0.0, %v8403
    %v8405 = vpop.f32.mrb[0].mxu0
    %v8406 = vpop.f32.mrb[0].mxu0
    %v8407 = vadd.f32 0.0, %v8406
    %v8408 = vpop.f32.mrb[0].mxu0
    %8409 = vdwg.mxu0
    %v8410 = vadd.f32 %v8291, %v8361
    %v8411 = vadd.f32 %v8292, %v8363
    %v8412 = vadd.f32 %v8293, %v8404
    %v8413 = vadd.f32 %v8294, %v8365
    %v8414 = vadd.f32 %v8295, %v8367
    %v8415 = vadd.f32 %v8296, %v8407
    %v8416 = vld [vmem:[%s3603] sm:$0xf]
    %v8417 = vld [vmem:[%s3603 + $0x4] sm:$0x1]
    %v8418 = vld [vmem:[#allocation3 + $0x4] sm:$0x77]
    %v8419 = vld [vmem:[#allocation3 + $0xc] sm:$0x77]
    %v8422 = vunpack.c.l.b16 %v8416
    %v8423 = vunpack.c.l.b16 %v8417
    %v8424 = vpack.c.b16 %v8423, %v8422
    %v8427 = vunpack.c.l.b16 %v8418
    %v8428 = vunpack.c.h.b16 %v8418
    %v8429 = vunpack.c.l.b16 %v8419
    %v8430 = vunpack.c.h.b16 %v8419
    %v8431 = vpack.c.b16 %v8427, %v8427
    %v8432 = vpack.c.b16 %v8428, %v8428
    %v8433 = vpack.c.b16 %v8429, %v8429
    %v8434 = vpack.c.b16 %v8430, %v8430
    %8435 = vrot.lane.b32.xlu0 %v8431, 127
    %v8436 = vpop.permute.xlu0 %8435
    %8437 = vrot.lane.b32.xlu0 %v8432, 127
    %v8438 = vpop.permute.xlu0 %8437
    %8439 = vrot.lane.b32.xlu0 %v8433, 127
    %v8440 = vpop.permute.xlu0 %8439
    %8441 = vrot.lane.b32.xlu0 %v8434, 127
    %v8442 = vpop.permute.xlu0 %8441
    %v8443 = vsel %vm1384, %v8436, %v8438
    %v8444 = vsel %vm1384, %v8438, %v8440
    %v8445 = vsel %vm1384, %v8440, %v8442
    %v8447 = vsel %vm778, %v8424, 0
    %v8450 = vand.u32 %v8443, %v785
    %v8453 = vand.u32 %v8444, %v785
    %v8456 = vand.u32 %v8445, %v785
    %8458 = vmatprep.subr.bf16.mxu0 %v8453
    %8459 = vmatpush1.bf16.msra.mxu0 %v8450
    %8460 = vmatprep.subr.bf16.mxu0 0
    %8461 = vmatpush1.bf16.msra.mxu0 0
    %8462 = vmatprep.subr.bf16.mxu0 0
    %8463 = vmatpush1.bf16.msra.mxu0 0
    %8464 = vmatprep.subr.bf16.mxu0 0
    %8465 = vmatpush1.bf16.msra.mxu0 0
    %8466 = vmatprep.subr.bf16.mxu0 0
    %8467 = vmatpush1.bf16.msra.mxu0 0
    %8468 = vmatprep.subr.bf16.mxu0 0
    %8469 = vmatpush1.bf16.msra.mxu0 0
    %8470 = vmatprep.subr.bf16.mxu0 0
    %8471 = vmatpush1.bf16.msra.mxu0 0
    %8472 = vmatprep.subr.bf16.mxu0 0
    %8473 = vmatpush1.bf16.msra.mxu0 0
    %8474 = vmatprep.subr.bf16.mxu0 0
    %8475 = vmatpush1.bf16.msra.mxu0 0
    %8476 = vmatprep.subr.bf16.mxu0 0
    %8477 = vmatpush1.bf16.msra.mxu0 0
    %8478 = vmatprep.subr.bf16.mxu0 0
    %8479 = vmatpush1.bf16.msra.mxu0 0
    %8480 = vmatprep.subr.bf16.mxu0 0
    %8481 = vmatpush1.bf16.msra.mxu0 0
    %8482 = vmatprep.subr.bf16.mxu0 0
    %8483 = vmatpush1.bf16.msra.mxu0 0
    %8484 = vmatprep.subr.bf16.mxu0 0
    %8485 = vmatpush1.bf16.msra.mxu0 0
    %8486 = vmatprep.subr.bf16.mxu0 0
    %8487 = vmatpush1.bf16.msra.mxu0 0
    %8488 = vmatprep.subr.bf16.mxu0 0
    %8489 = vmatpush1.bf16.msra.mxu0 0
    %8490 = vmatprep.mubr.bf16.mxu0 0
    %8491 = vmatmul.mubr.bf16.gmra.mrb[0].mxu0 %v8447
    %v8492 = vpop.f32.mrb[0].mxu0
    %v8493 = vadd.f32 0.0, %v8492
    %v8494 = vpop.f32.mrb[0].mxu0
    %v8495 = vadd.f32 0.0, %v8494
    %v8496 = vpop.f32.mrb[0].mxu0
    %v8497 = vadd.f32 0.0, %v8496
    %v8498 = vpop.f32.mrb[0].mxu0
    %v8499 = vadd.f32 0.0, %v8498
    %8500 = vdwg.mxu0
    %8501 = vmatprep.subr.bf16.mxu0 0
    %8502 = vmatpush1.bf16.msra.mxu0 %v8456
    %8503 = vmatprep.subr.bf16.mxu0 0
    %8504 = vmatpush1.bf16.msra.mxu0 0
    %8505 = vmatprep.subr.bf16.mxu0 0
    %8506 = vmatpush1.bf16.msra.mxu0 0
    %8507 = vmatprep.subr.bf16.mxu0 0
    %8508 = vmatpush1.bf16.msra.mxu0 0
    %8509 = vmatprep.subr.bf16.mxu0 0
    %8510 = vmatpush1.bf16.msra.mxu0 0
    %8511 = vmatprep.subr.bf16.mxu0 0
    %8512 = vmatpush1.bf16.msra.mxu0 0
    %8513 = vmatprep.subr.bf16.mxu0 0
    %8514 = vmatpush1.bf16.msra.mxu0 0
    %8515 = vmatprep.subr.bf16.mxu0 0
    %8516 = vmatpush1.bf16.msra.mxu0 0
    %8517 = vmatprep.subr.bf16.mxu0 0
    %8518 = vmatpush1.bf16.msra.mxu0 0
    %8519 = vmatprep.subr.bf16.mxu0 0
    %8520 = vmatpush1.bf16.msra.mxu0 0
    %8521 = vmatprep.subr.bf16.mxu0 0
    %8522 = vmatpush1.bf16.msra.mxu0 0
    %8523 = vmatprep.subr.bf16.mxu0 0
    %8524 = vmatpush1.bf16.msra.mxu0 0
    %8525 = vmatprep.subr.bf16.mxu0 0
    %8526 = vmatpush1.bf16.msra.mxu0 0
    %8527 = vmatprep.subr.bf16.mxu0 0
    %8528 = vmatpush1.bf16.msra.mxu0 0
    %8529 = vmatprep.subr.bf16.mxu0 0
    %8530 = vmatpush1.bf16.msra.mxu0 0
    %8531 = vmatprep.subr.bf16.mxu0 0
    %8532 = vmatpush1.bf16.msra.mxu0 0
    %8533 = vmatprep.mubr.bf16.mxu0 0
    %8534 = vmatmul.mubr.bf16.gmra.mrb[0].mxu0 %v8447
    %v8535 = vpop.f32.mrb[0].mxu0
    %v8536 = vadd.f32 0.0, %v8535
    %v8537 = vpop.f32.mrb[0].mxu0
    %v8538 = vpop.f32.mrb[0].mxu0
    %v8539 = vadd.f32 0.0, %v8538
    %v8540 = vpop.f32.mrb[0].mxu0
    %8541 = vdwg.mxu0
    %v8542 = vadd.f32 %v8410, %v8493
    %v8543 = vadd.f32 %v8411, %v8495
    %v8544 = vadd.f32 %v8412, %v8536
    %v8545 = vadd.f32 %v8413, %v8497
    %v8546 = vadd.f32 %v8414, %v8499
    %v8547 = vadd.f32 %v8415, %v8539
    %v8548 = vld [vmem:[%s3736] sm:$0xf]
    %v8549 = vld [vmem:[%s3736 + $0x4] sm:$0x1]
    %v8552 = vunpack.c.l.b16 %v8548
    %v8553 = vunpack.c.l.b16 %v8549
    %v8554 = vpack.c.b16 %v8553, %v8552
    %8555 = vrot.lane.b32.xlu0 %v8431, 126
    %v8556 = vpop.permute.xlu0 %8555
    %8557 = vrot.lane.b32.xlu0 %v8432, 126
    %v8558 = vpop.permute.xlu0 %8557
    %8559 = vrot.lane.b32.xlu0 %v8433, 126
    %v8560 = vpop.permute.xlu0 %8559
    %8561 = vrot.lane.b32.xlu0 %v8434, 126
    %v8562 = vpop.permute.xlu0 %8561
    %v8563 = vsel %vm3752, %v8556, %v8558
    %v8564 = vsel %vm3752, %v8558, %v8560
    %v8565 = vsel %vm3752, %v8560, %v8562
    %v8567 = vsel %vm778, %v8554, 0
    %v8570 = vand.u32 %v8563, %v785
    %v8573 = vand.u32 %v8564, %v785
    %v8576 = vand.u32 %v8565, %v785
    %8578 = vmatprep.subr.bf16.mxu0 %v8573
    %8579 = vmatpush1.bf16.msra.mxu0 %v8570
    %8580 = vmatprep.subr.bf16.mxu0 0
    %8581 = vmatpush1.bf16.msra.mxu0 0
    %8582 = vmatprep.subr.bf16.mxu0 0
    %8583 = vmatpush1.bf16.msra.mxu0 0
    %8584 = vmatprep.subr.bf16.mxu0 0
    %8585 = vmatpush1.bf16.msra.mxu0 0
    %8586 = vmatprep.subr.bf16.mxu0 0
    %8587 = vmatpush1.bf16.msra.mxu0 0
    %8588 = vmatprep.subr.bf16.mxu0 0
    %8589 = vmatpush1.bf16.msra.mxu0 0
    %8590 = vmatprep.subr.bf16.mxu0 0
    %8591 = vmatpush1.bf16.msra.mxu0 0
    %8592 = vmatprep.subr.bf16.mxu0 0
    %8593 = vmatpush1.bf16.msra.mxu0 0
    %8594 = vmatprep.subr.bf16.mxu0 0
    %8595 = vmatpush1.bf16.msra.mxu0 0
    %8596 = vmatprep.subr.bf16.mxu0 0
    %8597 = vmatpush1.bf16.msra.mxu0 0
    %8598 = vmatprep.subr.bf16.mxu0 0
    %8599 = vmatpush1.bf16.msra.mxu0 0
    %8600 = vmatprep.subr.bf16.mxu0 0
    %8601 = vmatpush1.bf16.msra.mxu0 0
    %8602 = vmatprep.subr.bf16.mxu0 0
    %8603 = vmatpush1.bf16.msra.mxu0 0
    %8604 = vmatprep.subr.bf16.mxu0 0
    %8605 = vmatpush1.bf16.msra.mxu0 0
    %8606 = vmatprep.subr.bf16.mxu0 0
    %8607 = vmatpush1.bf16.msra.mxu0 0
    %8608 = vmatprep.subr.bf16.mxu0 0
    %8609 = vmatpush1.bf16.msra.mxu0 0
    %8610 = vmatprep.mubr.bf16.mxu0 0
    %8611 = vmatmul.mubr.bf16.gmra.mrb[0].mxu0 %v8567
    %v8612 = vpop.f32.mrb[0].mxu0
    %v8613 = vadd.f32 0.0, %v8612
    %v8614 = vpop.f32.mrb[0].mxu0
    %v8615 = vadd.f32 0.0, %v8614
    %v8616 = vpop.f32.mrb[0].mxu0
    %v8617 = vadd.f32 0.0, %v8616
    %v8618 = vpop.f32.mrb[0].mxu0
    %v8619 = vadd.f32 0.0, %v8618
    %8620 = vdwg.mxu0
    %8621 = vmatprep.subr.bf16.mxu0 0
    %8622 = vmatpush1.bf16.msra.mxu0 %v8576
    %8623 = vmatprep.subr.bf16.mxu0 0
    %8624 = vmatpush1.bf16.msra.mxu0 0
    %8625 = vmatprep.subr.bf16.mxu0 0
    %8626 = vmatpush1.bf16.msra.mxu0 0
    %8627 = vmatprep.subr.bf16.mxu0 0
    %8628 = vmatpush1.bf16.msra.mxu0 0
    %8629 = vmatprep.subr.bf16.mxu0 0
    %8630 = vmatpush1.bf16.msra.mxu0 0
    %8631 = vmatprep.subr.bf16.mxu0 0
    %8632 = vmatpush1.bf16.msra.mxu0 0
    %8633 = vmatprep.subr.bf16.mxu0 0
    %8634 = vmatpush1.bf16.msra.mxu0 0
    %8635 = vmatprep.subr.bf16.mxu0 0
    %8636 = vmatpush1.bf16.msra.mxu0 0
    %8637 = vmatprep.subr.bf16.mxu0 0
    %8638 = vmatpush1.bf16.msra.mxu0 0
    %8639 = vmatprep.subr.bf16.mxu0 0
    %8640 = vmatpush1.bf16.msra.mxu0 0
    %8641 = vmatprep.subr.bf16.mxu0 0
    %8642 = vmatpush1.bf16.msra.mxu0 0
    %8643 = vmatprep.subr.bf16.mxu0 0
    %8644 = vmatpush1.bf16.msra.mxu0 0
    %8645 = vmatprep.subr.bf16.mxu0 0
    %8646 = vmatpush1.bf16.msra.mxu0 0
    %8647 = vmatprep.subr.bf16.mxu0 0
    %8648 = vmatpush1.bf16.msra.mxu0 0
    %8649 = vmatprep.subr.bf16.mxu0 0
    %8650 = vmatpush1.bf16.msra.mxu0 0
    %8651 = vmatprep.subr.bf16.mxu0 0
    %8652 = vmatpush1.bf16.msra.mxu0 0
    %8653 = vmatprep.mubr.bf16.mxu0 0
    %8654 = vmatmul.mubr.bf16.gmra.mrb[0].mxu0 %v8567
    %v8655 = vpop.f32.mrb[0].mxu0
    %v8656 = vadd.f32 0.0, %v8655
    %v8657 = vpop.f32.mrb[0].mxu0
    %v8658 = vpop.f32.mrb[0].mxu0
    %v8659 = vadd.f32 0.0, %v8658
    %v8660 = vpop.f32.mrb[0].mxu0
    %8661 = vdwg.mxu0
    %v8662 = vadd.f32 %v8542, %v8613
    %v8663 = vadd.f32 %v8543, %v8615
    %v8664 = vadd.f32 %v8544, %v8656
    %v8665 = vadd.f32 %v8545, %v8617
    %v8666 = vadd.f32 %v8546, %v8619
    %v8667 = vadd.f32 %v8547, %v8659
    %v8668 = vld [vmem:[%s3858] sm:$0xf]
    %v8669 = vld [vmem:[%s3858 + $0x4] sm:$0x1]
    %v8672 = vunpack.c.l.b16 %v8668
    %v8673 = vunpack.c.l.b16 %v8669
    %v8674 = vpack.c.b16 %v8673, %v8672
    %8675 = vrot.lane.b32.xlu0 %v8431, 106
    %v8676 = vpop.permute.xlu0 %8675
    %8677 = vrot.lane.b32.xlu0 %v8432, 106
    %v8678 = vpop.permute.xlu0 %8677
    %8679 = vrot.lane.b32.xlu0 %v8433, 106
    %v8680 = vpop.permute.xlu0 %8679
    %8681 = vrot.lane.b32.xlu0 %v8434, 106
    %v8682 = vpop.permute.xlu0 %8681
    %v8683 = vsel %vm3874, %v8676, %v8678
    %v8684 = vsel %vm3874, %v8678, %v8680
    %v8685 = vsel %vm3874, %v8680, %v8682
    %v8687 = vsel %vm778, %v8674, 0
    %v8690 = vand.u32 %v8683, %v785
    %v8693 = vand.u32 %v8684, %v785
    %v8696 = vand.u32 %v8685, %v785
    %8698 = vmatprep.subr.bf16.mxu0 %v8693
    %8699 = vmatpush1.bf16.msra.mxu0 %v8690
    %8700 = vmatprep.subr.bf16.mxu0 0
    %8701 = vmatpush1.bf16.msra.mxu0 0
    %8702 = vmatprep.subr.bf16.mxu0 0
    %8703 = vmatpush1.bf16.msra.mxu0 0
    %8704 = vmatprep.subr.bf16.mxu0 0
    %8705 = vmatpush1.bf16.msra.mxu0 0
    %8706 = vmatprep.subr.bf16.mxu0 0
    %8707 = vmatpush1.bf16.msra.mxu0 0
    %8708 = vmatprep.subr.bf16.mxu0 0
    %8709 = vmatpush1.bf16.msra.mxu0 0
    %8710 = vmatprep.subr.bf16.mxu0 0
    %8711 = vmatpush1.bf16.msra.mxu0 0
    %8712 = vmatprep.subr.bf16.mxu0 0
    %8713 = vmatpush1.bf16.msra.mxu0 0
    %8714 = vmatprep.subr.bf16.mxu0 0
    %8715 = vmatpush1.bf16.msra.mxu0 0
    %8716 = vmatprep.subr.bf16.mxu0 0
    %8717 = vmatpush1.bf16.msra.mxu0 0
    %8718 = vmatprep.subr.bf16.mxu0 0
    %8719 = vmatpush1.bf16.msra.mxu0 0
    %8720 = vmatprep.subr.bf16.mxu0 0
    %8721 = vmatpush1.bf16.msra.mxu0 0
    %8722 = vmatprep.subr.bf16.mxu0 0
    %8723 = vmatpush1.bf16.msra.mxu0 0
    %8724 = vmatprep.subr.bf16.mxu0 0
    %8725 = vmatpush1.bf16.msra.mxu0 0
    %8726 = vmatprep.subr.bf16.mxu0 0
    %8727 = vmatpush1.bf16.msra.mxu0 0
    %8728 = vmatprep.subr.bf16.mxu0 0
    %8729 = vmatpush1.bf16.msra.mxu0 0
    %8730 = vmatprep.mubr.bf16.mxu0 0
    %8731 = vmatmul.mubr.bf16.gmra.mrb[0].mxu0 %v8687
    %v8732 = vpop.f32.mrb[0].mxu0
    %v8733 = vadd.f32 0.0, %v8732
    %v8734 = vpop.f32.mrb[0].mxu0
    %v8735 = vadd.f32 0.0, %v8734
    %v8736 = vpop.f32.mrb[0].mxu0
    %v8737 = vadd.f32 0.0, %v8736
    %v8738 = vpop.f32.mrb[0].mxu0
    %v8739 = vadd.f32 0.0, %v8738
    %8740 = vdwg.mxu0
    %8741 = vmatprep.subr.bf16.mxu0 0
    %8742 = vmatpush1.bf16.msra.mxu0 %v8696
    %8743 = vmatprep.subr.bf16.mxu0 0
    %8744 = vmatpush1.bf16.msra.mxu0 0
    %8745 = vmatprep.subr.bf16.mxu0 0
    %8746 = vmatpush1.bf16.msra.mxu0 0
    %8747 = vmatprep.subr.bf16.mxu0 0
    %8748 = vmatpush1.bf16.msra.mxu0 0
    %8749 = vmatprep.subr.bf16.mxu0 0
    %8750 = vmatpush1.bf16.msra.mxu0 0
    %8751 = vmatprep.subr.bf16.mxu0 0
    %8752 = vmatpush1.bf16.msra.mxu0 0
    %8753 = vmatprep.subr.bf16.mxu0 0
    %8754 = vmatpush1.bf16.msra.mxu0 0
    %8755 = vmatprep.subr.bf16.mxu0 0
    %8756 = vmatpush1.bf16.msra.mxu0 0
    %8757 = vmatprep.subr.bf16.mxu0 0
    %8758 = vmatpush1.bf16.msra.mxu0 0
    %8759 = vmatprep.subr.bf16.mxu0 0
    %8760 = vmatpush1.bf16.msra.mxu0 0
    %8761 = vmatprep.subr.bf16.mxu0 0
    %8762 = vmatpush1.bf16.msra.mxu0 0
    %8763 = vmatprep.subr.bf16.mxu0 0
    %8764 = vmatpush1.bf16.msra.mxu0 0
    %8765 = vmatprep.subr.bf16.mxu0 0
    %8766 = vmatpush1.bf16.msra.mxu0 0
    %8767 = vmatprep.subr.bf16.mxu0 0
    %8768 = vmatpush1.bf16.msra.mxu0 0
    %8769 = vmatprep.subr.bf16.mxu0 0
    %8770 = vmatpush1.bf16.msra.mxu0 0
    %8771 = vmatprep.subr.bf16.mxu0 0
    %8772 = vmatpush1.bf16.msra.mxu0 0
    %8773 = vmatprep.mubr.bf16.mxu0 0
    %8774 = vmatmul.mubr.bf16.gmra.mrb[0].mxu0 %v8687
    %v8775 = vpop.f32.mrb[0].mxu0
    %v8776 = vadd.f32 0.0, %v8775
    %v8777 = vpop.f32.mrb[0].mxu0
    %v8778 = vpop.f32.mrb[0].mxu0
    %v8779 = vadd.f32 0.0, %v8778
    %v8780 = vpop.f32.mrb[0].mxu0
    %8781 = vdwg.mxu0
    %v8782 = vadd.f32 %v8662, %v8733
    %v8783 = vadd.f32 %v8663, %v8735
    %v8784 = vadd.f32 %v8664, %v8776
    %v8785 = vadd.f32 %v8665, %v8737
    %v8786 = vadd.f32 %v8666, %v8739
    %v8787 = vadd.f32 %v8667, %v8779
    %v8788 = vld [vmem:[%s3980] sm:$0xf]
    %v8789 = vld [vmem:[%s3980 + $0x4] sm:$0x1]
    %v8792 = vunpack.c.l.b16 %v8788
    %v8793 = vunpack.c.l.b16 %v8789
    %v8794 = vpack.c.b16 %v8793, %v8792
    %8795 = vrot.lane.b32.xlu0 %v8431, 105
    %v8796 = vpop.permute.xlu0 %8795
    %8797 = vrot.lane.b32.xlu0 %v8432, 105
    %v8798 = vpop.permute.xlu0 %8797
    %8799 = vrot.lane.b32.xlu0 %v8433, 105
    %v8800 = vpop.permute.xlu0 %8799
    %8801 = vrot.lane.b32.xlu0 %v8434, 105
    %v8802 = vpop.permute.xlu0 %8801
    %v8803 = vsel %vm1506, %v8796, %v8798
    %v8804 = vsel %vm1506, %v8798, %v8800
    %v8805 = vsel %vm1506, %v8800, %v8802
    %v8807 = vsel %vm778, %v8794, 0
    %v8810 = vand.u32 %v8803, %v785
    %v8813 = vand.u32 %v8804, %v785
    %v8816 = vand.u32 %v8805, %v785
    %8818 = vmatprep.subr.bf16.mxu0 %v8813
    %8819 = vmatpush1.bf16.msra.mxu0 %v8810
    %8820 = vmatprep.subr.bf16.mxu0 0
    %8821 = vmatpush1.bf16.msra.mxu0 0
    %8822 = vmatprep.subr.bf16.mxu0 0
    %8823 = vmatpush1.bf16.msra.mxu0 0
    %8824 = vmatprep.subr.bf16.mxu0 0
    %8825 = vmatpush1.bf16.msra.mxu0 0
    %8826 = vmatprep.subr.bf16.mxu0 0
    %8827 = vmatpush1.bf16.msra.mxu0 0
    %8828 = vmatprep.subr.bf16.mxu0 0
    %8829 = vmatpush1.bf16.msra.mxu0 0
    %8830 = vmatprep.subr.bf16.mxu0 0
    %8831 = vmatpush1.bf16.msra.mxu0 0
    %8832 = vmatprep.subr.bf16.mxu0 0
    %8833 = vmatpush1.bf16.msra.mxu0 0
    %8834 = vmatprep.subr.bf16.mxu0 0
    %8835 = vmatpush1.bf16.msra.mxu0 0
    %8836 = vmatprep.subr.bf16.mxu0 0
    %8837 = vmatpush1.bf16.msra.mxu0 0
    %8838 = vmatprep.subr.bf16.mxu0 0
    %8839 = vmatpush1.bf16.msra.mxu0 0
    %8840 = vmatprep.subr.bf16.mxu0 0
    %8841 = vmatpush1.bf16.msra.mxu0 0
    %8842 = vmatprep.subr.bf16.mxu0 0
    %8843 = vmatpush1.bf16.msra.mxu0 0
    %8844 = vmatprep.subr.bf16.mxu0 0
    %8845 = vmatpush1.bf16.msra.mxu0 0
    %8846 = vmatprep.subr.bf16.mxu0 0
    %8847 = vmatpush1.bf16.msra.mxu0 0
    %8848 = vmatprep.subr.bf16.mxu0 0
    %8849 = vmatpush1.bf16.msra.mxu0 0
    %8850 = vmatprep.mubr.bf16.mxu0 0
    %8851 = vmatmul.mubr.bf16.gmra.mrb[0].mxu0 %v8807
    %v8852 = vpop.f32.mrb[0].mxu0
    %v8853 = vadd.f32 0.0, %v8852
    %v8854 = vpop.f32.mrb[0].mxu0
    %v8855 = vadd.f32 0.0, %v8854
    %v8856 = vpop.f32.mrb[0].mxu0
    %v8857 = vadd.f32 0.0, %v8856
    %v8858 = vpop.f32.mrb[0].mxu0
    %v8859 = vadd.f32 0.0, %v8858
    %8860 = vdwg.mxu0
    %8861 = vmatprep.subr.bf16.mxu0 0
    %8862 = vmatpush1.bf16.msra.mxu0 %v8816
    %8863 = vmatprep.subr.bf16.mxu0 0
    %8864 = vmatpush1.bf16.msra.mxu0 0
    %8865 = vmatprep.subr.bf16.mxu0 0
    %8866 = vmatpush1.bf16.msra.mxu0 0
    %8867 = vmatprep.subr.bf16.mxu0 0
    %8868 = vmatpush1.bf16.msra.mxu0 0
    %8869 = vmatprep.subr.bf16.mxu0 0
    %8870 = vmatpush1.bf16.msra.mxu0 0
    %8871 = vmatprep.subr.bf16.mxu0 0
    %8872 = vmatpush1.bf16.msra.mxu0 0
    %8873 = vmatprep.subr.bf16.mxu0 0
    %8874 = vmatpush1.bf16.msra.mxu0 0
    %8875 = vmatprep.subr.bf16.mxu0 0
    %8876 = vmatpush1.bf16.msra.mxu0 0
    %8877 = vmatprep.subr.bf16.mxu0 0
    %8878 = vmatpush1.bf16.msra.mxu0 0
    %8879 = vmatprep.subr.bf16.mxu0 0
    %8880 = vmatpush1.bf16.msra.mxu0 0
    %8881 = vmatprep.subr.bf16.mxu0 0
    %8882 = vmatpush1.bf16.msra.mxu0 0
    %8883 = vmatprep.subr.bf16.mxu0 0
    %8884 = vmatpush1.bf16.msra.mxu0 0
    %8885 = vmatprep.subr.bf16.mxu0 0
    %8886 = vmatpush1.bf16.msra.mxu0 0
    %8887 = vmatprep.subr.bf16.mxu0 0
    %8888 = vmatpush1.bf16.msra.mxu0 0
    %8889 = vmatprep.subr.bf16.mxu0 0
    %8890 = vmatpush1.bf16.msra.mxu0 0
    %8891 = vmatprep.subr.bf16.mxu0 0
    %8892 = vmatpush1.bf16.msra.mxu0 0
    %8893 = vmatprep.mubr.bf16.mxu0 0
    %8894 = vmatmul.mubr.bf16.gmra.mrb[0].mxu0 %v8807
    %v8895 = vpop.f32.mrb[0].mxu0
    %v8896 = vadd.f32 0.0, %v8895
    %v8897 = vpop.f32.mrb[0].mxu0
    %v8898 = vpop.f32.mrb[0].mxu0
    %v8899 = vadd.f32 0.0, %v8898
    %v8900 = vpop.f32.mrb[0].mxu0
    %8901 = vdwg.mxu0
    %v8902 = vadd.f32 %v8782, %v8853
    %v8903 = vadd.f32 %v8783, %v8855
    %v8904 = vadd.f32 %v8784, %v8896
    %v8905 = vadd.f32 %v8785, %v8857
    %v8906 = vadd.f32 %v8786, %v8859
    %v8907 = vadd.f32 %v8787, %v8899
    %v8908 = vld [vmem:[%s4101] sm:$0xf]
    %v8909 = vld [vmem:[%s4101 + $0x4] sm:$0x1]
    %v8912 = vunpack.c.l.b16 %v8908
    %v8913 = vunpack.c.l.b16 %v8909
    %v8914 = vpack.c.b16 %v8913, %v8912
    %8915 = vrot.lane.b32.xlu0 %v8431, 104
    %v8916 = vpop.permute.xlu0 %8915
    %8917 = vrot.lane.b32.xlu0 %v8432, 104
    %v8918 = vpop.permute.xlu0 %8917
    %8919 = vrot.lane.b32.xlu0 %v8433, 104
    %v8920 = vpop.permute.xlu0 %8919
    %8921 = vrot.lane.b32.xlu0 %v8434, 104
    %v8922 = vpop.permute.xlu0 %8921
    %v8923 = vsel %vm1628, %v8916, %v8918
    %v8924 = vsel %vm1628, %v8918, %v8920
    %v8925 = vsel %vm1628, %v8920, %v8922
    %v8927 = vsel %vm778, %v8914, 0
    %v8930 = vand.u32 %v8923, %v785
    %v8933 = vand.u32 %v8924, %v785
    %v8936 = vand.u32 %v8925, %v785
    %8938 = vmatprep.subr.bf16.mxu0 %v8933
    %8939 = vmatpush1.bf16.msra.mxu0 %v8930
    %8940 = vmatprep.subr.bf16.mxu0 0
    %8941 = vmatpush1.bf16.msra.mxu0 0
    %8942 = vmatprep.subr.bf16.mxu0 0
    %8943 = vmatpush1.bf16.msra.mxu0 0
    %8944 = vmatprep.subr.bf16.mxu0 0
    %8945 = vmatpush1.bf16.msra.mxu0 0
    %8946 = vmatprep.subr.bf16.mxu0 0
    %8947 = vmatpush1.bf16.msra.mxu0 0
    %8948 = vmatprep.subr.bf16.mxu0 0
    %8949 = vmatpush1.bf16.msra.mxu0 0
    %8950 = vmatprep.subr.bf16.mxu0 0
    %8951 = vmatpush1.bf16.msra.mxu0 0
    %8952 = vmatprep.subr.bf16.mxu0 0
    %8953 = vmatpush1.bf16.msra.mxu0 0
    %8954 = vmatprep.subr.bf16.mxu0 0
    %8955 = vmatpush1.bf16.msra.mxu0 0
    %8956 = vmatprep.subr.bf16.mxu0 0
    %8957 = vmatpush1.bf16.msra.mxu0 0
    %8958 = vmatprep.subr.bf16.mxu0 0
    %8959 = vmatpush1.bf16.msra.mxu0 0
    %8960 = vmatprep.subr.bf16.mxu0 0
    %8961 = vmatpush1.bf16.msra.mxu0 0
    %8962 = vmatprep.subr.bf16.mxu0 0
    %8963 = vmatpush1.bf16.msra.mxu0 0
    %8964 = vmatprep.subr.bf16.mxu0 0
    %8965 = vmatpush1.bf16.msra.mxu0 0
    %8966 = vmatprep.subr.bf16.mxu0 0
    %8967 = vmatpush1.bf16.msra.mxu0 0
    %8968 = vmatprep.subr.bf16.mxu0 0
    %8969 = vmatpush1.bf16.msra.mxu0 0
    %8970 = vmatprep.mubr.bf16.mxu0 0
    %8971 = vmatmul.mubr.bf16.gmra.mrb[0].mxu0 %v8927
    %v8972 = vpop.f32.mrb[0].mxu0
    %v8973 = vadd.f32 0.0, %v8972
    %v8974 = vpop.f32.mrb[0].mxu0
    %v8975 = vadd.f32 0.0, %v8974
    %v8976 = vpop.f32.mrb[0].mxu0
    %v8977 = vadd.f32 0.0, %v8976
    %v8978 = vpop.f32.mrb[0].mxu0
    %v8979 = vadd.f32 0.0, %v8978
    %8980 = vdwg.mxu0
    %8981 = vmatprep.subr.bf16.mxu0 0
    %8982 = vmatpush1.bf16.msra.mxu0 %v8936
    %8983 = vmatprep.subr.bf16.mxu0 0
    %8984 = vmatpush1.bf16.msra.mxu0 0
    %8985 = vmatprep.subr.bf16.mxu0 0
    %8986 = vmatpush1.bf16.msra.mxu0 0
    %8987 = vmatprep.subr.bf16.mxu0 0
    %8988 = vmatpush1.bf16.msra.mxu0 0
    %8989 = vmatprep.subr.bf16.mxu0 0
    %8990 = vmatpush1.bf16.msra.mxu0 0
    %8991 = vmatprep.subr.bf16.mxu0 0
    %8992 = vmatpush1.bf16.msra.mxu0 0
    %8993 = vmatprep.subr.bf16.mxu0 0
    %8994 = vmatpush1.bf16.msra.mxu0 0
    %8995 = vmatprep.subr.bf16.mxu0 0
    %8996 = vmatpush1.bf16.msra.mxu0 0
    %8997 = vmatprep.subr.bf16.mxu0 0
    %8998 = vmatpush1.bf16.msra.mxu0 0
    %8999 = vmatprep.subr.bf16.mxu0 0
    %9000 = vmatpush1.bf16.msra.mxu0 0
    %9001 = vmatprep.subr.bf16.mxu0 0
    %9002 = vmatpush1.bf16.msra.mxu0 0
    %9003 = vmatprep.subr.bf16.mxu0 0
    %9004 = vmatpush1.bf16.msra.mxu0 0
    %9005 = vmatprep.subr.bf16.mxu0 0
    %9006 = vmatpush1.bf16.msra.mxu0 0
    %9007 = vmatprep.subr.bf16.mxu0 0
    %9008 = vmatpush1.bf16.msra.mxu0 0
    %9009 = vmatprep.subr.bf16.mxu0 0
    %9010 = vmatpush1.bf16.msra.mxu0 0
    %9011 = vmatprep.subr.bf16.mxu0 0
    %9012 = vmatpush1.bf16.msra.mxu0 0
    %9013 = vmatprep.mubr.bf16.mxu0 0
    %9014 = vmatmul.mubr.bf16.gmra.mrb[0].mxu0 %v8927
    %v9015 = vpop.f32.mrb[0].mxu0
    %v9016 = vadd.f32 0.0, %v9015
    %v9017 = vpop.f32.mrb[0].mxu0
    %v9018 = vpop.f32.mrb[0].mxu0
    %v9019 = vadd.f32 0.0, %v9018
    %v9020 = vpop.f32.mrb[0].mxu0
    %9021 = vdwg.mxu0
    %v9022 = vadd.f32 %v8902, %v8973
    %v9023 = vadd.f32 %v8903, %v8975
    %v9024 = vadd.f32 %v8904, %v9016
    %v9025 = vadd.f32 %v8905, %v8977
    %v9026 = vadd.f32 %v8906, %v8979
    %v9027 = vadd.f32 %v8907, %v9019
    %v9028 = vld [vmem:[%s4222] sm:$0xf]
    %v9029 = vld [vmem:[%s4222 + $0x4] sm:$0x1]
    %v9032 = vunpack.c.l.b16 %v9028
    %v9033 = vunpack.c.l.b16 %v9029
    %v9034 = vpack.c.b16 %v9033, %v9032
    %9035 = vrot.lane.b32.xlu0 %v8431, 103
    %v9036 = vpop.permute.xlu0 %9035
    %9037 = vrot.lane.b32.xlu0 %v8432, 103
    %v9038 = vpop.permute.xlu0 %9037
    %9039 = vrot.lane.b32.xlu0 %v8433, 103
    %v9040 = vpop.permute.xlu0 %9039
    %9041 = vrot.lane.b32.xlu0 %v8434, 103
    %v9042 = vpop.permute.xlu0 %9041
    %v9043 = vsel %vm1750, %v9036, %v9038
    %v9044 = vsel %vm1750, %v9038, %v9040
    %v9045 = vsel %vm1750, %v9040, %v9042
    %v9047 = vsel %vm778, %v9034, 0
    %v9050 = vand.u32 %v9043, %v785
    %v9053 = vand.u32 %v9044, %v785
    %v9056 = vand.u32 %v9045, %v785
    %9058 = vmatprep.subr.bf16.mxu0 %v9053
    %9059 = vmatpush1.bf16.msra.mxu0 %v9050
    %9060 = vmatprep.subr.bf16.mxu0 0
    %9061 = vmatpush1.bf16.msra.mxu0 0
    %9062 = vmatprep.subr.bf16.mxu0 0
    %9063 = vmatpush1.bf16.msra.mxu0 0
    %9064 = vmatprep.subr.bf16.mxu0 0
    %9065 = vmatpush1.bf16.msra.mxu0 0
    %9066 = vmatprep.subr.bf16.mxu0 0
    %9067 = vmatpush1.bf16.msra.mxu0 0
    %9068 = vmatprep.subr.bf16.mxu0 0
    %9069 = vmatpush1.bf16.msra.mxu0 0
    %9070 = vmatprep.subr.bf16.mxu0 0
    %9071 = vmatpush1.bf16.msra.mxu0 0
    %9072 = vmatprep.subr.bf16.mxu0 0
    %9073 = vmatpush1.bf16.msra.mxu0 0
    %9074 = vmatprep.subr.bf16.mxu0 0
    %9075 = vmatpush1.bf16.msra.mxu0 0
    %9076 = vmatprep.subr.bf16.mxu0 0
    %9077 = vmatpush1.bf16.msra.mxu0 0
    %9078 = vmatprep.subr.bf16.mxu0 0
    %9079 = vmatpush1.bf16.msra.mxu0 0
    %9080 = vmatprep.subr.bf16.mxu0 0
    %9081 = vmatpush1.bf16.msra.mxu0 0
    %9082 = vmatprep.subr.bf16.mxu0 0
    %9083 = vmatpush1.bf16.msra.mxu0 0
    %9084 = vmatprep.subr.bf16.mxu0 0
    %9085 = vmatpush1.bf16.msra.mxu0 0
    %9086 = vmatprep.subr.bf16.mxu0 0
    %9087 = vmatpush1.bf16.msra.mxu0 0
    %9088 = vmatprep.subr.bf16.mxu0 0
    %9089 = vmatpush1.bf16.msra.mxu0 0
    %9090 = vmatprep.mubr.bf16.mxu0 0
    %9091 = vmatmul.mubr.bf16.gmra.mrb[0].mxu0 %v9047
    %v9092 = vpop.f32.mrb[0].mxu0
    %v9093 = vadd.f32 0.0, %v9092
    %v9094 = vpop.f32.mrb[0].mxu0
    %v9095 = vadd.f32 0.0, %v9094
    %v9096 = vpop.f32.mrb[0].mxu0
    %v9097 = vadd.f32 0.0, %v9096
    %v9098 = vpop.f32.mrb[0].mxu0
    %v9099 = vadd.f32 0.0, %v9098
    %9100 = vdwg.mxu0
    %9101 = vmatprep.subr.bf16.mxu0 0
    %9102 = vmatpush1.bf16.msra.mxu0 %v9056
    %9103 = vmatprep.subr.bf16.mxu0 0
    %9104 = vmatpush1.bf16.msra.mxu0 0
    %9105 = vmatprep.subr.bf16.mxu0 0
    %9106 = vmatpush1.bf16.msra.mxu0 0
    %9107 = vmatprep.subr.bf16.mxu0 0
    %9108 = vmatpush1.bf16.msra.mxu0 0
    %9109 = vmatprep.subr.bf16.mxu0 0
    %9110 = vmatpush1.bf16.msra.mxu0 0
    %9111 = vmatprep.subr.bf16.mxu0 0
    %9112 = vmatpush1.bf16.msra.mxu0 0
    %9113 = vmatprep.subr.bf16.mxu0 0
    %9114 = vmatpush1.bf16.msra.mxu0 0
    %9115 = vmatprep.subr.bf16.mxu0 0
    %9116 = vmatpush1.bf16.msra.mxu0 0
    %9117 = vmatprep.subr.bf16.mxu0 0
    %9118 = vmatpush1.bf16.msra.mxu0 0
    %9119 = vmatprep.subr.bf16.mxu0 0
    %9120 = vmatpush1.bf16.msra.mxu0 0
    %9121 = vmatprep.subr.bf16.mxu0 0
    %9122 = vmatpush1.bf16.msra.mxu0 0
    %9123 = vmatprep.subr.bf16.mxu0 0
    %9124 = vmatpush1.bf16.msra.mxu0 0
    %9125 = vmatprep.subr.bf16.mxu0 0
    %9126 = vmatpush1.bf16.msra.mxu0 0
    %9127 = vmatprep.subr.bf16.mxu0 0
    %9128 = vmatpush1.bf16.msra.mxu0 0
    %9129 = vmatprep.subr.bf16.mxu0 0
    %9130 = vmatpush1.bf16.msra.mxu0 0
    %9131 = vmatprep.subr.bf16.mxu0 0
    %9132 = vmatpush1.bf16.msra.mxu0 0
    %9133 = vmatprep.mubr.bf16.mxu0 0
    %9134 = vmatmul.mubr.bf16.gmra.mrb[0].mxu0 %v9047
    %v9135 = vpop.f32.mrb[0].mxu0
    %v9136 = vadd.f32 0.0, %v9135
    %v9137 = vpop.f32.mrb[0].mxu0
    %v9138 = vpop.f32.mrb[0].mxu0
    %v9139 = vadd.f32 0.0, %v9138
    %v9140 = vpop.f32.mrb[0].mxu0
    %9141 = vdwg.mxu0
    %v9142 = vadd.f32 %v9022, %v9093
    %v9143 = vadd.f32 %v9023, %v9095
    %v9144 = vadd.f32 %v9024, %v9136
    %v9145 = vadd.f32 %v9025, %v9097
    %v9146 = vadd.f32 %v9026, %v9099
    %v9147 = vadd.f32 %v9027, %v9139
    %v9148 = vld [vmem:[%s4343] sm:$0xf]
    %v9149 = vld [vmem:[%s4343 + $0x4] sm:$0x1]
    %v9152 = vunpack.c.l.b16 %v9148
    %v9153 = vunpack.c.l.b16 %v9149
    %v9154 = vpack.c.b16 %v9153, %v9152
    %9155 = vrot.lane.b32.xlu0 %v8431, 102
    %v9156 = vpop.permute.xlu0 %9155
    %9157 = vrot.lane.b32.xlu0 %v8432, 102
    %v9158 = vpop.permute.xlu0 %9157
    %9159 = vrot.lane.b32.xlu0 %v8433, 102
    %v9160 = vpop.permute.xlu0 %9159
    %9161 = vrot.lane.b32.xlu0 %v8434, 102
    %v9162 = vpop.permute.xlu0 %9161
    %v9163 = vsel %vm4359, %v9156, %v9158
    %v9164 = vsel %vm4359, %v9158, %v9160
    %v9165 = vsel %vm4359, %v9160, %v9162
    %v9167 = vsel %vm778, %v9154, 0
    %v9170 = vand.u32 %v9163, %v785
    %v9173 = vand.u32 %v9164, %v785
    %v9176 = vand.u32 %v9165, %v785
    %9178 = vmatprep.subr.bf16.mxu0 %v9173
    %9179 = vmatpush1.bf16.msra.mxu0 %v9170
    %9180 = vmatprep.subr.bf16.mxu0 0
    %9181 = vmatpush1.bf16.msra.mxu0 0
    %9182 = vmatprep.subr.bf16.mxu0 0
    %9183 = vmatpush1.bf16.msra.mxu0 0
    %9184 = vmatprep.subr.bf16.mxu0 0
    %9185 = vmatpush1.bf16.msra.mxu0 0
    %9186 = vmatprep.subr.bf16.mxu0 0
    %9187 = vmatpush1.bf16.msra.mxu0 0
    %9188 = vmatprep.subr.bf16.mxu0 0
    %9189 = vmatpush1.bf16.msra.mxu0 0
    %9190 = vmatprep.subr.bf16.mxu0 0
    %9191 = vmatpush1.bf16.msra.mxu0 0
    %9192 = vmatprep.subr.bf16.mxu0 0
    %9193 = vmatpush1.bf16.msra.mxu0 0
    %9194 = vmatprep.subr.bf16.mxu0 0
    %9195 = vmatpush1.bf16.msra.mxu0 0
    %9196 = vmatprep.subr.bf16.mxu0 0
    %9197 = vmatpush1.bf16.msra.mxu0 0
    %9198 = vmatprep.subr.bf16.mxu0 0
    %9199 = vmatpush1.bf16.msra.mxu0 0
    %9200 = vmatprep.subr.bf16.mxu0 0
    %9201 = vmatpush1.bf16.msra.mxu0 0
    %9202 = vmatprep.subr.bf16.mxu0 0
    %9203 = vmatpush1.bf16.msra.mxu0 0
    %9204 = vmatprep.subr.bf16.mxu0 0
    %9205 = vmatpush1.bf16.msra.mxu0 0
    %9206 = vmatprep.subr.bf16.mxu0 0
    %9207 = vmatpush1.bf16.msra.mxu0 0
    %9208 = vmatprep.subr.bf16.mxu0 0
    %9209 = vmatpush1.bf16.msra.mxu0 0
    %9210 = vmatprep.mubr.bf16.mxu0 0
    %9211 = vmatmul.mubr.bf16.gmra.mrb[0].mxu0 %v9167
    %v9212 = vpop.f32.mrb[0].mxu0
    %v9213 = vadd.f32 0.0, %v9212
    %v9214 = vpop.f32.mrb[0].mxu0
    %v9215 = vadd.f32 0.0, %v9214
    %v9216 = vpop.f32.mrb[0].mxu0
    %v9217 = vadd.f32 0.0, %v9216
    %v9218 = vpop.f32.mrb[0].mxu0
    %v9219 = vadd.f32 0.0, %v9218
    %9220 = vdwg.mxu0
    %9221 = vmatprep.subr.bf16.mxu0 0
    %9222 = vmatpush1.bf16.msra.mxu0 %v9176
    %9223 = vmatprep.subr.bf16.mxu0 0
    %9224 = vmatpush1.bf16.msra.mxu0 0
    %9225 = vmatprep.subr.bf16.mxu0 0
    %9226 = vmatpush1.bf16.msra.mxu0 0
    %9227 = vmatprep.subr.bf16.mxu0 0
    %9228 = vmatpush1.bf16.msra.mxu0 0
    %9229 = vmatprep.subr.bf16.mxu0 0
    %9230 = vmatpush1.bf16.msra.mxu0 0
    %9231 = vmatprep.subr.bf16.mxu0 0
    %9232 = vmatpush1.bf16.msra.mxu0 0
    %9233 = vmatprep.subr.bf16.mxu0 0
    %9234 = vmatpush1.bf16.msra.mxu0 0
    %9235 = vmatprep.subr.bf16.mxu0 0
    %9236 = vmatpush1.bf16.msra.mxu0 0
    %9237 = vmatprep.subr.bf16.mxu0 0
    %9238 = vmatpush1.bf16.msra.mxu0 0
    %9239 = vmatprep.subr.bf16.mxu0 0
    %9240 = vmatpush1.bf16.msra.mxu0 0
    %9241 = vmatprep.subr.bf16.mxu0 0
    %9242 = vmatpush1.bf16.msra.mxu0 0
    %9243 = vmatprep.subr.bf16.mxu0 0
    %9244 = vmatpush1.bf16.msra.mxu0 0
    %9245 = vmatprep.subr.bf16.mxu0 0
    %9246 = vmatpush1.bf16.msra.mxu0 0
    %9247 = vmatprep.subr.bf16.mxu0 0
    %9248 = vmatpush1.bf16.msra.mxu0 0
    %9249 = vmatprep.subr.bf16.mxu0 0
    %9250 = vmatpush1.bf16.msra.mxu0 0
    %9251 = vmatprep.subr.bf16.mxu0 0
    %9252 = vmatpush1.bf16.msra.mxu0 0
    %9253 = vmatprep.mubr.bf16.mxu0 0
    %9254 = vmatmul.mubr.bf16.gmra.mrb[0].mxu0 %v9167
    %v9255 = vpop.f32.mrb[0].mxu0
    %v9256 = vadd.f32 0.0, %v9255
    %v9257 = vpop.f32.mrb[0].mxu0
    %v9258 = vpop.f32.mrb[0].mxu0
    %v9259 = vadd.f32 0.0, %v9258
    %v9260 = vpop.f32.mrb[0].mxu0
    %9261 = vdwg.mxu0
    %v9262 = vadd.f32 %v9142, %v9213
    %v9263 = vadd.f32 %v9143, %v9215
    %v9264 = vadd.f32 %v9144, %v9256
    %v9265 = vadd.f32 %v9145, %v9217
    %v9266 = vadd.f32 %v9146, %v9219
    %v9267 = vadd.f32 %v9147, %v9259
    %v9268 = vld [vmem:[%s4465] sm:$0xf]
    %v9269 = vld [vmem:[%s4465 + $0x4] sm:$0x1]
    %v9272 = vunpack.c.l.b16 %v9268
    %v9273 = vunpack.c.l.b16 %v9269
    %v9274 = vpack.c.b16 %v9273, %v9272
    %9275 = vrot.lane.b32.xlu0 %v8431, 82
    %v9276 = vpop.permute.xlu0 %9275
    %9277 = vrot.lane.b32.xlu0 %v8432, 82
    %v9278 = vpop.permute.xlu0 %9277
    %9279 = vrot.lane.b32.xlu0 %v8433, 82
    %v9280 = vpop.permute.xlu0 %9279
    %9281 = vrot.lane.b32.xlu0 %v8434, 82
    %v9282 = vpop.permute.xlu0 %9281
    %v9283 = vsel %vm4481, %v9276, %v9278
    %v9284 = vsel %vm4481, %v9278, %v9280
    %v9285 = vsel %vm4481, %v9280, %v9282
    %v9287 = vsel %vm778, %v9274, 0
    %v9290 = vand.u32 %v9283, %v785
    %v9293 = vand.u32 %v9284, %v785
    %v9296 = vand.u32 %v9285, %v785
    %9298 = vmatprep.subr.bf16.mxu0 %v9293
    %9299 = vmatpush1.bf16.msra.mxu0 %v9290
    %9300 = vmatprep.subr.bf16.mxu0 0
    %9301 = vmatpush1.bf16.msra.mxu0 0
    %9302 = vmatprep.subr.bf16.mxu0 0
    %9303 = vmatpush1.bf16.msra.mxu0 0
    %9304 = vmatprep.subr.bf16.mxu0 0
    %9305 = vmatpush1.bf16.msra.mxu0 0
    %9306 = vmatprep.subr.bf16.mxu0 0
    %9307 = vmatpush1.bf16.msra.mxu0 0
    %9308 = vmatprep.subr.bf16.mxu0 0
    %9309 = vmatpush1.bf16.msra.mxu0 0
    %9310 = vmatprep.subr.bf16.mxu0 0
    %9311 = vmatpush1.bf16.msra.mxu0 0
    %9312 = vmatprep.subr.bf16.mxu0 0
    %9313 = vmatpush1.bf16.msra.mxu0 0
    %9314 = vmatprep.subr.bf16.mxu0 0
    %9315 = vmatpush1.bf16.msra.mxu0 0
    %9316 = vmatprep.subr.bf16.mxu0 0
    %9317 = vmatpush1.bf16.msra.mxu0 0
    %9318 = vmatprep.subr.bf16.mxu0 0
    %9319 = vmatpush1.bf16.msra.mxu0 0
    %9320 = vmatprep.subr.bf16.mxu0 0
    %9321 = vmatpush1.bf16.msra.mxu0 0
    %9322 = vmatprep.subr.bf16.mxu0 0
    %9323 = vmatpush1.bf16.msra.mxu0 0
    %9324 = vmatprep.subr.bf16.mxu0 0
    %9325 = vmatpush1.bf16.msra.mxu0 0
    %9326 = vmatprep.subr.bf16.mxu0 0
    %9327 = vmatpush1.bf16.msra.mxu0 0
    %9328 = vmatprep.subr.bf16.mxu0 0
    %9329 = vmatpush1.bf16.msra.mxu0 0
    %9330 = vmatprep.mubr.bf16.mxu0 0
    %9331 = vmatmul.mubr.bf16.gmra.mrb[0].mxu0 %v9287
    %v9332 = vpop.f32.mrb[0].mxu0
    %v9333 = vadd.f32 0.0, %v9332
    %v9334 = vpop.f32.mrb[0].mxu0
    %v9335 = vadd.f32 0.0, %v9334
    %v9336 = vpop.f32.mrb[0].mxu0
    %v9337 = vadd.f32 0.0, %v9336
    %v9338 = vpop.f32.mrb[0].mxu0
    %v9339 = vadd.f32 0.0, %v9338
    %9340 = vdwg.mxu0
    %9341 = vmatprep.subr.bf16.mxu0 0
    %9342 = vmatpush1.bf16.msra.mxu0 %v9296
    %9343 = vmatprep.subr.bf16.mxu0 0
    %9344 = vmatpush1.bf16.msra.mxu0 0
    %9345 = vmatprep.subr.bf16.mxu0 0
    %9346 = vmatpush1.bf16.msra.mxu0 0
    %9347 = vmatprep.subr.bf16.mxu0 0
    %9348 = vmatpush1.bf16.msra.mxu0 0
    %9349 = vmatprep.subr.bf16.mxu0 0
    %9350 = vmatpush1.bf16.msra.mxu0 0
    %9351 = vmatprep.subr.bf16.mxu0 0
    %9352 = vmatpush1.bf16.msra.mxu0 0
    %9353 = vmatprep.subr.bf16.mxu0 0
    %9354 = vmatpush1.bf16.msra.mxu0 0
    %9355 = vmatprep.subr.bf16.mxu0 0
    %9356 = vmatpush1.bf16.msra.mxu0 0
    %9357 = vmatprep.subr.bf16.mxu0 0
    %9358 = vmatpush1.bf16.msra.mxu0 0
    %9359 = vmatprep.subr.bf16.mxu0 0
    %9360 = vmatpush1.bf16.msra.mxu0 0
    %9361 = vmatprep.subr.bf16.mxu0 0
    %9362 = vmatpush1.bf16.msra.mxu0 0
    %9363 = vmatprep.subr.bf16.mxu0 0
    %9364 = vmatpush1.bf16.msra.mxu0 0
    %9365 = vmatprep.subr.bf16.mxu0 0
    %9366 = vmatpush1.bf16.msra.mxu0 0
    %9367 = vmatprep.subr.bf16.mxu0 0
    %9368 = vmatpush1.bf16.msra.mxu0 0
    %9369 = vmatprep.subr.bf16.mxu0 0
    %9370 = vmatpush1.bf16.msra.mxu0 0
    %9371 = vmatprep.subr.bf16.mxu0 0
    %9372 = vmatpush1.bf16.msra.mxu0 0
    %9373 = vmatprep.mubr.bf16.mxu0 0
    %9374 = vmatmul.mubr.bf16.gmra.mrb[0].mxu0 %v9287
    %v9375 = vpop.f32.mrb[0].mxu0
    %v9376 = vadd.f32 0.0, %v9375
    %v9377 = vpop.f32.mrb[0].mxu0
    %v9378 = vpop.f32.mrb[0].mxu0
    %v9379 = vadd.f32 0.0, %v9378
    %v9380 = vpop.f32.mrb[0].mxu0
    %9381 = vdwg.mxu0
    %v9382 = vadd.f32 %v9262, %v9333
    %v9383 = vadd.f32 %v9263, %v9335
    %v9384 = vadd.f32 %v9264, %v9376
    %v9385 = vadd.f32 %v9265, %v9337
    %v9386 = vadd.f32 %v9266, %v9339
    %v9387 = vadd.f32 %v9267, %v9379
    %v9388 = vld [vmem:[%s4587] sm:$0xf]
    %v9389 = vld [vmem:[%s4587 + $0x4] sm:$0x1]
    %v9392 = vunpack.c.l.b16 %v9388
    %v9393 = vunpack.c.l.b16 %v9389
    %v9394 = vpack.c.b16 %v9393, %v9392
    %9395 = vrot.lane.b32.xlu0 %v8431, 81
    %v9396 = vpop.permute.xlu0 %9395
    %9397 = vrot.lane.b32.xlu0 %v8432, 81
    %v9398 = vpop.permute.xlu0 %9397
    %9399 = vrot.lane.b32.xlu0 %v8433, 81
    %v9400 = vpop.permute.xlu0 %9399
    %9401 = vrot.lane.b32.xlu0 %v8434, 81
    %v9402 = vpop.permute.xlu0 %9401
    %v9403 = vsel %vm4603, %v9396, %v9398
    %v9404 = vsel %vm4603, %v9398, %v9400
    %v9405 = vsel %vm4603, %v9400, %v9402
    %v9407 = vsel %vm778, %v9394, 0
    %v9410 = vand.u32 %v9403, %v785
    %v9413 = vand.u32 %v9404, %v785
    %v9416 = vand.u32 %v9405, %v785
    %9418 = vmatprep.subr.bf16.mxu0 %v9413
    %9419 = vmatpush1.bf16.msra.mxu0 %v9410
    %9420 = vmatprep.subr.bf16.mxu0 0
    %9421 = vmatpush1.bf16.msra.mxu0 0
    %9422 = vmatprep.subr.bf16.mxu0 0
    %9423 = vmatpush1.bf16.msra.mxu0 0
    %9424 = vmatprep.subr.bf16.mxu0 0
    %9425 = vmatpush1.bf16.msra.mxu0 0
    %9426 = vmatprep.subr.bf16.mxu0 0
    %9427 = vmatpush1.bf16.msra.mxu0 0
    %9428 = vmatprep.subr.bf16.mxu0 0
    %9429 = vmatpush1.bf16.msra.mxu0 0
    %9430 = vmatprep.subr.bf16.mxu0 0
    %9431 = vmatpush1.bf16.msra.mxu0 0
    %9432 = vmatprep.subr.bf16.mxu0 0
    %9433 = vmatpush1.bf16.msra.mxu0 0
    %9434 = vmatprep.subr.bf16.mxu0 0
    %9435 = vmatpush1.bf16.msra.mxu0 0
    %9436 = vmatprep.subr.bf16.mxu0 0
    %9437 = vmatpush1.bf16.msra.mxu0 0
    %9438 = vmatprep.subr.bf16.mxu0 0
    %9439 = vmatpush1.bf16.msra.mxu0 0
    %9440 = vmatprep.subr.bf16.mxu0 0
    %9441 = vmatpush1.bf16.msra.mxu0 0
    %9442 = vmatprep.subr.bf16.mxu0 0
    %9443 = vmatpush1.bf16.msra.mxu0 0
    %9444 = vmatprep.subr.bf16.mxu0 0
    %9445 = vmatpush1.bf16.msra.mxu0 0
    %9446 = vmatprep.subr.bf16.mxu0 0
    %9447 = vmatpush1.bf16.msra.mxu0 0
    %9448 = vmatprep.subr.bf16.mxu0 0
    %9449 = vmatpush1.bf16.msra.mxu0 0
    %9450 = vmatprep.mubr.bf16.mxu0 0
    %9451 = vmatmul.mubr.bf16.gmra.mrb[0].mxu0 %v9407
    %v9452 = vpop.f32.mrb[0].mxu0
    %v9453 = vadd.f32 0.0, %v9452
    %v9454 = vpop.f32.mrb[0].mxu0
    %v9455 = vadd.f32 0.0, %v9454
    %v9456 = vpop.f32.mrb[0].mxu0
    %v9457 = vadd.f32 0.0, %v9456
    %v9458 = vpop.f32.mrb[0].mxu0
    %v9459 = vadd.f32 0.0, %v9458
    %9460 = vdwg.mxu0
    %9461 = vmatprep.subr.bf16.mxu0 0
    %9462 = vmatpush1.bf16.msra.mxu0 %v9416
    %9463 = vmatprep.subr.bf16.mxu0 0
    %9464 = vmatpush1.bf16.msra.mxu0 0
    %9465 = vmatprep.subr.bf16.mxu0 0
    %9466 = vmatpush1.bf16.msra.mxu0 0
    %9467 = vmatprep.subr.bf16.mxu0 0
    %9468 = vmatpush1.bf16.msra.mxu0 0
    %9469 = vmatprep.subr.bf16.mxu0 0
    %9470 = vmatpush1.bf16.msra.mxu0 0
    %9471 = vmatprep.subr.bf16.mxu0 0
    %9472 = vmatpush1.bf16.msra.mxu0 0
    %9473 = vmatprep.subr.bf16.mxu0 0
    %9474 = vmatpush1.bf16.msra.mxu0 0
    %9475 = vmatprep.subr.bf16.mxu0 0
    %9476 = vmatpush1.bf16.msra.mxu0 0
    %9477 = vmatprep.subr.bf16.mxu0 0
    %9478 = vmatpush1.bf16.msra.mxu0 0
    %9479 = vmatprep.subr.bf16.mxu0 0
    %9480 = vmatpush1.bf16.msra.mxu0 0
    %9481 = vmatprep.subr.bf16.mxu0 0
    %9482 = vmatpush1.bf16.msra.mxu0 0
    %9483 = vmatprep.subr.bf16.mxu0 0
    %9484 = vmatpush1.bf16.msra.mxu0 0
    %9485 = vmatprep.subr.bf16.mxu0 0
    %9486 = vmatpush1.bf16.msra.mxu0 0
    %9487 = vmatprep.subr.bf16.mxu0 0
    %9488 = vmatpush1.bf16.msra.mxu0 0
    %9489 = vmatprep.subr.bf16.mxu0 0
    %9490 = vmatpush1.bf16.msra.mxu0 0
    %9491 = vmatprep.subr.bf16.mxu0 0
    %9492 = vmatpush1.bf16.msra.mxu0 0
    %9493 = vmatprep.mubr.bf16.mxu0 0
    %9494 = vmatmul.mubr.bf16.gmra.mrb[0].mxu0 %v9407
    %v9495 = vpop.f32.mrb[0].mxu0
    %v9496 = vadd.f32 0.0, %v9495
    %v9497 = vpop.f32.mrb[0].mxu0
    %v9498 = vpop.f32.mrb[0].mxu0
    %v9499 = vadd.f32 0.0, %v9498
    %v9500 = vpop.f32.mrb[0].mxu0
    %9501 = vdwg.mxu0
    %v9502 = vadd.f32 %v9382, %v9453
    %v9503 = vadd.f32 %v9383, %v9455
    %v9504 = vadd.f32 %v9384, %v9496
    %v9505 = vadd.f32 %v9385, %v9457
    %v9506 = vadd.f32 %v9386, %v9459
    %v9507 = vadd.f32 %v9387, %v9499
    %v9508 = vld [vmem:[%s4709] sm:$0xf]
    %v9509 = vld [vmem:[%s4709 + $0x4] sm:$0x1]
    %v9512 = vunpack.c.l.b16 %v9508
    %v9513 = vunpack.c.l.b16 %v9509
    %v9514 = vpack.c.b16 %v9513, %v9512
    %9515 = vrot.lane.b32.xlu0 %v8431, 80
    %v9516 = vpop.permute.xlu0 %9515
    %9517 = vrot.lane.b32.xlu0 %v8432, 80
    %v9518 = vpop.permute.xlu0 %9517
    %9519 = vrot.lane.b32.xlu0 %v8433, 80
    %v9520 = vpop.permute.xlu0 %9519
    %9521 = vrot.lane.b32.xlu0 %v8434, 80
    %v9522 = vpop.permute.xlu0 %9521
    %v9523 = vsel %vm4725, %v9516, %v9518
    %v9524 = vsel %vm4725, %v9518, %v9520
    %v9525 = vsel %vm4725, %v9520, %v9522
    %v9527 = vsel %vm778, %v9514, 0
    %v9530 = vand.u32 %v9523, %v785
    %v9533 = vand.u32 %v9524, %v785
    %v9536 = vand.u32 %v9525, %v785
    %9538 = vmatprep.subr.bf16.mxu0 %v9533
    %9539 = vmatpush1.bf16.msra.mxu0 %v9530
    %9540 = vmatprep.subr.bf16.mxu0 0
    %9541 = vmatpush1.bf16.msra.mxu0 0
    %9542 = vmatprep.subr.bf16.mxu0 0
    %9543 = vmatpush1.bf16.msra.mxu0 0
    %9544 = vmatprep.subr.bf16.mxu0 0
    %9545 = vmatpush1.bf16.msra.mxu0 0
    %9546 = vmatprep.subr.bf16.mxu0 0
    %9547 = vmatpush1.bf16.msra.mxu0 0
    %9548 = vmatprep.subr.bf16.mxu0 0
    %9549 = vmatpush1.bf16.msra.mxu0 0
    %9550 = vmatprep.subr.bf16.mxu0 0
    %9551 = vmatpush1.bf16.msra.mxu0 0
    %9552 = vmatprep.subr.bf16.mxu0 0
    %9553 = vmatpush1.bf16.msra.mxu0 0
    %9554 = vmatprep.subr.bf16.mxu0 0
    %9555 = vmatpush1.bf16.msra.mxu0 0
    %9556 = vmatprep.subr.bf16.mxu0 0
    %9557 = vmatpush1.bf16.msra.mxu0 0
    %9558 = vmatprep.subr.bf16.mxu0 0
    %9559 = vmatpush1.bf16.msra.mxu0 0
    %9560 = vmatprep.subr.bf16.mxu0 0
    %9561 = vmatpush1.bf16.msra.mxu0 0
    %9562 = vmatprep.subr.bf16.mxu0 0
    %9563 = vmatpush1.bf16.msra.mxu0 0
    %9564 = vmatprep.subr.bf16.mxu0 0
    %9565 = vmatpush1.bf16.msra.mxu0 0
    %9566 = vmatprep.subr.bf16.mxu0 0
    %9567 = vmatpush1.bf16.msra.mxu0 0
    %9568 = vmatprep.subr.bf16.mxu0 0
    %9569 = vmatpush1.bf16.msra.mxu0 0
    %9570 = vmatprep.mubr.bf16.mxu0 0
    %9571 = vmatmul.mubr.bf16.gmra.mrb[0].mxu0 %v9527
    %v9572 = vpop.f32.mrb[0].mxu0
    %v9573 = vadd.f32 0.0, %v9572
    %v9574 = vpop.f32.mrb[0].mxu0
    %v9575 = vadd.f32 0.0, %v9574
    %v9576 = vpop.f32.mrb[0].mxu0
    %v9577 = vadd.f32 0.0, %v9576
    %v9578 = vpop.f32.mrb[0].mxu0
    %v9579 = vadd.f32 0.0, %v9578
    %9580 = vdwg.mxu0
    %9581 = vmatprep.subr.bf16.mxu0 0
    %9582 = vmatpush1.bf16.msra.mxu0 %v9536
    %9583 = vmatprep.subr.bf16.mxu0 0
    %9584 = vmatpush1.bf16.msra.mxu0 0
    %9585 = vmatprep.subr.bf16.mxu0 0
    %9586 = vmatpush1.bf16.msra.mxu0 0
    %9587 = vmatprep.subr.bf16.mxu0 0
    %9588 = vmatpush1.bf16.msra.mxu0 0
    %9589 = vmatprep.subr.bf16.mxu0 0
    %9590 = vmatpush1.bf16.msra.mxu0 0
    %9591 = vmatprep.subr.bf16.mxu0 0
    %9592 = vmatpush1.bf16.msra.mxu0 0
    %9593 = vmatprep.subr.bf16.mxu0 0
    %9594 = vmatpush1.bf16.msra.mxu0 0
    %9595 = vmatprep.subr.bf16.mxu0 0
    %9596 = vmatpush1.bf16.msra.mxu0 0
    %9597 = vmatprep.subr.bf16.mxu0 0
    %9598 = vmatpush1.bf16.msra.mxu0 0
    %9599 = vmatprep.subr.bf16.mxu0 0
    %9600 = vmatpush1.bf16.msra.mxu0 0
    %9601 = vmatprep.subr.bf16.mxu0 0
    %9602 = vmatpush1.bf16.msra.mxu0 0
    %9603 = vmatprep.subr.bf16.mxu0 0
    %9604 = vmatpush1.bf16.msra.mxu0 0
    %9605 = vmatprep.subr.bf16.mxu0 0
    %9606 = vmatpush1.bf16.msra.mxu0 0
    %9607 = vmatprep.subr.bf16.mxu0 0
    %9608 = vmatpush1.bf16.msra.mxu0 0
    %9609 = vmatprep.subr.bf16.mxu0 0
    %9610 = vmatpush1.bf16.msra.mxu0 0
    %9611 = vmatprep.subr.bf16.mxu0 0
    %9612 = vmatpush1.bf16.msra.mxu0 0
    %9613 = vmatprep.mubr.bf16.mxu0 0
    %9614 = vmatmul.mubr.bf16.gmra.mrb[0].mxu0 %v9527
    %v9615 = vpop.f32.mrb[0].mxu0
    %v9616 = vadd.f32 0.0, %v9615
    %v9617 = vpop.f32.mrb[0].mxu0
    %v9618 = vpop.f32.mrb[0].mxu0
    %v9619 = vadd.f32 0.0, %v9618
    %v9620 = vpop.f32.mrb[0].mxu0
    %9621 = vdwg.mxu0
    %v9622 = vadd.f32 %v9502, %v9573
    %v9623 = vadd.f32 %v9503, %v9575
    %v9624 = vadd.f32 %v9504, %v9616
    %v9625 = vadd.f32 %v9505, %v9577
    %v9626 = vadd.f32 %v9506, %v9579
    %v9627 = vadd.f32 %v9507, %v9619
    %v9628 = vld [vmem:[%s4831] sm:$0xf]
    %v9629 = vld [vmem:[%s4831 + $0x4] sm:$0x1]
    %v9632 = vunpack.c.l.b16 %v9628
    %v9633 = vunpack.c.l.b16 %v9629
    %v9634 = vpack.c.b16 %v9633, %v9632
    %9635 = vrot.lane.b32.xlu0 %v8431, 79
    %v9636 = vpop.permute.xlu0 %9635
    %9637 = vrot.lane.b32.xlu0 %v8432, 79
    %v9638 = vpop.permute.xlu0 %9637
    %9639 = vrot.lane.b32.xlu0 %v8433, 79
    %v9640 = vpop.permute.xlu0 %9639
    %9641 = vrot.lane.b32.xlu0 %v8434, 79
    %v9642 = vpop.permute.xlu0 %9641
    %v9643 = vsel %vm4847, %v9636, %v9638
    %v9644 = vsel %vm4847, %v9638, %v9640
    %v9645 = vsel %vm4847, %v9640, %v9642
    %v9647 = vsel %vm778, %v9634, 0
    %v9650 = vand.u32 %v9643, %v785
    %v9653 = vand.u32 %v9644, %v785
    %v9656 = vand.u32 %v9645, %v785
    %9658 = vmatprep.subr.bf16.mxu0 %v9653
    %9659 = vmatpush1.bf16.msra.mxu0 %v9650
    %9660 = vmatprep.subr.bf16.mxu0 0
    %9661 = vmatpush1.bf16.msra.mxu0 0
    %9662 = vmatprep.subr.bf16.mxu0 0
    %9663 = vmatpush1.bf16.msra.mxu0 0
    %9664 = vmatprep.subr.bf16.mxu0 0
    %9665 = vmatpush1.bf16.msra.mxu0 0
    %9666 = vmatprep.subr.bf16.mxu0 0
    %9667 = vmatpush1.bf16.msra.mxu0 0
    %9668 = vmatprep.subr.bf16.mxu0 0
    %9669 = vmatpush1.bf16.msra.mxu0 0
    %9670 = vmatprep.subr.bf16.mxu0 0
    %9671 = vmatpush1.bf16.msra.mxu0 0
    %9672 = vmatprep.subr.bf16.mxu0 0
    %9673 = vmatpush1.bf16.msra.mxu0 0
    %9674 = vmatprep.subr.bf16.mxu0 0
    %9675 = vmatpush1.bf16.msra.mxu0 0
    %9676 = vmatprep.subr.bf16.mxu0 0
    %9677 = vmatpush1.bf16.msra.mxu0 0
    %9678 = vmatprep.subr.bf16.mxu0 0
    %9679 = vmatpush1.bf16.msra.mxu0 0
    %9680 = vmatprep.subr.bf16.mxu0 0
    %9681 = vmatpush1.bf16.msra.mxu0 0
    %9682 = vmatprep.subr.bf16.mxu0 0
    %9683 = vmatpush1.bf16.msra.mxu0 0
    %9684 = vmatprep.subr.bf16.mxu0 0
    %9685 = vmatpush1.bf16.msra.mxu0 0
    %9686 = vmatprep.subr.bf16.mxu0 0
    %9687 = vmatpush1.bf16.msra.mxu0 0
    %9688 = vmatprep.subr.bf16.mxu0 0
    %9689 = vmatpush1.bf16.msra.mxu0 0
    %9690 = vmatprep.mubr.bf16.mxu0 0
    %9691 = vmatmul.mubr.bf16.gmra.mrb[0].mxu0 %v9647
    %v9692 = vpop.f32.mrb[0].mxu0
    %v9693 = vadd.f32 0.0, %v9692
    %v9694 = vpop.f32.mrb[0].mxu0
    %v9695 = vadd.f32 0.0, %v9694
    %v9696 = vpop.f32.mrb[0].mxu0
    %v9697 = vadd.f32 0.0, %v9696
    %v9698 = vpop.f32.mrb[0].mxu0
    %v9699 = vadd.f32 0.0, %v9698
    %9700 = vdwg.mxu0
    %9701 = vmatprep.subr.bf16.mxu0 0
    %9702 = vmatpush1.bf16.msra.mxu0 %v9656
    %9703 = vmatprep.subr.bf16.mxu0 0
    %9704 = vmatpush1.bf16.msra.mxu0 0
    %9705 = vmatprep.subr.bf16.mxu0 0
    %9706 = vmatpush1.bf16.msra.mxu0 0
    %9707 = vmatprep.subr.bf16.mxu0 0
    %9708 = vmatpush1.bf16.msra.mxu0 0
    %9709 = vmatprep.subr.bf16.mxu0 0
    %9710 = vmatpush1.bf16.msra.mxu0 0
    %9711 = vmatprep.subr.bf16.mxu0 0
    %9712 = vmatpush1.bf16.msra.mxu0 0
    %9713 = vmatprep.subr.bf16.mxu0 0
    %9714 = vmatpush1.bf16.msra.mxu0 0
    %9715 = vmatprep.subr.bf16.mxu0 0
    %9716 = vmatpush1.bf16.msra.mxu0 0
    %9717 = vmatprep.subr.bf16.mxu0 0
    %9718 = vmatpush1.bf16.msra.mxu0 0
    %9719 = vmatprep.subr.bf16.mxu0 0
    %9720 = vmatpush1.bf16.msra.mxu0 0
    %9721 = vmatprep.subr.bf16.mxu0 0
    %9722 = vmatpush1.bf16.msra.mxu0 0
    %9723 = vmatprep.subr.bf16.mxu0 0
    %9724 = vmatpush1.bf16.msra.mxu0 0
    %9725 = vmatprep.subr.bf16.mxu0 0
    %9726 = vmatpush1.bf16.msra.mxu0 0
    %9727 = vmatprep.subr.bf16.mxu0 0
    %9728 = vmatpush1.bf16.msra.mxu0 0
    %9729 = vmatprep.subr.bf16.mxu0 0
    %9730 = vmatpush1.bf16.msra.mxu0 0
    %9731 = vmatprep.subr.bf16.mxu0 0
    %9732 = vmatpush1.bf16.msra.mxu0 0
    %9733 = vmatprep.mubr.bf16.mxu0 0
    %9734 = vmatmul.mubr.bf16.gmra.mrb[0].mxu0 %v9647
    %v9735 = vpop.f32.mrb[0].mxu0
    %v9736 = vadd.f32 0.0, %v9735
    %v9737 = vpop.f32.mrb[0].mxu0
    %v9738 = vpop.f32.mrb[0].mxu0
    %v9739 = vadd.f32 0.0, %v9738
    %v9740 = vpop.f32.mrb[0].mxu0
    %9741 = vdwg.mxu0
    %v9742 = vadd.f32 %v9622, %v9693
    %v9743 = vadd.f32 %v9623, %v9695
    %v9744 = vadd.f32 %v9624, %v9736
    %v9745 = vadd.f32 %v9625, %v9697
    %v9746 = vadd.f32 %v9626, %v9699
    %v9747 = vadd.f32 %v9627, %v9739
    %v9748 = vld [vmem:[%s4953] sm:$0xf]
    %v9749 = vld [vmem:[%s4953 + $0x4] sm:$0x1]
    %v9752 = vunpack.c.l.b16 %v9748
    %v9753 = vunpack.c.l.b16 %v9749
    %v9754 = vpack.c.b16 %v9753, %v9752
    %9755 = vrot.lane.b32.xlu0 %v8431, 78
    %v9756 = vpop.permute.xlu0 %9755
    %9757 = vrot.lane.b32.xlu0 %v8432, 78
    %v9758 = vpop.permute.xlu0 %9757
    %9759 = vrot.lane.b32.xlu0 %v8433, 78
    %v9760 = vpop.permute.xlu0 %9759
    %9761 = vrot.lane.b32.xlu0 %v8434, 78
    %v9762 = vpop.permute.xlu0 %9761
    %v9763 = vsel %vm4969, %v9756, %v9758
    %v9764 = vsel %vm4969, %v9758, %v9760
    %v9765 = vsel %vm4969, %v9760, %v9762
    %v9767 = vsel %vm778, %v9754, 0
    %v9770 = vand.u32 %v9763, %v785
    %v9773 = vand.u32 %v9764, %v785
    %v9776 = vand.u32 %v9765, %v785
    %9778 = vmatprep.subr.bf16.mxu0 %v9773
    %9779 = vmatpush1.bf16.msra.mxu0 %v9770
    %9780 = vmatprep.subr.bf16.mxu0 0
    %9781 = vmatpush1.bf16.msra.mxu0 0
    %9782 = vmatprep.subr.bf16.mxu0 0
    %9783 = vmatpush1.bf16.msra.mxu0 0
    %9784 = vmatprep.subr.bf16.mxu0 0
    %9785 = vmatpush1.bf16.msra.mxu0 0
    %9786 = vmatprep.subr.bf16.mxu0 0
    %9787 = vmatpush1.bf16.msra.mxu0 0
    %9788 = vmatprep.subr.bf16.mxu0 0
    %9789 = vmatpush1.bf16.msra.mxu0 0
    %9790 = vmatprep.subr.bf16.mxu0 0
    %9791 = vmatpush1.bf16.msra.mxu0 0
    %9792 = vmatprep.subr.bf16.mxu0 0
    %9793 = vmatpush1.bf16.msra.mxu0 0
    %9794 = vmatprep.subr.bf16.mxu0 0
    %9795 = vmatpush1.bf16.msra.mxu0 0
    %9796 = vmatprep.subr.bf16.mxu0 0
    %9797 = vmatpush1.bf16.msra.mxu0 0
    %9798 = vmatprep.subr.bf16.mxu0 0
    %9799 = vmatpush1.bf16.msra.mxu0 0
    %9800 = vmatprep.subr.bf16.mxu0 0
    %9801 = vmatpush1.bf16.msra.mxu0 0
    %9802 = vmatprep.subr.bf16.mxu0 0
    %9803 = vmatpush1.bf16.msra.mxu0 0
    %9804 = vmatprep.subr.bf16.mxu0 0
    %9805 = vmatpush1.bf16.msra.mxu0 0
    %9806 = vmatprep.subr.bf16.mxu0 0
    %9807 = vmatpush1.bf16.msra.mxu0 0
    %9808 = vmatprep.subr.bf16.mxu0 0
    %9809 = vmatpush1.bf16.msra.mxu0 0
    %9810 = vmatprep.mubr.bf16.mxu0 0
    %9811 = vmatmul.mubr.bf16.gmra.mrb[0].mxu0 %v9767
    %v9812 = vpop.f32.mrb[0].mxu0
    %v9813 = vadd.f32 0.0, %v9812
    %v9814 = vpop.f32.mrb[0].mxu0
    %v9815 = vadd.f32 0.0, %v9814
    %v9816 = vpop.f32.mrb[0].mxu0
    %v9817 = vadd.f32 0.0, %v9816
    %v9818 = vpop.f32.mrb[0].mxu0
    %v9819 = vadd.f32 0.0, %v9818
    %9820 = vdwg.mxu0
    %9821 = vmatprep.subr.bf16.mxu0 0
    %9822 = vmatpush1.bf16.msra.mxu0 %v9776
    %9823 = vmatprep.subr.bf16.mxu0 0
    %9824 = vmatpush1.bf16.msra.mxu0 0
    %9825 = vmatprep.subr.bf16.mxu0 0
    %9826 = vmatpush1.bf16.msra.mxu0 0
    %9827 = vmatprep.subr.bf16.mxu0 0
    %9828 = vmatpush1.bf16.msra.mxu0 0
    %9829 = vmatprep.subr.bf16.mxu0 0
    %9830 = vmatpush1.bf16.msra.mxu0 0
    %9831 = vmatprep.subr.bf16.mxu0 0
    %9832 = vmatpush1.bf16.msra.mxu0 0
    %9833 = vmatprep.subr.bf16.mxu0 0
    %9834 = vmatpush1.bf16.msra.mxu0 0
    %9835 = vmatprep.subr.bf16.mxu0 0
    %9836 = vmatpush1.bf16.msra.mxu0 0
    %9837 = vmatprep.subr.bf16.mxu0 0
    %9838 = vmatpush1.bf16.msra.mxu0 0
    %9839 = vmatprep.subr.bf16.mxu0 0
    %9840 = vmatpush1.bf16.msra.mxu0 0
    %9841 = vmatprep.subr.bf16.mxu0 0
    %9842 = vmatpush1.bf16.msra.mxu0 0
    %9843 = vmatprep.subr.bf16.mxu0 0
    %9844 = vmatpush1.bf16.msra.mxu0 0
    %9845 = vmatprep.subr.bf16.mxu0 0
    %9846 = vmatpush1.bf16.msra.mxu0 0
    %9847 = vmatprep.subr.bf16.mxu0 0
    %9848 = vmatpush1.bf16.msra.mxu0 0
    %9849 = vmatprep.subr.bf16.mxu0 0
    %9850 = vmatpush1.bf16.msra.mxu0 0
    %9851 = vmatprep.subr.bf16.mxu0 0
    %9852 = vmatpush1.bf16.msra.mxu0 0
    %9853 = vmatprep.mubr.bf16.mxu0 0
    %9854 = vmatmul.mubr.bf16.gmra.mrb[0].mxu0 %v9767
    %v9855 = vpop.f32.mrb[0].mxu0
    %v9856 = vadd.f32 0.0, %v9855
    %v9857 = vpop.f32.mrb[0].mxu0
    %v9858 = vpop.f32.mrb[0].mxu0
    %v9859 = vadd.f32 0.0, %v9858
    %v9860 = vpop.f32.mrb[0].mxu0
    %9861 = vdwg.mxu0
    %v9862 = vadd.f32 %v9742, %v9813
    %v9863 = vadd.f32 %v9743, %v9815
    %v9864 = vadd.f32 %v9744, %v9856
    %v9865 = vadd.f32 %v9745, %v9817
    %v9866 = vadd.f32 %v9746, %v9819
    %v9867 = vadd.f32 %v9747, %v9859
    %v9868 = vadd.f32 %v9862, %v5078
    %v9869 = vadd.f32 %v9863, %v5078
    %v9870 = vadd.f32 %v9864, %v5078
    %v9871 = vadd.f32 %v9865, %v5083
    %v9872 = vadd.f32 %v9866, %v5083
    %v9873 = vadd.f32 %v9867, %v5083
    %v9874 = vtanh.pop %v9868
    %v9875 = vtanh.pop %v9869
    %v9876 = vtanh.pop %v9870
    %v9877 = vtanh.pop %v9871
    %v9878 = vtanh.pop %v9872
    %v9879 = vtanh.pop %v9873
    %v9880 = vpack.c.bf16 %v9877, %v9874
    %v9881 = vpack.c.bf16 %v9878, %v9875
    %v9882 = vpack.c.bf16 %v9879, %v9876
    %v9884 = vsel %vm1885, %v9880, 0
    %v9887 = vsel %vm1885, %v9881, 0
    %v9890 = vsel %vm1885, %v9882, 0
    %9892 = vmatprep.subr.bf16.mxu0 %v9887
    %9893 = vmatpush1.bf16.msra.mxu0 %v9884
    %9894 = vmatprep.subr.bf16.mxu0 0
    %9895 = vmatpush1.bf16.msra.mxu0 0
    %9896 = vmatprep.subr.bf16.mxu0 0
    %9897 = vmatpush1.bf16.msra.mxu0 0
    %9898 = vmatprep.subr.bf16.mxu0 0
    %9899 = vmatpush1.bf16.msra.mxu0 0
    %9900 = vmatprep.subr.bf16.mxu0 0
    %9901 = vmatpush1.bf16.msra.mxu0 0
    %9902 = vmatprep.subr.bf16.mxu0 0
    %9903 = vmatpush1.bf16.msra.mxu0 0
    %9904 = vmatprep.subr.bf16.mxu0 0
    %9905 = vmatpush1.bf16.msra.mxu0 0
    %9906 = vmatprep.subr.bf16.mxu0 0
    %9907 = vmatpush1.bf16.msra.mxu0 0
    %9908 = vmatprep.subr.bf16.mxu0 0
    %9909 = vmatpush1.bf16.msra.mxu0 0
    %9910 = vmatprep.subr.bf16.mxu0 0
    %9911 = vmatpush1.bf16.msra.mxu0 0
    %9912 = vmatprep.subr.bf16.mxu0 0
    %9913 = vmatpush1.bf16.msra.mxu0 0
    %9914 = vmatprep.subr.bf16.mxu0 0
    %9915 = vmatpush1.bf16.msra.mxu0 0
    %9916 = vmatprep.subr.bf16.mxu0 0
    %9917 = vmatpush1.bf16.msra.mxu0 0
    %9918 = vmatprep.subr.bf16.mxu0 0
    %9919 = vmatpush1.bf16.msra.mxu0 0
    %9920 = vmatprep.subr.bf16.mxu0 0
    %9921 = vmatpush1.bf16.msra.mxu0 0
    %9922 = vmatprep.subr.bf16.mxu0 0
    %9923 = vmatpush1.bf16.msra.mxu0 0
    %9924 = vmatprep.mubr.bf16.mxu0 0
    %9925 = vmatmul.mubr.bf16.gmra.mrb[0].mxu0 %v5101
    %v9926 = vpop.f32.mrb[0].mxu0
    %v9927 = vadd.f32 0.0, %v9926
    %v9928 = vpop.f32.mrb[0].mxu0
    %v9929 = vadd.f32 0.0, %v9928
    %v9930 = vpop.f32.mrb[0].mxu0
    %v9931 = vpop.f32.mrb[0].mxu0
    %9932 = vdwg.mxu0
    %9933 = vmatprep.subr.bf16.mxu0 0
    %9934 = vmatpush1.bf16.msra.mxu0 %v9890
    %9935 = vmatprep.subr.bf16.mxu0 0
    %9936 = vmatpush1.bf16.msra.mxu0 0
    %9937 = vmatprep.subr.bf16.mxu0 0
    %9938 = vmatpush1.bf16.msra.mxu0 0
    %9939 = vmatprep.subr.bf16.mxu0 0
    %9940 = vmatpush1.bf16.msra.mxu0 0
    %9941 = vmatprep.subr.bf16.mxu0 0
    %9942 = vmatpush1.bf16.msra.mxu0 0
    %9943 = vmatprep.subr.bf16.mxu0 0
    %9944 = vmatpush1.bf16.msra.mxu0 0
    %9945 = vmatprep.subr.bf16.mxu0 0
    %9946 = vmatpush1.bf16.msra.mxu0 0
    %9947 = vmatprep.subr.bf16.mxu0 0
    %9948 = vmatpush1.bf16.msra.mxu0 0
    %9949 = vmatprep.subr.bf16.mxu0 0
    %9950 = vmatpush1.bf16.msra.mxu0 0
    %9951 = vmatprep.subr.bf16.mxu0 0
    %9952 = vmatpush1.bf16.msra.mxu0 0
    %9953 = vmatprep.subr.bf16.mxu0 0
    %9954 = vmatpush1.bf16.msra.mxu0 0
    %9955 = vmatprep.subr.bf16.mxu0 0
    %9956 = vmatpush1.bf16.msra.mxu0 0
    %9957 = vmatprep.subr.bf16.mxu0 0
    %9958 = vmatpush1.bf16.msra.mxu0 0
    %9959 = vmatprep.subr.bf16.mxu0 0
    %9960 = vmatpush1.bf16.msra.mxu0 0
    %9961 = vmatprep.subr.bf16.mxu0 0
    %9962 = vmatpush1.bf16.msra.mxu0 0
    %9963 = vmatprep.subr.bf16.mxu0 0
    %9964 = vmatpush1.bf16.msra.mxu0 0
    %9965 = vmatprep.mubr.bf16.mxu0 0
    %9966 = vmatmul.mubr.bf16.gmra.mrb[0].mxu0 %v5101
    %v9967 = vpop.f32.mrb[0].mxu0
    %v9968 = vadd.f32 0.0, %v9967
    %v9969 = vpop.f32.mrb[0].mxu0
    %v9970 = vpop.f32.mrb[0].mxu0
    %v9971 = vpop.f32.mrb[0].mxu0
    %9972 = vdwg.mxu0
    %v9973 = vadd.f32 %v6812, %v9927
    %v9974 = vadd.f32 %v6813, %v9929
    %v9975 = vadd.f32 %v6814, %v9968
    %v9976 = vtanh.pop %v9973
    %v9977 = vtanh.pop %v9974
    %v9978 = vtanh.pop %v9975
    %v9979 = vtanh.pop %v9976
    %v9980 = vtanh.pop %v9977
    %v9981 = vtanh.pop %v9978
    %s9982 = scalar_lea.vmem [#allocation22], 24
    %9983 = vst [vmem:[%s9982] sm:$0xff] %v9979
    %9984 = vst [vmem:[%s9982 + $0x8] sm:$0xff] %v9980
    %9985 = vst [vmem:[%s9982 + $0x10] sm:$0xff] %v9981
    // Predicated region
    $region90: #{model_forward.1} parent=1 // pred_check
      _
    $region91: #{model_forward.1} parent=1 // pred_check_branch
      %9987 = sbr.rel (0) target = $region93
    $region92: #{model_forward.1} parent=1 // pred_region
      %s9989 = ssub.s32 768, 768
      %9990 = vsyncadd [#allocation6], %s9989
      %s9991 = sshll.u32 [#allocation22], 4
      %s9992 = int_to_ptr.vmem [resolvable:$true] %s9991
      %9997 = dma.vmem_to_hbm [thread:$0]  %s9992, 768, %s11, [#allocation6], 384, 384, 24
    $region93: #{model_forward.1} parent=1 // pred_fallthru
      _
    // Predicated region
    $region94: #{model_forward.1} parent=1 // pred_check
      _
    $region95: #{model_forward.1} parent=1 // pred_check_branch
      %9999 = sbr.rel (0) target = $region97
    $region96: #{model_forward.1} parent=1 // pred_region
      %10000 = dma.done [#allocation6], 768
    $region97: #{model_forward.1} parent=1 // pred_fallthru
      _
    %10001 = vsyncpa [#allocation5], 1
    %10002 = vsyncpa [#allocation8], 1
    %10003 = vsyncpa [#allocation11], 1
    %10004 = vsyncpa [#allocation14], 1
    %10005 = vsyncpa [#allocation17], 1
    %10006 = vsyncpa [#allocation20], 1
    %10007 = vsyncpa [#allocation6], 1

</llo_original>
